<compile_context>
chip_gen: v6e
topology: v6e:2x2x1
jax: 0.10.0
libtpu: 0.0.40
codegen_flags: <defaults>
</compile_context>

<pallas_src>
import functools

import numpy as np
import jax
import jax.numpy as jnp
from jax.experimental import pallas as pl
from jax.experimental.pallas import tpu as pltpu

# ---- config (mirrors the SimpleNamespace driving the PyTorch module) ----
SEQ_LEN = 8
LATENT_NDIM = 32
NHEADS = 2
NLAYERS = 2
MASK_LEG = False
N_PTS = (17 - 4 + 2) if MASK_LEG else (17 + 2)   # get_n_pts
L = N_PTS * 2                                     # token axis after Embedding (38)
EPS = 1e-5


def _round_up(x, m):
    return (x + m - 1) // m * m


# ----------------------------------------------------------------------------
# Packed-slab layouts (module-level, shared by init_params and the kernel)
# ----------------------------------------------------------------------------
def _build_weight_layout():
    """bf16 weight slab: name -> (row_offset, cin, cout); rows 16-aligned."""
    d, s = LATENT_NDIM, SEQ_LEN
    entries = [("emb1", s, 4 * d), ("emb2", 4 * d, 2 * d), ("emb3", 2 * d, d)]
    for l in range(NLAYERS):
        entries += [(f"wqkv{l}", d, 3 * d), (f"wo{l}", d, d),
                    (f"wf1{l}", d, 4 * d), (f"wf2{l}", 4 * d, d)]
    layout, r = {}, 0
    for name, cin, cout in entries:
        layout[name] = (r, cin, cout)
        r = _round_up(r + cin, 16)          # bf16 sublane-tile alignment
    return layout, _round_up(r, 16)


def _build_vec_layout():
    """f32 vector slab: rows [0, D) hold the rotate_half permutation matrix,
    then one row per bias / GN / LN affine vector: name -> (row, width)."""
    d = LATENT_NDIM
    names = [("b1", 4 * d), ("g1", 4 * d), ("a1", 4 * d),
             ("b2", 2 * d), ("g2", 2 * d), ("a2", 2 * d),
             ("b3", d), ("g3", d), ("a3", d)]
    for l in range(NLAYERS):
        names += [(f"bqkv{l}", 3 * d), (f"bo{l}", d),
                  (f"ln1g{l}", d), (f"ln1b{l}", d),
                  (f"bf1{l}", 4 * d), (f"bf2{l}", d),
                  (f"ln2g{l}", d), (f"ln2b{l}", d)]
    layout, r = {}, d
    for name, width in names:
        layout[name] = (r, width)
        r += 1
    return layout, _round_up(r, 8)


W_LAYOUT, W_ROWS = _build_weight_layout()
W_COLS = 128
V_LAYOUT, V_ROWS = _build_vec_layout()
V_COLS = 128


# ----------------------------------------------------------------------------
# in-kernel helpers (all f32 VPU/EUP math; bf16 only at MXU inputs)
# ----------------------------------------------------------------------------
def _gn_silu(h, gamma, beta, fold, blkmask):
    """GroupNorm(num_groups=1) over all (token, channel) elements of each
    sample (biased var via E[x^2]-mu^2, two independent reductions), then
    per-channel affine, then SiLU.  Per-sample stats for fold>1 are recovered
    with a block-diagonal f32 matmul (no misaligned reshapes)."""
    m, c = h.shape
    n = float((m // fold) * c)
    rs = jnp.sum(h, axis=-1, keepdims=True)          # (m, 1)
    rs2 = jnp.sum(h * h, axis=-1, keepdims=True)     # (m, 1)
    if blkmask is None:                               # fold == 1
        mu = jnp.sum(rs) / n
        var = jnp.maximum(jnp.sum(rs2) / n - mu * mu, 0.0)
    else:                                             # per-sample totals at every row
        mu = jnp.dot(blkmask, rs, preferred_element_type=jnp.float32) / n
        msq = jnp.dot(blkmask, rs2, preferred_element_type=jnp.float32) / n
        var = jnp.maximum(msq - mu * mu, 0.0)
    hn = (h - mu) * jax.lax.rsqrt(var + EPS)
    hn = hn * gamma + beta
    return hn * jax.nn.sigmoid(hn)


def _layernorm(t, gamma, beta):
    c = float(t.shape[-1])
    s1 = jnp.sum(t, axis=-1, keepdims=True)
    s2 = jnp.sum(t * t, axis=-1, keepdims=True)
    mu = s1 / c
    var = jnp.maximum(s2 / c - mu * mu, 0.0)
    return (t - mu) * jax.lax.rsqrt(var + EPS) * gamma + beta


# ----------------------------------------------------------------------------
# single fused kernel: embedding conv stack + RoPE + all encoder layers
# ----------------------------------------------------------------------------
def fused_encoder_kernel(x_ref, w_ref, vec_ref, rope_ref, z_ref, *aw_refs,
                         fold):
    need_weights = len(aw_refs) > 0
    d = LATENT_NDIM
    dh = d // NHEADS
    m = fold * L                                      # folded row count (MXU M)

    def W(name):                                      # bf16 weight slice
        r, cin, cout = W_LAYOUT[name]
        return w_ref[r:r + cin, :cout]

    def V(name):                                      # f32 (1, width) vector
        r, width = V_LAYOUT[name]
        return vec_ref[r:r + 1, :width]

    # block-diagonal same-sample mask (only needed when the batch is folded)
    if fold > 1:
        ri = jax.lax.broadcasted_iota(jnp.int32, (m, m), 0)
        ci = jax.lax.broadcasted_iota(jnp.int32, (m, m), 1)
        blkmask = jnp.zeros((m, m), jnp.float32)
        for f in range(fold):
            in_r = jnp.logical_and(ri >= f * L, ri < (f + 1) * L)
            in_c = jnp.logical_and(ci >= f * L, ci < (f + 1) * L)
            blkmask = blkmask + jnp.logical_and(in_r, in_c).astype(jnp.float32)
    else:
        blkmask = None

    # ---- Embedding: 3x (Conv1d(k=1) == matmul) + GroupNorm(1) + SiLU ----
    x = x_ref[...].reshape(m, SEQ_LEN)                               # (m, S) f32
    h = _gn_silu(jnp.dot(x.astype(jnp.bfloat16), W("emb1"),
                         preferred_element_type=jnp.float32) + V("b1"),
                 V("g1"), V("a1"), fold, blkmask)                    # (m, 4D)
    h = _gn_silu(jnp.dot(h.astype(jnp.bfloat16), W("emb2"),
                         preferred_element_type=jnp.float32) + V("b2"),
                 V("g2"), V("a2"), fold, blkmask)                    # (m, 2D)
    h = _gn_silu(jnp.dot(h.astype(jnp.bfloat16), W("emb3"),
                         preferred_element_type=jnp.float32) + V("b3"),
                 V("g3"), V("a3"), fold, blkmask)                    # (m, D)

    # ---- rotary embedding (interleaved rotate_half) ----
    # rotate_half is a fixed +-1 pair-swap: one tiny f32 matmul with a constant
    # permutation matrix on the otherwise-idle MXU (no lane shuffles/selects).
    pmat = vec_ref[0:d, 0:d]                                         # (D, D) f32
    rot = jnp.dot(h, pmat, preferred_element_type=jnp.float32)
    h = h * rope_ref[0] + rot * rope_ref[1]                          # cos / sin

    # ---- transformer encoder blocks (static loop over packed layer params) --
    for l in range(NLAYERS):
        qkv = (jnp.dot(h.astype(jnp.bfloat16), W(f"wqkv{l}"),
                       preferred_element_type=jnp.float32)
               + V(f"bqkv{l}"))                                      # (m, 3D)
        qkv16 = qkv.astype(jnp.bfloat16)                             # Q already pre-scaled

        r_wo, _, _ = W_LAYOUT[f"wo{l}"]
        attn_out = V(f"bo{l}")                                       # (1, D) -> broadcast
        p_sum = None
        for hd in range(NHEADS):
            qs = qkv16[:, hd * dh:(hd + 1) * dh]                     # (m, dh)
            ks = qkv16[:, d + hd * dh:d + (hd + 1) * dh]
            vs = qkv16[:, 2 * d + hd * dh:2 * d + (hd + 1) * dh]

            s = jax.lax.dot_general(qs, ks, (((1,), (1,)), ((), ())),
                                    preferred_element_type=jnp.float32)  # (m, m)
            e = jnp.exp(s - jnp.max(s, axis=-1, keepdims=True))
            if blkmask is not None:
                e = e * blkmask                                      # kill cross-sample terms
            denom = jnp.sum(e, axis=-1, keepdims=True)
            p = e * pl.reciprocal(denom, approx=not need_weights)
            if need_weights:
                p_sum = p if p_sum is None else p_sum + p

            o = jnp.dot(p.astype(jnp.bfloat16), vs,
                        preferred_element_type=jnp.float32)          # (m, dh)
            wo_h = w_ref[r_wo + hd * dh:r_wo + (hd + 1) * dh, :d]    # (dh, D)
            attn_out = attn_out + jnp.dot(o.astype(jnp.bfloat16), wo_h,
                                          preferred_element_type=jnp.float32)

        if need_weights:
            # head-averaged attention map (nn.MultiheadAttention default)
            p_avg = p_sum * (1.0 / NHEADS)
            for f in range(fold):
                aw_refs[0][f, l, :, :] = p_avg[f * L:(f + 1) * L,
                                               f * L:(f + 1) * L]

        h = _layernorm(h + attn_out, V(f"ln1g{l}"), V(f"ln1b{l}"))

        ff = (jnp.dot(h.astype(jnp.bfloat16), W(f"wf1{l}"),
                      preferred_element_type=jnp.float32) + V(f"bf1{l}"))
        ff = ff * jax.nn.sigmoid(ff)                                 # SiLU
        ff = (jnp.dot(ff.astype(jnp.bfloat16), W(f"wf2{l}"),
                      preferred_element_type=jnp.float32) + V(f"bf2{l}"))
        h = _layernorm(h + ff, V(f"ln2g{l}"), V(f"ln2b{l}"))

    z_ref[...] = h.reshape(z_ref.shape)


# ----------------------------------------------------------------------------
# wrapper: BlockSpecs / grid (per-generation batch folding)
# ----------------------------------------------------------------------------
def fused_forward(x_bls, packed, need_weights, fold):
    b = x_bls.shape[0]
    assert fold == 1 or fold == b, "fold must be 1 or the full batch"
    d = LATENT_NDIM
    n_steps = b // fold

    rope = packed["rope"]                              # (2, L, D)
    if fold > 1:
        # one grid step per `fold` samples: batch folded into the row dim
        rope = jnp.tile(rope, (1, fold, 1))            # (2, fold*L, D)
        x_in = x_bls.reshape(b * L, SEQ_LEN)
        x_spec = pl.BlockSpec((fold * L, SEQ_LEN), lambda i: (i, 0))
        z_shape = jax.ShapeDtypeStruct((b * L, d), jnp.float32)
        z_spec = pl.BlockSpec((fold * L, d), lambda i: (i, 0))
    else:
        x_in = x_bls
        x_spec = pl.BlockSpec((1, L, SEQ_LEN), lambda i: (i, 0, 0))
        z_shape = jax.ShapeDtypeStruct((b, L, d), jnp.float32)
        z_spec = pl.BlockSpec((1, L, d), lambda i: (i, 0, 0))

    in_specs = [
        x_spec,
        pl.BlockSpec((W_ROWS, W_COLS), lambda i: (0, 0)),      # bf16 weight slab
        pl.BlockSpec((V_ROWS, V_COLS), lambda i: (0, 0)),      # f32 vector slab
        pl.BlockSpec(rope.shape, lambda i: (0, 0, 0)),         # RoPE cos/sin
    ]

    if need_weights:
        out_shape = (z_shape,
                     jax.ShapeDtypeStruct((b, NLAYERS, L, L), jnp.float32))
        out_specs = (z_spec,
                     pl.BlockSpec((fold, NLAYERS, L, L),
                                  lambda i: (i, 0, 0, 0)))
    else:
        out_shape = z_shape
        out_specs = z_spec

    res = pl.pallas_call(
        functools.partial(fused_encoder_kernel, fold=fold),
        out_shape=out_shape,
        grid=(n_steps,),
        in_specs=in_specs,
        out_specs=out_specs,
        compiler_params=pltpu.CompilerParams(
            dimension_semantics=("parallel",)),
    )(x_in, packed["w"], packed["vec"], rope)

    if need_weights:
        z, aw = res
    else:
        z, aw = res, None
    if fold > 1:
        z = z.reshape(b, L, d)
    return z, aw


# ----------------------------------------------------------------------------
# parameter init (deterministic, synthetic) -> packed slabs
# ----------------------------------------------------------------------------
def init_params(key):
    d, s = LATENT_NDIM, SEQ_LEN
    keys = iter(jax.random.split(key, 16))

    def nrm(shape, scale=0.02):
        return np.asarray(jax.random.normal(next(keys), shape, jnp.float32)) * scale

    w_slab = np.zeros((W_ROWS, W_COLS), np.float32)
    v_slab = np.zeros((V_ROWS, V_COLS), np.float32)

    def put_w(name, arr):
        r, cin, cout = W_LAYOUT[name]
        w_slab[r:r + cin, :cout] = arr

    def put_v(name, arr):
        r, width = V_LAYOUT[name]
        v_slab[r, :width] = arr

    # Embedding conv stack (Conv1d k=1 == matmul), weights transposed (C_in, C_out)
    put_w("emb1", nrm((s, 4 * d)))
    put_w("emb2", nrm((4 * d, 2 * d)))
    put_w("emb3", nrm((2 * d, d)))
    for idx, c in zip((1, 2, 3), (4 * d, 2 * d, d)):
        put_v(f"b{idx}", nrm((c,)))
        put_v(f"g{idx}", np.ones((c,), np.float32))
        put_v(f"a{idx}", np.zeros((c,), np.float32))

    dh = d // NHEADS
    scale = 1.0 / np.sqrt(dh)
    for l in range(NLAYERS):
        wqkv = nrm((d, 3 * d))
        wqkv[:, :d] *= scale          # fold 1/sqrt(dh) query scale into Wq
        put_w(f"wqkv{l}", wqkv)
        put_w(f"wo{l}", nrm((d, d)))
        put_w(f"wf1{l}", nrm((d, 4 * d)))
        put_w(f"wf2{l}", nrm((4 * d, d)))
        bqkv = np.zeros((3 * d,), np.float32)
        bqkv[:d] *= scale             # (zeros; kept for formal equivalence)
        put_v(f"bqkv{l}", bqkv)
        put_v(f"bo{l}", np.zeros((d,), np.float32))
        put_v(f"ln1g{l}", np.ones((d,), np.float32))
        put_v(f"ln1b{l}", np.zeros((d,), np.float32))
        put_v(f"bf1{l}", np.zeros((4 * d,), np.float32))
        put_v(f"bf2{l}", np.zeros((d,), np.float32))
        put_v(f"ln2g{l}", np.ones((d,), np.float32))
        put_v(f"ln2b{l}", np.zeros((d,), np.float32))

    # rotate_half permutation (interleaved pairs): P[2i+1,2i]=-1, P[2i,2i+1]=+1
    pmat = np.zeros((d, d), np.float32)
    for i in range(0, d, 2):
        pmat[i + 1, i] = -1.0
        pmat[i, i + 1] = 1.0
    v_slab[0:d, 0:d] = pmat

    # RotaryEmbedding(learned_freq=True) default init: theta=10000, interleaved repeat
    inv_freq = 1.0 / (10000.0 ** (np.arange(0, d, 2, dtype=np.float32) / d))
    t = np.arange(L, dtype=np.float32)
    ang = np.repeat(t[:, None] * inv_freq[None, :], 2, axis=-1)      # (L, D)
    rope = np.stack([np.cos(ang), np.sin(ang)], axis=0).astype(np.float32)

    return dict(w=jnp.asarray(w_slab, jnp.bfloat16),
                vec=jnp.asarray(v_slab, jnp.float32),
                rope=jnp.asarray(rope, jnp.float32))


def _fold_for_device(batch):
    """Batch folding config: fold the whole batch into one grid step on
    single-TensorCore chips (v5e/v6e); keep grid=(batch,) 'parallel' on
    multi-core chips (v7x, megacore v4/v5p) so every core gets work."""
    try:
        kind = jax.devices()[0].device_kind.lower()
    except Exception:
        kind = ""
    multi_core = any(tag in kind for tag in ("v7", "7x", "v4", "v5p"))
    return 1 if multi_core else batch


# ----------------------------------------------------------------------------
# full Encoder forward
# ----------------------------------------------------------------------------
def encoder_forward(kps, bbox, packed, is_train, fold):
    b, seq_len = kps.shape[:2]
    kps_f = kps.reshape(b, seq_len, -1)
    bbox_f = bbox.reshape(b, seq_len, -1)
    x = jnp.concatenate([kps_f, bbox_f], axis=2)                     # (b, seq, n_pts*2)
    # Conv1d(k=1) over channel(=seq_len) axis == matmul once transposed to (b, L, seq)
    x = jnp.transpose(x, (0, 2, 1)).astype(jnp.float32)
    z, attn = fused_forward(x, packed, need_weights=not is_train, fold=fold)
    return z, attn                                                   # attn is None in train


if __name__ == "__main__":
    key = jax.random.PRNGKey(0)
    kparams, kkps, kbbox = jax.random.split(key, 3)
    packed = init_params(kparams)

    b = 2
    kps = jax.random.normal(kkps, (b, SEQ_LEN, 17, 2), jnp.float32)
    bbox = jax.random.normal(kbbox, (b, SEQ_LEN, 2, 2), jnp.float32)

    fold = _fold_for_device(b)
    fwd = jax.jit(encoder_forward, static_argnums=(3, 4))

    # eval path (is_train=False): returns per-layer head-averaged attention maps
    z, attn = fwd(kps, bbox, packed, False, fold)
    jax.block_until_ready(z)
    jax.block_until_ready(attn)
    assert z.shape == (b, L, LATENT_NDIM)
    assert attn.shape == (b, NLAYERS, L, L)
    assert bool(jnp.all(jnp.isfinite(z)))
    assert bool(jnp.all(jnp.isfinite(attn)))
    # attention rows sum to 1 (exact reciprocal on the eval path)
    row_sums = jnp.sum(attn, axis=-1)
    assert bool(jnp.all(jnp.abs(row_sums - 1.0) < 1e-3))

    # train path (is_train=True): attention-weight output skipped entirely
    z_tr, attn_tr = fwd(kps, bbox, packed, True, fold)
    jax.block_until_ready(z_tr)
    assert z_tr.shape == (b, L, LATENT_NDIM)
    assert attn_tr is None
    assert bool(jnp.all(jnp.isfinite(z_tr)))

    print("KERNEL_OK")
</pallas_src>

<mosaic_0001>
module attributes {stable_mosaic.version = 11 : i64} {
  func.func @fused_encoder_kernel(%arg0: i32, %arg1: memref<76x8xf32, #tpu.memory_space<vmem>>, %arg2: memref<656x128xbf16, #tpu.memory_space<vmem>>, %arg3: memref<64x128xf32, #tpu.memory_space<vmem>>, %arg4: memref<2x76x32xf32, #tpu.memory_space<vmem>>, %arg5: memref<76x32xf32, #tpu.memory_space<vmem>>, %arg6: memref<2x2x38x38xf32, #tpu.memory_space<vmem>>) attributes {dimension_semantics = [#tpu.dimension_semantics<parallel>], iteration_bounds = array<i64: 1>, scalar_prefetch = 0 : i64, scratch_operands = 0 : i64, tpu.core_type = #tpu.core_type<tc>, window_params = [{transform_indices = @transform_0, window_bounds = array<i64: 76, 8>}, {pipeline_mode = #tpu.pipeline_mode<synchronous>, transform_indices = @transform_1, window_bounds = array<i64: 656, 128>}, {pipeline_mode = #tpu.pipeline_mode<synchronous>, transform_indices = @transform_2, window_bounds = array<i64: 64, 128>}, {pipeline_mode = #tpu.pipeline_mode<synchronous>, transform_indices = @transform_3, window_bounds = array<i64: 2, 76, 32>}, {transform_indices = @transform_4, window_bounds = array<i64: 76, 32>}, {transform_indices = @transform_5, window_bounds = array<i64: 2, 2, 38, 38>}]} {
    %0 = tpu.iota {dimensions = array<i32: 0>} : vector<76x76xi32>
    %1 = tpu.iota {dimensions = array<i32: 1>} : vector<76x76xi32>
    %cst = arith.constant 0.000000e+00 : f32
    %2 = vector.broadcast %cst : f32 to vector<76x76xf32>
    %c0_i32 = arith.constant 0 : i32
    %3 = vector.broadcast %c0_i32 : i32 to vector<76x76xi32>
    %4 = arith.cmpi sge, %0, %3 : vector<76x76xi32>
    %c38_i32 = arith.constant 38 : i32
    %5 = vector.broadcast %c38_i32 : i32 to vector<76x76xi32>
    %6 = arith.cmpi slt, %0, %5 : vector<76x76xi32>
    %7 = arith.andi %4, %6 : vector<76x76xi1>
    %c0_i32_0 = arith.constant 0 : i32
    %8 = vector.broadcast %c0_i32_0 : i32 to vector<76x76xi32>
    %9 = arith.cmpi sge, %1, %8 : vector<76x76xi32>
    %c38_i32_1 = arith.constant 38 : i32
    %10 = vector.broadcast %c38_i32_1 : i32 to vector<76x76xi32>
    %11 = arith.cmpi slt, %1, %10 : vector<76x76xi32>
    %12 = arith.andi %9, %11 : vector<76x76xi1>
    %13 = arith.andi %7, %12 : vector<76x76xi1>
    %14 = arith.extui %13 : vector<76x76xi1> to vector<76x76xi32>
    %15 = arith.sitofp %14 : vector<76x76xi32> to vector<76x76xf32>
    %16 = arith.addf %2, %15 : vector<76x76xf32>
    %c38_i32_2 = arith.constant 38 : i32
    %17 = vector.broadcast %c38_i32_2 : i32 to vector<76x76xi32>
    %18 = arith.cmpi sge, %0, %17 : vector<76x76xi32>
    %c76_i32 = arith.constant 76 : i32
    %19 = vector.broadcast %c76_i32 : i32 to vector<76x76xi32>
    %20 = arith.cmpi slt, %0, %19 : vector<76x76xi32>
    %21 = arith.andi %18, %20 : vector<76x76xi1>
    %c38_i32_3 = arith.constant 38 : i32
    %22 = vector.broadcast %c38_i32_3 : i32 to vector<76x76xi32>
    %23 = arith.cmpi sge, %1, %22 : vector<76x76xi32>
    %c76_i32_4 = arith.constant 76 : i32
    %24 = vector.broadcast %c76_i32_4 : i32 to vector<76x76xi32>
    %25 = arith.cmpi slt, %1, %24 : vector<76x76xi32>
    %26 = arith.andi %23, %25 : vector<76x76xi1>
    %27 = arith.andi %21, %26 : vector<76x76xi1>
    %28 = arith.extui %27 : vector<76x76xi1> to vector<76x76xi32>
    %29 = arith.sitofp %28 : vector<76x76xi32> to vector<76x76xf32>
    %30 = arith.addf %16, %29 : vector<76x76xf32>
    %c0 = arith.constant 0 : index
    %c0_5 = arith.constant 0 : index
    %31 = vector.load %arg1[%c0, %c0_5] : memref<76x8xf32, #tpu.memory_space<vmem>>, vector<76x8xf32>
    %32 = arith.truncf %31 : vector<76x8xf32> to vector<76x8xbf16>
    %c0_6 = arith.constant 0 : index
    %c0_7 = arith.constant 0 : index
    %33 = vector.load %arg2[%c0_6, %c0_7] : memref<656x128xbf16, #tpu.memory_space<vmem>>, vector<8x128xbf16>
    %cst_8 = arith.constant dense<0.000000e+00> : vector<76x128xf32>
    %34 = tpu.matmul %32, %33, %cst_8 {dimension_numbers = #tpu.dot_dimension_numbers<[1], [0], [0], [1], [0, 0, 1, 1], [], []>} : vector<76x8xbf16>, vector<8x128xbf16>, vector<76x128xf32> -> vector<76x128xf32>
    %c32 = arith.constant 32 : index
    %c0_9 = arith.constant 0 : index
    %35 = vector.load %arg3[%c32, %c0_9] : memref<64x128xf32, #tpu.memory_space<vmem>>, vector<1x128xf32>
    %36 = vector.broadcast %35 : vector<1x128xf32> to vector<76x128xf32>
    %37 = arith.addf %34, %36 : vector<76x128xf32>
    %c33 = arith.constant 33 : index
    %c0_10 = arith.constant 0 : index
    %38 = vector.load %arg3[%c33, %c0_10] : memref<64x128xf32, #tpu.memory_space<vmem>>, vector<1x128xf32>
    %c34 = arith.constant 34 : index
    %c0_11 = arith.constant 0 : index
    %39 = vector.load %arg3[%c34, %c0_11] : memref<64x128xf32, #tpu.memory_space<vmem>>, vector<1x128xf32>
    %cst_12 = arith.constant dense<0.000000e+00> : vector<76xf32>
    %40 = vector.multi_reduction <add>, %37, %cst_12 [1] : vector<76x128xf32> to vector<76xf32>
    %41 = vector.shape_cast %40 : vector<76xf32> to vector<76x1xf32>
    %42 = arith.mulf %37, %37 : vector<76x128xf32>
    %cst_13 = arith.constant dense<0.000000e+00> : vector<76xf32>
    %43 = vector.multi_reduction <add>, %42, %cst_13 [1] : vector<76x128xf32> to vector<76xf32>
    %44 = vector.shape_cast %43 : vector<76xf32> to vector<76x1xf32>
    %cst_14 = arith.constant dense<0.000000e+00> : vector<76x1xf32>
    %45 = tpu.matmul %30, %41, %cst_14 {dimension_numbers = #tpu.dot_dimension_numbers<[1], [0], [0], [1], [0, 0, 1, 1], [], []>} : vector<76x76xf32>, vector<76x1xf32>, vector<76x1xf32> -> vector<76x1xf32>
    %cst_15 = arith.constant 4.864000e+03 : f32
    %46 = vector.broadcast %cst_15 : f32 to vector<76x1xf32>
    %47 = arith.divf %45, %46 : vector<76x1xf32>
    %cst_16 = arith.constant dense<0.000000e+00> : vector<76x1xf32>
    %48 = tpu.matmul %30, %44, %cst_16 {dimension_numbers = #tpu.dot_dimension_numbers<[1], [0], [0], [1], [0, 0, 1, 1], [], []>} : vector<76x76xf32>, vector<76x1xf32>, vector<76x1xf32> -> vector<76x1xf32>
    %cst_17 = arith.constant 4.864000e+03 : f32
    %49 = vector.broadcast %cst_17 : f32 to vector<76x1xf32>
    %50 = arith.divf %48, %49 : vector<76x1xf32>
    %51 = arith.mulf %47, %47 : vector<76x1xf32>
    %52 = arith.subf %50, %51 : vector<76x1xf32>
    %cst_18 = arith.constant 0.000000e+00 : f32
    %53 = vector.broadcast %cst_18 : f32 to vector<76x1xf32>
    %54 = arith.maximumf %52, %53 : vector<76x1xf32>
    %55 = vector.broadcast %47 : vector<76x1xf32> to vector<76x128xf32>
    %56 = arith.subf %37, %55 : vector<76x128xf32>
    %cst_19 = arith.constant 9.99999974E-6 : f32
    %57 = vector.broadcast %cst_19 : f32 to vector<76x1xf32>
    %58 = arith.addf %54, %57 : vector<76x1xf32>
    %59 = math.rsqrt %58 : vector<76x1xf32>
    %60 = vector.broadcast %59 : vector<76x1xf32> to vector<76x128xf32>
    %61 = arith.mulf %56, %60 : vector<76x128xf32>
    %62 = vector.broadcast %38 : vector<1x128xf32> to vector<76x128xf32>
    %63 = arith.mulf %61, %62 : vector<76x128xf32>
    %64 = vector.broadcast %39 : vector<1x128xf32> to vector<76x128xf32>
    %65 = arith.addf %63, %64 : vector<76x128xf32>
    %66 = arith.negf %65 : vector<76x128xf32>
    %67 = math.exp %66 : vector<76x128xf32>
    %cst_20 = arith.constant 1.000000e+00 : f32
    %68 = vector.broadcast %cst_20 : f32 to vector<76x128xf32>
    %69 = arith.addf %68, %67 : vector<76x128xf32>
    %70 = arith.divf %68, %69 : vector<76x128xf32>
    %71 = arith.mulf %65, %70 : vector<76x128xf32>
    %72 = arith.truncf %71 : vector<76x128xf32> to vector<76x128xbf16>
    %c16 = arith.constant 16 : index
    %c0_21 = arith.constant 0 : index
    %73 = vector.load %arg2[%c16, %c0_21] : memref<656x128xbf16, #tpu.memory_space<vmem>>, vector<128x64xbf16>
    %cst_22 = arith.constant dense<0.000000e+00> : vector<76x64xf32>
    %74 = tpu.matmul %72, %73, %cst_22 {dimension_numbers = #tpu.dot_dimension_numbers<[1], [0], [0], [1], [0, 0, 1, 1], [], []>} : vector<76x128xbf16>, vector<128x64xbf16>, vector<76x64xf32> -> vector<76x64xf32>
    %c35 = arith.constant 35 : index
    %c0_23 = arith.constant 0 : index
    %75 = vector.load %arg3[%c35, %c0_23] : memref<64x128xf32, #tpu.memory_space<vmem>>, vector<1x64xf32>
    %76 = vector.broadcast %75 : vector<1x64xf32> to vector<76x64xf32>
    %77 = arith.addf %74, %76 : vector<76x64xf32>
    %c36 = arith.constant 36 : index
    %c0_24 = arith.constant 0 : index
    %78 = vector.load %arg3[%c36, %c0_24] : memref<64x128xf32, #tpu.memory_space<vmem>>, vector<1x64xf32>
    %c37 = arith.constant 37 : index
    %c0_25 = arith.constant 0 : index
    %79 = vector.load %arg3[%c37, %c0_25] : memref<64x128xf32, #tpu.memory_space<vmem>>, vector<1x64xf32>
    %cst_26 = arith.constant dense<0.000000e+00> : vector<76xf32>
    %80 = vector.multi_reduction <add>, %77, %cst_26 [1] : vector<76x64xf32> to vector<76xf32>
    %81 = vector.shape_cast %80 : vector<76xf32> to vector<76x1xf32>
    %82 = arith.mulf %77, %77 : vector<76x64xf32>
    %cst_27 = arith.constant dense<0.000000e+00> : vector<76xf32>
    %83 = vector.multi_reduction <add>, %82, %cst_27 [1] : vector<76x64xf32> to vector<76xf32>
    %84 = vector.shape_cast %83 : vector<76xf32> to vector<76x1xf32>
    %cst_28 = arith.constant dense<0.000000e+00> : vector<76x1xf32>
    %85 = tpu.matmul %30, %81, %cst_28 {dimension_numbers = #tpu.dot_dimension_numbers<[1], [0], [0], [1], [0, 0, 1, 1], [], []>} : vector<76x76xf32>, vector<76x1xf32>, vector<76x1xf32> -> vector<76x1xf32>
    %cst_29 = arith.constant 2.432000e+03 : f32
    %86 = vector.broadcast %cst_29 : f32 to vector<76x1xf32>
    %87 = arith.divf %85, %86 : vector<76x1xf32>
    %cst_30 = arith.constant dense<0.000000e+00> : vector<76x1xf32>
    %88 = tpu.matmul %30, %84, %cst_30 {dimension_numbers = #tpu.dot_dimension_numbers<[1], [0], [0], [1], [0, 0, 1, 1], [], []>} : vector<76x76xf32>, vector<76x1xf32>, vector<76x1xf32> -> vector<76x1xf32>
    %cst_31 = arith.constant 2.432000e+03 : f32
    %89 = vector.broadcast %cst_31 : f32 to vector<76x1xf32>
    %90 = arith.divf %88, %89 : vector<76x1xf32>
    %91 = arith.mulf %87, %87 : vector<76x1xf32>
    %92 = arith.subf %90, %91 : vector<76x1xf32>
    %cst_32 = arith.constant 0.000000e+00 : f32
    %93 = vector.broadcast %cst_32 : f32 to vector<76x1xf32>
    %94 = arith.maximumf %92, %93 : vector<76x1xf32>
    %95 = vector.broadcast %87 : vector<76x1xf32> to vector<76x64xf32>
    %96 = arith.subf %77, %95 : vector<76x64xf32>
    %cst_33 = arith.constant 9.99999974E-6 : f32
    %97 = vector.broadcast %cst_33 : f32 to vector<76x1xf32>
    %98 = arith.addf %94, %97 : vector<76x1xf32>
    %99 = math.rsqrt %98 : vector<76x1xf32>
    %100 = vector.broadcast %99 : vector<76x1xf32> to vector<76x64xf32>
    %101 = arith.mulf %96, %100 : vector<76x64xf32>
    %102 = vector.broadcast %78 : vector<1x64xf32> to vector<76x64xf32>
    %103 = arith.mulf %101, %102 : vector<76x64xf32>
    %104 = vector.broadcast %79 : vector<1x64xf32> to vector<76x64xf32>
    %105 = arith.addf %103, %104 : vector<76x64xf32>
    %106 = arith.negf %105 : vector<76x64xf32>
    %107 = math.exp %106 : vector<76x64xf32>
    %cst_34 = arith.constant 1.000000e+00 : f32
    %108 = vector.broadcast %cst_34 : f32 to vector<76x64xf32>
    %109 = arith.addf %108, %107 : vector<76x64xf32>
    %110 = arith.divf %108, %109 : vector<76x64xf32>
    %111 = arith.mulf %105, %110 : vector<76x64xf32>
    %112 = arith.truncf %111 : vector<76x64xf32> to vector<76x64xbf16>
    %c144 = arith.constant 144 : index
    %c0_35 = arith.constant 0 : index
    %113 = vector.load %arg2[%c144, %c0_35] : memref<656x128xbf16, #tpu.memory_space<vmem>>, vector<64x32xbf16>
    %cst_36 = arith.constant dense<0.000000e+00> : vector<76x32xf32>
    %114 = tpu.matmul %112, %113, %cst_36 {dimension_numbers = #tpu.dot_dimension_numbers<[1], [0], [0], [1], [0, 0, 1, 1], [], []>} : vector<76x64xbf16>, vector<64x32xbf16>, vector<76x32xf32> -> vector<76x32xf32>
    %c38 = arith.constant 38 : index
    %c0_37 = arith.constant 0 : index
    %115 = vector.load %arg3[%c38, %c0_37] : memref<64x128xf32, #tpu.memory_space<vmem>>, vector<1x32xf32>
    %116 = vector.broadcast %115 : vector<1x32xf32> to vector<76x32xf32>
    %117 = arith.addf %114, %116 : vector<76x32xf32>
    %c39 = arith.constant 39 : index
    %c0_38 = arith.constant 0 : index
    %118 = vector.load %arg3[%c39, %c0_38] : memref<64x128xf32, #tpu.memory_space<vmem>>, vector<1x32xf32>
    %c40 = arith.constant 40 : index
    %c0_39 = arith.constant 0 : index
    %119 = vector.load %arg3[%c40, %c0_39] : memref<64x128xf32, #tpu.memory_space<vmem>>, vector<1x32xf32>
    %cst_40 = arith.constant dense<0.000000e+00> : vector<76xf32>
    %120 = vector.multi_reduction <add>, %117, %cst_40 [1] : vector<76x32xf32> to vector<76xf32>
    %121 = vector.shape_cast %120 : vector<76xf32> to vector<76x1xf32>
    %122 = arith.mulf %117, %117 : vector<76x32xf32>
    %cst_41 = arith.constant dense<0.000000e+00> : vector<76xf32>
    %123 = vector.multi_reduction <add>, %122, %cst_41 [1] : vector<76x32xf32> to vector<76xf32>
    %124 = vector.shape_cast %123 : vector<76xf32> to vector<76x1xf32>
    %cst_42 = arith.constant dense<0.000000e+00> : vector<76x1xf32>
    %125 = tpu.matmul %30, %121, %cst_42 {dimension_numbers = #tpu.dot_dimension_numbers<[1], [0], [0], [1], [0, 0, 1, 1], [], []>} : vector<76x76xf32>, vector<76x1xf32>, vector<76x1xf32> -> vector<76x1xf32>
    %cst_43 = arith.constant 1.216000e+03 : f32
    %126 = vector.broadcast %cst_43 : f32 to vector<76x1xf32>
    %127 = arith.divf %125, %126 : vector<76x1xf32>
    %cst_44 = arith.constant dense<0.000000e+00> : vector<76x1xf32>
    %128 = tpu.matmul %30, %124, %cst_44 {dimension_numbers = #tpu.dot_dimension_numbers<[1], [0], [0], [1], [0, 0, 1, 1], [], []>} : vector<76x76xf32>, vector<76x1xf32>, vector<76x1xf32> -> vector<76x1xf32>
    %cst_45 = arith.constant 1.216000e+03 : f32
    %129 = vector.broadcast %cst_45 : f32 to vector<76x1xf32>
    %130 = arith.divf %128, %129 : vector<76x1xf32>
    %131 = arith.mulf %127, %127 : vector<76x1xf32>
    %132 = arith.subf %130, %131 : vector<76x1xf32>
    %cst_46 = arith.constant 0.000000e+00 : f32
    %133 = vector.broadcast %cst_46 : f32 to vector<76x1xf32>
    %134 = arith.maximumf %132, %133 : vector<76x1xf32>
    %135 = vector.broadcast %127 : vector<76x1xf32> to vector<76x32xf32>
    %136 = arith.subf %117, %135 : vector<76x32xf32>
    %cst_47 = arith.constant 9.99999974E-6 : f32
    %137 = vector.broadcast %cst_47 : f32 to vector<76x1xf32>
    %138 = arith.addf %134, %137 : vector<76x1xf32>
    %139 = math.rsqrt %138 : vector<76x1xf32>
    %140 = vector.broadcast %139 : vector<76x1xf32> to vector<76x32xf32>
    %141 = arith.mulf %136, %140 : vector<76x32xf32>
    %142 = vector.broadcast %118 : vector<1x32xf32> to vector<76x32xf32>
    %143 = arith.mulf %141, %142 : vector<76x32xf32>
    %144 = vector.broadcast %119 : vector<1x32xf32> to vector<76x32xf32>
    %145 = arith.addf %143, %144 : vector<76x32xf32>
    %146 = arith.negf %145 : vector<76x32xf32>
    %147 = math.exp %146 : vector<76x32xf32>
    %cst_48 = arith.constant 1.000000e+00 : f32
    %148 = vector.broadcast %cst_48 : f32 to vector<76x32xf32>
    %149 = arith.addf %148, %147 : vector<76x32xf32>
    %150 = arith.divf %148, %149 : vector<76x32xf32>
    %151 = arith.mulf %145, %150 : vector<76x32xf32>
    %c0_49 = arith.constant 0 : index
    %c0_50 = arith.constant 0 : index
    %152 = vector.load %arg3[%c0_49, %c0_50] : memref<64x128xf32, #tpu.memory_space<vmem>>, vector<32x32xf32>
    %cst_51 = arith.constant dense<0.000000e+00> : vector<76x32xf32>
    %153 = tpu.matmul %151, %152, %cst_51 {dimension_numbers = #tpu.dot_dimension_numbers<[1], [0], [0], [1], [0, 0, 1, 1], [], []>} : vector<76x32xf32>, vector<32x32xf32>, vector<76x32xf32> -> vector<76x32xf32>
    %c0_52 = arith.constant 0 : index
    %c0_53 = arith.constant 0 : index
    %c0_54 = arith.constant 0 : index
    %154 = vector.load %arg4[%c0_52, %c0_53, %c0_54] : memref<2x76x32xf32, #tpu.memory_space<vmem>>, vector<1x76x32xf32>
    %155 = vector.shape_cast %154 : vector<1x76x32xf32> to vector<76x32xf32>
    %156 = arith.mulf %151, %155 : vector<76x32xf32>
    %c1 = arith.constant 1 : index
    %c0_55 = arith.constant 0 : index
    %c0_56 = arith.constant 0 : index
    %157 = vector.load %arg4[%c1, %c0_55, %c0_56] : memref<2x76x32xf32, #tpu.memory_space<vmem>>, vector<1x76x32xf32>
    %158 = vector.shape_cast %157 : vector<1x76x32xf32> to vector<76x32xf32>
    %159 = arith.mulf %153, %158 : vector<76x32xf32>
    %160 = arith.addf %156, %159 : vector<76x32xf32>
    %161 = arith.truncf %160 : vector<76x32xf32> to vector<76x32xbf16>
    %c208 = arith.constant 208 : index
    %c0_57 = arith.constant 0 : index
    %162 = vector.load %arg2[%c208, %c0_57] : memref<656x128xbf16, #tpu.memory_space<vmem>>, vector<32x96xbf16>
    %cst_58 = arith.constant dense<0.000000e+00> : vector<76x96xf32>
    %163 = tpu.matmul %161, %162, %cst_58 {dimension_numbers = #tpu.dot_dimension_numbers<[1], [0], [0], [1], [0, 0, 1, 1], [], []>} : vector<76x32xbf16>, vector<32x96xbf16>, vector<76x96xf32> -> vector<76x96xf32>
    %c41 = arith.constant 41 : index
    %c0_59 = arith.constant 0 : index
    %164 = vector.load %arg3[%c41, %c0_59] : memref<64x128xf32, #tpu.memory_space<vmem>>, vector<1x96xf32>
    %165 = vector.broadcast %164 : vector<1x96xf32> to vector<76x96xf32>
    %166 = arith.addf %163, %165 : vector<76x96xf32>
    %167 = arith.truncf %166 : vector<76x96xf32> to vector<76x96xbf16>
    %c42 = arith.constant 42 : index
    %c0_60 = arith.constant 0 : index
    %168 = vector.load %arg3[%c42, %c0_60] : memref<64x128xf32, #tpu.memory_space<vmem>>, vector<1x32xf32>
    %169 = vector.extract_strided_slice %167 {offsets = [0, 0], sizes = [76, 16], strides = [1, 1]} : vector<76x96xbf16> to vector<76x16xbf16>
    %170 = vector.extract_strided_slice %167 {offsets = [0, 32], sizes = [76, 16], strides = [1, 1]} : vector<76x96xbf16> to vector<76x16xbf16>
    %171 = vector.extract_strided_slice %167 {offsets = [0, 64], sizes = [76, 16], strides = [1, 1]} : vector<76x96xbf16> to vector<76x16xbf16>
    %cst_61 = arith.constant dense<0.000000e+00> : vector<76x76xf32>
    %172 = tpu.matmul %169, %170, %cst_61 {dimension_numbers = #tpu.dot_dimension_numbers<[1], [1], [0], [0], [0, 0, 1, 0], [], []>} : vector<76x16xbf16>, vector<76x16xbf16>, vector<76x76xf32> -> vector<76x76xf32>
    %cst_62 = arith.constant dense<0xFF800000> : vector<76xf32>
    %173 = vector.multi_reduction <maximumf>, %172, %cst_62 [1] : vector<76x76xf32> to vector<76xf32>
    %174 = vector.shape_cast %173 : vector<76xf32> to vector<76x1xf32>
    %175 = vector.broadcast %174 : vector<76x1xf32> to vector<76x76xf32>
    %176 = arith.subf %172, %175 : vector<76x76xf32>
    %177 = math.exp %176 : vector<76x76xf32>
    %178 = arith.mulf %177, %30 : vector<76x76xf32>
    %cst_63 = arith.constant dense<0.000000e+00> : vector<76xf32>
    %179 = vector.multi_reduction <add>, %178, %cst_63 [1] : vector<76x76xf32> to vector<76xf32>
    %180 = vector.shape_cast %179 : vector<76xf32> to vector<76x1xf32>
    %181 = tpu.reciprocal %180 : vector<76x1xf32> -> vector<76x1xf32>
    %182 = vector.broadcast %181 : vector<76x1xf32> to vector<76x76xf32>
    %183 = arith.mulf %178, %182 : vector<76x76xf32>
    %184 = arith.truncf %183 : vector<76x76xf32> to vector<76x76xbf16>
    %cst_64 = arith.constant dense<0.000000e+00> : vector<76x16xf32>
    %185 = tpu.matmul %184, %171, %cst_64 {dimension_numbers = #tpu.dot_dimension_numbers<[1], [0], [0], [1], [0, 0, 1, 1], [], []>} : vector<76x76xbf16>, vector<76x16xbf16>, vector<76x16xf32> -> vector<76x16xf32>
    %c240 = arith.constant 240 : index
    %c0_65 = arith.constant 0 : index
    %186 = vector.load %arg2[%c240, %c0_65] : memref<656x128xbf16, #tpu.memory_space<vmem>>, vector<16x32xbf16>
    %187 = arith.truncf %185 : vector<76x16xf32> to vector<76x16xbf16>
    %cst_66 = arith.constant dense<0.000000e+00> : vector<76x32xf32>
    %188 = tpu.matmul %187, %186, %cst_66 {dimension_numbers = #tpu.dot_dimension_numbers<[1], [0], [0], [1], [0, 0, 1, 1], [], []>} : vector<76x16xbf16>, vector<16x32xbf16>, vector<76x32xf32> -> vector<76x32xf32>
    %189 = vector.broadcast %168 : vector<1x32xf32> to vector<76x32xf32>
    %190 = arith.addf %189, %188 : vector<76x32xf32>
    %191 = vector.extract_strided_slice %167 {offsets = [0, 16], sizes = [76, 16], strides = [1, 1]} : vector<76x96xbf16> to vector<76x16xbf16>
    %192 = vector.extract_strided_slice %167 {offsets = [0, 48], sizes = [76, 16], strides = [1, 1]} : vector<76x96xbf16> to vector<76x16xbf16>
    %193 = vector.extract_strided_slice %167 {offsets = [0, 80], sizes = [76, 16], strides = [1, 1]} : vector<76x96xbf16> to vector<76x16xbf16>
    %cst_67 = arith.constant dense<0.000000e+00> : vector<76x76xf32>
    %194 = tpu.matmul %191, %192, %cst_67 {dimension_numbers = #tpu.dot_dimension_numbers<[1], [1], [0], [0], [0, 0, 1, 0], [], []>} : vector<76x16xbf16>, vector<76x16xbf16>, vector<76x76xf32> -> vector<76x76xf32>
    %cst_68 = arith.constant dense<0xFF800000> : vector<76xf32>
    %195 = vector.multi_reduction <maximumf>, %194, %cst_68 [1] : vector<76x76xf32> to vector<76xf32>
    %196 = vector.shape_cast %195 : vector<76xf32> to vector<76x1xf32>
    %197 = vector.broadcast %196 : vector<76x1xf32> to vector<76x76xf32>
    %198 = arith.subf %194, %197 : vector<76x76xf32>
    %199 = math.exp %198 : vector<76x76xf32>
    %200 = arith.mulf %199, %30 : vector<76x76xf32>
    %cst_69 = arith.constant dense<0.000000e+00> : vector<76xf32>
    %201 = vector.multi_reduction <add>, %200, %cst_69 [1] : vector<76x76xf32> to vector<76xf32>
    %202 = vector.shape_cast %201 : vector<76xf32> to vector<76x1xf32>
    %203 = tpu.reciprocal %202 : vector<76x1xf32> -> vector<76x1xf32>
    %204 = vector.broadcast %203 : vector<76x1xf32> to vector<76x76xf32>
    %205 = arith.mulf %200, %204 : vector<76x76xf32>
    %206 = arith.addf %183, %205 : vector<76x76xf32>
    %207 = arith.truncf %205 : vector<76x76xf32> to vector<76x76xbf16>
    %cst_70 = arith.constant dense<0.000000e+00> : vector<76x16xf32>
    %208 = tpu.matmul %207, %193, %cst_70 {dimension_numbers = #tpu.dot_dimension_numbers<[1], [0], [0], [1], [0, 0, 1, 1], [], []>} : vector<76x76xbf16>, vector<76x16xbf16>, vector<76x16xf32> -> vector<76x16xf32>
    %c256 = arith.constant 256 : index
    %c0_71 = arith.constant 0 : index
    %209 = vector.load %arg2[%c256, %c0_71] : memref<656x128xbf16, #tpu.memory_space<vmem>>, vector<16x32xbf16>
    %210 = arith.truncf %208 : vector<76x16xf32> to vector<76x16xbf16>
    %cst_72 = arith.constant dense<0.000000e+00> : vector<76x32xf32>
    %211 = tpu.matmul %210, %209, %cst_72 {dimension_numbers = #tpu.dot_dimension_numbers<[1], [0], [0], [1], [0, 0, 1, 1], [], []>} : vector<76x16xbf16>, vector<16x32xbf16>, vector<76x32xf32> -> vector<76x32xf32>
    %212 = arith.addf %190, %211 : vector<76x32xf32>
    %cst_73 = arith.constant 5.000000e-01 : f32
    %213 = vector.broadcast %cst_73 : f32 to vector<76x76xf32>
    %214 = arith.mulf %206, %213 : vector<76x76xf32>
    %215 = vector.extract_strided_slice %214 {offsets = [0, 0], sizes = [38, 38], strides = [1, 1]} : vector<76x76xf32> to vector<38x38xf32>
    %c0_74 = arith.constant 0 : index
    %c0_75 = arith.constant 0 : index
    %c0_76 = arith.constant 0 : index
    %c0_77 = arith.constant 0 : index
    %216 = vector.load %arg6[%c0_74, %c0_75, %c0_76, %c0_77] : memref<2x2x38x38xf32, #tpu.memory_space<vmem>>, vector<1x1x38x38xf32>
    %217 = vector.shape_cast %216 : vector<1x1x38x38xf32> to vector<38x38xf32>
    %218 = vector.shape_cast %215 : vector<38x38xf32> to vector<1x1x38x38xf32>
    tpu.vector_store %arg6[%c0_74, %c0_75, %c0_76, %c0_77], %218 {strides = array<i32>} : memref<2x2x38x38xf32, #tpu.memory_space<vmem>>, vector<1x1x38x38xf32>,
    %219 = vector.extract_strided_slice %214 {offsets = [38, 38], sizes = [38, 38], strides = [1, 1]} : vector<76x76xf32> to vector<38x38xf32>
    %c1_78 = arith.constant 1 : index
    %c0_79 = arith.constant 0 : index
    %c0_80 = arith.constant 0 : index
    %c0_81 = arith.constant 0 : index
    %220 = vector.load %arg6[%c1_78, %c0_79, %c0_80, %c0_81] : memref<2x2x38x38xf32, #tpu.memory_space<vmem>>, vector<1x1x38x38xf32>
    %221 = vector.shape_cast %220 : vector<1x1x38x38xf32> to vector<38x38xf32>
    %222 = vector.shape_cast %219 : vector<38x38xf32> to vector<1x1x38x38xf32>
    tpu.vector_store %arg6[%c1_78, %c0_79, %c0_80, %c0_81], %222 {strides = array<i32>} : memref<2x2x38x38xf32, #tpu.memory_space<vmem>>, vector<1x1x38x38xf32>,
    %223 = arith.addf %160, %212 : vector<76x32xf32>
    %c43 = arith.constant 43 : index
    %c0_82 = arith.constant 0 : index
    %224 = vector.load %arg3[%c43, %c0_82] : memref<64x128xf32, #tpu.memory_space<vmem>>, vector<1x32xf32>
    %c44 = arith.constant 44 : index
    %c0_83 = arith.constant 0 : index
    %225 = vector.load %arg3[%c44, %c0_83] : memref<64x128xf32, #tpu.memory_space<vmem>>, vector<1x32xf32>
    %cst_84 = arith.constant dense<0.000000e+00> : vector<76xf32>
    %226 = vector.multi_reduction <add>, %223, %cst_84 [1] : vector<76x32xf32> to vector<76xf32>
    %227 = vector.shape_cast %226 : vector<76xf32> to vector<76x1xf32>
    %228 = arith.mulf %223, %223 : vector<76x32xf32>
    %cst_85 = arith.constant dense<0.000000e+00> : vector<76xf32>
    %229 = vector.multi_reduction <add>, %228, %cst_85 [1] : vector<76x32xf32> to vector<76xf32>
    %230 = vector.shape_cast %229 : vector<76xf32> to vector<76x1xf32>
    %cst_86 = arith.constant 3.200000e+01 : f32
    %231 = vector.broadcast %cst_86 : f32 to vector<76x1xf32>
    %232 = arith.divf %227, %231 : vector<76x1xf32>
    %cst_87 = arith.constant 3.200000e+01 : f32
    %233 = vector.broadcast %cst_87 : f32 to vector<76x1xf32>
    %234 = arith.divf %230, %233 : vector<76x1xf32>
    %235 = arith.mulf %232, %232 : vector<76x1xf32>
    %236 = arith.subf %234, %235 : vector<76x1xf32>
    %cst_88 = arith.constant 0.000000e+00 : f32
    %237 = vector.broadcast %cst_88 : f32 to vector<76x1xf32>
    %238 = arith.maximumf %236, %237 : vector<76x1xf32>
    %239 = vector.broadcast %232 : vector<76x1xf32> to vector<76x32xf32>
    %240 = arith.subf %223, %239 : vector<76x32xf32>
    %cst_89 = arith.constant 9.99999974E-6 : f32
    %241 = vector.broadcast %cst_89 : f32 to vector<76x1xf32>
    %242 = arith.addf %238, %241 : vector<76x1xf32>
    %243 = math.rsqrt %242 : vector<76x1xf32>
    %244 = vector.broadcast %243 : vector<76x1xf32> to vector<76x32xf32>
    %245 = arith.mulf %240, %244 : vector<76x32xf32>
    %246 = vector.broadcast %224 : vector<1x32xf32> to vector<76x32xf32>
    %247 = arith.mulf %245, %246 : vector<76x32xf32>
    %248 = vector.broadcast %225 : vector<1x32xf32> to vector<76x32xf32>
    %249 = arith.addf %247, %248 : vector<76x32xf32>
    %250 = arith.truncf %249 : vector<76x32xf32> to vector<76x32xbf16>
    %c272 = arith.constant 272 : index
    %c0_90 = arith.constant 0 : index
    %251 = vector.load %arg2[%c272, %c0_90] : memref<656x128xbf16, #tpu.memory_space<vmem>>, vector<32x128xbf16>
    %cst_91 = arith.constant dense<0.000000e+00> : vector<76x128xf32>
    %252 = tpu.matmul %250, %251, %cst_91 {dimension_numbers = #tpu.dot_dimension_numbers<[1], [0], [0], [1], [0, 0, 1, 1], [], []>} : vector<76x32xbf16>, vector<32x128xbf16>, vector<76x128xf32> -> vector<76x128xf32>
    %c45 = arith.constant 45 : index
    %c0_92 = arith.constant 0 : index
    %253 = vector.load %arg3[%c45, %c0_92] : memref<64x128xf32, #tpu.memory_space<vmem>>, vector<1x128xf32>
    %254 = vector.broadcast %253 : vector<1x128xf32> to vector<76x128xf32>
    %255 = arith.addf %252, %254 : vector<76x128xf32>
    %256 = arith.negf %255 : vector<76x128xf32>
    %257 = math.exp %256 : vector<76x128xf32>
    %cst_93 = arith.constant 1.000000e+00 : f32
    %258 = vector.broadcast %cst_93 : f32 to vector<76x128xf32>
    %259 = arith.addf %258, %257 : vector<76x128xf32>
    %260 = arith.divf %258, %259 : vector<76x128xf32>
    %261 = arith.mulf %255, %260 : vector<76x128xf32>
    %262 = arith.truncf %261 : vector<76x128xf32> to vector<76x128xbf16>
    %c304 = arith.constant 304 : index
    %c0_94 = arith.constant 0 : index
    %263 = vector.load %arg2[%c304, %c0_94] : memref<656x128xbf16, #tpu.memory_space<vmem>>, vector<128x32xbf16>
    %cst_95 = arith.constant dense<0.000000e+00> : vector<76x32xf32>
    %264 = tpu.matmul %262, %263, %cst_95 {dimension_numbers = #tpu.dot_dimension_numbers<[1], [0], [0], [1], [0, 0, 1, 1], [], []>} : vector<76x128xbf16>, vector<128x32xbf16>, vector<76x32xf32> -> vector<76x32xf32>
    %c46 = arith.constant 46 : index
    %c0_96 = arith.constant 0 : index
    %265 = vector.load %arg3[%c46, %c0_96] : memref<64x128xf32, #tpu.memory_space<vmem>>, vector<1x32xf32>
    %266 = vector.broadcast %265 : vector<1x32xf32> to vector<76x32xf32>
    %267 = arith.addf %264, %266 : vector<76x32xf32>
    %268 = arith.addf %249, %267 : vector<76x32xf32>
    %c47 = arith.constant 47 : index
    %c0_97 = arith.constant 0 : index
    %269 = vector.load %arg3[%c47, %c0_97] : memref<64x128xf32, #tpu.memory_space<vmem>>, vector<1x32xf32>
    %c48 = arith.constant 48 : index
    %c0_98 = arith.constant 0 : index
    %270 = vector.load %arg3[%c48, %c0_98] : memref<64x128xf32, #tpu.memory_space<vmem>>, vector<1x32xf32>
    %cst_99 = arith.constant dense<0.000000e+00> : vector<76xf32>
    %271 = vector.multi_reduction <add>, %268, %cst_99 [1] : vector<76x32xf32> to vector<76xf32>
    %272 = vector.shape_cast %271 : vector<76xf32> to vector<76x1xf32>
    %273 = arith.mulf %268, %268 : vector<76x32xf32>
    %cst_100 = arith.constant dense<0.000000e+00> : vector<76xf32>
    %274 = vector.multi_reduction <add>, %273, %cst_100 [1] : vector<76x32xf32> to vector<76xf32>
    %275 = vector.shape_cast %274 : vector<76xf32> to vector<76x1xf32>
    %cst_101 = arith.constant 3.200000e+01 : f32
    %276 = vector.broadcast %cst_101 : f32 to vector<76x1xf32>
    %277 = arith.divf %272, %276 : vector<76x1xf32>
    %cst_102 = arith.constant 3.200000e+01 : f32
    %278 = vector.broadcast %cst_102 : f32 to vector<76x1xf32>
    %279 = arith.divf %275, %278 : vector<76x1xf32>
    %280 = arith.mulf %277, %277 : vector<76x1xf32>
    %281 = arith.subf %279, %280 : vector<76x1xf32>
    %cst_103 = arith.constant 0.000000e+00 : f32
    %282 = vector.broadcast %cst_103 : f32 to vector<76x1xf32>
    %283 = arith.maximumf %281, %282 : vector<76x1xf32>
    %284 = vector.broadcast %277 : vector<76x1xf32> to vector<76x32xf32>
    %285 = arith.subf %268, %284 : vector<76x32xf32>
    %cst_104 = arith.constant 9.99999974E-6 : f32
    %286 = vector.broadcast %cst_104 : f32 to vector<76x1xf32>
    %287 = arith.addf %283, %286 : vector<76x1xf32>
    %288 = math.rsqrt %287 : vector<76x1xf32>
    %289 = vector.broadcast %288 : vector<76x1xf32> to vector<76x32xf32>
    %290 = arith.mulf %285, %289 : vector<76x32xf32>
    %291 = vector.broadcast %269 : vector<1x32xf32> to vector<76x32xf32>
    %292 = arith.mulf %290, %291 : vector<76x32xf32>
    %293 = vector.broadcast %270 : vector<1x32xf32> to vector<76x32xf32>
    %294 = arith.addf %292, %293 : vector<76x32xf32>
    %295 = arith.truncf %294 : vector<76x32xf32> to vector<76x32xbf16>
    %c432 = arith.constant 432 : index
    %c0_105 = arith.constant 0 : index
    %296 = vector.load %arg2[%c432, %c0_105] : memref<656x128xbf16, #tpu.memory_space<vmem>>, vector<32x96xbf16>
    %cst_106 = arith.constant dense<0.000000e+00> : vector<76x96xf32>
    %297 = tpu.matmul %295, %296, %cst_106 {dimension_numbers = #tpu.dot_dimension_numbers<[1], [0], [0], [1], [0, 0, 1, 1], [], []>} : vector<76x32xbf16>, vector<32x96xbf16>, vector<76x96xf32> -> vector<76x96xf32>
    %c49 = arith.constant 49 : index
    %c0_107 = arith.constant 0 : index
    %298 = vector.load %arg3[%c49, %c0_107] : memref<64x128xf32, #tpu.memory_space<vmem>>, vector<1x96xf32>
    %299 = vector.broadcast %298 : vector<1x96xf32> to vector<76x96xf32>
    %300 = arith.addf %297, %299 : vector<76x96xf32>
    %301 = arith.truncf %300 : vector<76x96xf32> to vector<76x96xbf16>
    %c50 = arith.constant 50 : index
    %c0_108 = arith.constant 0 : index
    %302 = vector.load %arg3[%c50, %c0_108] : memref<64x128xf32, #tpu.memory_space<vmem>>, vector<1x32xf32>
    %303 = vector.extract_strided_slice %301 {offsets = [0, 0], sizes = [76, 16], strides = [1, 1]} : vector<76x96xbf16> to vector<76x16xbf16>
    %304 = vector.extract_strided_slice %301 {offsets = [0, 32], sizes = [76, 16], strides = [1, 1]} : vector<76x96xbf16> to vector<76x16xbf16>
    %305 = vector.extract_strided_slice %301 {offsets = [0, 64], sizes = [76, 16], strides = [1, 1]} : vector<76x96xbf16> to vector<76x16xbf16>
    %cst_109 = arith.constant dense<0.000000e+00> : vector<76x76xf32>
    %306 = tpu.matmul %303, %304, %cst_109 {dimension_numbers = #tpu.dot_dimension_numbers<[1], [1], [0], [0], [0, 0, 1, 0], [], []>} : vector<76x16xbf16>, vector<76x16xbf16>, vector<76x76xf32> -> vector<76x76xf32>
    %cst_110 = arith.constant dense<0xFF800000> : vector<76xf32>
    %307 = vector.multi_reduction <maximumf>, %306, %cst_110 [1] : vector<76x76xf32> to vector<76xf32>
    %308 = vector.shape_cast %307 : vector<76xf32> to vector<76x1xf32>
    %309 = vector.broadcast %308 : vector<76x1xf32> to vector<76x76xf32>
    %310 = arith.subf %306, %309 : vector<76x76xf32>
    %311 = math.exp %310 : vector<76x76xf32>
    %312 = arith.mulf %311, %30 : vector<76x76xf32>
    %cst_111 = arith.constant dense<0.000000e+00> : vector<76xf32>
    %313 = vector.multi_reduction <add>, %312, %cst_111 [1] : vector<76x76xf32> to vector<76xf32>
    %314 = vector.shape_cast %313 : vector<76xf32> to vector<76x1xf32>
    %315 = tpu.reciprocal %314 : vector<76x1xf32> -> vector<76x1xf32>
    %316 = vector.broadcast %315 : vector<76x1xf32> to vector<76x76xf32>
    %317 = arith.mulf %312, %316 : vector<76x76xf32>
    %318 = arith.truncf %317 : vector<76x76xf32> to vector<76x76xbf16>
    %cst_112 = arith.constant dense<0.000000e+00> : vector<76x16xf32>
    %319 = tpu.matmul %318, %305, %cst_112 {dimension_numbers = #tpu.dot_dimension_numbers<[1], [0], [0], [1], [0, 0, 1, 1], [], []>} : vector<76x76xbf16>, vector<76x16xbf16>, vector<76x16xf32> -> vector<76x16xf32>
    %c464 = arith.constant 464 : index
    %c0_113 = arith.constant 0 : index
    %320 = vector.load %arg2[%c464, %c0_113] : memref<656x128xbf16, #tpu.memory_space<vmem>>, vector<16x32xbf16>
    %321 = arith.truncf %319 : vector<76x16xf32> to vector<76x16xbf16>
    %cst_114 = arith.constant dense<0.000000e+00> : vector<76x32xf32>
    %322 = tpu.matmul %321, %320, %cst_114 {dimension_numbers = #tpu.dot_dimension_numbers<[1], [0], [0], [1], [0, 0, 1, 1], [], []>} : vector<76x16xbf16>, vector<16x32xbf16>, vector<76x32xf32> -> vector<76x32xf32>
    %323 = vector.broadcast %302 : vector<1x32xf32> to vector<76x32xf32>
    %324 = arith.addf %323, %322 : vector<76x32xf32>
    %325 = vector.extract_strided_slice %301 {offsets = [0, 16], sizes = [76, 16], strides = [1, 1]} : vector<76x96xbf16> to vector<76x16xbf16>
    %326 = vector.extract_strided_slice %301 {offsets = [0, 48], sizes = [76, 16], strides = [1, 1]} : vector<76x96xbf16> to vector<76x16xbf16>
    %327 = vector.extract_strided_slice %301 {offsets = [0, 80], sizes = [76, 16], strides = [1, 1]} : vector<76x96xbf16> to vector<76x16xbf16>
    %cst_115 = arith.constant dense<0.000000e+00> : vector<76x76xf32>
    %328 = tpu.matmul %325, %326, %cst_115 {dimension_numbers = #tpu.dot_dimension_numbers<[1], [1], [0], [0], [0, 0, 1, 0], [], []>} : vector<76x16xbf16>, vector<76x16xbf16>, vector<76x76xf32> -> vector<76x76xf32>
    %cst_116 = arith.constant dense<0xFF800000> : vector<76xf32>
    %329 = vector.multi_reduction <maximumf>, %328, %cst_116 [1] : vector<76x76xf32> to vector<76xf32>
    %330 = vector.shape_cast %329 : vector<76xf32> to vector<76x1xf32>
    %331 = vector.broadcast %330 : vector<76x1xf32> to vector<76x76xf32>
    %332 = arith.subf %328, %331 : vector<76x76xf32>
    %333 = math.exp %332 : vector<76x76xf32>
    %334 = arith.mulf %333, %30 : vector<76x76xf32>
    %cst_117 = arith.constant dense<0.000000e+00> : vector<76xf32>
    %335 = vector.multi_reduction <add>, %334, %cst_117 [1] : vector<76x76xf32> to vector<76xf32>
    %336 = vector.shape_cast %335 : vector<76xf32> to vector<76x1xf32>
    %337 = tpu.reciprocal %336 : vector<76x1xf32> -> vector<76x1xf32>
    %338 = vector.broadcast %337 : vector<76x1xf32> to vector<76x76xf32>
    %339 = arith.mulf %334, %338 : vector<76x76xf32>
    %340 = arith.addf %317, %339 : vector<76x76xf32>
    %341 = arith.truncf %339 : vector<76x76xf32> to vector<76x76xbf16>
    %cst_118 = arith.constant dense<0.000000e+00> : vector<76x16xf32>
    %342 = tpu.matmul %341, %327, %cst_118 {dimension_numbers = #tpu.dot_dimension_numbers<[1], [0], [0], [1], [0, 0, 1, 1], [], []>} : vector<76x76xbf16>, vector<76x16xbf16>, vector<76x16xf32> -> vector<76x16xf32>
    %c480 = arith.constant 480 : index
    %c0_119 = arith.constant 0 : index
    %343 = vector.load %arg2[%c480, %c0_119] : memref<656x128xbf16, #tpu.memory_space<vmem>>, vector<16x32xbf16>
    %344 = arith.truncf %342 : vector<76x16xf32> to vector<76x16xbf16>
    %cst_120 = arith.constant dense<0.000000e+00> : vector<76x32xf32>
    %345 = tpu.matmul %344, %343, %cst_120 {dimension_numbers = #tpu.dot_dimension_numbers<[1], [0], [0], [1], [0, 0, 1, 1], [], []>} : vector<76x16xbf16>, vector<16x32xbf16>, vector<76x32xf32> -> vector<76x32xf32>
    %346 = arith.addf %324, %345 : vector<76x32xf32>
    %cst_121 = arith.constant 5.000000e-01 : f32
    %347 = vector.broadcast %cst_121 : f32 to vector<76x76xf32>
    %348 = arith.mulf %340, %347 : vector<76x76xf32>
    %349 = vector.extract_strided_slice %348 {offsets = [0, 0], sizes = [38, 38], strides = [1, 1]} : vector<76x76xf32> to vector<38x38xf32>
    %c0_122 = arith.constant 0 : index
    %c1_123 = arith.constant 1 : index
    %c0_124 = arith.constant 0 : index
    %c0_125 = arith.constant 0 : index
    %350 = vector.load %arg6[%c0_122, %c1_123, %c0_124, %c0_125] : memref<2x2x38x38xf32, #tpu.memory_space<vmem>>, vector<1x1x38x38xf32>
    %351 = vector.shape_cast %350 : vector<1x1x38x38xf32> to vector<38x38xf32>
    %352 = vector.shape_cast %349 : vector<38x38xf32> to vector<1x1x38x38xf32>
    tpu.vector_store %arg6[%c0_122, %c1_123, %c0_124, %c0_125], %352 {strides = array<i32>} : memref<2x2x38x38xf32, #tpu.memory_space<vmem>>, vector<1x1x38x38xf32>,
    %353 = vector.extract_strided_slice %348 {offsets = [38, 38], sizes = [38, 38], strides = [1, 1]} : vector<76x76xf32> to vector<38x38xf32>
    %c1_126 = arith.constant 1 : index
    %c1_127 = arith.constant 1 : index
    %c0_128 = arith.constant 0 : index
    %c0_129 = arith.constant 0 : index
    %354 = vector.load %arg6[%c1_126, %c1_127, %c0_128, %c0_129] : memref<2x2x38x38xf32, #tpu.memory_space<vmem>>, vector<1x1x38x38xf32>
    %355 = vector.shape_cast %354 : vector<1x1x38x38xf32> to vector<38x38xf32>
    %356 = vector.shape_cast %353 : vector<38x38xf32> to vector<1x1x38x38xf32>
    tpu.vector_store %arg6[%c1_126, %c1_127, %c0_128, %c0_129], %356 {strides = array<i32>} : memref<2x2x38x38xf32, #tpu.memory_space<vmem>>, vector<1x1x38x38xf32>,
    %357 = arith.addf %294, %346 : vector<76x32xf32>
    %c51 = arith.constant 51 : index
    %c0_130 = arith.constant 0 : index
    %358 = vector.load %arg3[%c51, %c0_130] : memref<64x128xf32, #tpu.memory_space<vmem>>, vector<1x32xf32>
    %c52 = arith.constant 52 : index
    %c0_131 = arith.constant 0 : index
    %359 = vector.load %arg3[%c52, %c0_131] : memref<64x128xf32, #tpu.memory_space<vmem>>, vector<1x32xf32>
    %cst_132 = arith.constant dense<0.000000e+00> : vector<76xf32>
    %360 = vector.multi_reduction <add>, %357, %cst_132 [1] : vector<76x32xf32> to vector<76xf32>
    %361 = vector.shape_cast %360 : vector<76xf32> to vector<76x1xf32>
    %362 = arith.mulf %357, %357 : vector<76x32xf32>
    %cst_133 = arith.constant dense<0.000000e+00> : vector<76xf32>
    %363 = vector.multi_reduction <add>, %362, %cst_133 [1] : vector<76x32xf32> to vector<76xf32>
    %364 = vector.shape_cast %363 : vector<76xf32> to vector<76x1xf32>
    %cst_134 = arith.constant 3.200000e+01 : f32
    %365 = vector.broadcast %cst_134 : f32 to vector<76x1xf32>
    %366 = arith.divf %361, %365 : vector<76x1xf32>
    %cst_135 = arith.constant 3.200000e+01 : f32
    %367 = vector.broadcast %cst_135 : f32 to vector<76x1xf32>
    %368 = arith.divf %364, %367 : vector<76x1xf32>
    %369 = arith.mulf %366, %366 : vector<76x1xf32>
    %370 = arith.subf %368, %369 : vector<76x1xf32>
    %cst_136 = arith.constant 0.000000e+00 : f32
    %371 = vector.broadcast %cst_136 : f32 to vector<76x1xf32>
    %372 = arith.maximumf %370, %371 : vector<76x1xf32>
    %373 = vector.broadcast %366 : vector<76x1xf32> to vector<76x32xf32>
    %374 = arith.subf %357, %373 : vector<76x32xf32>
    %cst_137 = arith.constant 9.99999974E-6 : f32
    %375 = vector.broadcast %cst_137 : f32 to vector<76x1xf32>
    %376 = arith.addf %372, %375 : vector<76x1xf32>
    %377 = math.rsqrt %376 : vector<76x1xf32>
    %378 = vector.broadcast %377 : vector<76x1xf32> to vector<76x32xf32>
    %379 = arith.mulf %374, %378 : vector<76x32xf32>
    %380 = vector.broadcast %358 : vector<1x32xf32> to vector<76x32xf32>
    %381 = arith.mulf %379, %380 : vector<76x32xf32>
    %382 = vector.broadcast %359 : vector<1x32xf32> to vector<76x32xf32>
    %383 = arith.addf %381, %382 : vector<76x32xf32>
    %384 = arith.truncf %383 : vector<76x32xf32> to vector<76x32xbf16>
    %c496 = arith.constant 496 : index
    %c0_138 = arith.constant 0 : index
    %385 = vector.load %arg2[%c496, %c0_138] : memref<656x128xbf16, #tpu.memory_space<vmem>>, vector<32x128xbf16>
    %cst_139 = arith.constant dense<0.000000e+00> : vector<76x128xf32>
    %386 = tpu.matmul %384, %385, %cst_139 {dimension_numbers = #tpu.dot_dimension_numbers<[1], [0], [0], [1], [0, 0, 1, 1], [], []>} : vector<76x32xbf16>, vector<32x128xbf16>, vector<76x128xf32> -> vector<76x128xf32>
    %c53 = arith.constant 53 : index
    %c0_140 = arith.constant 0 : index
    %387 = vector.load %arg3[%c53, %c0_140] : memref<64x128xf32, #tpu.memory_space<vmem>>, vector<1x128xf32>
    %388 = vector.broadcast %387 : vector<1x128xf32> to vector<76x128xf32>
    %389 = arith.addf %386, %388 : vector<76x128xf32>
    %390 = arith.negf %389 : vector<76x128xf32>
    %391 = math.exp %390 : vector<76x128xf32>
    %cst_141 = arith.constant 1.000000e+00 : f32
    %392 = vector.broadcast %cst_141 : f32 to vector<76x128xf32>
    %393 = arith.addf %392, %391 : vector<76x128xf32>
    %394 = arith.divf %392, %393 : vector<76x128xf32>
    %395 = arith.mulf %389, %394 : vector<76x128xf32>
    %396 = arith.truncf %395 : vector<76x128xf32> to vector<76x128xbf16>
    %c528 = arith.constant 528 : index
    %c0_142 = arith.constant 0 : index
    %397 = vector.load %arg2[%c528, %c0_142] : memref<656x128xbf16, #tpu.memory_space<vmem>>, vector<128x32xbf16>
    %cst_143 = arith.constant dense<0.000000e+00> : vector<76x32xf32>
    %398 = tpu.matmul %396, %397, %cst_143 {dimension_numbers = #tpu.dot_dimension_numbers<[1], [0], [0], [1], [0, 0, 1, 1], [], []>} : vector<76x128xbf16>, vector<128x32xbf16>, vector<76x32xf32> -> vector<76x32xf32>
    %c54 = arith.constant 54 : index
    %c0_144 = arith.constant 0 : index
    %399 = vector.load %arg3[%c54, %c0_144] : memref<64x128xf32, #tpu.memory_space<vmem>>, vector<1x32xf32>
    %400 = vector.broadcast %399 : vector<1x32xf32> to vector<76x32xf32>
    %401 = arith.addf %398, %400 : vector<76x32xf32>
    %402 = arith.addf %383, %401 : vector<76x32xf32>
    %c55 = arith.constant 55 : index
    %c0_145 = arith.constant 0 : index
    %403 = vector.load %arg3[%c55, %c0_145] : memref<64x128xf32, #tpu.memory_space<vmem>>, vector<1x32xf32>
    %c56 = arith.constant 56 : index
    %c0_146 = arith.constant 0 : index
    %404 = vector.load %arg3[%c56, %c0_146] : memref<64x128xf32, #tpu.memory_space<vmem>>, vector<1x32xf32>
    %cst_147 = arith.constant dense<0.000000e+00> : vector<76xf32>
    %405 = vector.multi_reduction <add>, %402, %cst_147 [1] : vector<76x32xf32> to vector<76xf32>
    %406 = vector.shape_cast %405 : vector<76xf32> to vector<76x1xf32>
    %407 = arith.mulf %402, %402 : vector<76x32xf32>
    %cst_148 = arith.constant dense<0.000000e+00> : vector<76xf32>
    %408 = vector.multi_reduction <add>, %407, %cst_148 [1] : vector<76x32xf32> to vector<76xf32>
    %409 = vector.shape_cast %408 : vector<76xf32> to vector<76x1xf32>
    %cst_149 = arith.constant 3.200000e+01 : f32
    %410 = vector.broadcast %cst_149 : f32 to vector<76x1xf32>
    %411 = arith.divf %406, %410 : vector<76x1xf32>
    %cst_150 = arith.constant 3.200000e+01 : f32
    %412 = vector.broadcast %cst_150 : f32 to vector<76x1xf32>
    %413 = arith.divf %409, %412 : vector<76x1xf32>
    %414 = arith.mulf %411, %411 : vector<76x1xf32>
    %415 = arith.subf %413, %414 : vector<76x1xf32>
    %cst_151 = arith.constant 0.000000e+00 : f32
    %416 = vector.broadcast %cst_151 : f32 to vector<76x1xf32>
    %417 = arith.maximumf %415, %416 : vector<76x1xf32>
    %418 = vector.broadcast %411 : vector<76x1xf32> to vector<76x32xf32>
    %419 = arith.subf %402, %418 : vector<76x32xf32>
    %cst_152 = arith.constant 9.99999974E-6 : f32
    %420 = vector.broadcast %cst_152 : f32 to vector<76x1xf32>
    %421 = arith.addf %417, %420 : vector<76x1xf32>
    %422 = math.rsqrt %421 : vector<76x1xf32>
    %423 = vector.broadcast %422 : vector<76x1xf32> to vector<76x32xf32>
    %424 = arith.mulf %419, %423 : vector<76x32xf32>
    %425 = vector.broadcast %403 : vector<1x32xf32> to vector<76x32xf32>
    %426 = arith.mulf %424, %425 : vector<76x32xf32>
    %427 = vector.broadcast %404 : vector<1x32xf32> to vector<76x32xf32>
    %428 = arith.addf %426, %427 : vector<76x32xf32>
    %c0_153 = arith.constant 0 : index
    %c0_154 = arith.constant 0 : index
    %429 = vector.load %arg5[%c0_153, %c0_154] : memref<76x32xf32, #tpu.memory_space<vmem>>, vector<76x32xf32>
    tpu.vector_store %arg5[%c0_153, %c0_154], %428 {strides = array<i32>} : memref<76x32xf32, #tpu.memory_space<vmem>>, vector<76x32xf32>,
    return
  }
  func.func @transform_0(%arg0: i32) -> (i32, i32) {
    %c0_i32 = arith.constant 0 : i32
    %c0_i32_0 = arith.constant 0 : i32
    return %arg0, %c0_i32 : i32, i32
  }
  func.func @transform_1(%arg0: i32) -> (i32, i32) {
    %c0_i32 = arith.constant 0 : i32
    %c0_i32_0 = arith.constant 0 : i32
    %c0_i32_1 = arith.constant 0 : i32
    return %c0_i32, %c0_i32_0 : i32, i32
  }
  func.func @transform_2(%arg0: i32) -> (i32, i32) {
    %c0_i32 = arith.constant 0 : i32
    %c0_i32_0 = arith.constant 0 : i32
    %c0_i32_1 = arith.constant 0 : i32
    return %c0_i32, %c0_i32_0 : i32, i32
  }
  func.func @transform_3(%arg0: i32) -> (i32, i32, i32) {
    %c0_i32 = arith.constant 0 : i32
    %c0_i32_0 = arith.constant 0 : i32
    %c0_i32_1 = arith.constant 0 : i32
    %c0_i32_2 = arith.constant 0 : i32
    return %c0_i32, %c0_i32_0, %c0_i32_1 : i32, i32, i32
  }
  func.func @transform_4(%arg0: i32) -> (i32, i32) {
    %c0_i32 = arith.constant 0 : i32
    %c0_i32_0 = arith.constant 0 : i32
    return %arg0, %c0_i32 : i32, i32
  }
  func.func @transform_5(%arg0: i32) -> (i32, i32, i32, i32) {
    %c0_i32 = arith.constant 0 : i32
    %c0_i32_0 = arith.constant 0 : i32
    %c0_i32_1 = arith.constant 0 : i32
    %c0_i32_2 = arith.constant 0 : i32
    return %arg0, %c0_i32, %c0_i32_0, %c0_i32_1 : i32, i32, i32, i32
  }
}

</mosaic_0001>

<llo_original>
// kernel: tile.9
$region0: #{tile.9}
  %s0 = inlined_call_operand.vmem [shape: f32[2,2,38,32], index: 0, kind: input, shape index: {}]
  %s1 = inlined_call_operand.vmem [shape: f32[2,76,32], index: 1, kind: output, shape index: {}]
  $region1: #{tile.9} parent=0
    #allocation0 [shape = 'u8[262144]{0}', space=vmem, size = 0x40000, scoped, tag = 'scoped mem for input reshape']
    %s3 = sshll.u32 1, 2
    %s4 = ssub.s32 %s3, 1
    %s5 = smul.addr 2, 63
    %s6 = scalar_lea.vmem %s0, %s5
    %v7 = vld [vmem:[%s6] sm:%s4]
    %s8 = scalar_lea.vmem [#allocation0], 504
    %9 = vst [vmem:[%s8] sm:%s4] %v7
    %s10 = smul.addr 2, 62
    %s11 = scalar_lea.vmem %s0, %s10
    %v12 = vld [vmem:[%s11] sm:%s4]
    %s13 = scalar_lea.vmem [#allocation0], 496
    %14 = vst [vmem:[%s13] sm:%s4] %v12
    %s15 = smul.addr 2, 61
    %s16 = scalar_lea.vmem %s0, %s15
    %v17 = vld [vmem:[%s16] sm:%s4]
    %s18 = scalar_lea.vmem [#allocation0], 488
    %19 = vst [vmem:[%s18] sm:%s4] %v17
    %s20 = smul.addr 2, 60
    %s21 = scalar_lea.vmem %s0, %s20
    %v22 = vld [vmem:[%s21] sm:%s4]
    %s23 = scalar_lea.vmem [#allocation0], 480
    %24 = vst [vmem:[%s23] sm:%s4] %v22
    %s25 = smul.addr 2, 59
    %s26 = scalar_lea.vmem %s0, %s25
    %v27 = vld [vmem:[%s26] sm:%s4]
    %s28 = scalar_lea.vmem [#allocation0], 472
    %29 = vst [vmem:[%s28] sm:%s4] %v27
    %s30 = smul.addr 2, 58
    %s31 = scalar_lea.vmem %s0, %s30
    %v32 = vld [vmem:[%s31] sm:%s4]
    %s33 = scalar_lea.vmem [#allocation0], 464
    %34 = vst [vmem:[%s33] sm:%s4] %v32
    %s35 = smul.addr 2, 57
    %s36 = scalar_lea.vmem %s0, %s35
    %v37 = vld [vmem:[%s36] sm:%s4]
    %s38 = scalar_lea.vmem [#allocation0], 456
    %39 = vst [vmem:[%s38] sm:%s4] %v37
    %s40 = smul.addr 2, 56
    %s41 = scalar_lea.vmem %s0, %s40
    %v42 = vld [vmem:[%s41] sm:%s4]
    %s43 = scalar_lea.vmem [#allocation0], 448
    %44 = vst [vmem:[%s43] sm:%s4] %v42
    %s45 = smul.addr 2, 55
    %s46 = scalar_lea.vmem %s0, %s45
    %v47 = vld [vmem:[%s46] sm:%s4]
    %s48 = scalar_lea.vmem [#allocation0], 440
    %49 = vst [vmem:[%s48] sm:%s4] %v47
    %s50 = smul.addr 2, 54
    %s51 = scalar_lea.vmem %s0, %s50
    %v52 = vld [vmem:[%s51] sm:%s4]
    %s53 = scalar_lea.vmem [#allocation0], 432
    %54 = vst [vmem:[%s53] sm:%s4] %v52
    %s55 = smul.addr 2, 53
    %s56 = scalar_lea.vmem %s0, %s55
    %v57 = vld [vmem:[%s56] sm:%s4]
    %s58 = scalar_lea.vmem [#allocation0], 424
    %59 = vst [vmem:[%s58] sm:%s4] %v57
    %s60 = smul.addr 2, 52
    %s61 = scalar_lea.vmem %s0, %s60
    %v62 = vld [vmem:[%s61] sm:%s4]
    %s63 = scalar_lea.vmem [#allocation0], 416
    %64 = vst [vmem:[%s63] sm:%s4] %v62
    %s65 = smul.addr 2, 51
    %s66 = scalar_lea.vmem %s0, %s65
    %v67 = vld [vmem:[%s66] sm:%s4]
    %s68 = scalar_lea.vmem [#allocation0], 408
    %69 = vst [vmem:[%s68] sm:%s4] %v67
    %s70 = smul.addr 2, 50
    %s71 = scalar_lea.vmem %s0, %s70
    %v72 = vld [vmem:[%s71] sm:%s4]
    %s73 = scalar_lea.vmem [#allocation0], 400
    %74 = vst [vmem:[%s73] sm:%s4] %v72
    %s75 = smul.addr 2, 49
    %s76 = scalar_lea.vmem %s0, %s75
    %v77 = vld [vmem:[%s76] sm:%s4]
    %s78 = scalar_lea.vmem [#allocation0], 392
    %79 = vst [vmem:[%s78] sm:%s4] %v77
    %s80 = smul.addr 2, 48
    %s81 = scalar_lea.vmem %s0, %s80
    %v82 = vld [vmem:[%s81] sm:%s4]
    %s83 = scalar_lea.vmem [#allocation0], 384
    %84 = vst [vmem:[%s83] sm:%s4] %v82
    %s85 = smul.addr 2, 47
    %s86 = scalar_lea.vmem %s0, %s85
    %v87 = vld [vmem:[%s86] sm:%s4]
    %s88 = scalar_lea.vmem [#allocation0], 376
    %89 = vst [vmem:[%s88] sm:%s4] %v87
    %s90 = smul.addr 2, 46
    %s91 = scalar_lea.vmem %s0, %s90
    %v92 = vld [vmem:[%s91] sm:%s4]
    %s93 = scalar_lea.vmem [#allocation0], 368
    %94 = vst [vmem:[%s93] sm:%s4] %v92
    %s95 = smul.addr 2, 45
    %s96 = scalar_lea.vmem %s0, %s95
    %v97 = vld [vmem:[%s96] sm:%s4]
    %s98 = scalar_lea.vmem [#allocation0], 360
    %99 = vst [vmem:[%s98] sm:%s4] %v97
    %s100 = smul.addr 2, 44
    %s101 = scalar_lea.vmem %s0, %s100
    %v102 = vld [vmem:[%s101] sm:%s4]
    %s103 = scalar_lea.vmem [#allocation0], 352
    %104 = vst [vmem:[%s103] sm:%s4] %v102
    %s105 = smul.addr 2, 43
    %s106 = scalar_lea.vmem %s0, %s105
    %v107 = vld [vmem:[%s106] sm:%s4]
    %s108 = scalar_lea.vmem [#allocation0], 344
    %109 = vst [vmem:[%s108] sm:%s4] %v107
    %s110 = smul.addr 2, 42
    %s111 = scalar_lea.vmem %s0, %s110
    %v112 = vld [vmem:[%s111] sm:%s4]
    %s113 = scalar_lea.vmem [#allocation0], 336
    %114 = vst [vmem:[%s113] sm:%s4] %v112
    %s115 = smul.addr 2, 41
    %s116 = scalar_lea.vmem %s0, %s115
    %v117 = vld [vmem:[%s116] sm:%s4]
    %s118 = scalar_lea.vmem [#allocation0], 328
    %119 = vst [vmem:[%s118] sm:%s4] %v117
    %s120 = smul.addr 2, 40
    %s121 = scalar_lea.vmem %s0, %s120
    %v122 = vld [vmem:[%s121] sm:%s4]
    %s123 = scalar_lea.vmem [#allocation0], 320
    %124 = vst [vmem:[%s123] sm:%s4] %v122
    %s125 = smul.addr 2, 39
    %s126 = scalar_lea.vmem %s0, %s125
    %v127 = vld [vmem:[%s126] sm:%s4]
    %s128 = scalar_lea.vmem [#allocation0], 312
    %129 = vst [vmem:[%s128] sm:%s4] %v127
    %s130 = smul.addr 2, 38
    %s131 = scalar_lea.vmem %s0, %s130
    %v132 = vld [vmem:[%s131] sm:%s4]
    %s133 = scalar_lea.vmem [#allocation0], 304
    %134 = vst [vmem:[%s133] sm:%s4] %v132
    %s135 = smul.addr 2, 37
    %s136 = scalar_lea.vmem %s0, %s135
    %v137 = vld [vmem:[%s136] sm:%s4]
    %s138 = scalar_lea.vmem [#allocation0], 296
    %139 = vst [vmem:[%s138] sm:%s4] %v137
    %s140 = smul.addr 2, 36
    %s141 = scalar_lea.vmem %s0, %s140
    %v142 = vld [vmem:[%s141] sm:%s4]
    %s143 = scalar_lea.vmem [#allocation0], 288
    %144 = vst [vmem:[%s143] sm:%s4] %v142
    %s145 = smul.addr 2, 35
    %s146 = scalar_lea.vmem %s0, %s145
    %v147 = vld [vmem:[%s146] sm:%s4]
    %s148 = scalar_lea.vmem [#allocation0], 280
    %149 = vst [vmem:[%s148] sm:%s4] %v147
    %s150 = smul.addr 2, 34
    %s151 = scalar_lea.vmem %s0, %s150
    %v152 = vld [vmem:[%s151] sm:%s4]
    %s153 = scalar_lea.vmem [#allocation0], 272
    %154 = vst [vmem:[%s153] sm:%s4] %v152
    %s155 = smul.addr 2, 33
    %s156 = scalar_lea.vmem %s0, %s155
    %v157 = vld [vmem:[%s156] sm:%s4]
    %s158 = scalar_lea.vmem [#allocation0], 264
    %159 = vst [vmem:[%s158] sm:%s4] %v157
    %s160 = smul.addr 2, 32
    %s161 = scalar_lea.vmem %s0, %s160
    %v162 = vld [vmem:[%s161] sm:%s4]
    %s163 = scalar_lea.vmem [#allocation0], 256
    %164 = vst [vmem:[%s163] sm:%s4] %v162
    %s165 = smul.addr 2, 31
    %s166 = scalar_lea.vmem %s0, %s165
    %v167 = vld [vmem:[%s166] sm:%s4]
    %s168 = scalar_lea.vmem [#allocation0], 248
    %169 = vst [vmem:[%s168] sm:%s4] %v167
    %s170 = smul.addr 2, 30
    %s171 = scalar_lea.vmem %s0, %s170
    %v172 = vld [vmem:[%s171] sm:%s4]
    %s173 = scalar_lea.vmem [#allocation0], 240
    %174 = vst [vmem:[%s173] sm:%s4] %v172
    %s175 = smul.addr 2, 29
    %s176 = scalar_lea.vmem %s0, %s175
    %v177 = vld [vmem:[%s176] sm:%s4]
    %s178 = scalar_lea.vmem [#allocation0], 232
    %179 = vst [vmem:[%s178] sm:%s4] %v177
    %s180 = smul.addr 2, 28
    %s181 = scalar_lea.vmem %s0, %s180
    %v182 = vld [vmem:[%s181] sm:%s4]
    %s183 = scalar_lea.vmem [#allocation0], 224
    %184 = vst [vmem:[%s183] sm:%s4] %v182
    %s185 = smul.addr 2, 27
    %s186 = scalar_lea.vmem %s0, %s185
    %v187 = vld [vmem:[%s186] sm:%s4]
    %s188 = scalar_lea.vmem [#allocation0], 216
    %189 = vst [vmem:[%s188] sm:%s4] %v187
    %s190 = smul.addr 2, 26
    %s191 = scalar_lea.vmem %s0, %s190
    %v192 = vld [vmem:[%s191] sm:%s4]
    %s193 = scalar_lea.vmem [#allocation0], 208
    %194 = vst [vmem:[%s193] sm:%s4] %v192
    %s195 = smul.addr 2, 25
    %s196 = scalar_lea.vmem %s0, %s195
    %v197 = vld [vmem:[%s196] sm:%s4]
    %s198 = scalar_lea.vmem [#allocation0], 200
    %199 = vst [vmem:[%s198] sm:%s4] %v197
    %s200 = smul.addr 2, 24
    %s201 = scalar_lea.vmem %s0, %s200
    %v202 = vld [vmem:[%s201] sm:%s4]
    %s203 = scalar_lea.vmem [#allocation0], 192
    %204 = vst [vmem:[%s203] sm:%s4] %v202
    %s205 = smul.addr 2, 23
    %s206 = scalar_lea.vmem %s0, %s205
    %v207 = vld [vmem:[%s206] sm:%s4]
    %s208 = scalar_lea.vmem [#allocation0], 184
    %209 = vst [vmem:[%s208] sm:%s4] %v207
    %s210 = smul.addr 2, 22
    %s211 = scalar_lea.vmem %s0, %s210
    %v212 = vld [vmem:[%s211] sm:%s4]
    %s213 = scalar_lea.vmem [#allocation0], 176
    %214 = vst [vmem:[%s213] sm:%s4] %v212
    %s215 = smul.addr 2, 21
    %s216 = scalar_lea.vmem %s0, %s215
    %v217 = vld [vmem:[%s216] sm:%s4]
    %s218 = scalar_lea.vmem [#allocation0], 168
    %219 = vst [vmem:[%s218] sm:%s4] %v217
    %s220 = smul.addr 2, 20
    %s221 = scalar_lea.vmem %s0, %s220
    %v222 = vld [vmem:[%s221] sm:%s4]
    %s223 = scalar_lea.vmem [#allocation0], 160
    %224 = vst [vmem:[%s223] sm:%s4] %v222
    %s225 = smul.addr 2, 19
    %s226 = scalar_lea.vmem %s0, %s225
    %v227 = vld [vmem:[%s226] sm:%s4]
    %s228 = scalar_lea.vmem [#allocation0], 152
    %229 = vst [vmem:[%s228] sm:%s4] %v227
    %s230 = smul.addr 2, 18
    %s231 = scalar_lea.vmem %s0, %s230
    %v232 = vld [vmem:[%s231] sm:%s4]
    %s233 = scalar_lea.vmem [#allocation0], 144
    %234 = vst [vmem:[%s233] sm:%s4] %v232
    %s235 = smul.addr 2, 17
    %s236 = scalar_lea.vmem %s0, %s235
    %v237 = vld [vmem:[%s236] sm:%s4]
    %s238 = scalar_lea.vmem [#allocation0], 136
    %239 = vst [vmem:[%s238] sm:%s4] %v237
    %s240 = smul.addr 2, 16
    %s241 = scalar_lea.vmem %s0, %s240
    %v242 = vld [vmem:[%s241] sm:%s4]
    %s243 = scalar_lea.vmem [#allocation0], 128
    %244 = vst [vmem:[%s243] sm:%s4] %v242
    %s245 = smul.addr 2, 15
    %s246 = scalar_lea.vmem %s0, %s245
    %v247 = vld [vmem:[%s246] sm:%s4]
    %s248 = scalar_lea.vmem [#allocation0], 120
    %249 = vst [vmem:[%s248] sm:%s4] %v247
    %s250 = smul.addr 2, 14
    %s251 = scalar_lea.vmem %s0, %s250
    %v252 = vld [vmem:[%s251] sm:%s4]
    %s253 = scalar_lea.vmem [#allocation0], 112
    %254 = vst [vmem:[%s253] sm:%s4] %v252
    %s255 = smul.addr 2, 13
    %s256 = scalar_lea.vmem %s0, %s255
    %v257 = vld [vmem:[%s256] sm:%s4]
    %s258 = scalar_lea.vmem [#allocation0], 104
    %259 = vst [vmem:[%s258] sm:%s4] %v257
    %s260 = smul.addr 2, 12
    %s261 = scalar_lea.vmem %s0, %s260
    %v262 = vld [vmem:[%s261] sm:%s4]
    %s263 = scalar_lea.vmem [#allocation0], 96
    %264 = vst [vmem:[%s263] sm:%s4] %v262
    %s265 = smul.addr 2, 11
    %s266 = scalar_lea.vmem %s0, %s265
    %v267 = vld [vmem:[%s266] sm:%s4]
    %s268 = scalar_lea.vmem [#allocation0], 88
    %269 = vst [vmem:[%s268] sm:%s4] %v267
    %s270 = smul.addr 2, 10
    %s271 = scalar_lea.vmem %s0, %s270
    %v272 = vld [vmem:[%s271] sm:%s4]
    %s273 = scalar_lea.vmem [#allocation0], 80
    %274 = vst [vmem:[%s273] sm:%s4] %v272
    %s275 = smul.addr 2, 9
    %s276 = scalar_lea.vmem %s0, %s275
    %v277 = vld [vmem:[%s276] sm:%s4]
    %s278 = scalar_lea.vmem [#allocation0], 72
    %279 = vst [vmem:[%s278] sm:%s4] %v277
    %s280 = smul.addr 2, 8
    %s281 = scalar_lea.vmem %s0, %s280
    %v282 = vld [vmem:[%s281] sm:%s4]
    %s283 = scalar_lea.vmem [#allocation0], 64
    %284 = vst [vmem:[%s283] sm:%s4] %v282
    %s285 = smul.addr 2, 7
    %s286 = scalar_lea.vmem %s0, %s285
    %v287 = vld [vmem:[%s286] sm:%s4]
    %s288 = scalar_lea.vmem [#allocation0], 56
    %289 = vst [vmem:[%s288] sm:%s4] %v287
    %s290 = smul.addr 2, 6
    %s291 = scalar_lea.vmem %s0, %s290
    %v292 = vld [vmem:[%s291] sm:%s4]
    %s293 = scalar_lea.vmem [#allocation0], 48
    %294 = vst [vmem:[%s293] sm:%s4] %v292
    %s295 = smul.addr 2, 5
    %s296 = scalar_lea.vmem %s0, %s295
    %v297 = vld [vmem:[%s296] sm:%s4]
    %s298 = scalar_lea.vmem [#allocation0], 40
    %299 = vst [vmem:[%s298] sm:%s4] %v297
    %s300 = smul.addr 2, 4
    %s301 = scalar_lea.vmem %s0, %s300
    %v302 = vld [vmem:[%s301] sm:%s4]
    %s303 = scalar_lea.vmem [#allocation0], 32
    %304 = vst [vmem:[%s303] sm:%s4] %v302
    %s305 = smul.addr 2, 3
    %s306 = scalar_lea.vmem %s0, %s305
    %v307 = vld [vmem:[%s306] sm:%s4]
    %s308 = scalar_lea.vmem [#allocation0], 24
    %309 = vst [vmem:[%s308] sm:%s4] %v307
    %s310 = smul.addr 2, 2
    %s311 = scalar_lea.vmem %s0, %s310
    %v312 = vld [vmem:[%s311] sm:%s4]
    %s313 = scalar_lea.vmem [#allocation0], 16
    %314 = vst [vmem:[%s313] sm:%s4] %v312
    %s315 = scalar_lea.vmem %s0, 2
    %v316 = vld [vmem:[%s315] sm:%s4]
    %s317 = scalar_lea.vmem [#allocation0], 8
    %318 = vst [vmem:[%s317] sm:%s4] %v316
    %v319 = vld [vmem:[%s0] sm:%s4]
    %320 = vst [vmem:[#allocation0] sm:%s4] %v319
    %v321 = vld [vmem:[#allocation0] ss:$8 sm:$0xf]
    %v322 = vld [vmem:[#allocation0] ss:$8 sm:$0xf0]
    %vm323 = vcmask 1047556
    %v324 = vsel %vm323, %v322, %v321
    %vm325 = vcmask 310272
    %326 = vst.msk [vmem:[%s1] sm:$0xff] %vm325, %v324
    %s327 = scalar_lea.vmem [#allocation0], 64
    %v328 = vld [vmem:[%s327] ss:$8 sm:$0xf]
    %s329 = scalar_lea.vmem [#allocation0], 64
    %v330 = vld [vmem:[%s329] ss:$8 sm:$0xf0]
    %vm331 = vcmask 1047556
    %v332 = vsel %vm331, %v330, %v328
    %vm333 = vcmask 310272
    %s334 = scalar_lea.vmem %s1, 8
    %335 = vst.msk [vmem:[%s334] sm:$0xff] %vm333, %v332
    %s336 = scalar_lea.vmem [#allocation0], 128
    %v337 = vld [vmem:[%s336] ss:$8 sm:$0xf]
    %s338 = scalar_lea.vmem [#allocation0], 128
    %v339 = vld [vmem:[%s338] ss:$8 sm:$0xf0]
    %vm340 = vcmask 1047556
    %v341 = vsel %vm340, %v339, %v337
    %vm342 = vcmask 310272
    %s343 = scalar_lea.vmem %s1, 16
    %344 = vst.msk [vmem:[%s343] sm:$0xff] %vm342, %v341
    %s345 = scalar_lea.vmem [#allocation0], 192
    %v346 = vld [vmem:[%s345] ss:$8 sm:$0xf]
    %s347 = scalar_lea.vmem [#allocation0], 192
    %v348 = vld [vmem:[%s347] ss:$8 sm:$0xf0]
    %vm349 = vcmask 1047556
    %v350 = vsel %vm349, %v348, %v346
    %vm351 = vcmask 310272
    %s352 = scalar_lea.vmem %s1, 24
    %353 = vst.msk [vmem:[%s352] sm:$0xff] %vm351, %v350
    %s354 = scalar_lea.vmem [#allocation0], 256
    %v355 = vld [vmem:[%s354] ss:$8 sm:$0xf]
    %s356 = scalar_lea.vmem [#allocation0], 256
    %v357 = vld [vmem:[%s356] ss:$8 sm:$0xf0]
    %vm358 = vcmask 1047556
    %v359 = vsel %vm358, %v357, %v355
    %vm360 = vcmask 310272
    %s361 = scalar_lea.vmem %s1, 32
    %362 = vst.msk [vmem:[%s361] sm:$0xff] %vm360, %v359
    %s363 = scalar_lea.vmem [#allocation0], 320
    %v364 = vld [vmem:[%s363] ss:$8 sm:$0xf]
    %s365 = scalar_lea.vmem [#allocation0], 320
    %v366 = vld [vmem:[%s365] ss:$8 sm:$0xf0]
    %vm367 = vcmask 1047556
    %v368 = vsel %vm367, %v366, %v364
    %vm369 = vcmask 310272
    %s370 = scalar_lea.vmem %s1, 40
    %371 = vst.msk [vmem:[%s370] sm:$0xff] %vm369, %v368
    %s372 = scalar_lea.vmem [#allocation0], 384
    %v373 = vld [vmem:[%s372] ss:$8 sm:$0xf]
    %s374 = scalar_lea.vmem [#allocation0], 384
    %v375 = vld [vmem:[%s374] ss:$8 sm:$0xf0]
    %vm376 = vcmask 1047556
    %v377 = vsel %vm376, %v375, %v373
    %vm378 = vcmask 310272
    %s379 = scalar_lea.vmem %s1, 48
    %380 = vst.msk [vmem:[%s379] sm:$0xff] %vm378, %v377
    %s381 = scalar_lea.vmem [#allocation0], 448
    %v382 = vld [vmem:[%s381] ss:$8 sm:$0xf]
    %s383 = scalar_lea.vmem [#allocation0], 448
    %v384 = vld [vmem:[%s383] ss:$8 sm:$0xf0]
    %vm385 = vcmask 1047556
    %v386 = vsel %vm385, %v384, %v382
    %vm387 = vcmask 310272
    %s388 = scalar_lea.vmem %s1, 56
    %389 = vst.msk [vmem:[%s388] sm:$0xff] %vm387, %v386
    %s390 = scalar_lea.vmem [#allocation0], 1
    %v391 = vld [vmem:[%s390] ss:$8 sm:$0xf]
    %s392 = scalar_lea.vmem [#allocation0], 1
    %v393 = vld [vmem:[%s392] ss:$8 sm:$0xf0]
    %vm394 = vcmask 1047556
    %v395 = vsel %vm394, %v393, %v391
    %396 = vrot.lane.b32.xlu0 %v395, 38
    %v397 = vpop.permute.xlu0 %396
    %vm398 = vcmask 621872
    %399 = vst.msk [vmem:[%s1] sm:$0xff] %vm398, %v397
    %s400 = scalar_lea.vmem [#allocation0], 257
    %v401 = vld [vmem:[%s400] ss:$8 sm:$0xf]
    %s402 = scalar_lea.vmem [#allocation0], 257
    %v403 = vld [vmem:[%s402] ss:$8 sm:$0xf0]
    %vm404 = vcmask 1047556
    %v405 = vsel %vm404, %v403, %v401
    %406 = vrot.lane.b32.xlu0 %v405, 38
    %v407 = vpop.permute.xlu0 %406
    %vm408 = vcmask 621872
    %s409 = scalar_lea.vmem %s1, 32
    %410 = vst.msk [vmem:[%s409] sm:$0xff] %vm408, %v407
    %s411 = scalar_lea.vmem [#allocation0], 65
    %v412 = vld [vmem:[%s411] ss:$8 sm:$0xf]
    %s413 = scalar_lea.vmem [#allocation0], 65
    %v414 = vld [vmem:[%s413] ss:$8 sm:$0xf0]
    %vm415 = vcmask 1047556
    %v416 = vsel %vm415, %v414, %v412
    %417 = vrot.lane.b32.xlu0 %v416, 38
    %v418 = vpop.permute.xlu0 %417
    %vm419 = vcmask 621872
    %s420 = scalar_lea.vmem %s1, 8
    %421 = vst.msk [vmem:[%s420] sm:$0xff] %vm419, %v418
    %s422 = scalar_lea.vmem [#allocation0], 321
    %v423 = vld [vmem:[%s422] ss:$8 sm:$0xf]
    %s424 = scalar_lea.vmem [#allocation0], 321
    %v425 = vld [vmem:[%s424] ss:$8 sm:$0xf0]
    %vm426 = vcmask 1047556
    %v427 = vsel %vm426, %v425, %v423
    %428 = vrot.lane.b32.xlu0 %v427, 38
    %v429 = vpop.permute.xlu0 %428
    %vm430 = vcmask 621872
    %s431 = scalar_lea.vmem %s1, 40
    %432 = vst.msk [vmem:[%s431] sm:$0xff] %vm430, %v429
    %s433 = scalar_lea.vmem [#allocation0], 129
    %v434 = vld [vmem:[%s433] ss:$8 sm:$0xf]
    %s435 = scalar_lea.vmem [#allocation0], 129
    %v436 = vld [vmem:[%s435] ss:$8 sm:$0xf0]
    %vm437 = vcmask 1047556
    %v438 = vsel %vm437, %v436, %v434
    %439 = vrot.lane.b32.xlu0 %v438, 38
    %v440 = vpop.permute.xlu0 %439
    %vm441 = vcmask 621872
    %s442 = scalar_lea.vmem %s1, 16
    %443 = vst.msk [vmem:[%s442] sm:$0xff] %vm441, %v440
    %s444 = scalar_lea.vmem [#allocation0], 385
    %v445 = vld [vmem:[%s444] ss:$8 sm:$0xf]
    %s446 = scalar_lea.vmem [#allocation0], 385
    %v447 = vld [vmem:[%s446] ss:$8 sm:$0xf0]
    %vm448 = vcmask 1047556
    %v449 = vsel %vm448, %v447, %v445
    %450 = vrot.lane.b32.xlu0 %v449, 38
    %v451 = vpop.permute.xlu0 %450
    %vm452 = vcmask 621872
    %s453 = scalar_lea.vmem %s1, 48
    %454 = vst.msk [vmem:[%s453] sm:$0xff] %vm452, %v451
    %s455 = scalar_lea.vmem [#allocation0], 193
    %v456 = vld [vmem:[%s455] ss:$8 sm:$0xf]
    %s457 = scalar_lea.vmem [#allocation0], 193
    %v458 = vld [vmem:[%s457] ss:$8 sm:$0xf0]
    %vm459 = vcmask 1047556
    %v460 = vsel %vm459, %v458, %v456
    %461 = vrot.lane.b32.xlu0 %v460, 38
    %v462 = vpop.permute.xlu0 %461
    %vm463 = vcmask 621872
    %s464 = scalar_lea.vmem %s1, 24
    %465 = vst.msk [vmem:[%s464] sm:$0xff] %vm463, %v462
    %s466 = scalar_lea.vmem [#allocation0], 449
    %v467 = vld [vmem:[%s466] ss:$8 sm:$0xf]
    %s468 = scalar_lea.vmem [#allocation0], 449
    %v469 = vld [vmem:[%s468] ss:$8 sm:$0xf0]
    %vm470 = vcmask 1047556
    %v471 = vsel %vm470, %v469, %v467
    %472 = vrot.lane.b32.xlu0 %v471, 38
    %v473 = vpop.permute.xlu0 %472
    %vm474 = vcmask 621872
    %s475 = scalar_lea.vmem %s1, 56
    %476 = vst.msk [vmem:[%s475] sm:$0xff] %vm474, %v473

// kernel: encoder_forward.1
$region0: #{encoder_forward.1}
  #allocation0 [shape = 'u32[]', space=smem, size = 0x4, offset = 0x4, fixed_abs, tag = 'smem constant byte address 0x4 - core index']
  #allocation1 [shape = 'u32[144,128]{1,0:T(1,128)}', space=vmem, size = 0x12000, scoped, tag = 'internal scratch']
  %s0 = inlined_call_operand.vmem [shape: f32[76,8], index: 0, kind: input, shape index: {}]
  %s1 = inlined_call_operand.vmem [shape: bf16[656,128], index: 1, kind: input, shape index: {}]
  %s2 = inlined_call_operand.vmem [shape: f32[64,128], index: 2, kind: input, shape index: {}]
  %s3 = inlined_call_operand.vmem [shape: f32[2,76,32], index: 3, kind: input, shape index: {}]
  %s4 = inlined_call_operand.vmem [shape: f32[76,32], index: 4, kind: output, shape index: {0}]
  %s5 = inlined_call_operand.vmem [shape: f32[2,2,38,38], index: 5, kind: output, shape index: {1}]
  %6 = xla_tuple %s4, %s5
  %s7 = sld [smem:[#allocation0]]
  $region34: #{encoder_forward.1} parent=0
    _
  %s9 = ssub.s32 1, %s7
  %s10 = scalar_select 0, %s9, %s7
  // Predicated region
  $region2: #{encoder_forward.1} parent=0 // pred_check
    _
  $region3: #{encoder_forward.1} parent=0 // pred_check_branch
    %12 = sbr.rel (0) target = $region5
  $region4: #{encoder_forward.1} parent=0 // pred_region
    _
  $region5: #{encoder_forward.1} parent=0 // pred_fallthru
    _
  // Predicated region
  $region6: #{encoder_forward.1} parent=0 // pred_check
    _
  $region7: #{encoder_forward.1} parent=0 // pred_check_branch
    %14 = sbr.rel (0) target = $region9
  $region8: #{encoder_forward.1} parent=0 // pred_region
    _
  $region9: #{encoder_forward.1} parent=0 // pred_fallthru
    _
  // Predicated region
  $region10: #{encoder_forward.1} parent=0 // pred_check
    _
  $region11: #{encoder_forward.1} parent=0 // pred_check_branch
    %16 = sbr.rel (0) target = $region13
  $region12: #{encoder_forward.1} parent=0 // pred_region
    _
  $region13: #{encoder_forward.1} parent=0 // pred_fallthru
    _
  // Predicated region
  $region14: #{encoder_forward.1} parent=0 // pred_check
    _
  $region15: #{encoder_forward.1} parent=0 // pred_check_branch
    %18 = sbr.rel (0) target = $region17
  $region16: #{encoder_forward.1} parent=0 // pred_region
    _
  $region17: #{encoder_forward.1} parent=0 // pred_fallthru
    _
  %v20 = vlaneseq
  %v21 = vshrl.u32 %v20, 7
  %v22 = vadd.s32 %v21, 8
  %v23 = vadd.s32 %v21, 16
  %v24 = vadd.s32 %v21, 24
  %v25 = vadd.s32 %v21, 32
  %v26 = vadd.s32 %v21, 40
  %v27 = vadd.s32 %v21, 48
  %v28 = vadd.s32 %v21, 56
  %v29 = vadd.s32 %v21, 64
  %v30 = vadd.s32 %v21, 72
  %v31 = vlaneseq
  %v32 = vand.u32 %v31, 127
  %vm33 = vcmp.ge.s32.totalorder %v21, 0
  %vm34 = vcmp.ge.s32.totalorder %v22, 0
  %vm35 = vcmp.ge.s32.totalorder %v23, 0
  %vm36 = vcmp.ge.s32.totalorder %v24, 0
  %vm37 = vcmp.ge.s32.totalorder %v25, 0
  %vm38 = vcmp.ge.s32.totalorder %v26, 0
  %vm39 = vcmp.ge.s32.totalorder %v27, 0
  %vm40 = vcmp.ge.s32.totalorder %v28, 0
  %vm41 = vcmp.ge.s32.totalorder %v29, 0
  %vm42 = vcmp.ge.s32.totalorder %v30, 0
  %vm43 = vcmp.lt.s32.totalorder %v21, 38
  %vm44 = vcmp.lt.s32.totalorder %v22, 38
  %vm45 = vcmp.lt.s32.totalorder %v23, 38
  %vm46 = vcmp.lt.s32.totalorder %v24, 38
  %vm47 = vcmp.lt.s32.totalorder %v25, 38
  %vm48 = vcmp.lt.s32.totalorder %v26, 38
  %vm49 = vcmp.lt.s32.totalorder %v27, 38
  %vm50 = vcmp.lt.s32.totalorder %v28, 38
  %vm51 = vcmp.lt.s32.totalorder %v29, 38
  %vm52 = vcmp.lt.s32.totalorder %v30, 38
  %vm53 = vmand %vm33, %vm43
  %vm54 = vmand %vm34, %vm44
  %vm55 = vmand %vm35, %vm45
  %vm56 = vmand %vm36, %vm46
  %vm57 = vmand %vm37, %vm47
  %vm58 = vmand %vm38, %vm48
  %vm59 = vmand %vm39, %vm49
  %vm60 = vmand %vm40, %vm50
  %vm61 = vmand %vm41, %vm51
  %vm62 = vmand %vm42, %vm52
  %vm63 = vcmp.ge.s32.totalorder %v32, 0
  %vm64 = vcmp.lt.s32.totalorder %v32, 38
  %vm65 = vmand %vm63, %vm64
  %vm66 = vmand %vm53, %vm65
  %vm67 = vmand %vm54, %vm65
  %vm68 = vmand %vm55, %vm65
  %vm69 = vmand %vm56, %vm65
  %vm70 = vmand %vm57, %vm65
  %vm71 = vmand %vm58, %vm65
  %vm72 = vmand %vm59, %vm65
  %vm73 = vmand %vm60, %vm65
  %vm74 = vmand %vm61, %vm65
  %vm75 = vmand %vm62, %vm65
  %v76 = vsel %vm66, 1, 0
  %v77 = vsel %vm67, 1, 0
  %v78 = vsel %vm68, 1, 0
  %v79 = vsel %vm69, 1, 0
  %v80 = vsel %vm70, 1, 0
  %v81 = vsel %vm71, 1, 0
  %v82 = vsel %vm72, 1, 0
  %v83 = vsel %vm73, 1, 0
  %v84 = vsel %vm74, 1, 0
  %v85 = vsel %vm75, 1, 0
  %v86 = vcvt.s32.f32 %v76
  %v87 = vcvt.s32.f32 %v77
  %v88 = vcvt.s32.f32 %v78
  %v89 = vcvt.s32.f32 %v79
  %v90 = vcvt.s32.f32 %v80
  %v91 = vcvt.s32.f32 %v81
  %v92 = vcvt.s32.f32 %v82
  %v93 = vcvt.s32.f32 %v83
  %v94 = vcvt.s32.f32 %v84
  %v95 = vcvt.s32.f32 %v85
  %v96 = vadd.f32 %v86, 0.0
  %v97 = vadd.f32 %v87, 0.0
  %v98 = vadd.f32 %v88, 0.0
  %v99 = vadd.f32 %v89, 0.0
  %v100 = vadd.f32 %v90, 0.0
  %v101 = vadd.f32 %v91, 0.0
  %v102 = vadd.f32 %v92, 0.0
  %v103 = vadd.f32 %v93, 0.0
  %v104 = vadd.f32 %v94, 0.0
  %v105 = vadd.f32 %v95, 0.0
  %vm106 = vcmp.ge.s32.totalorder %v21, 38
  %vm107 = vcmp.ge.s32.totalorder %v22, 38
  %vm108 = vcmp.ge.s32.totalorder %v23, 38
  %vm109 = vcmp.ge.s32.totalorder %v24, 38
  %vm110 = vcmp.ge.s32.totalorder %v25, 38
  %vm111 = vcmp.ge.s32.totalorder %v26, 38
  %vm112 = vcmp.ge.s32.totalorder %v27, 38
  %vm113 = vcmp.ge.s32.totalorder %v28, 38
  %vm114 = vcmp.ge.s32.totalorder %v29, 38
  %vm115 = vcmp.ge.s32.totalorder %v30, 38
  %vm116 = vcmp.lt.s32.totalorder %v21, 76
  %vm117 = vcmp.lt.s32.totalorder %v22, 76
  %vm118 = vcmp.lt.s32.totalorder %v23, 76
  %vm119 = vcmp.lt.s32.totalorder %v24, 76
  %vm120 = vcmp.lt.s32.totalorder %v25, 76
  %vm121 = vcmp.lt.s32.totalorder %v26, 76
  %vm122 = vcmp.lt.s32.totalorder %v27, 76
  %vm123 = vcmp.lt.s32.totalorder %v28, 76
  %vm124 = vcmp.lt.s32.totalorder %v29, 76
  %vm125 = vcmp.lt.s32.totalorder %v30, 76
  %vm126 = vmand %vm106, %vm116
  %vm127 = vmand %vm107, %vm117
  %vm128 = vmand %vm108, %vm118
  %vm129 = vmand %vm109, %vm119
  %vm130 = vmand %vm110, %vm120
  %vm131 = vmand %vm111, %vm121
  %vm132 = vmand %vm112, %vm122
  %vm133 = vmand %vm113, %vm123
  %vm134 = vmand %vm114, %vm124
  %vm135 = vmand %vm115, %vm125
  %vm136 = vcmp.ge.s32.totalorder %v32, 38
  %vm137 = vcmp.lt.s32.totalorder %v32, 76
  %vm138 = vmand %vm136, %vm137
  %vm139 = vmand %vm126, %vm138
  %vm140 = vmand %vm127, %vm138
  %vm141 = vmand %vm128, %vm138
  %vm142 = vmand %vm129, %vm138
  %vm143 = vmand %vm130, %vm138
  %vm144 = vmand %vm131, %vm138
  %vm145 = vmand %vm132, %vm138
  %vm146 = vmand %vm133, %vm138
  %vm147 = vmand %vm134, %vm138
  %vm148 = vmand %vm135, %vm138
  %v149 = vsel %vm139, 1, 0
  %v150 = vsel %vm140, 1, 0
  %v151 = vsel %vm141, 1, 0
  %v152 = vsel %vm142, 1, 0
  %v153 = vsel %vm143, 1, 0
  %v154 = vsel %vm144, 1, 0
  %v155 = vsel %vm145, 1, 0
  %v156 = vsel %vm146, 1, 0
  %v157 = vsel %vm147, 1, 0
  %v158 = vsel %vm148, 1, 0
  %v159 = vcvt.s32.f32 %v149
  %v160 = vcvt.s32.f32 %v150
  %v161 = vcvt.s32.f32 %v151
  %v162 = vcvt.s32.f32 %v152
  %v163 = vcvt.s32.f32 %v153
  %v164 = vcvt.s32.f32 %v154
  %v165 = vcvt.s32.f32 %v155
  %v166 = vcvt.s32.f32 %v156
  %v167 = vcvt.s32.f32 %v157
  %v168 = vcvt.s32.f32 %v158
  %v169 = vadd.f32 %v96, %v159
  %v170 = vadd.f32 %v97, %v160
  %v171 = vadd.f32 %v98, %v161
  %v172 = vadd.f32 %v99, %v162
  %v173 = vadd.f32 %v100, %v163
  %v174 = vadd.f32 %v101, %v164
  %v175 = vadd.f32 %v102, %v165
  %v176 = vadd.f32 %v103, %v166
  %v177 = vadd.f32 %v104, %v167
  %v178 = vadd.f32 %v105, %v168
  %v179 = vld [vmem:[%s0] sm:$0xff]
  %v180 = vld [vmem:[%s0 + $0x8] sm:$0xff]
  %v181 = vld [vmem:[%s0 + $0x10] sm:$0xff]
  %v182 = vld [vmem:[%s0 + $0x18] sm:$0xff]
  %v183 = vld [vmem:[%s0 + $0x20] sm:$0xff]
  %v184 = vld [vmem:[%s0 + $0x28] sm:$0xff]
  %v185 = vld [vmem:[%s0 + $0x30] sm:$0xff]
  %v186 = vld [vmem:[%s0 + $0x38] sm:$0xff]
  %v187 = vld [vmem:[%s0 + $0x40] sm:$0xff]
  %v188 = vld [vmem:[%s0 + $0x48] sm:$0xf]
  %v189 = vpack.c.bf16 %v180, %v179
  %v190 = vpack.c.bf16 %v182, %v181
  %v191 = vpack.c.bf16 %v184, %v183
  %v192 = vpack.c.bf16 %v186, %v185
  %v193 = vpack.c.bf16 %v188, %v187
  %v194 = vld [vmem:[%s1] sm:$0xf]
  %v195 = vld [vmem:[%s2 + $0x20] sm:$0x1]
  %v196 = vlaneseq
  %v197 = vshrl.u32 %v196, 7
  %v198 = vsub.s32 0, %v197
  %v199 = vrot.slane %v195, %v198
  %vm200 = vcmask 64512
  %v202 = vsel %vm200, %v189, 0
  %v205 = vsel %vm200, %v190, 0
  %v208 = vsel %vm200, %v191, 0
  %v211 = vsel %vm200, %v192, 0
  %v214 = vsel %vm200, %v193, 0
  %vm216 = vcmask 1043456
  %v218 = vsel %vm216, %v194, 0
  %220 = vmatprep.subr.bf16.mxu0 0
  %221 = vmatpush1.bf16.msra.mxu0 0
  %222 = vmatprep.subr.bf16.mxu0 0
  %223 = vmatpush1.bf16.msra.mxu0 0
  %224 = vmatprep.subr.bf16.mxu0 0
  %225 = vmatpush1.bf16.msra.mxu0 0
  %226 = vmatprep.subr.bf16.mxu0 0
  %227 = vmatpush1.bf16.msra.mxu0 0
  %228 = vmatprep.subr.bf16.mxu0 0
  %229 = vmatpush1.bf16.msra.mxu0 0
  %230 = vmatprep.subr.bf16.mxu0 0
  %231 = vmatpush1.bf16.msra.mxu0 0
  %232 = vmatprep.subr.bf16.mxu0 0
  %233 = vmatpush1.bf16.msra.mxu0 0
  %234 = vmatprep.subr.bf16.mxu0 0
  %235 = vmatpush1.bf16.msra.mxu0 %v218
  %236 = vmatprep.subr.bf16.mxu0 0
  %237 = vmatpush2.bf16.msra.mxu0 0
  %238 = vmatprep.subr.bf16.mxu0 0
  %239 = vmatpush2.bf16.msra.mxu0 0
  %240 = vmatprep.subr.bf16.mxu0 0
  %241 = vmatpush2.bf16.msra.mxu0 0
  %242 = vmatprep.subr.bf16.mxu0 0
  %243 = vmatpush2.bf16.msra.mxu0 0
  %244 = vmatprep.subr.bf16.mxu0 0
  %245 = vmatpush2.bf16.msra.mxu0 0
  %246 = vmatprep.subr.bf16.mxu0 0
  %247 = vmatpush2.bf16.msra.mxu0 0
  %248 = vmatprep.subr.bf16.mxu0 0
  %249 = vmatpush2.bf16.msra.mxu0 0
  %250 = vmatprep.subr.bf16.mxu0 0
  %251 = vmatpush2.bf16.msra.mxu0 0
  %252 = vmatprep.mubr.bf16.mxu0 0
  %253 = vmatmul.mubr.bf16.gmra.mxu0 %v202
  %v254 = vpop.f32.mrf.mxu0
  %v255 = vadd.f32 %v199, %v254
  %v256 = vpop.f32.mrf.mxu0
  %v257 = vpop.f32.mrf.mxu0
  %v258 = vadd.f32 %v199, %v257
  %v259 = vpop.f32.mrf.mxu0
  %260 = vmatprep.mubr.bf16.mxu0 0
  %261 = vmatmul.mubr.bf16.gmra.mxu0 %v205
  %v262 = vpop.f32.mrf.mxu0
  %v263 = vadd.f32 %v199, %v262
  %v264 = vpop.f32.mrf.mxu0
  %v265 = vpop.f32.mrf.mxu0
  %v266 = vadd.f32 %v199, %v265
  %v267 = vpop.f32.mrf.mxu0
  %268 = vmatprep.mubr.bf16.mxu0 0
  %269 = vmatmul.mubr.bf16.gmra.mxu0 %v208
  %v270 = vpop.f32.mrf.mxu0
  %v271 = vadd.f32 %v199, %v270
  %v272 = vpop.f32.mrf.mxu0
  %v273 = vpop.f32.mrf.mxu0
  %v274 = vadd.f32 %v199, %v273
  %v275 = vpop.f32.mrf.mxu0
  %276 = vmatprep.mubr.bf16.mxu0 0
  %277 = vmatmul.mubr.bf16.gmra.mxu0 %v211
  %v278 = vpop.f32.mrf.mxu0
  %v279 = vadd.f32 %v199, %v278
  %v280 = vpop.f32.mrf.mxu0
  %v281 = vpop.f32.mrf.mxu0
  %v282 = vadd.f32 %v199, %v281
  %v283 = vpop.f32.mrf.mxu0
  %284 = vmatprep.mubr.bf16.mxu0 0
  %285 = vmatmul.mubr.bf16.gmra.mxu0 %v214
  %v286 = vpop.f32.mrf.mxu0
  %v287 = vadd.f32 %v199, %v286
  %v288 = vpop.f32.mrf.mxu0
  %v289 = vpop.f32.mrf.mxu0
  %v290 = vadd.f32 %v199, %v289
  %v291 = vpop.f32.mrf.mxu0
  %292 = vdwg.mxu0
  %v293 = vld [vmem:[%s2 + $0x21] sm:$0x1]
  %v294 = vld [vmem:[%s2 + $0x22] sm:$0x1]
  %295 = vadd.xlane.f32.xlu0 %v255
  %v296 = vpop.xlane.xlu0 %295
  %297 = vadd.xlane.f32.xlu0 %v258
  %v298 = vpop.xlane.xlu0 %297
  %299 = vadd.xlane.f32.xlu0 %v263
  %v300 = vpop.xlane.xlu0 %299
  %301 = vadd.xlane.f32.xlu0 %v266
  %v302 = vpop.xlane.xlu0 %301
  %303 = vadd.xlane.f32.xlu0 %v271
  %v304 = vpop.xlane.xlu0 %303
  %305 = vadd.xlane.f32.xlu0 %v274
  %v306 = vpop.xlane.xlu0 %305
  %307 = vadd.xlane.f32.xlu0 %v279
  %v308 = vpop.xlane.xlu0 %307
  %309 = vadd.xlane.f32.xlu0 %v282
  %v310 = vpop.xlane.xlu0 %309
  %311 = vadd.xlane.f32.xlu0 %v287
  %v312 = vpop.xlane.xlu0 %311
  %v313 = vsel %vm216, %v290, 0.0
  %314 = vadd.xlane.f32.xlu0 %v313
  %v315 = vpop.xlane.xlu0 %314
  %v316 = vmul.f32 %v255, %v255
  %v317 = vmul.f32 %v258, %v258
  %v318 = vmul.f32 %v263, %v263
  %v319 = vmul.f32 %v266, %v266
  %v320 = vmul.f32 %v271, %v271
  %v321 = vmul.f32 %v274, %v274
  %v322 = vmul.f32 %v279, %v279
  %v323 = vmul.f32 %v282, %v282
  %v324 = vmul.f32 %v287, %v287
  %v325 = vmul.f32 %v290, %v290
  %326 = vadd.xlane.f32.xlu0 %v316
  %v327 = vpop.xlane.xlu0 %326
  %328 = vadd.xlane.f32.xlu0 %v317
  %v329 = vpop.xlane.xlu0 %328
  %330 = vadd.xlane.f32.xlu0 %v318
  %v331 = vpop.xlane.xlu0 %330
  %332 = vadd.xlane.f32.xlu0 %v319
  %v333 = vpop.xlane.xlu0 %332
  %334 = vadd.xlane.f32.xlu0 %v320
  %v335 = vpop.xlane.xlu0 %334
  %336 = vadd.xlane.f32.xlu0 %v321
  %v337 = vpop.xlane.xlu0 %336
  %338 = vadd.xlane.f32.xlu0 %v322
  %v339 = vpop.xlane.xlu0 %338
  %340 = vadd.xlane.f32.xlu0 %v323
  %v341 = vpop.xlane.xlu0 %340
  %342 = vadd.xlane.f32.xlu0 %v324
  %v343 = vpop.xlane.xlu0 %342
  %v344 = vsel %vm216, %v325, 0.0
  %345 = vadd.xlane.f32.xlu0 %v344
  %v346 = vpop.xlane.xlu0 %345
  %vm347 = vcmask 621568
  %v349 = vsel %vm347, %v169, 0
  %v352 = vsel %vm347, %v170, 0
  %v355 = vsel %vm347, %v171, 0
  %v358 = vsel %vm347, %v172, 0
  %v361 = vsel %vm347, %v173, 0
  %v364 = vsel %vm347, %v174, 0
  %v367 = vsel %vm347, %v175, 0
  %v370 = vsel %vm347, %v176, 0
  %v373 = vsel %vm347, %v177, 0
  %v376 = vsel %vm347, %v178, 0
  %v379 = vsel %vm216, %v315, 0
  %381 = vmatprep.subr.mxu0 0.0
  %382 = vmatpush1.msra.mxu0 0.0
  %383 = vmatprep.subr.mxu0 0.0
  %384 = vmatpush1.msra.mxu0 0.0
  %385 = vmatprep.subr.mxu0 0.0
  %386 = vmatpush1.msra.mxu0 0.0
  %387 = vmatprep.subr.mxu0 0.0
  %388 = vmatpush1.msra.mxu0 0.0
  %389 = vmatprep.subr.mxu0 0.0
  %390 = vmatpush1.msra.mxu0 0.0
  %391 = vmatprep.subr.mxu0 0.0
  %392 = vmatpush1.msra.mxu0 0.0
  %393 = vmatprep.subr.mxu0 0.0
  %394 = vmatpush1.msra.mxu0 %v379
  %395 = vmatprep.subr.mxu0 0.0
  %396 = vmatpush1.msra.mxu0 %v312
  %397 = vmatprep.subr.mxu0 0.0
  %398 = vmatpush1.msra.mxu0 %v310
  %399 = vmatprep.subr.mxu0 0.0
  %400 = vmatpush1.msra.mxu0 %v308
  %401 = vmatprep.subr.mxu0 0.0
  %402 = vmatpush1.msra.mxu0 %v306
  %403 = vmatprep.subr.mxu0 0.0
  %404 = vmatpush1.msra.mxu0 %v304
  %405 = vmatprep.subr.mxu0 0.0
  %406 = vmatpush1.msra.mxu0 %v302
  %407 = vmatprep.subr.mxu0 0.0
  %408 = vmatpush1.msra.mxu0 %v300
  %409 = vmatprep.subr.mxu0 0.0
  %410 = vmatpush1.msra.mxu0 %v298
  %411 = vmatprep.subr.mxu0 0.0
  %412 = vmatpush1.msra.mxu0 %v296
  %413 = vmatprep.subr.mxu0 0.0
  %414 = vmatpush2.msra.mxu0 0.0
  %415 = vmatprep.subr.mxu0 0.0
  %416 = vmatpush2.msra.mxu0 0.0
  %417 = vmatprep.subr.mxu0 0.0
  %418 = vmatpush2.msra.mxu0 0.0
  %419 = vmatprep.subr.mxu0 0.0
  %420 = vmatpush2.msra.mxu0 0.0
  %421 = vmatprep.subr.mxu0 0.0
  %422 = vmatpush2.msra.mxu0 0.0
  %423 = vmatprep.subr.mxu0 0.0
  %424 = vmatpush2.msra.mxu0 0.0
  %425 = vmatprep.subr.mxu0 0.0
  %426 = vmatpush2.msra.mxu0 0.0
  %427 = vmatprep.subr.mxu0 0.0
  %428 = vmatpush2.msra.mxu0 0.0
  %429 = vmatprep.subr.mxu0 0.0
  %430 = vmatpush2.msra.mxu0 0.0
  %431 = vmatprep.subr.mxu0 0.0
  %432 = vmatpush2.msra.mxu0 0.0
  %433 = vmatprep.subr.mxu0 0.0
  %434 = vmatpush2.msra.mxu0 0.0
  %435 = vmatprep.subr.mxu0 0.0
  %436 = vmatpush2.msra.mxu0 0.0
  %437 = vmatprep.subr.mxu0 0.0
  %438 = vmatpush2.msra.mxu0 0.0
  %439 = vmatprep.subr.mxu0 0.0
  %440 = vmatpush2.msra.mxu0 0.0
  %441 = vmatprep.subr.mxu0 0.0
  %442 = vmatpush2.msra.mxu0 0.0
  %443 = vmatprep.subr.mxu0 0.0
  %444 = vmatpush2.msra.mxu0 0.0
  %445 = vmatprep.mubr.f32.mxu0 0.0
  %446 = vmatmul.mubr.f32.gmra.mxu0 %v349
  %v447 = vpop.f32.mrf.mxu0
  %v448 = vadd.f32 0.0, %v447
  %v449 = vpop.f32.mrf.mxu0
  %450 = vmatprep.mubr.f32.mxu0 0.0
  %451 = vmatmul.mubr.f32.gmra.mxu0 %v352
  %v452 = vpop.f32.mrf.mxu0
  %v453 = vadd.f32 0.0, %v452
  %v454 = vpop.f32.mrf.mxu0
  %455 = vmatprep.mubr.f32.mxu0 0.0
  %456 = vmatmul.mubr.f32.gmra.mxu0 %v355
  %v457 = vpop.f32.mrf.mxu0
  %v458 = vadd.f32 0.0, %v457
  %v459 = vpop.f32.mrf.mxu0
  %460 = vmatprep.mubr.f32.mxu0 0.0
  %461 = vmatmul.mubr.f32.gmra.mxu0 %v358
  %v462 = vpop.f32.mrf.mxu0
  %v463 = vadd.f32 0.0, %v462
  %v464 = vpop.f32.mrf.mxu0
  %465 = vmatprep.mubr.f32.mxu0 0.0
  %466 = vmatmul.mubr.f32.gmra.mxu0 %v361
  %v467 = vpop.f32.mrf.mxu0
  %v468 = vadd.f32 0.0, %v467
  %v469 = vpop.f32.mrf.mxu0
  %470 = vmatprep.mubr.f32.mxu0 0.0
  %471 = vmatmul.mubr.f32.gmra.mxu0 %v364
  %v472 = vpop.f32.mrf.mxu0
  %v473 = vadd.f32 0.0, %v472
  %v474 = vpop.f32.mrf.mxu0
  %475 = vmatprep.mubr.f32.mxu0 0.0
  %476 = vmatmul.mubr.f32.gmra.mxu0 %v367
  %v477 = vpop.f32.mrf.mxu0
  %v478 = vadd.f32 0.0, %v477
  %v479 = vpop.f32.mrf.mxu0
  %480 = vmatprep.mubr.f32.mxu0 0.0
  %481 = vmatmul.mubr.f32.gmra.mxu0 %v370
  %v482 = vpop.f32.mrf.mxu0
  %v483 = vadd.f32 0.0, %v482
  %v484 = vpop.f32.mrf.mxu0
  %485 = vmatprep.mubr.f32.mxu0 0.0
  %486 = vmatmul.mubr.f32.gmra.mxu0 %v373
  %v487 = vpop.f32.mrf.mxu0
  %v488 = vadd.f32 0.0, %v487
  %v489 = vpop.f32.mrf.mxu0
  %490 = vmatprep.mubr.f32.mxu0 0.0
  %491 = vmatmul.mubr.f32.gmra.mxu0 %v376
  %v492 = vpop.f32.mrf.mxu0
  %v493 = vadd.f32 0.0, %v492
  %v494 = vpop.f32.mrf.mxu0
  %495 = vdwg.mxu0
  %v496 = vrcp.pop 4864.0
  %v497 = vmul.f32 %v448, %v496
  %v498 = vmul.f32 %v453, %v496
  %v499 = vmul.f32 %v458, %v496
  %v500 = vmul.f32 %v463, %v496
  %v501 = vmul.f32 %v468, %v496
  %v502 = vmul.f32 %v473, %v496
  %v503 = vmul.f32 %v478, %v496
  %v504 = vmul.f32 %v483, %v496
  %v505 = vmul.f32 %v488, %v496
  %v506 = vmul.f32 %v493, %v496
  %v508 = vsel %vm216, %v346, 0
  %510 = vmatprep.subr.mxu0 0.0
  %511 = vmatpush1.msra.mxu0 0.0
  %512 = vmatprep.subr.mxu0 0.0
  %513 = vmatpush1.msra.mxu0 0.0
  %514 = vmatprep.subr.mxu0 0.0
  %515 = vmatpush1.msra.mxu0 0.0
  %516 = vmatprep.subr.mxu0 0.0
  %517 = vmatpush1.msra.mxu0 0.0
  %518 = vmatprep.subr.mxu0 0.0
  %519 = vmatpush1.msra.mxu0 0.0
  %520 = vmatprep.subr.mxu0 0.0
  %521 = vmatpush1.msra.mxu0 0.0
  %522 = vmatprep.subr.mxu0 0.0
  %523 = vmatpush1.msra.mxu0 %v508
  %524 = vmatprep.subr.mxu0 0.0
  %525 = vmatpush1.msra.mxu0 %v343
  %526 = vmatprep.subr.mxu0 0.0
  %527 = vmatpush1.msra.mxu0 %v341
  %528 = vmatprep.subr.mxu0 0.0
  %529 = vmatpush1.msra.mxu0 %v339
  %530 = vmatprep.subr.mxu0 0.0
  %531 = vmatpush1.msra.mxu0 %v337
  %532 = vmatprep.subr.mxu0 0.0
  %533 = vmatpush1.msra.mxu0 %v335
  %534 = vmatprep.subr.mxu0 0.0
  %535 = vmatpush1.msra.mxu0 %v333
  %536 = vmatprep.subr.mxu0 0.0
  %537 = vmatpush1.msra.mxu0 %v331
  %538 = vmatprep.subr.mxu0 0.0
  %539 = vmatpush1.msra.mxu0 %v329
  %540 = vmatprep.subr.mxu0 0.0
  %541 = vmatpush1.msra.mxu0 %v327
  %542 = vmatprep.subr.mxu0 0.0
  %543 = vmatpush2.msra.mxu0 0.0
  %544 = vmatprep.subr.mxu0 0.0
  %545 = vmatpush2.msra.mxu0 0.0
  %546 = vmatprep.subr.mxu0 0.0
  %547 = vmatpush2.msra.mxu0 0.0
  %548 = vmatprep.subr.mxu0 0.0
  %549 = vmatpush2.msra.mxu0 0.0
  %550 = vmatprep.subr.mxu0 0.0
  %551 = vmatpush2.msra.mxu0 0.0
  %552 = vmatprep.subr.mxu0 0.0
  %553 = vmatpush2.msra.mxu0 0.0
  %554 = vmatprep.subr.mxu0 0.0
  %555 = vmatpush2.msra.mxu0 0.0
  %556 = vmatprep.subr.mxu0 0.0
  %557 = vmatpush2.msra.mxu0 0.0
  %558 = vmatprep.subr.mxu0 0.0
  %559 = vmatpush2.msra.mxu0 0.0
  %560 = vmatprep.subr.mxu0 0.0
  %561 = vmatpush2.msra.mxu0 0.0
  %562 = vmatprep.subr.mxu0 0.0
  %563 = vmatpush2.msra.mxu0 0.0
  %564 = vmatprep.subr.mxu0 0.0
  %565 = vmatpush2.msra.mxu0 0.0
  %566 = vmatprep.subr.mxu0 0.0
  %567 = vmatpush2.msra.mxu0 0.0
  %568 = vmatprep.subr.mxu0 0.0
  %569 = vmatpush2.msra.mxu0 0.0
  %570 = vmatprep.subr.mxu0 0.0
  %571 = vmatpush2.msra.mxu0 0.0
  %572 = vmatprep.subr.mxu0 0.0
  %573 = vmatpush2.msra.mxu0 0.0
  %574 = vmatprep.mubr.f32.mxu0 0.0
  %575 = vmatmul.mubr.f32.gmra.mxu0 %v349
  %v576 = vpop.f32.mrf.mxu0
  %v577 = vadd.f32 0.0, %v576
  %v578 = vpop.f32.mrf.mxu0
  %579 = vmatprep.mubr.f32.mxu0 0.0
  %580 = vmatmul.mubr.f32.gmra.mxu0 %v352
  %v581 = vpop.f32.mrf.mxu0
  %v582 = vadd.f32 0.0, %v581
  %v583 = vpop.f32.mrf.mxu0
  %584 = vmatprep.mubr.f32.mxu0 0.0
  %585 = vmatmul.mubr.f32.gmra.mxu0 %v355
  %v586 = vpop.f32.mrf.mxu0
  %v587 = vadd.f32 0.0, %v586
  %v588 = vpop.f32.mrf.mxu0
  %589 = vmatprep.mubr.f32.mxu0 0.0
  %590 = vmatmul.mubr.f32.gmra.mxu0 %v358
  %v591 = vpop.f32.mrf.mxu0
  %v592 = vadd.f32 0.0, %v591
  %v593 = vpop.f32.mrf.mxu0
  %594 = vmatprep.mubr.f32.mxu0 0.0
  %595 = vmatmul.mubr.f32.gmra.mxu0 %v361
  %v596 = vpop.f32.mrf.mxu0
  %v597 = vadd.f32 0.0, %v596
  %v598 = vpop.f32.mrf.mxu0
  %599 = vmatprep.mubr.f32.mxu0 0.0
  %600 = vmatmul.mubr.f32.gmra.mxu0 %v364
  %v601 = vpop.f32.mrf.mxu0
  %v602 = vadd.f32 0.0, %v601
  %v603 = vpop.f32.mrf.mxu0
  %604 = vmatprep.mubr.f32.mxu0 0.0
  %605 = vmatmul.mubr.f32.gmra.mxu0 %v367
  %v606 = vpop.f32.mrf.mxu0
  %v607 = vadd.f32 0.0, %v606
  %v608 = vpop.f32.mrf.mxu0
  %609 = vmatprep.mubr.f32.mxu0 0.0
  %610 = vmatmul.mubr.f32.gmra.mxu0 %v370
  %v611 = vpop.f32.mrf.mxu0
  %v612 = vadd.f32 0.0, %v611
  %v613 = vpop.f32.mrf.mxu0
  %614 = vmatprep.mubr.f32.mxu0 0.0
  %615 = vmatmul.mubr.f32.gmra.mxu0 %v373
  %v616 = vpop.f32.mrf.mxu0
  %v617 = vadd.f32 0.0, %v616
  %v618 = vpop.f32.mrf.mxu0
  %619 = vmatprep.mubr.f32.mxu0 0.0
  %620 = vmatmul.mubr.f32.gmra.mxu0 %v376
  %v621 = vpop.f32.mrf.mxu0
  %v622 = vadd.f32 0.0, %v621
  %v623 = vpop.f32.mrf.mxu0
  %624 = vdwg.mxu0
  %v625 = vmul.f32 %v577, %v496
  %v626 = vmul.f32 %v582, %v496
  %v627 = vmul.f32 %v587, %v496
  %v628 = vmul.f32 %v592, %v496
  %v629 = vmul.f32 %v597, %v496
  %v630 = vmul.f32 %v602, %v496
  %v631 = vmul.f32 %v607, %v496
  %v632 = vmul.f32 %v612, %v496
  %v633 = vmul.f32 %v617, %v496
  %v634 = vmul.f32 %v622, %v496
  %v635 = vmul.f32 %v497, %v497
  %v636 = vmul.f32 %v498, %v498
  %v637 = vmul.f32 %v499, %v499
  %v638 = vmul.f32 %v500, %v500
  %v639 = vmul.f32 %v501, %v501
  %v640 = vmul.f32 %v502, %v502
  %v641 = vmul.f32 %v503, %v503
  %v642 = vmul.f32 %v504, %v504
  %v643 = vmul.f32 %v505, %v505
  %v644 = vmul.f32 %v506, %v506
  %v645 = vsub.f32 %v625, %v635
  %v646 = vsub.f32 %v626, %v636
  %v647 = vsub.f32 %v627, %v637
  %v648 = vsub.f32 %v628, %v638
  %v649 = vsub.f32 %v629, %v639
  %v650 = vsub.f32 %v630, %v640
  %v651 = vsub.f32 %v631, %v641
  %v652 = vsub.f32 %v632, %v642
  %v653 = vsub.f32 %v633, %v643
  %v654 = vsub.f32 %v634, %v644
  %v655 = vmax.f32 %v645, 0.0
  %v656 = vmax.f32 %v646, 0.0
  %v657 = vmax.f32 %v647, 0.0
  %v658 = vmax.f32 %v648, 0.0
  %v659 = vmax.f32 %v649, 0.0
  %v660 = vmax.f32 %v650, 0.0
  %v661 = vmax.f32 %v651, 0.0
  %v662 = vmax.f32 %v652, 0.0
  %v663 = vmax.f32 %v653, 0.0
  %v664 = vmax.f32 %v654, 0.0
  %666 = vset.pattern.permute.xlu0 0
  %667 = vperm.xlu0 %666, %v497
  %v668 = vpop.permute.xlu0 %667
  %671 = vset.pattern.permute.xlu0 0
  %672 = vperm.xlu0 %671, %v498
  %v673 = vpop.permute.xlu0 %672
  %676 = vset.pattern.permute.xlu0 0
  %677 = vperm.xlu0 %676, %v499
  %v678 = vpop.permute.xlu0 %677
  %681 = vset.pattern.permute.xlu0 0
  %682 = vperm.xlu0 %681, %v500
  %v683 = vpop.permute.xlu0 %682
  %686 = vset.pattern.permute.xlu0 0
  %687 = vperm.xlu0 %686, %v501
  %v688 = vpop.permute.xlu0 %687
  %691 = vset.pattern.permute.xlu0 0
  %692 = vperm.xlu0 %691, %v502
  %v693 = vpop.permute.xlu0 %692
  %696 = vset.pattern.permute.xlu0 0
  %697 = vperm.xlu0 %696, %v503
  %v698 = vpop.permute.xlu0 %697
  %701 = vset.pattern.permute.xlu0 0
  %702 = vperm.xlu0 %701, %v504
  %v703 = vpop.permute.xlu0 %702
  %706 = vset.pattern.permute.xlu0 0
  %707 = vperm.xlu0 %706, %v505
  %v708 = vpop.permute.xlu0 %707
  %711 = vset.pattern.permute.xlu0 0
  %712 = vperm.xlu0 %711, %v506
  %v713 = vpop.permute.xlu0 %712
  %v715 = vsub.f32 %v255, %v668
  %v716 = vsub.f32 %v258, %v673
  %v717 = vsub.f32 %v263, %v678
  %v718 = vsub.f32 %v266, %v683
  %v719 = vsub.f32 %v271, %v688
  %v720 = vsub.f32 %v274, %v693
  %v721 = vsub.f32 %v279, %v698
  %v722 = vsub.f32 %v282, %v703
  %v723 = vsub.f32 %v287, %v708
  %v724 = vsub.f32 %v290, %v713
  %v725 = vadd.f32 %v655, 1e-05
  %v726 = vadd.f32 %v656, 1e-05
  %v727 = vadd.f32 %v657, 1e-05
  %v728 = vadd.f32 %v658, 1e-05
  %v729 = vadd.f32 %v659, 1e-05
  %v730 = vadd.f32 %v660, 1e-05
  %v731 = vadd.f32 %v661, 1e-05
  %v732 = vadd.f32 %v662, 1e-05
  %v733 = vadd.f32 %v663, 1e-05
  %v734 = vadd.f32 %v664, 1e-05
  %v735 = vrsqrt.pop %v725
  %v736 = vrsqrt.pop %v726
  %v737 = vrsqrt.pop %v727
  %v738 = vrsqrt.pop %v728
  %v739 = vrsqrt.pop %v729
  %v740 = vrsqrt.pop %v730
  %v741 = vrsqrt.pop %v731
  %v742 = vrsqrt.pop %v732
  %v743 = vrsqrt.pop %v733
  %v744 = vrsqrt.pop %v734
  %746 = vset.pattern.permute.xlu0 0
  %747 = vperm.xlu0 %746, %v735
  %v748 = vpop.permute.xlu0 %747
  %751 = vset.pattern.permute.xlu0 0
  %752 = vperm.xlu0 %751, %v736
  %v753 = vpop.permute.xlu0 %752
  %756 = vset.pattern.permute.xlu0 0
  %757 = vperm.xlu0 %756, %v737
  %v758 = vpop.permute.xlu0 %757
  %761 = vset.pattern.permute.xlu0 0
  %762 = vperm.xlu0 %761, %v738
  %v763 = vpop.permute.xlu0 %762
  %766 = vset.pattern.permute.xlu0 0
  %767 = vperm.xlu0 %766, %v739
  %v768 = vpop.permute.xlu0 %767
  %771 = vset.pattern.permute.xlu0 0
  %772 = vperm.xlu0 %771, %v740
  %v773 = vpop.permute.xlu0 %772
  %776 = vset.pattern.permute.xlu0 0
  %777 = vperm.xlu0 %776, %v741
  %v778 = vpop.permute.xlu0 %777
  %781 = vset.pattern.permute.xlu0 0
  %782 = vperm.xlu0 %781, %v742
  %v783 = vpop.permute.xlu0 %782
  %786 = vset.pattern.permute.xlu0 0
  %787 = vperm.xlu0 %786, %v743
  %v788 = vpop.permute.xlu0 %787
  %791 = vset.pattern.permute.xlu0 0
  %792 = vperm.xlu0 %791, %v744
  %v793 = vpop.permute.xlu0 %792
  %v795 = vmul.f32 %v715, %v748
  %v796 = vmul.f32 %v716, %v753
  %v797 = vmul.f32 %v717, %v758
  %v798 = vmul.f32 %v718, %v763
  %v799 = vmul.f32 %v719, %v768
  %v800 = vmul.f32 %v720, %v773
  %v801 = vmul.f32 %v721, %v778
  %v802 = vmul.f32 %v722, %v783
  %v803 = vmul.f32 %v723, %v788
  %v804 = vmul.f32 %v724, %v793
  %v805 = vlaneseq
  %v806 = vshrl.u32 %v805, 7
  %v807 = vsub.s32 0, %v806
  %v808 = vrot.slane %v293, %v807
  %v809 = vmul.f32 %v795, %v808
  %v810 = vmul.f32 %v796, %v808
  %v811 = vmul.f32 %v797, %v808
  %v812 = vmul.f32 %v798, %v808
  %v813 = vmul.f32 %v799, %v808
  %v814 = vmul.f32 %v800, %v808
  %v815 = vmul.f32 %v801, %v808
  %v816 = vmul.f32 %v802, %v808
  %v817 = vmul.f32 %v803, %v808
  %v818 = vmul.f32 %v804, %v808
  %v819 = vlaneseq
  %v820 = vshrl.u32 %v819, 7
  %v821 = vsub.s32 0, %v820
  %v822 = vrot.slane %v294, %v821
  %v823 = vadd.f32 %v809, %v822
  %v824 = vadd.f32 %v810, %v822
  %v825 = vadd.f32 %v811, %v822
  %v826 = vadd.f32 %v812, %v822
  %v827 = vadd.f32 %v813, %v822
  %v828 = vadd.f32 %v814, %v822
  %v829 = vadd.f32 %v815, %v822
  %v830 = vadd.f32 %v816, %v822
  %v831 = vadd.f32 %v817, %v822
  %v832 = vadd.f32 %v818, %v822
  %v833 = vxor.u32 %v823, 2147483648
  %v834 = vxor.u32 %v824, 2147483648
  %v835 = vxor.u32 %v825, 2147483648
  %v836 = vxor.u32 %v826, 2147483648
  %v837 = vxor.u32 %v827, 2147483648
  %v838 = vxor.u32 %v828, 2147483648
  %v839 = vxor.u32 %v829, 2147483648
  %v840 = vxor.u32 %v830, 2147483648
  %v841 = vxor.u32 %v831, 2147483648
  %v842 = vxor.u32 %v832, 2147483648
  %v843 = vmul.f32 %v833, 1.442695
  %v844 = vpow.pop %v843
  %v845 = vmul.f32 %v834, 1.442695
  %v846 = vpow.pop %v845
  %v847 = vmul.f32 %v835, 1.442695
  %v848 = vpow.pop %v847
  %v849 = vmul.f32 %v836, 1.442695
  %v850 = vpow.pop %v849
  %v851 = vmul.f32 %v837, 1.442695
  %v852 = vpow.pop %v851
  %v853 = vmul.f32 %v838, 1.442695
  %v854 = vpow.pop %v853
  %v855 = vmul.f32 %v839, 1.442695
  %v856 = vpow.pop %v855
  %v857 = vmul.f32 %v840, 1.442695
  %v858 = vpow.pop %v857
  %v859 = vmul.f32 %v841, 1.442695
  %v860 = vpow.pop %v859
  %v861 = vmul.f32 %v842, 1.442695
  %v862 = vpow.pop %v861
  %v863 = vadd.f32 %v844, 1.0
  %v864 = vadd.f32 %v846, 1.0
  %v865 = vadd.f32 %v848, 1.0
  %v866 = vadd.f32 %v850, 1.0
  %v867 = vadd.f32 %v852, 1.0
  %v868 = vadd.f32 %v854, 1.0
  %v869 = vadd.f32 %v856, 1.0
  %v870 = vadd.f32 %v858, 1.0
  %v871 = vadd.f32 %v860, 1.0
  %v872 = vadd.f32 %v862, 1.0
  %v873 = vrcp.pop %v863
  %v874 = vmul.f32 1.0, %v873
  %v875 = vrcp.pop %v864
  %v876 = vmul.f32 1.0, %v875
  %v877 = vrcp.pop %v865
  %v878 = vmul.f32 1.0, %v877
  %v879 = vrcp.pop %v866
  %v880 = vmul.f32 1.0, %v879
  %v881 = vrcp.pop %v867
  %v882 = vmul.f32 1.0, %v881
  %v883 = vrcp.pop %v868
  %v884 = vmul.f32 1.0, %v883
  %v885 = vrcp.pop %v869
  %v886 = vmul.f32 1.0, %v885
  %v887 = vrcp.pop %v870
  %v888 = vmul.f32 1.0, %v887
  %v889 = vrcp.pop %v871
  %v890 = vmul.f32 1.0, %v889
  %v891 = vrcp.pop %v872
  %v892 = vmul.f32 1.0, %v891
  %v893 = vmul.f32 %v823, %v874
  %v894 = vmul.f32 %v824, %v876
  %v895 = vmul.f32 %v825, %v878
  %v896 = vmul.f32 %v826, %v880
  %v897 = vmul.f32 %v827, %v882
  %v898 = vmul.f32 %v828, %v884
  %v899 = vmul.f32 %v829, %v886
  %v900 = vmul.f32 %v830, %v888
  %v901 = vmul.f32 %v831, %v890
  %v902 = vmul.f32 %v832, %v892
  %v903 = vpack.c.bf16 %v894, %v893
  %v904 = vpack.c.bf16 %v896, %v895
  %v905 = vpack.c.bf16 %v898, %v897
  %v906 = vpack.c.bf16 %v900, %v899
  %v907 = vpack.c.bf16 %v902, %v901
  %v908 = vld [vmem:[%s1 + $0x8] sm:$0xf]
  %v909 = vld [vmem:[%s1 + $0xc] sm:$0xf]
  %v910 = vld [vmem:[%s1 + $0x10] sm:$0xf]
  %v911 = vld [vmem:[%s1 + $0x14] sm:$0xf]
  %v912 = vld [vmem:[%s1 + $0x18] sm:$0xf]
  %v913 = vld [vmem:[%s1 + $0x1c] sm:$0xf]
  %v914 = vld [vmem:[%s1 + $0x20] sm:$0xf]
  %v915 = vld [vmem:[%s1 + $0x24] sm:$0xf]
  %v916 = vld [vmem:[%s1 + $0x28] sm:$0xf]
  %v917 = vld [vmem:[%s1 + $0x2c] sm:$0xf]
  %v918 = vld [vmem:[%s1 + $0x30] sm:$0xf]
  %v919 = vld [vmem:[%s1 + $0x34] sm:$0xf]
  %v920 = vld [vmem:[%s1 + $0x38] sm:$0xf]
  %v921 = vld [vmem:[%s1 + $0x3c] sm:$0xf]
  %v922 = vld [vmem:[%s1 + $0x40] sm:$0xf]
  %v923 = vld [vmem:[%s1 + $0x44] sm:$0xf]
  %v924 = vld [vmem:[%s2 + $0x23] sm:$0x1]
  %v925 = vlaneseq
  %v926 = vshrl.u32 %v925, 7
  %v927 = vsub.s32 0, %v926
  %v928 = vrot.slane %v924, %v927
  %v945 = vunpack.c.l.b16 %v908
  %v946 = vunpack.c.l.b16 %v909
  %v947 = vunpack.c.l.b16 %v910
  %v948 = vunpack.c.l.b16 %v911
  %v949 = vunpack.c.l.b16 %v912
  %v950 = vunpack.c.l.b16 %v913
  %v951 = vunpack.c.l.b16 %v914
  %v952 = vunpack.c.l.b16 %v915
  %v953 = vunpack.c.l.b16 %v916
  %v954 = vunpack.c.l.b16 %v917
  %v955 = vunpack.c.l.b16 %v918
  %v956 = vunpack.c.l.b16 %v919
  %v957 = vunpack.c.l.b16 %v920
  %v958 = vunpack.c.l.b16 %v921
  %v959 = vunpack.c.l.b16 %v922
  %v960 = vunpack.c.l.b16 %v923
  %v961 = vpack.c.b16 %v946, %v945
  %v962 = vpack.c.b16 %v948, %v947
  %v963 = vpack.c.b16 %v950, %v949
  %v964 = vpack.c.b16 %v952, %v951
  %v965 = vpack.c.b16 %v954, %v953
  %v966 = vpack.c.b16 %v956, %v955
  %v967 = vpack.c.b16 %v958, %v957
  %v968 = vpack.c.b16 %v960, %v959
  %977 = vmatprep.subr.bf16.mxu0 0
  %978 = vmatpush1.bf16.msra.mxu0 %v968
  %979 = vmatprep.subr.bf16.mxu0 0
  %980 = vmatpush1.bf16.msra.mxu0 %v967
  %981 = vmatprep.subr.bf16.mxu0 0
  %982 = vmatpush1.bf16.msra.mxu0 %v966
  %983 = vmatprep.subr.bf16.mxu0 0
  %984 = vmatpush1.bf16.msra.mxu0 %v965
  %985 = vmatprep.subr.bf16.mxu0 0
  %986 = vmatpush1.bf16.msra.mxu0 %v964
  %987 = vmatprep.subr.bf16.mxu0 0
  %988 = vmatpush1.bf16.msra.mxu0 %v963
  %989 = vmatprep.subr.bf16.mxu0 0
  %990 = vmatpush1.bf16.msra.mxu0 %v962
  %991 = vmatprep.subr.bf16.mxu0 0
  %992 = vmatpush1.bf16.msra.mxu0 %v961
  %993 = vmatprep.subr.bf16.mxu0 0
  %994 = vmatpush2.bf16.msra.mxu0 0
  %995 = vmatprep.subr.bf16.mxu0 0
  %996 = vmatpush2.bf16.msra.mxu0 0
  %997 = vmatprep.subr.bf16.mxu0 0
  %998 = vmatpush2.bf16.msra.mxu0 0
  %999 = vmatprep.subr.bf16.mxu0 0
  %1000 = vmatpush2.bf16.msra.mxu0 0
  %1001 = vmatprep.subr.bf16.mxu0 0
  %1002 = vmatpush2.bf16.msra.mxu0 0
  %1003 = vmatprep.subr.bf16.mxu0 0
  %1004 = vmatpush2.bf16.msra.mxu0 0
  %1005 = vmatprep.subr.bf16.mxu0 0
  %1006 = vmatpush2.bf16.msra.mxu0 0
  %1007 = vmatprep.subr.bf16.mxu0 0
  %1008 = vmatpush2.bf16.msra.mxu0 0
  %1009 = vmatprep.mubr.bf16.mxu0 0
  %1010 = vmatmul.mubr.bf16.gmra.mxu0 %v903
  %v1011 = vpop.f32.mrf.mxu0
  %v1012 = vadd.f32 %v928, %v1011
  %v1013 = vpop.f32.mrf.mxu0
  %v1014 = vpop.f32.mrf.mxu0
  %v1015 = vadd.f32 %v928, %v1014
  %v1016 = vpop.f32.mrf.mxu0
  %1017 = vmatprep.mubr.bf16.mxu0 0
  %1018 = vmatmul.mubr.bf16.gmra.mxu0 %v904
  %v1019 = vpop.f32.mrf.mxu0
  %v1020 = vadd.f32 %v928, %v1019
  %v1021 = vpop.f32.mrf.mxu0
  %v1022 = vpop.f32.mrf.mxu0
  %v1023 = vadd.f32 %v928, %v1022
  %v1024 = vpop.f32.mrf.mxu0
  %1025 = vmatprep.mubr.bf16.mxu0 0
  %1026 = vmatmul.mubr.bf16.gmra.mxu0 %v905
  %v1027 = vpop.f32.mrf.mxu0
  %v1028 = vadd.f32 %v928, %v1027
  %v1029 = vpop.f32.mrf.mxu0
  %v1030 = vpop.f32.mrf.mxu0
  %v1031 = vadd.f32 %v928, %v1030
  %v1032 = vpop.f32.mrf.mxu0
  %1033 = vmatprep.mubr.bf16.mxu0 0
  %1034 = vmatmul.mubr.bf16.gmra.mxu0 %v906
  %v1035 = vpop.f32.mrf.mxu0
  %v1036 = vadd.f32 %v928, %v1035
  %v1037 = vpop.f32.mrf.mxu0
  %v1038 = vpop.f32.mrf.mxu0
  %v1039 = vadd.f32 %v928, %v1038
  %v1040 = vpop.f32.mrf.mxu0
  %1041 = vmatprep.mubr.bf16.mxu0 0
  %1042 = vmatmul.mubr.bf16.gmra.mxu0 %v907
  %v1043 = vpop.f32.mrf.mxu0
  %v1044 = vadd.f32 %v928, %v1043
  %v1045 = vpop.f32.mrf.mxu0
  %v1046 = vpop.f32.mrf.mxu0
  %v1047 = vadd.f32 %v928, %v1046
  %v1048 = vpop.f32.mrf.mxu0
  %1049 = vdwg.mxu0
  %v1050 = vld [vmem:[%s2 + $0x24] sm:$0x1]
  %v1051 = vld [vmem:[%s2 + $0x25] sm:$0x1]
  %vm1052 = vcmask 523264
  %v1053 = vsel %vm1052, %v1012, 0.0
  %1054 = vadd.xlane.f32.xlu0 %v1053
  %v1055 = vpop.xlane.xlu0 %1054
  %v1056 = vsel %vm1052, %v1015, 0.0
  %1057 = vadd.xlane.f32.xlu0 %v1056
  %v1058 = vpop.xlane.xlu0 %1057
  %v1059 = vsel %vm1052, %v1020, 0.0
  %1060 = vadd.xlane.f32.xlu0 %v1059
  %v1061 = vpop.xlane.xlu0 %1060
  %v1062 = vsel %vm1052, %v1023, 0.0
  %1063 = vadd.xlane.f32.xlu0 %v1062
  %v1064 = vpop.xlane.xlu0 %1063
  %v1065 = vsel %vm1052, %v1028, 0.0
  %1066 = vadd.xlane.f32.xlu0 %v1065
  %v1067 = vpop.xlane.xlu0 %1066
  %v1068 = vsel %vm1052, %v1031, 0.0
  %1069 = vadd.xlane.f32.xlu0 %v1068
  %v1070 = vpop.xlane.xlu0 %1069
  %v1071 = vsel %vm1052, %v1036, 0.0
  %1072 = vadd.xlane.f32.xlu0 %v1071
  %v1073 = vpop.xlane.xlu0 %1072
  %v1074 = vsel %vm1052, %v1039, 0.0
  %1075 = vadd.xlane.f32.xlu0 %v1074
  %v1076 = vpop.xlane.xlu0 %1075
  %v1077 = vsel %vm1052, %v1044, 0.0
  %1078 = vadd.xlane.f32.xlu0 %v1077
  %v1079 = vpop.xlane.xlu0 %1078
  %vm1080 = vcmask 519168
  %v1081 = vsel %vm1080, %v1047, 0.0
  %1082 = vadd.xlane.f32.xlu0 %v1081
  %v1083 = vpop.xlane.xlu0 %1082
  %v1084 = vmul.f32 %v1012, %v1012
  %v1085 = vmul.f32 %v1015, %v1015
  %v1086 = vmul.f32 %v1020, %v1020
  %v1087 = vmul.f32 %v1023, %v1023
  %v1088 = vmul.f32 %v1028, %v1028
  %v1089 = vmul.f32 %v1031, %v1031
  %v1090 = vmul.f32 %v1036, %v1036
  %v1091 = vmul.f32 %v1039, %v1039
  %v1092 = vmul.f32 %v1044, %v1044
  %v1093 = vmul.f32 %v1047, %v1047
  %v1094 = vsel %vm1052, %v1084, 0.0
  %1095 = vadd.xlane.f32.xlu0 %v1094
  %v1096 = vpop.xlane.xlu0 %1095
  %v1097 = vsel %vm1052, %v1085, 0.0
  %1098 = vadd.xlane.f32.xlu0 %v1097
  %v1099 = vpop.xlane.xlu0 %1098
  %v1100 = vsel %vm1052, %v1086, 0.0
  %1101 = vadd.xlane.f32.xlu0 %v1100
  %v1102 = vpop.xlane.xlu0 %1101
  %v1103 = vsel %vm1052, %v1087, 0.0
  %1104 = vadd.xlane.f32.xlu0 %v1103
  %v1105 = vpop.xlane.xlu0 %1104
  %v1106 = vsel %vm1052, %v1088, 0.0
  %1107 = vadd.xlane.f32.xlu0 %v1106
  %v1108 = vpop.xlane.xlu0 %1107
  %v1109 = vsel %vm1052, %v1089, 0.0
  %1110 = vadd.xlane.f32.xlu0 %v1109
  %v1111 = vpop.xlane.xlu0 %1110
  %v1112 = vsel %vm1052, %v1090, 0.0
  %1113 = vadd.xlane.f32.xlu0 %v1112
  %v1114 = vpop.xlane.xlu0 %1113
  %v1115 = vsel %vm1052, %v1091, 0.0
  %1116 = vadd.xlane.f32.xlu0 %v1115
  %v1117 = vpop.xlane.xlu0 %1116
  %v1118 = vsel %vm1052, %v1092, 0.0
  %1119 = vadd.xlane.f32.xlu0 %v1118
  %v1120 = vpop.xlane.xlu0 %1119
  %v1121 = vsel %vm1080, %v1093, 0.0
  %1122 = vadd.xlane.f32.xlu0 %v1121
  %v1123 = vpop.xlane.xlu0 %1122
  %v1125 = vsel %vm216, %v1083, 0
  %1127 = vmatprep.subr.mxu0 0.0
  %1128 = vmatpush1.msra.mxu0 0.0
  %1129 = vmatprep.subr.mxu0 0.0
  %1130 = vmatpush1.msra.mxu0 0.0
  %1131 = vmatprep.subr.mxu0 0.0
  %1132 = vmatpush1.msra.mxu0 0.0
  %1133 = vmatprep.subr.mxu0 0.0
  %1134 = vmatpush1.msra.mxu0 0.0
  %1135 = vmatprep.subr.mxu0 0.0
  %1136 = vmatpush1.msra.mxu0 0.0
  %1137 = vmatprep.subr.mxu0 0.0
  %1138 = vmatpush1.msra.mxu0 0.0
  %1139 = vmatprep.subr.mxu0 0.0
  %1140 = vmatpush1.msra.mxu0 %v1125
  %1141 = vmatprep.subr.mxu0 0.0
  %1142 = vmatpush1.msra.mxu0 %v1079
  %1143 = vmatprep.subr.mxu0 0.0
  %1144 = vmatpush1.msra.mxu0 %v1076
  %1145 = vmatprep.subr.mxu0 0.0
  %1146 = vmatpush1.msra.mxu0 %v1073
  %1147 = vmatprep.subr.mxu0 0.0
  %1148 = vmatpush1.msra.mxu0 %v1070
  %1149 = vmatprep.subr.mxu0 0.0
  %1150 = vmatpush1.msra.mxu0 %v1067
  %1151 = vmatprep.subr.mxu0 0.0
  %1152 = vmatpush1.msra.mxu0 %v1064
  %1153 = vmatprep.subr.mxu0 0.0
  %1154 = vmatpush1.msra.mxu0 %v1061
  %1155 = vmatprep.subr.mxu0 0.0
  %1156 = vmatpush1.msra.mxu0 %v1058
  %1157 = vmatprep.subr.mxu0 0.0
  %1158 = vmatpush1.msra.mxu0 %v1055
  %1159 = vmatprep.subr.mxu0 0.0
  %1160 = vmatpush2.msra.mxu0 0.0
  %1161 = vmatprep.subr.mxu0 0.0
  %1162 = vmatpush2.msra.mxu0 0.0
  %1163 = vmatprep.subr.mxu0 0.0
  %1164 = vmatpush2.msra.mxu0 0.0
  %1165 = vmatprep.subr.mxu0 0.0
  %1166 = vmatpush2.msra.mxu0 0.0
  %1167 = vmatprep.subr.mxu0 0.0
  %1168 = vmatpush2.msra.mxu0 0.0
  %1169 = vmatprep.subr.mxu0 0.0
  %1170 = vmatpush2.msra.mxu0 0.0
  %1171 = vmatprep.subr.mxu0 0.0
  %1172 = vmatpush2.msra.mxu0 0.0
  %1173 = vmatprep.subr.mxu0 0.0
  %1174 = vmatpush2.msra.mxu0 0.0
  %1175 = vmatprep.subr.mxu0 0.0
  %1176 = vmatpush2.msra.mxu0 0.0
  %1177 = vmatprep.subr.mxu0 0.0
  %1178 = vmatpush2.msra.mxu0 0.0
  %1179 = vmatprep.subr.mxu0 0.0
  %1180 = vmatpush2.msra.mxu0 0.0
  %1181 = vmatprep.subr.mxu0 0.0
  %1182 = vmatpush2.msra.mxu0 0.0
  %1183 = vmatprep.subr.mxu0 0.0
  %1184 = vmatpush2.msra.mxu0 0.0
  %1185 = vmatprep.subr.mxu0 0.0
  %1186 = vmatpush2.msra.mxu0 0.0
  %1187 = vmatprep.subr.mxu0 0.0
  %1188 = vmatpush2.msra.mxu0 0.0
  %1189 = vmatprep.subr.mxu0 0.0
  %1190 = vmatpush2.msra.mxu0 0.0
  %1191 = vmatprep.mubr.f32.mxu0 0.0
  %1192 = vmatmul.mubr.f32.gmra.mxu0 %v349
  %v1193 = vpop.f32.mrf.mxu0
  %v1194 = vadd.f32 0.0, %v1193
  %v1195 = vpop.f32.mrf.mxu0
  %1196 = vmatprep.mubr.f32.mxu0 0.0
  %1197 = vmatmul.mubr.f32.gmra.mxu0 %v352
  %v1198 = vpop.f32.mrf.mxu0
  %v1199 = vadd.f32 0.0, %v1198
  %v1200 = vpop.f32.mrf.mxu0
  %1201 = vmatprep.mubr.f32.mxu0 0.0
  %1202 = vmatmul.mubr.f32.gmra.mxu0 %v355
  %v1203 = vpop.f32.mrf.mxu0
  %v1204 = vadd.f32 0.0, %v1203
  %v1205 = vpop.f32.mrf.mxu0
  %1206 = vmatprep.mubr.f32.mxu0 0.0
  %1207 = vmatmul.mubr.f32.gmra.mxu0 %v358
  %v1208 = vpop.f32.mrf.mxu0
  %v1209 = vadd.f32 0.0, %v1208
  %v1210 = vpop.f32.mrf.mxu0
  %1211 = vmatprep.mubr.f32.mxu0 0.0
  %1212 = vmatmul.mubr.f32.gmra.mxu0 %v361
  %v1213 = vpop.f32.mrf.mxu0
  %v1214 = vadd.f32 0.0, %v1213
  %v1215 = vpop.f32.mrf.mxu0
  %1216 = vmatprep.mubr.f32.mxu0 0.0
  %1217 = vmatmul.mubr.f32.gmra.mxu0 %v364
  %v1218 = vpop.f32.mrf.mxu0
  %v1219 = vadd.f32 0.0, %v1218
  %v1220 = vpop.f32.mrf.mxu0
  %1221 = vmatprep.mubr.f32.mxu0 0.0
  %1222 = vmatmul.mubr.f32.gmra.mxu0 %v367
  %v1223 = vpop.f32.mrf.mxu0
  %v1224 = vadd.f32 0.0, %v1223
  %v1225 = vpop.f32.mrf.mxu0
  %1226 = vmatprep.mubr.f32.mxu0 0.0
  %1227 = vmatmul.mubr.f32.gmra.mxu0 %v370
  %v1228 = vpop.f32.mrf.mxu0
  %v1229 = vadd.f32 0.0, %v1228
  %v1230 = vpop.f32.mrf.mxu0
  %1231 = vmatprep.mubr.f32.mxu0 0.0
  %1232 = vmatmul.mubr.f32.gmra.mxu0 %v373
  %v1233 = vpop.f32.mrf.mxu0
  %v1234 = vadd.f32 0.0, %v1233
  %v1235 = vpop.f32.mrf.mxu0
  %1236 = vmatprep.mubr.f32.mxu0 0.0
  %1237 = vmatmul.mubr.f32.gmra.mxu0 %v376
  %v1238 = vpop.f32.mrf.mxu0
  %v1239 = vadd.f32 0.0, %v1238
  %v1240 = vpop.f32.mrf.mxu0
  %1241 = vdwg.mxu0
  %v1242 = vrcp.pop 2432.0
  %v1243 = vmul.f32 %v1194, %v1242
  %v1244 = vmul.f32 %v1199, %v1242
  %v1245 = vmul.f32 %v1204, %v1242
  %v1246 = vmul.f32 %v1209, %v1242
  %v1247 = vmul.f32 %v1214, %v1242
  %v1248 = vmul.f32 %v1219, %v1242
  %v1249 = vmul.f32 %v1224, %v1242
  %v1250 = vmul.f32 %v1229, %v1242
  %v1251 = vmul.f32 %v1234, %v1242
  %v1252 = vmul.f32 %v1239, %v1242
  %v1254 = vsel %vm216, %v1123, 0
  %1256 = vmatprep.subr.mxu0 0.0
  %1257 = vmatpush1.msra.mxu0 0.0
  %1258 = vmatprep.subr.mxu0 0.0
  %1259 = vmatpush1.msra.mxu0 0.0
  %1260 = vmatprep.subr.mxu0 0.0
  %1261 = vmatpush1.msra.mxu0 0.0
  %1262 = vmatprep.subr.mxu0 0.0
  %1263 = vmatpush1.msra.mxu0 0.0
  %1264 = vmatprep.subr.mxu0 0.0
  %1265 = vmatpush1.msra.mxu0 0.0
  %1266 = vmatprep.subr.mxu0 0.0
  %1267 = vmatpush1.msra.mxu0 0.0
  %1268 = vmatprep.subr.mxu0 0.0
  %1269 = vmatpush1.msra.mxu0 %v1254
  %1270 = vmatprep.subr.mxu0 0.0
  %1271 = vmatpush1.msra.mxu0 %v1120
  %1272 = vmatprep.subr.mxu0 0.0
  %1273 = vmatpush1.msra.mxu0 %v1117
  %1274 = vmatprep.subr.mxu0 0.0
  %1275 = vmatpush1.msra.mxu0 %v1114
  %1276 = vmatprep.subr.mxu0 0.0
  %1277 = vmatpush1.msra.mxu0 %v1111
  %1278 = vmatprep.subr.mxu0 0.0
  %1279 = vmatpush1.msra.mxu0 %v1108
  %1280 = vmatprep.subr.mxu0 0.0
  %1281 = vmatpush1.msra.mxu0 %v1105
  %1282 = vmatprep.subr.mxu0 0.0
  %1283 = vmatpush1.msra.mxu0 %v1102
  %1284 = vmatprep.subr.mxu0 0.0
  %1285 = vmatpush1.msra.mxu0 %v1099
  %1286 = vmatprep.subr.mxu0 0.0
  %1287 = vmatpush1.msra.mxu0 %v1096
  %1288 = vmatprep.subr.mxu0 0.0
  %1289 = vmatpush2.msra.mxu0 0.0
  %1290 = vmatprep.subr.mxu0 0.0
  %1291 = vmatpush2.msra.mxu0 0.0
  %1292 = vmatprep.subr.mxu0 0.0
  %1293 = vmatpush2.msra.mxu0 0.0
  %1294 = vmatprep.subr.mxu0 0.0
  %1295 = vmatpush2.msra.mxu0 0.0
  %1296 = vmatprep.subr.mxu0 0.0
  %1297 = vmatpush2.msra.mxu0 0.0
  %1298 = vmatprep.subr.mxu0 0.0
  %1299 = vmatpush2.msra.mxu0 0.0
  %1300 = vmatprep.subr.mxu0 0.0
  %1301 = vmatpush2.msra.mxu0 0.0
  %1302 = vmatprep.subr.mxu0 0.0
  %1303 = vmatpush2.msra.mxu0 0.0
  %1304 = vmatprep.subr.mxu0 0.0
  %1305 = vmatpush2.msra.mxu0 0.0
  %1306 = vmatprep.subr.mxu0 0.0
  %1307 = vmatpush2.msra.mxu0 0.0
  %1308 = vmatprep.subr.mxu0 0.0
  %1309 = vmatpush2.msra.mxu0 0.0
  %1310 = vmatprep.subr.mxu0 0.0
  %1311 = vmatpush2.msra.mxu0 0.0
  %1312 = vmatprep.subr.mxu0 0.0
  %1313 = vmatpush2.msra.mxu0 0.0
  %1314 = vmatprep.subr.mxu0 0.0
  %1315 = vmatpush2.msra.mxu0 0.0
  %1316 = vmatprep.subr.mxu0 0.0
  %1317 = vmatpush2.msra.mxu0 0.0
  %1318 = vmatprep.subr.mxu0 0.0
  %1319 = vmatpush2.msra.mxu0 0.0
  %1320 = vmatprep.mubr.f32.mxu0 0.0
  %1321 = vmatmul.mubr.f32.gmra.mxu0 %v349
  %v1322 = vpop.f32.mrf.mxu0
  %v1323 = vadd.f32 0.0, %v1322
  %v1324 = vpop.f32.mrf.mxu0
  %1325 = vmatprep.mubr.f32.mxu0 0.0
  %1326 = vmatmul.mubr.f32.gmra.mxu0 %v352
  %v1327 = vpop.f32.mrf.mxu0
  %v1328 = vadd.f32 0.0, %v1327
  %v1329 = vpop.f32.mrf.mxu0
  %1330 = vmatprep.mubr.f32.mxu0 0.0
  %1331 = vmatmul.mubr.f32.gmra.mxu0 %v355
  %v1332 = vpop.f32.mrf.mxu0
  %v1333 = vadd.f32 0.0, %v1332
  %v1334 = vpop.f32.mrf.mxu0
  %1335 = vmatprep.mubr.f32.mxu0 0.0
  %1336 = vmatmul.mubr.f32.gmra.mxu0 %v358
  %v1337 = vpop.f32.mrf.mxu0
  %v1338 = vadd.f32 0.0, %v1337
  %v1339 = vpop.f32.mrf.mxu0
  %1340 = vmatprep.mubr.f32.mxu0 0.0
  %1341 = vmatmul.mubr.f32.gmra.mxu0 %v361
  %v1342 = vpop.f32.mrf.mxu0
  %v1343 = vadd.f32 0.0, %v1342
  %v1344 = vpop.f32.mrf.mxu0
  %1345 = vmatprep.mubr.f32.mxu0 0.0
  %1346 = vmatmul.mubr.f32.gmra.mxu0 %v364
  %v1347 = vpop.f32.mrf.mxu0
  %v1348 = vadd.f32 0.0, %v1347
  %v1349 = vpop.f32.mrf.mxu0
  %1350 = vmatprep.mubr.f32.mxu0 0.0
  %1351 = vmatmul.mubr.f32.gmra.mxu0 %v367
  %v1352 = vpop.f32.mrf.mxu0
  %v1353 = vadd.f32 0.0, %v1352
  %v1354 = vpop.f32.mrf.mxu0
  %1355 = vmatprep.mubr.f32.mxu0 0.0
  %1356 = vmatmul.mubr.f32.gmra.mxu0 %v370
  %v1357 = vpop.f32.mrf.mxu0
  %v1358 = vadd.f32 0.0, %v1357
  %v1359 = vpop.f32.mrf.mxu0
  %1360 = vmatprep.mubr.f32.mxu0 0.0
  %1361 = vmatmul.mubr.f32.gmra.mxu0 %v373
  %v1362 = vpop.f32.mrf.mxu0
  %v1363 = vadd.f32 0.0, %v1362
  %v1364 = vpop.f32.mrf.mxu0
  %1365 = vmatprep.mubr.f32.mxu0 0.0
  %1366 = vmatmul.mubr.f32.gmra.mxu0 %v376
  %v1367 = vpop.f32.mrf.mxu0
  %v1368 = vadd.f32 0.0, %v1367
  %v1369 = vpop.f32.mrf.mxu0
  %1370 = vdwg.mxu0
  %v1371 = vmul.f32 %v1323, %v1242
  %v1372 = vmul.f32 %v1328, %v1242
  %v1373 = vmul.f32 %v1333, %v1242
  %v1374 = vmul.f32 %v1338, %v1242
  %v1375 = vmul.f32 %v1343, %v1242
  %v1376 = vmul.f32 %v1348, %v1242
  %v1377 = vmul.f32 %v1353, %v1242
  %v1378 = vmul.f32 %v1358, %v1242
  %v1379 = vmul.f32 %v1363, %v1242
  %v1380 = vmul.f32 %v1368, %v1242
  %v1381 = vmul.f32 %v1243, %v1243
  %v1382 = vmul.f32 %v1244, %v1244
  %v1383 = vmul.f32 %v1245, %v1245
  %v1384 = vmul.f32 %v1246, %v1246
  %v1385 = vmul.f32 %v1247, %v1247
  %v1386 = vmul.f32 %v1248, %v1248
  %v1387 = vmul.f32 %v1249, %v1249
  %v1388 = vmul.f32 %v1250, %v1250
  %v1389 = vmul.f32 %v1251, %v1251
  %v1390 = vmul.f32 %v1252, %v1252
  %v1391 = vsub.f32 %v1371, %v1381
  %v1392 = vsub.f32 %v1372, %v1382
  %v1393 = vsub.f32 %v1373, %v1383
  %v1394 = vsub.f32 %v1374, %v1384
  %v1395 = vsub.f32 %v1375, %v1385
  %v1396 = vsub.f32 %v1376, %v1386
  %v1397 = vsub.f32 %v1377, %v1387
  %v1398 = vsub.f32 %v1378, %v1388
  %v1399 = vsub.f32 %v1379, %v1389
  %v1400 = vsub.f32 %v1380, %v1390
  %v1401 = vmax.f32 %v1391, 0.0
  %v1402 = vmax.f32 %v1392, 0.0
  %v1403 = vmax.f32 %v1393, 0.0
  %v1404 = vmax.f32 %v1394, 0.0
  %v1405 = vmax.f32 %v1395, 0.0
  %v1406 = vmax.f32 %v1396, 0.0
  %v1407 = vmax.f32 %v1397, 0.0
  %v1408 = vmax.f32 %v1398, 0.0
  %v1409 = vmax.f32 %v1399, 0.0
  %v1410 = vmax.f32 %v1400, 0.0
  %1412 = vset.pattern.permute.xlu0 0
  %1413 = vperm.xlu0 %1412, %v1243
  %v1414 = vpop.permute.xlu0 %1413
  %1417 = vset.pattern.permute.xlu0 0
  %1418 = vperm.xlu0 %1417, %v1244
  %v1419 = vpop.permute.xlu0 %1418
  %1422 = vset.pattern.permute.xlu0 0
  %1423 = vperm.xlu0 %1422, %v1245
  %v1424 = vpop.permute.xlu0 %1423
  %1427 = vset.pattern.permute.xlu0 0
  %1428 = vperm.xlu0 %1427, %v1246
  %v1429 = vpop.permute.xlu0 %1428
  %1432 = vset.pattern.permute.xlu0 0
  %1433 = vperm.xlu0 %1432, %v1247
  %v1434 = vpop.permute.xlu0 %1433
  %1437 = vset.pattern.permute.xlu0 0
  %1438 = vperm.xlu0 %1437, %v1248
  %v1439 = vpop.permute.xlu0 %1438
  %1442 = vset.pattern.permute.xlu0 0
  %1443 = vperm.xlu0 %1442, %v1249
  %v1444 = vpop.permute.xlu0 %1443
  %1447 = vset.pattern.permute.xlu0 0
  %1448 = vperm.xlu0 %1447, %v1250
  %v1449 = vpop.permute.xlu0 %1448
  %1452 = vset.pattern.permute.xlu0 0
  %1453 = vperm.xlu0 %1452, %v1251
  %v1454 = vpop.permute.xlu0 %1453
  %1457 = vset.pattern.permute.xlu0 0
  %1458 = vperm.xlu0 %1457, %v1252
  %v1459 = vpop.permute.xlu0 %1458
  %v1461 = vsub.f32 %v1012, %v1414
  %v1462 = vsub.f32 %v1015, %v1419
  %v1463 = vsub.f32 %v1020, %v1424
  %v1464 = vsub.f32 %v1023, %v1429
  %v1465 = vsub.f32 %v1028, %v1434
  %v1466 = vsub.f32 %v1031, %v1439
  %v1467 = vsub.f32 %v1036, %v1444
  %v1468 = vsub.f32 %v1039, %v1449
  %v1469 = vsub.f32 %v1044, %v1454
  %v1470 = vsub.f32 %v1047, %v1459
  %v1471 = vadd.f32 %v1401, 1e-05
  %v1472 = vadd.f32 %v1402, 1e-05
  %v1473 = vadd.f32 %v1403, 1e-05
  %v1474 = vadd.f32 %v1404, 1e-05
  %v1475 = vadd.f32 %v1405, 1e-05
  %v1476 = vadd.f32 %v1406, 1e-05
  %v1477 = vadd.f32 %v1407, 1e-05
  %v1478 = vadd.f32 %v1408, 1e-05
  %v1479 = vadd.f32 %v1409, 1e-05
  %v1480 = vadd.f32 %v1410, 1e-05
  %v1481 = vrsqrt.pop %v1471
  %v1482 = vrsqrt.pop %v1472
  %v1483 = vrsqrt.pop %v1473
  %v1484 = vrsqrt.pop %v1474
  %v1485 = vrsqrt.pop %v1475
  %v1486 = vrsqrt.pop %v1476
  %v1487 = vrsqrt.pop %v1477
  %v1488 = vrsqrt.pop %v1478
  %v1489 = vrsqrt.pop %v1479
  %v1490 = vrsqrt.pop %v1480
  %1492 = vset.pattern.permute.xlu0 0
  %1493 = vperm.xlu0 %1492, %v1481
  %v1494 = vpop.permute.xlu0 %1493
  %1497 = vset.pattern.permute.xlu0 0
  %1498 = vperm.xlu0 %1497, %v1482
  %v1499 = vpop.permute.xlu0 %1498
  %1502 = vset.pattern.permute.xlu0 0
  %1503 = vperm.xlu0 %1502, %v1483
  %v1504 = vpop.permute.xlu0 %1503
  %1507 = vset.pattern.permute.xlu0 0
  %1508 = vperm.xlu0 %1507, %v1484
  %v1509 = vpop.permute.xlu0 %1508
  %1512 = vset.pattern.permute.xlu0 0
  %1513 = vperm.xlu0 %1512, %v1485
  %v1514 = vpop.permute.xlu0 %1513
  %1517 = vset.pattern.permute.xlu0 0
  %1518 = vperm.xlu0 %1517, %v1486
  %v1519 = vpop.permute.xlu0 %1518
  %1522 = vset.pattern.permute.xlu0 0
  %1523 = vperm.xlu0 %1522, %v1487
  %v1524 = vpop.permute.xlu0 %1523
  %1527 = vset.pattern.permute.xlu0 0
  %1528 = vperm.xlu0 %1527, %v1488
  %v1529 = vpop.permute.xlu0 %1528
  %1532 = vset.pattern.permute.xlu0 0
  %1533 = vperm.xlu0 %1532, %v1489
  %v1534 = vpop.permute.xlu0 %1533
  %1537 = vset.pattern.permute.xlu0 0
  %1538 = vperm.xlu0 %1537, %v1490
  %v1539 = vpop.permute.xlu0 %1538
  %v1541 = vmul.f32 %v1461, %v1494
  %v1542 = vmul.f32 %v1462, %v1499
  %v1543 = vmul.f32 %v1463, %v1504
  %v1544 = vmul.f32 %v1464, %v1509
  %v1545 = vmul.f32 %v1465, %v1514
  %v1546 = vmul.f32 %v1466, %v1519
  %v1547 = vmul.f32 %v1467, %v1524
  %v1548 = vmul.f32 %v1468, %v1529
  %v1549 = vmul.f32 %v1469, %v1534
  %v1550 = vmul.f32 %v1470, %v1539
  %v1551 = vlaneseq
  %v1552 = vshrl.u32 %v1551, 7
  %v1553 = vsub.s32 0, %v1552
  %v1554 = vrot.slane %v1050, %v1553
  %v1555 = vmul.f32 %v1541, %v1554
  %v1556 = vmul.f32 %v1542, %v1554
  %v1557 = vmul.f32 %v1543, %v1554
  %v1558 = vmul.f32 %v1544, %v1554
  %v1559 = vmul.f32 %v1545, %v1554
  %v1560 = vmul.f32 %v1546, %v1554
  %v1561 = vmul.f32 %v1547, %v1554
  %v1562 = vmul.f32 %v1548, %v1554
  %v1563 = vmul.f32 %v1549, %v1554
  %v1564 = vmul.f32 %v1550, %v1554
  %v1565 = vlaneseq
  %v1566 = vshrl.u32 %v1565, 7
  %v1567 = vsub.s32 0, %v1566
  %v1568 = vrot.slane %v1051, %v1567
  %v1569 = vadd.f32 %v1555, %v1568
  %v1570 = vadd.f32 %v1556, %v1568
  %v1571 = vadd.f32 %v1557, %v1568
  %v1572 = vadd.f32 %v1558, %v1568
  %v1573 = vadd.f32 %v1559, %v1568
  %v1574 = vadd.f32 %v1560, %v1568
  %v1575 = vadd.f32 %v1561, %v1568
  %v1576 = vadd.f32 %v1562, %v1568
  %v1577 = vadd.f32 %v1563, %v1568
  %v1578 = vadd.f32 %v1564, %v1568
  %v1579 = vxor.u32 %v1569, 2147483648
  %v1580 = vxor.u32 %v1570, 2147483648
  %v1581 = vxor.u32 %v1571, 2147483648
  %v1582 = vxor.u32 %v1572, 2147483648
  %v1583 = vxor.u32 %v1573, 2147483648
  %v1584 = vxor.u32 %v1574, 2147483648
  %v1585 = vxor.u32 %v1575, 2147483648
  %v1586 = vxor.u32 %v1576, 2147483648
  %v1587 = vxor.u32 %v1577, 2147483648
  %v1588 = vxor.u32 %v1578, 2147483648
  %v1589 = vmul.f32 %v1579, 1.442695
  %v1590 = vpow.pop %v1589
  %v1591 = vmul.f32 %v1580, 1.442695
  %v1592 = vpow.pop %v1591
  %v1593 = vmul.f32 %v1581, 1.442695
  %v1594 = vpow.pop %v1593
  %v1595 = vmul.f32 %v1582, 1.442695
  %v1596 = vpow.pop %v1595
  %v1597 = vmul.f32 %v1583, 1.442695
  %v1598 = vpow.pop %v1597
  %v1599 = vmul.f32 %v1584, 1.442695
  %v1600 = vpow.pop %v1599
  %v1601 = vmul.f32 %v1585, 1.442695
  %v1602 = vpow.pop %v1601
  %v1603 = vmul.f32 %v1586, 1.442695
  %v1604 = vpow.pop %v1603
  %v1605 = vmul.f32 %v1587, 1.442695
  %v1606 = vpow.pop %v1605
  %v1607 = vmul.f32 %v1588, 1.442695
  %v1608 = vpow.pop %v1607
  %v1609 = vadd.f32 %v1590, 1.0
  %v1610 = vadd.f32 %v1592, 1.0
  %v1611 = vadd.f32 %v1594, 1.0
  %v1612 = vadd.f32 %v1596, 1.0
  %v1613 = vadd.f32 %v1598, 1.0
  %v1614 = vadd.f32 %v1600, 1.0
  %v1615 = vadd.f32 %v1602, 1.0
  %v1616 = vadd.f32 %v1604, 1.0
  %v1617 = vadd.f32 %v1606, 1.0
  %v1618 = vadd.f32 %v1608, 1.0
  %v1619 = vrcp.pop %v1609
  %v1620 = vmul.f32 1.0, %v1619
  %v1621 = vrcp.pop %v1610
  %v1622 = vmul.f32 1.0, %v1621
  %v1623 = vrcp.pop %v1611
  %v1624 = vmul.f32 1.0, %v1623
  %v1625 = vrcp.pop %v1612
  %v1626 = vmul.f32 1.0, %v1625
  %v1627 = vrcp.pop %v1613
  %v1628 = vmul.f32 1.0, %v1627
  %v1629 = vrcp.pop %v1614
  %v1630 = vmul.f32 1.0, %v1629
  %v1631 = vrcp.pop %v1615
  %v1632 = vmul.f32 1.0, %v1631
  %v1633 = vrcp.pop %v1616
  %v1634 = vmul.f32 1.0, %v1633
  %v1635 = vrcp.pop %v1617
  %v1636 = vmul.f32 1.0, %v1635
  %v1637 = vrcp.pop %v1618
  %v1638 = vmul.f32 1.0, %v1637
  %v1639 = vmul.f32 %v1569, %v1620
  %v1640 = vmul.f32 %v1570, %v1622
  %v1641 = vmul.f32 %v1571, %v1624
  %v1642 = vmul.f32 %v1572, %v1626
  %v1643 = vmul.f32 %v1573, %v1628
  %v1644 = vmul.f32 %v1574, %v1630
  %v1645 = vmul.f32 %v1575, %v1632
  %v1646 = vmul.f32 %v1576, %v1634
  %v1647 = vmul.f32 %v1577, %v1636
  %v1648 = vmul.f32 %v1578, %v1638
  %v1649 = vpack.c.bf16 %v1640, %v1639
  %v1650 = vpack.c.bf16 %v1642, %v1641
  %v1651 = vpack.c.bf16 %v1644, %v1643
  %v1652 = vpack.c.bf16 %v1646, %v1645
  %v1653 = vpack.c.bf16 %v1648, %v1647
  %v1654 = vld [vmem:[%s1 + $0x48] sm:$0xf]
  %v1655 = vld [vmem:[%s1 + $0x4c] sm:$0xf]
  %v1656 = vld [vmem:[%s1 + $0x50] sm:$0xf]
  %v1657 = vld [vmem:[%s1 + $0x54] sm:$0xf]
  %v1658 = vld [vmem:[%s1 + $0x58] sm:$0xf]
  %v1659 = vld [vmem:[%s1 + $0x5c] sm:$0xf]
  %v1660 = vld [vmem:[%s1 + $0x60] sm:$0xf]
  %v1661 = vld [vmem:[%s1 + $0x64] sm:$0xf]
  %v1662 = vld [vmem:[%s2 + $0x26] sm:$0x1]
  %v1663 = vlaneseq
  %v1664 = vshrl.u32 %v1663, 7
  %v1665 = vsub.s32 0, %v1664
  %v1666 = vrot.slane %v1662, %v1665
  %v1675 = vunpack.c.l.b16 %v1654
  %v1676 = vunpack.c.l.b16 %v1655
  %v1677 = vunpack.c.l.b16 %v1656
  %v1678 = vunpack.c.l.b16 %v1657
  %v1679 = vunpack.c.l.b16 %v1658
  %v1680 = vunpack.c.l.b16 %v1659
  %v1681 = vunpack.c.l.b16 %v1660
  %v1682 = vunpack.c.l.b16 %v1661
  %v1683 = vpack.c.b16 %v1676, %v1675
  %v1684 = vpack.c.b16 %v1678, %v1677
  %v1685 = vpack.c.b16 %v1680, %v1679
  %v1686 = vpack.c.b16 %v1682, %v1681
  %v1692 = vsel %vm1052, %v1649, 0
  %v1695 = vsel %vm1052, %v1650, 0
  %v1698 = vsel %vm1052, %v1651, 0
  %v1701 = vsel %vm1052, %v1652, 0
  %v1704 = vsel %vm1052, %v1653, 0
  %1706 = vmatprep.subr.bf16.mxu0 0
  %1707 = vmatpush1.bf16.msra.mxu0 0
  %1708 = vmatprep.subr.bf16.mxu0 0
  %1709 = vmatpush1.bf16.msra.mxu0 0
  %1710 = vmatprep.subr.bf16.mxu0 0
  %1711 = vmatpush1.bf16.msra.mxu0 0
  %1712 = vmatprep.subr.bf16.mxu0 0
  %1713 = vmatpush1.bf16.msra.mxu0 0
  %1714 = vmatprep.subr.bf16.mxu0 0
  %1715 = vmatpush1.bf16.msra.mxu0 %v1686
  %1716 = vmatprep.subr.bf16.mxu0 0
  %1717 = vmatpush1.bf16.msra.mxu0 %v1685
  %1718 = vmatprep.subr.bf16.mxu0 0
  %1719 = vmatpush1.bf16.msra.mxu0 %v1684
  %1720 = vmatprep.subr.bf16.mxu0 0
  %1721 = vmatpush1.bf16.msra.mxu0 %v1683
  %1722 = vmatprep.subr.bf16.mxu0 0
  %1723 = vmatpush2.bf16.msra.mxu0 0
  %1724 = vmatprep.subr.bf16.mxu0 0
  %1725 = vmatpush2.bf16.msra.mxu0 0
  %1726 = vmatprep.subr.bf16.mxu0 0
  %1727 = vmatpush2.bf16.msra.mxu0 0
  %1728 = vmatprep.subr.bf16.mxu0 0
  %1729 = vmatpush2.bf16.msra.mxu0 0
  %1730 = vmatprep.subr.bf16.mxu0 0
  %1731 = vmatpush2.bf16.msra.mxu0 0
  %1732 = vmatprep.subr.bf16.mxu0 0
  %1733 = vmatpush2.bf16.msra.mxu0 0
  %1734 = vmatprep.subr.bf16.mxu0 0
  %1735 = vmatpush2.bf16.msra.mxu0 0
  %1736 = vmatprep.subr.bf16.mxu0 0
  %1737 = vmatpush2.bf16.msra.mxu0 0
  %1738 = vmatprep.mubr.bf16.mxu0 0
  %1739 = vmatmul.mubr.bf16.gmra.mxu0 %v1692
  %v1740 = vpop.f32.mrf.mxu0
  %v1741 = vadd.f32 %v1666, %v1740
  %v1742 = vpop.f32.mrf.mxu0
  %v1743 = vpop.f32.mrf.mxu0
  %v1744 = vadd.f32 %v1666, %v1743
  %v1745 = vpop.f32.mrf.mxu0
  %1746 = vmatprep.mubr.bf16.mxu0 0
  %1747 = vmatmul.mubr.bf16.gmra.mxu0 %v1695
  %v1748 = vpop.f32.mrf.mxu0
  %v1749 = vadd.f32 %v1666, %v1748
  %v1750 = vpop.f32.mrf.mxu0
  %v1751 = vpop.f32.mrf.mxu0
  %v1752 = vadd.f32 %v1666, %v1751
  %v1753 = vpop.f32.mrf.mxu0
  %1754 = vmatprep.mubr.bf16.mxu0 0
  %1755 = vmatmul.mubr.bf16.gmra.mxu0 %v1698
  %v1756 = vpop.f32.mrf.mxu0
  %v1757 = vadd.f32 %v1666, %v1756
  %v1758 = vpop.f32.mrf.mxu0
  %v1759 = vpop.f32.mrf.mxu0
  %v1760 = vadd.f32 %v1666, %v1759
  %v1761 = vpop.f32.mrf.mxu0
  %1762 = vmatprep.mubr.bf16.mxu0 0
  %1763 = vmatmul.mubr.bf16.gmra.mxu0 %v1701
  %v1764 = vpop.f32.mrf.mxu0
  %v1765 = vadd.f32 %v1666, %v1764
  %v1766 = vpop.f32.mrf.mxu0
  %v1767 = vpop.f32.mrf.mxu0
  %v1768 = vadd.f32 %v1666, %v1767
  %v1769 = vpop.f32.mrf.mxu0
  %1770 = vmatprep.mubr.bf16.mxu0 0
  %1771 = vmatmul.mubr.bf16.gmra.mxu0 %v1704
  %v1772 = vpop.f32.mrf.mxu0
  %v1773 = vadd.f32 %v1666, %v1772
  %v1774 = vpop.f32.mrf.mxu0
  %v1775 = vpop.f32.mrf.mxu0
  %v1776 = vadd.f32 %v1666, %v1775
  %v1777 = vpop.f32.mrf.mxu0
  %1778 = vdwg.mxu0
  %v1779 = vld [vmem:[%s2 + $0x27] sm:$0x1]
  %v1780 = vld [vmem:[%s2 + $0x28] sm:$0x1]
  %vm1781 = vcmask 261120
  %v1782 = vsel %vm1781, %v1741, 0.0
  %1783 = vadd.xlane.f32.xlu0 %v1782
  %v1784 = vpop.xlane.xlu0 %1783
  %v1785 = vsel %vm1781, %v1744, 0.0
  %1786 = vadd.xlane.f32.xlu0 %v1785
  %v1787 = vpop.xlane.xlu0 %1786
  %v1788 = vsel %vm1781, %v1749, 0.0
  %1789 = vadd.xlane.f32.xlu0 %v1788
  %v1790 = vpop.xlane.xlu0 %1789
  %v1791 = vsel %vm1781, %v1752, 0.0
  %1792 = vadd.xlane.f32.xlu0 %v1791
  %v1793 = vpop.xlane.xlu0 %1792
  %v1794 = vsel %vm1781, %v1757, 0.0
  %1795 = vadd.xlane.f32.xlu0 %v1794
  %v1796 = vpop.xlane.xlu0 %1795
  %v1797 = vsel %vm1781, %v1760, 0.0
  %1798 = vadd.xlane.f32.xlu0 %v1797
  %v1799 = vpop.xlane.xlu0 %1798
  %v1800 = vsel %vm1781, %v1765, 0.0
  %1801 = vadd.xlane.f32.xlu0 %v1800
  %v1802 = vpop.xlane.xlu0 %1801
  %v1803 = vsel %vm1781, %v1768, 0.0
  %1804 = vadd.xlane.f32.xlu0 %v1803
  %v1805 = vpop.xlane.xlu0 %1804
  %v1806 = vsel %vm1781, %v1773, 0.0
  %1807 = vadd.xlane.f32.xlu0 %v1806
  %v1808 = vpop.xlane.xlu0 %1807
  %vm1809 = vcmask 257024
  %v1810 = vsel %vm1809, %v1776, 0.0
  %1811 = vadd.xlane.f32.xlu0 %v1810
  %v1812 = vpop.xlane.xlu0 %1811
  %v1813 = vmul.f32 %v1741, %v1741
  %v1814 = vmul.f32 %v1744, %v1744
  %v1815 = vmul.f32 %v1749, %v1749
  %v1816 = vmul.f32 %v1752, %v1752
  %v1817 = vmul.f32 %v1757, %v1757
  %v1818 = vmul.f32 %v1760, %v1760
  %v1819 = vmul.f32 %v1765, %v1765
  %v1820 = vmul.f32 %v1768, %v1768
  %v1821 = vmul.f32 %v1773, %v1773
  %v1822 = vmul.f32 %v1776, %v1776
  %v1823 = vsel %vm1781, %v1813, 0.0
  %1824 = vadd.xlane.f32.xlu0 %v1823
  %v1825 = vpop.xlane.xlu0 %1824
  %v1826 = vsel %vm1781, %v1814, 0.0
  %1827 = vadd.xlane.f32.xlu0 %v1826
  %v1828 = vpop.xlane.xlu0 %1827
  %v1829 = vsel %vm1781, %v1815, 0.0
  %1830 = vadd.xlane.f32.xlu0 %v1829
  %v1831 = vpop.xlane.xlu0 %1830
  %v1832 = vsel %vm1781, %v1816, 0.0
  %1833 = vadd.xlane.f32.xlu0 %v1832
  %v1834 = vpop.xlane.xlu0 %1833
  %v1835 = vsel %vm1781, %v1817, 0.0
  %1836 = vadd.xlane.f32.xlu0 %v1835
  %v1837 = vpop.xlane.xlu0 %1836
  %v1838 = vsel %vm1781, %v1818, 0.0
  %1839 = vadd.xlane.f32.xlu0 %v1838
  %v1840 = vpop.xlane.xlu0 %1839
  %v1841 = vsel %vm1781, %v1819, 0.0
  %1842 = vadd.xlane.f32.xlu0 %v1841
  %v1843 = vpop.xlane.xlu0 %1842
  %v1844 = vsel %vm1781, %v1820, 0.0
  %1845 = vadd.xlane.f32.xlu0 %v1844
  %v1846 = vpop.xlane.xlu0 %1845
  %v1847 = vsel %vm1781, %v1821, 0.0
  %1848 = vadd.xlane.f32.xlu0 %v1847
  %v1849 = vpop.xlane.xlu0 %1848
  %v1850 = vsel %vm1809, %v1822, 0.0
  %1851 = vadd.xlane.f32.xlu0 %v1850
  %v1852 = vpop.xlane.xlu0 %1851
  %v1854 = vsel %vm216, %v1812, 0
  %1856 = vmatprep.subr.mxu0 0.0
  %1857 = vmatpush1.msra.mxu0 0.0
  %1858 = vmatprep.subr.mxu0 0.0
  %1859 = vmatpush1.msra.mxu0 0.0
  %1860 = vmatprep.subr.mxu0 0.0
  %1861 = vmatpush1.msra.mxu0 0.0
  %1862 = vmatprep.subr.mxu0 0.0
  %1863 = vmatpush1.msra.mxu0 0.0
  %1864 = vmatprep.subr.mxu0 0.0
  %1865 = vmatpush1.msra.mxu0 0.0
  %1866 = vmatprep.subr.mxu0 0.0
  %1867 = vmatpush1.msra.mxu0 0.0
  %1868 = vmatprep.subr.mxu0 0.0
  %1869 = vmatpush1.msra.mxu0 %v1854
  %1870 = vmatprep.subr.mxu0 0.0
  %1871 = vmatpush1.msra.mxu0 %v1808
  %1872 = vmatprep.subr.mxu0 0.0
  %1873 = vmatpush1.msra.mxu0 %v1805
  %1874 = vmatprep.subr.mxu0 0.0
  %1875 = vmatpush1.msra.mxu0 %v1802
  %1876 = vmatprep.subr.mxu0 0.0
  %1877 = vmatpush1.msra.mxu0 %v1799
  %1878 = vmatprep.subr.mxu0 0.0
  %1879 = vmatpush1.msra.mxu0 %v1796
  %1880 = vmatprep.subr.mxu0 0.0
  %1881 = vmatpush1.msra.mxu0 %v1793
  %1882 = vmatprep.subr.mxu0 0.0
  %1883 = vmatpush1.msra.mxu0 %v1790
  %1884 = vmatprep.subr.mxu0 0.0
  %1885 = vmatpush1.msra.mxu0 %v1787
  %1886 = vmatprep.subr.mxu0 0.0
  %1887 = vmatpush1.msra.mxu0 %v1784
  %1888 = vmatprep.subr.mxu0 0.0
  %1889 = vmatpush2.msra.mxu0 0.0
  %1890 = vmatprep.subr.mxu0 0.0
  %1891 = vmatpush2.msra.mxu0 0.0
  %1892 = vmatprep.subr.mxu0 0.0
  %1893 = vmatpush2.msra.mxu0 0.0
  %1894 = vmatprep.subr.mxu0 0.0
  %1895 = vmatpush2.msra.mxu0 0.0
  %1896 = vmatprep.subr.mxu0 0.0
  %1897 = vmatpush2.msra.mxu0 0.0
  %1898 = vmatprep.subr.mxu0 0.0
  %1899 = vmatpush2.msra.mxu0 0.0
  %1900 = vmatprep.subr.mxu0 0.0
  %1901 = vmatpush2.msra.mxu0 0.0
  %1902 = vmatprep.subr.mxu0 0.0
  %1903 = vmatpush2.msra.mxu0 0.0
  %1904 = vmatprep.subr.mxu0 0.0
  %1905 = vmatpush2.msra.mxu0 0.0
  %1906 = vmatprep.subr.mxu0 0.0
  %1907 = vmatpush2.msra.mxu0 0.0
  %1908 = vmatprep.subr.mxu0 0.0
  %1909 = vmatpush2.msra.mxu0 0.0
  %1910 = vmatprep.subr.mxu0 0.0
  %1911 = vmatpush2.msra.mxu0 0.0
  %1912 = vmatprep.subr.mxu0 0.0
  %1913 = vmatpush2.msra.mxu0 0.0
  %1914 = vmatprep.subr.mxu0 0.0
  %1915 = vmatpush2.msra.mxu0 0.0
  %1916 = vmatprep.subr.mxu0 0.0
  %1917 = vmatpush2.msra.mxu0 0.0
  %1918 = vmatprep.subr.mxu0 0.0
  %1919 = vmatpush2.msra.mxu0 0.0
  %1920 = vmatprep.mubr.f32.mxu0 0.0
  %1921 = vmatmul.mubr.f32.gmra.mxu0 %v349
  %v1922 = vpop.f32.mrf.mxu0
  %v1923 = vadd.f32 0.0, %v1922
  %v1924 = vpop.f32.mrf.mxu0
  %1925 = vmatprep.mubr.f32.mxu0 0.0
  %1926 = vmatmul.mubr.f32.gmra.mxu0 %v352
  %v1927 = vpop.f32.mrf.mxu0
  %v1928 = vadd.f32 0.0, %v1927
  %v1929 = vpop.f32.mrf.mxu0
  %1930 = vmatprep.mubr.f32.mxu0 0.0
  %1931 = vmatmul.mubr.f32.gmra.mxu0 %v355
  %v1932 = vpop.f32.mrf.mxu0
  %v1933 = vadd.f32 0.0, %v1932
  %v1934 = vpop.f32.mrf.mxu0
  %1935 = vmatprep.mubr.f32.mxu0 0.0
  %1936 = vmatmul.mubr.f32.gmra.mxu0 %v358
  %v1937 = vpop.f32.mrf.mxu0
  %v1938 = vadd.f32 0.0, %v1937
  %v1939 = vpop.f32.mrf.mxu0
  %1940 = vmatprep.mubr.f32.mxu0 0.0
  %1941 = vmatmul.mubr.f32.gmra.mxu0 %v361
  %v1942 = vpop.f32.mrf.mxu0
  %v1943 = vadd.f32 0.0, %v1942
  %v1944 = vpop.f32.mrf.mxu0
  %1945 = vmatprep.mubr.f32.mxu0 0.0
  %1946 = vmatmul.mubr.f32.gmra.mxu0 %v364
  %v1947 = vpop.f32.mrf.mxu0
  %v1948 = vadd.f32 0.0, %v1947
  %v1949 = vpop.f32.mrf.mxu0
  %1950 = vmatprep.mubr.f32.mxu0 0.0
  %1951 = vmatmul.mubr.f32.gmra.mxu0 %v367
  %v1952 = vpop.f32.mrf.mxu0
  %v1953 = vadd.f32 0.0, %v1952
  %v1954 = vpop.f32.mrf.mxu0
  %1955 = vmatprep.mubr.f32.mxu0 0.0
  %1956 = vmatmul.mubr.f32.gmra.mxu0 %v370
  %v1957 = vpop.f32.mrf.mxu0
  %v1958 = vadd.f32 0.0, %v1957
  %v1959 = vpop.f32.mrf.mxu0
  %1960 = vmatprep.mubr.f32.mxu0 0.0
  %1961 = vmatmul.mubr.f32.gmra.mxu0 %v373
  %v1962 = vpop.f32.mrf.mxu0
  %v1963 = vadd.f32 0.0, %v1962
  %v1964 = vpop.f32.mrf.mxu0
  %1965 = vmatprep.mubr.f32.mxu0 0.0
  %1966 = vmatmul.mubr.f32.gmra.mxu0 %v376
  %v1967 = vpop.f32.mrf.mxu0
  %v1968 = vadd.f32 0.0, %v1967
  %v1969 = vpop.f32.mrf.mxu0
  %1970 = vdwg.mxu0
  %v1971 = vrcp.pop 1216.0
  %v1972 = vmul.f32 %v1923, %v1971
  %v1973 = vmul.f32 %v1928, %v1971
  %v1974 = vmul.f32 %v1933, %v1971
  %v1975 = vmul.f32 %v1938, %v1971
  %v1976 = vmul.f32 %v1943, %v1971
  %v1977 = vmul.f32 %v1948, %v1971
  %v1978 = vmul.f32 %v1953, %v1971
  %v1979 = vmul.f32 %v1958, %v1971
  %v1980 = vmul.f32 %v1963, %v1971
  %v1981 = vmul.f32 %v1968, %v1971
  %v1983 = vsel %vm216, %v1852, 0
  %1985 = vmatprep.subr.mxu0 0.0
  %1986 = vmatpush1.msra.mxu0 0.0
  %1987 = vmatprep.subr.mxu0 0.0
  %1988 = vmatpush1.msra.mxu0 0.0
  %1989 = vmatprep.subr.mxu0 0.0
  %1990 = vmatpush1.msra.mxu0 0.0
  %1991 = vmatprep.subr.mxu0 0.0
  %1992 = vmatpush1.msra.mxu0 0.0
  %1993 = vmatprep.subr.mxu0 0.0
  %1994 = vmatpush1.msra.mxu0 0.0
  %1995 = vmatprep.subr.mxu0 0.0
  %1996 = vmatpush1.msra.mxu0 0.0
  %1997 = vmatprep.subr.mxu0 0.0
  %1998 = vmatpush1.msra.mxu0 %v1983
  %1999 = vmatprep.subr.mxu0 0.0
  %2000 = vmatpush1.msra.mxu0 %v1849
  %2001 = vmatprep.subr.mxu0 0.0
  %2002 = vmatpush1.msra.mxu0 %v1846
  %2003 = vmatprep.subr.mxu0 0.0
  %2004 = vmatpush1.msra.mxu0 %v1843
  %2005 = vmatprep.subr.mxu0 0.0
  %2006 = vmatpush1.msra.mxu0 %v1840
  %2007 = vmatprep.subr.mxu0 0.0
  %2008 = vmatpush1.msra.mxu0 %v1837
  %2009 = vmatprep.subr.mxu0 0.0
  %2010 = vmatpush1.msra.mxu0 %v1834
  %2011 = vmatprep.subr.mxu0 0.0
  %2012 = vmatpush1.msra.mxu0 %v1831
  %2013 = vmatprep.subr.mxu0 0.0
  %2014 = vmatpush1.msra.mxu0 %v1828
  %2015 = vmatprep.subr.mxu0 0.0
  %2016 = vmatpush1.msra.mxu0 %v1825
  %2017 = vmatprep.subr.mxu0 0.0
  %2018 = vmatpush2.msra.mxu0 0.0
  %2019 = vmatprep.subr.mxu0 0.0
  %2020 = vmatpush2.msra.mxu0 0.0
  %2021 = vmatprep.subr.mxu0 0.0
  %2022 = vmatpush2.msra.mxu0 0.0
  %2023 = vmatprep.subr.mxu0 0.0
  %2024 = vmatpush2.msra.mxu0 0.0
  %2025 = vmatprep.subr.mxu0 0.0
  %2026 = vmatpush2.msra.mxu0 0.0
  %2027 = vmatprep.subr.mxu0 0.0
  %2028 = vmatpush2.msra.mxu0 0.0
  %2029 = vmatprep.subr.mxu0 0.0
  %2030 = vmatpush2.msra.mxu0 0.0
  %2031 = vmatprep.subr.mxu0 0.0
  %2032 = vmatpush2.msra.mxu0 0.0
  %2033 = vmatprep.subr.mxu0 0.0
  %2034 = vmatpush2.msra.mxu0 0.0
  %2035 = vmatprep.subr.mxu0 0.0
  %2036 = vmatpush2.msra.mxu0 0.0
  %2037 = vmatprep.subr.mxu0 0.0
  %2038 = vmatpush2.msra.mxu0 0.0
  %2039 = vmatprep.subr.mxu0 0.0
  %2040 = vmatpush2.msra.mxu0 0.0
  %2041 = vmatprep.subr.mxu0 0.0
  %2042 = vmatpush2.msra.mxu0 0.0
  %2043 = vmatprep.subr.mxu0 0.0
  %2044 = vmatpush2.msra.mxu0 0.0
  %2045 = vmatprep.subr.mxu0 0.0
  %2046 = vmatpush2.msra.mxu0 0.0
  %2047 = vmatprep.subr.mxu0 0.0
  %2048 = vmatpush2.msra.mxu0 0.0
  %2049 = vmatprep.mubr.f32.mxu0 0.0
  %2050 = vmatmul.mubr.f32.gmra.mxu0 %v349
  %v2051 = vpop.f32.mrf.mxu0
  %v2052 = vadd.f32 0.0, %v2051
  %v2053 = vpop.f32.mrf.mxu0
  %2054 = vmatprep.mubr.f32.mxu0 0.0
  %2055 = vmatmul.mubr.f32.gmra.mxu0 %v352
  %v2056 = vpop.f32.mrf.mxu0
  %v2057 = vadd.f32 0.0, %v2056
  %v2058 = vpop.f32.mrf.mxu0
  %2059 = vmatprep.mubr.f32.mxu0 0.0
  %2060 = vmatmul.mubr.f32.gmra.mxu0 %v355
  %v2061 = vpop.f32.mrf.mxu0
  %v2062 = vadd.f32 0.0, %v2061
  %v2063 = vpop.f32.mrf.mxu0
  %2064 = vmatprep.mubr.f32.mxu0 0.0
  %2065 = vmatmul.mubr.f32.gmra.mxu0 %v358
  %v2066 = vpop.f32.mrf.mxu0
  %v2067 = vadd.f32 0.0, %v2066
  %v2068 = vpop.f32.mrf.mxu0
  %2069 = vmatprep.mubr.f32.mxu0 0.0
  %2070 = vmatmul.mubr.f32.gmra.mxu0 %v361
  %v2071 = vpop.f32.mrf.mxu0
  %v2072 = vadd.f32 0.0, %v2071
  %v2073 = vpop.f32.mrf.mxu0
  %2074 = vmatprep.mubr.f32.mxu0 0.0
  %2075 = vmatmul.mubr.f32.gmra.mxu0 %v364
  %v2076 = vpop.f32.mrf.mxu0
  %v2077 = vadd.f32 0.0, %v2076
  %v2078 = vpop.f32.mrf.mxu0
  %2079 = vmatprep.mubr.f32.mxu0 0.0
  %2080 = vmatmul.mubr.f32.gmra.mxu0 %v367
  %v2081 = vpop.f32.mrf.mxu0
  %v2082 = vadd.f32 0.0, %v2081
  %v2083 = vpop.f32.mrf.mxu0
  %2084 = vmatprep.mubr.f32.mxu0 0.0
  %2085 = vmatmul.mubr.f32.gmra.mxu0 %v370
  %v2086 = vpop.f32.mrf.mxu0
  %v2087 = vadd.f32 0.0, %v2086
  %v2088 = vpop.f32.mrf.mxu0
  %2089 = vmatprep.mubr.f32.mxu0 0.0
  %2090 = vmatmul.mubr.f32.gmra.mxu0 %v373
  %v2091 = vpop.f32.mrf.mxu0
  %v2092 = vadd.f32 0.0, %v2091
  %v2093 = vpop.f32.mrf.mxu0
  %2094 = vmatprep.mubr.f32.mxu0 0.0
  %2095 = vmatmul.mubr.f32.gmra.mxu0 %v376
  %v2096 = vpop.f32.mrf.mxu0
  %v2097 = vadd.f32 0.0, %v2096
  %v2098 = vpop.f32.mrf.mxu0
  %2099 = vdwg.mxu0
  %v2100 = vmul.f32 %v2052, %v1971
  %v2101 = vmul.f32 %v2057, %v1971
  %v2102 = vmul.f32 %v2062, %v1971
  %v2103 = vmul.f32 %v2067, %v1971
  %v2104 = vmul.f32 %v2072, %v1971
  %v2105 = vmul.f32 %v2077, %v1971
  %v2106 = vmul.f32 %v2082, %v1971
  %v2107 = vmul.f32 %v2087, %v1971
  %v2108 = vmul.f32 %v2092, %v1971
  %v2109 = vmul.f32 %v2097, %v1971
  %v2110 = vmul.f32 %v1972, %v1972
  %v2111 = vmul.f32 %v1973, %v1973
  %v2112 = vmul.f32 %v1974, %v1974
  %v2113 = vmul.f32 %v1975, %v1975
  %v2114 = vmul.f32 %v1976, %v1976
  %v2115 = vmul.f32 %v1977, %v1977
  %v2116 = vmul.f32 %v1978, %v1978
  %v2117 = vmul.f32 %v1979, %v1979
  %v2118 = vmul.f32 %v1980, %v1980
  %v2119 = vmul.f32 %v1981, %v1981
  %v2120 = vsub.f32 %v2100, %v2110
  %v2121 = vsub.f32 %v2101, %v2111
  %v2122 = vsub.f32 %v2102, %v2112
  %v2123 = vsub.f32 %v2103, %v2113
  %v2124 = vsub.f32 %v2104, %v2114
  %v2125 = vsub.f32 %v2105, %v2115
  %v2126 = vsub.f32 %v2106, %v2116
  %v2127 = vsub.f32 %v2107, %v2117
  %v2128 = vsub.f32 %v2108, %v2118
  %v2129 = vsub.f32 %v2109, %v2119
  %v2130 = vmax.f32 %v2120, 0.0
  %v2131 = vmax.f32 %v2121, 0.0
  %v2132 = vmax.f32 %v2122, 0.0
  %v2133 = vmax.f32 %v2123, 0.0
  %v2134 = vmax.f32 %v2124, 0.0
  %v2135 = vmax.f32 %v2125, 0.0
  %v2136 = vmax.f32 %v2126, 0.0
  %v2137 = vmax.f32 %v2127, 0.0
  %v2138 = vmax.f32 %v2128, 0.0
  %v2139 = vmax.f32 %v2129, 0.0
  %2141 = vset.pattern.permute.xlu0 0
  %2142 = vperm.xlu0 %2141, %v1972
  %v2143 = vpop.permute.xlu0 %2142
  %2146 = vset.pattern.permute.xlu0 0
  %2147 = vperm.xlu0 %2146, %v1973
  %v2148 = vpop.permute.xlu0 %2147
  %2151 = vset.pattern.permute.xlu0 0
  %2152 = vperm.xlu0 %2151, %v1974
  %v2153 = vpop.permute.xlu0 %2152
  %2156 = vset.pattern.permute.xlu0 0
  %2157 = vperm.xlu0 %2156, %v1975
  %v2158 = vpop.permute.xlu0 %2157
  %2161 = vset.pattern.permute.xlu0 0
  %2162 = vperm.xlu0 %2161, %v1976
  %v2163 = vpop.permute.xlu0 %2162
  %2166 = vset.pattern.permute.xlu0 0
  %2167 = vperm.xlu0 %2166, %v1977
  %v2168 = vpop.permute.xlu0 %2167
  %2171 = vset.pattern.permute.xlu0 0
  %2172 = vperm.xlu0 %2171, %v1978
  %v2173 = vpop.permute.xlu0 %2172
  %2176 = vset.pattern.permute.xlu0 0
  %2177 = vperm.xlu0 %2176, %v1979
  %v2178 = vpop.permute.xlu0 %2177
  %2181 = vset.pattern.permute.xlu0 0
  %2182 = vperm.xlu0 %2181, %v1980
  %v2183 = vpop.permute.xlu0 %2182
  %2186 = vset.pattern.permute.xlu0 0
  %2187 = vperm.xlu0 %2186, %v1981
  %v2188 = vpop.permute.xlu0 %2187
  %v2190 = vsub.f32 %v1741, %v2143
  %v2191 = vsub.f32 %v1744, %v2148
  %v2192 = vsub.f32 %v1749, %v2153
  %v2193 = vsub.f32 %v1752, %v2158
  %v2194 = vsub.f32 %v1757, %v2163
  %v2195 = vsub.f32 %v1760, %v2168
  %v2196 = vsub.f32 %v1765, %v2173
  %v2197 = vsub.f32 %v1768, %v2178
  %v2198 = vsub.f32 %v1773, %v2183
  %v2199 = vsub.f32 %v1776, %v2188
  %v2200 = vadd.f32 %v2130, 1e-05
  %v2201 = vadd.f32 %v2131, 1e-05
  %v2202 = vadd.f32 %v2132, 1e-05
  %v2203 = vadd.f32 %v2133, 1e-05
  %v2204 = vadd.f32 %v2134, 1e-05
  %v2205 = vadd.f32 %v2135, 1e-05
  %v2206 = vadd.f32 %v2136, 1e-05
  %v2207 = vadd.f32 %v2137, 1e-05
  %v2208 = vadd.f32 %v2138, 1e-05
  %v2209 = vadd.f32 %v2139, 1e-05
  %v2210 = vrsqrt.pop %v2200
  %v2211 = vrsqrt.pop %v2201
  %v2212 = vrsqrt.pop %v2202
  %v2213 = vrsqrt.pop %v2203
  %v2214 = vrsqrt.pop %v2204
  %v2215 = vrsqrt.pop %v2205
  %v2216 = vrsqrt.pop %v2206
  %v2217 = vrsqrt.pop %v2207
  %v2218 = vrsqrt.pop %v2208
  %v2219 = vrsqrt.pop %v2209
  %2221 = vset.pattern.permute.xlu0 0
  %2222 = vperm.xlu0 %2221, %v2210
  %v2223 = vpop.permute.xlu0 %2222
  %2226 = vset.pattern.permute.xlu0 0
  %2227 = vperm.xlu0 %2226, %v2211
  %v2228 = vpop.permute.xlu0 %2227
  %2231 = vset.pattern.permute.xlu0 0
  %2232 = vperm.xlu0 %2231, %v2212
  %v2233 = vpop.permute.xlu0 %2232
  %2236 = vset.pattern.permute.xlu0 0
  %2237 = vperm.xlu0 %2236, %v2213
  %v2238 = vpop.permute.xlu0 %2237
  %2241 = vset.pattern.permute.xlu0 0
  %2242 = vperm.xlu0 %2241, %v2214
  %v2243 = vpop.permute.xlu0 %2242
  %2246 = vset.pattern.permute.xlu0 0
  %2247 = vperm.xlu0 %2246, %v2215
  %v2248 = vpop.permute.xlu0 %2247
  %2251 = vset.pattern.permute.xlu0 0
  %2252 = vperm.xlu0 %2251, %v2216
  %v2253 = vpop.permute.xlu0 %2252
  %2256 = vset.pattern.permute.xlu0 0
  %2257 = vperm.xlu0 %2256, %v2217
  %v2258 = vpop.permute.xlu0 %2257
  %2261 = vset.pattern.permute.xlu0 0
  %2262 = vperm.xlu0 %2261, %v2218
  %v2263 = vpop.permute.xlu0 %2262
  %2266 = vset.pattern.permute.xlu0 0
  %2267 = vperm.xlu0 %2266, %v2219
  %v2268 = vpop.permute.xlu0 %2267
  %v2270 = vmul.f32 %v2190, %v2223
  %v2271 = vmul.f32 %v2191, %v2228
  %v2272 = vmul.f32 %v2192, %v2233
  %v2273 = vmul.f32 %v2193, %v2238
  %v2274 = vmul.f32 %v2194, %v2243
  %v2275 = vmul.f32 %v2195, %v2248
  %v2276 = vmul.f32 %v2196, %v2253
  %v2277 = vmul.f32 %v2197, %v2258
  %v2278 = vmul.f32 %v2198, %v2263
  %v2279 = vmul.f32 %v2199, %v2268
  %v2280 = vlaneseq
  %v2281 = vshrl.u32 %v2280, 7
  %v2282 = vsub.s32 0, %v2281
  %v2283 = vrot.slane %v1779, %v2282
  %v2284 = vmul.f32 %v2270, %v2283
  %v2285 = vmul.f32 %v2271, %v2283
  %v2286 = vmul.f32 %v2272, %v2283
  %v2287 = vmul.f32 %v2273, %v2283
  %v2288 = vmul.f32 %v2274, %v2283
  %v2289 = vmul.f32 %v2275, %v2283
  %v2290 = vmul.f32 %v2276, %v2283
  %v2291 = vmul.f32 %v2277, %v2283
  %v2292 = vmul.f32 %v2278, %v2283
  %v2293 = vmul.f32 %v2279, %v2283
  %v2294 = vlaneseq
  %v2295 = vshrl.u32 %v2294, 7
  %v2296 = vsub.s32 0, %v2295
  %v2297 = vrot.slane %v1780, %v2296
  %v2298 = vadd.f32 %v2284, %v2297
  %v2299 = vadd.f32 %v2285, %v2297
  %v2300 = vadd.f32 %v2286, %v2297
  %v2301 = vadd.f32 %v2287, %v2297
  %v2302 = vadd.f32 %v2288, %v2297
  %v2303 = vadd.f32 %v2289, %v2297
  %v2304 = vadd.f32 %v2290, %v2297
  %v2305 = vadd.f32 %v2291, %v2297
  %v2306 = vadd.f32 %v2292, %v2297
  %v2307 = vadd.f32 %v2293, %v2297
  %v2308 = vxor.u32 %v2298, 2147483648
  %v2309 = vxor.u32 %v2299, 2147483648
  %v2310 = vxor.u32 %v2300, 2147483648
  %v2311 = vxor.u32 %v2301, 2147483648
  %v2312 = vxor.u32 %v2302, 2147483648
  %v2313 = vxor.u32 %v2303, 2147483648
  %v2314 = vxor.u32 %v2304, 2147483648
  %v2315 = vxor.u32 %v2305, 2147483648
  %v2316 = vxor.u32 %v2306, 2147483648
  %v2317 = vxor.u32 %v2307, 2147483648
  %v2318 = vmul.f32 %v2308, 1.442695
  %v2319 = vpow.pop %v2318
  %v2320 = vmul.f32 %v2309, 1.442695
  %v2321 = vpow.pop %v2320
  %v2322 = vmul.f32 %v2310, 1.442695
  %v2323 = vpow.pop %v2322
  %v2324 = vmul.f32 %v2311, 1.442695
  %v2325 = vpow.pop %v2324
  %v2326 = vmul.f32 %v2312, 1.442695
  %v2327 = vpow.pop %v2326
  %v2328 = vmul.f32 %v2313, 1.442695
  %v2329 = vpow.pop %v2328
  %v2330 = vmul.f32 %v2314, 1.442695
  %v2331 = vpow.pop %v2330
  %v2332 = vmul.f32 %v2315, 1.442695
  %v2333 = vpow.pop %v2332
  %v2334 = vmul.f32 %v2316, 1.442695
  %v2335 = vpow.pop %v2334
  %v2336 = vmul.f32 %v2317, 1.442695
  %v2337 = vpow.pop %v2336
  %v2338 = vadd.f32 %v2319, 1.0
  %v2339 = vadd.f32 %v2321, 1.0
  %v2340 = vadd.f32 %v2323, 1.0
  %v2341 = vadd.f32 %v2325, 1.0
  %v2342 = vadd.f32 %v2327, 1.0
  %v2343 = vadd.f32 %v2329, 1.0
  %v2344 = vadd.f32 %v2331, 1.0
  %v2345 = vadd.f32 %v2333, 1.0
  %v2346 = vadd.f32 %v2335, 1.0
  %v2347 = vadd.f32 %v2337, 1.0
  %v2348 = vrcp.pop %v2338
  %v2349 = vmul.f32 1.0, %v2348
  %v2350 = vrcp.pop %v2339
  %v2351 = vmul.f32 1.0, %v2350
  %v2352 = vrcp.pop %v2340
  %v2353 = vmul.f32 1.0, %v2352
  %v2354 = vrcp.pop %v2341
  %v2355 = vmul.f32 1.0, %v2354
  %v2356 = vrcp.pop %v2342
  %v2357 = vmul.f32 1.0, %v2356
  %v2358 = vrcp.pop %v2343
  %v2359 = vmul.f32 1.0, %v2358
  %v2360 = vrcp.pop %v2344
  %v2361 = vmul.f32 1.0, %v2360
  %v2362 = vrcp.pop %v2345
  %v2363 = vmul.f32 1.0, %v2362
  %v2364 = vrcp.pop %v2346
  %v2365 = vmul.f32 1.0, %v2364
  %v2366 = vrcp.pop %v2347
  %v2367 = vmul.f32 1.0, %v2366
  %v2368 = vmul.f32 %v2298, %v2349
  %v2369 = vmul.f32 %v2299, %v2351
  %v2370 = vmul.f32 %v2300, %v2353
  %v2371 = vmul.f32 %v2301, %v2355
  %v2372 = vmul.f32 %v2302, %v2357
  %v2373 = vmul.f32 %v2303, %v2359
  %v2374 = vmul.f32 %v2304, %v2361
  %v2375 = vmul.f32 %v2305, %v2363
  %v2376 = vmul.f32 %v2306, %v2365
  %v2377 = vmul.f32 %v2307, %v2367
  %v2378 = vld [vmem:[%s2] sm:$0xff]
  %v2379 = vld [vmem:[%s2 + $0x8] sm:$0xff]
  %v2380 = vld [vmem:[%s2 + $0x10] sm:$0xff]
  %v2381 = vld [vmem:[%s2 + $0x18] sm:$0xff]
  %v2383 = vsel %vm1781, %v2368, 0
  %v2386 = vsel %vm1781, %v2369, 0
  %v2389 = vsel %vm1781, %v2370, 0
  %v2392 = vsel %vm1781, %v2371, 0
  %v2395 = vsel %vm1781, %v2372, 0
  %v2398 = vsel %vm1781, %v2373, 0
  %v2401 = vsel %vm1781, %v2374, 0
  %v2404 = vsel %vm1781, %v2375, 0
  %v2407 = vsel %vm1781, %v2376, 0
  %v2410 = vsel %vm1781, %v2377, 0
  %2412 = vmatprep.subr.mxu0 0.0
  %2413 = vmatpush1.msra.mxu0 0.0
  %2414 = vmatprep.subr.mxu0 0.0
  %2415 = vmatpush1.msra.mxu0 0.0
  %2416 = vmatprep.subr.mxu0 0.0
  %2417 = vmatpush1.msra.mxu0 0.0
  %2418 = vmatprep.subr.mxu0 0.0
  %2419 = vmatpush1.msra.mxu0 0.0
  %2420 = vmatprep.subr.mxu0 0.0
  %2421 = vmatpush1.msra.mxu0 0.0
  %2422 = vmatprep.subr.mxu0 0.0
  %2423 = vmatpush1.msra.mxu0 0.0
  %2424 = vmatprep.subr.mxu0 0.0
  %2425 = vmatpush1.msra.mxu0 0.0
  %2426 = vmatprep.subr.mxu0 0.0
  %2427 = vmatpush1.msra.mxu0 0.0
  %2428 = vmatprep.subr.mxu0 0.0
  %2429 = vmatpush1.msra.mxu0 0.0
  %2430 = vmatprep.subr.mxu0 0.0
  %2431 = vmatpush1.msra.mxu0 0.0
  %2432 = vmatprep.subr.mxu0 0.0
  %2433 = vmatpush1.msra.mxu0 0.0
  %2434 = vmatprep.subr.mxu0 0.0
  %2435 = vmatpush1.msra.mxu0 0.0
  %2436 = vmatprep.subr.mxu0 0.0
  %2437 = vmatpush1.msra.mxu0 %v2381
  %2438 = vmatprep.subr.mxu0 0.0
  %2439 = vmatpush1.msra.mxu0 %v2380
  %2440 = vmatprep.subr.mxu0 0.0
  %2441 = vmatpush1.msra.mxu0 %v2379
  %2442 = vmatprep.subr.mxu0 0.0
  %2443 = vmatpush1.msra.mxu0 %v2378
  %2444 = vmatprep.subr.mxu0 0.0
  %2445 = vmatpush2.msra.mxu0 0.0
  %2446 = vmatprep.subr.mxu0 0.0
  %2447 = vmatpush2.msra.mxu0 0.0
  %2448 = vmatprep.subr.mxu0 0.0
  %2449 = vmatpush2.msra.mxu0 0.0
  %2450 = vmatprep.subr.mxu0 0.0
  %2451 = vmatpush2.msra.mxu0 0.0
  %2452 = vmatprep.subr.mxu0 0.0
  %2453 = vmatpush2.msra.mxu0 0.0
  %2454 = vmatprep.subr.mxu0 0.0
  %2455 = vmatpush2.msra.mxu0 0.0
  %2456 = vmatprep.subr.mxu0 0.0
  %2457 = vmatpush2.msra.mxu0 0.0
  %2458 = vmatprep.subr.mxu0 0.0
  %2459 = vmatpush2.msra.mxu0 0.0
  %2460 = vmatprep.subr.mxu0 0.0
  %2461 = vmatpush2.msra.mxu0 0.0
  %2462 = vmatprep.subr.mxu0 0.0
  %2463 = vmatpush2.msra.mxu0 0.0
  %2464 = vmatprep.subr.mxu0 0.0
  %2465 = vmatpush2.msra.mxu0 0.0
  %2466 = vmatprep.subr.mxu0 0.0
  %2467 = vmatpush2.msra.mxu0 0.0
  %2468 = vmatprep.subr.mxu0 0.0
  %2469 = vmatpush2.msra.mxu0 0.0
  %2470 = vmatprep.subr.mxu0 0.0
  %2471 = vmatpush2.msra.mxu0 0.0
  %2472 = vmatprep.subr.mxu0 0.0
  %2473 = vmatpush2.msra.mxu0 0.0
  %2474 = vmatprep.subr.mxu0 0.0
  %2475 = vmatpush2.msra.mxu0 0.0
  %2476 = vmatprep.mubr.f32.mxu0 0.0
  %2477 = vmatmul.mubr.f32.gmra.mxu0 %v2383
  %v2478 = vpop.f32.mrf.mxu0
  %v2479 = vadd.f32 0.0, %v2478
  %v2480 = vpop.f32.mrf.mxu0
  %2481 = vmatprep.mubr.f32.mxu0 0.0
  %2482 = vmatmul.mubr.f32.gmra.mxu0 %v2386
  %v2483 = vpop.f32.mrf.mxu0
  %v2484 = vadd.f32 0.0, %v2483
  %v2485 = vpop.f32.mrf.mxu0
  %2486 = vmatprep.mubr.f32.mxu0 0.0
  %2487 = vmatmul.mubr.f32.gmra.mxu0 %v2389
  %v2488 = vpop.f32.mrf.mxu0
  %v2489 = vadd.f32 0.0, %v2488
  %v2490 = vpop.f32.mrf.mxu0
  %2491 = vmatprep.mubr.f32.mxu0 0.0
  %2492 = vmatmul.mubr.f32.gmra.mxu0 %v2392
  %v2493 = vpop.f32.mrf.mxu0
  %v2494 = vadd.f32 0.0, %v2493
  %v2495 = vpop.f32.mrf.mxu0
  %2496 = vmatprep.mubr.f32.mxu0 0.0
  %2497 = vmatmul.mubr.f32.gmra.mxu0 %v2395
  %v2498 = vpop.f32.mrf.mxu0
  %v2499 = vadd.f32 0.0, %v2498
  %v2500 = vpop.f32.mrf.mxu0
  %2501 = vmatprep.mubr.f32.mxu0 0.0
  %2502 = vmatmul.mubr.f32.gmra.mxu0 %v2398
  %v2503 = vpop.f32.mrf.mxu0
  %v2504 = vadd.f32 0.0, %v2503
  %v2505 = vpop.f32.mrf.mxu0
  %2506 = vmatprep.mubr.f32.mxu0 0.0
  %2507 = vmatmul.mubr.f32.gmra.mxu0 %v2401
  %v2508 = vpop.f32.mrf.mxu0
  %v2509 = vadd.f32 0.0, %v2508
  %v2510 = vpop.f32.mrf.mxu0
  %2511 = vmatprep.mubr.f32.mxu0 0.0
  %2512 = vmatmul.mubr.f32.gmra.mxu0 %v2404
  %v2513 = vpop.f32.mrf.mxu0
  %v2514 = vadd.f32 0.0, %v2513
  %v2515 = vpop.f32.mrf.mxu0
  %2516 = vmatprep.mubr.f32.mxu0 0.0
  %2517 = vmatmul.mubr.f32.gmra.mxu0 %v2407
  %v2518 = vpop.f32.mrf.mxu0
  %v2519 = vadd.f32 0.0, %v2518
  %v2520 = vpop.f32.mrf.mxu0
  %2521 = vmatprep.mubr.f32.mxu0 0.0
  %2522 = vmatmul.mubr.f32.gmra.mxu0 %v2410
  %v2523 = vpop.f32.mrf.mxu0
  %v2524 = vadd.f32 0.0, %v2523
  %v2525 = vpop.f32.mrf.mxu0
  %2526 = vdwg.mxu0
  %v2527 = vld [vmem:[%s3] sm:$0xff]
  %v2528 = vld [vmem:[%s3 + $0x8] sm:$0xff]
  %v2529 = vld [vmem:[%s3 + $0x10] sm:$0xff]
  %v2530 = vld [vmem:[%s3 + $0x18] sm:$0xff]
  %v2531 = vld [vmem:[%s3 + $0x20] sm:$0xff]
  %v2532 = vld [vmem:[%s3 + $0x28] sm:$0xff]
  %v2533 = vld [vmem:[%s3 + $0x30] sm:$0xff]
  %v2534 = vld [vmem:[%s3 + $0x38] sm:$0xff]
  %v2535 = vld [vmem:[%s3 + $0x40] sm:$0xff]
  %v2536 = vld [vmem:[%s3 + $0x48] sm:$0xf]
  %v2537 = vmul.f32 %v2368, %v2527
  %v2538 = vmul.f32 %v2369, %v2528
  %v2539 = vmul.f32 %v2370, %v2529
  %v2540 = vmul.f32 %v2371, %v2530
  %v2541 = vmul.f32 %v2372, %v2531
  %v2542 = vmul.f32 %v2373, %v2532
  %v2543 = vmul.f32 %v2374, %v2533
  %v2544 = vmul.f32 %v2375, %v2534
  %v2545 = vmul.f32 %v2376, %v2535
  %v2546 = vmul.f32 %v2377, %v2536
  %s2547 = scalar_lea.vmem %s3, 80
  %v2548 = vld [vmem:[%s2547] sm:$0xff]
  %v2549 = vld [vmem:[%s2547 + $0x8] sm:$0xff]
  %v2550 = vld [vmem:[%s2547 + $0x10] sm:$0xff]
  %v2551 = vld [vmem:[%s2547 + $0x18] sm:$0xff]
  %v2552 = vld [vmem:[%s2547 + $0x20] sm:$0xff]
  %v2553 = vld [vmem:[%s2547 + $0x28] sm:$0xff]
  %v2554 = vld [vmem:[%s2547 + $0x30] sm:$0xff]
  %v2555 = vld [vmem:[%s2547 + $0x38] sm:$0xff]
  %v2556 = vld [vmem:[%s2547 + $0x40] sm:$0xff]
  %v2557 = vld [vmem:[%s2547 + $0x48] sm:$0xf]
  %v2558 = vmul.f32 %v2479, %v2548
  %v2559 = vmul.f32 %v2484, %v2549
  %v2560 = vmul.f32 %v2489, %v2550
  %v2561 = vmul.f32 %v2494, %v2551
  %v2562 = vmul.f32 %v2499, %v2552
  %v2563 = vmul.f32 %v2504, %v2553
  %v2564 = vmul.f32 %v2509, %v2554
  %v2565 = vmul.f32 %v2514, %v2555
  %v2566 = vmul.f32 %v2519, %v2556
  %v2567 = vmul.f32 %v2524, %v2557
  %v2568 = vadd.f32 %v2537, %v2558
  %v2569 = vadd.f32 %v2538, %v2559
  %v2570 = vadd.f32 %v2539, %v2560
  %v2571 = vadd.f32 %v2540, %v2561
  %v2572 = vadd.f32 %v2541, %v2562
  %v2573 = vadd.f32 %v2542, %v2563
  %v2574 = vadd.f32 %v2543, %v2564
  %v2575 = vadd.f32 %v2544, %v2565
  %v2576 = vadd.f32 %v2545, %v2566
  %v2577 = vadd.f32 %v2546, %v2567
  %v2578 = vpack.c.bf16 %v2569, %v2568
  %v2579 = vpack.c.bf16 %v2571, %v2570
  %v2580 = vpack.c.bf16 %v2573, %v2572
  %v2581 = vpack.c.bf16 %v2575, %v2574
  %v2582 = vpack.c.bf16 %v2577, %v2576
  %v2583 = vld [vmem:[%s1 + $0x68] sm:$0xf]
  %v2584 = vld [vmem:[%s1 + $0x6c] sm:$0xf]
  %v2585 = vld [vmem:[%s1 + $0x70] sm:$0xf]
  %v2586 = vld [vmem:[%s1 + $0x74] sm:$0xf]
  %v2587 = vld [vmem:[%s2 + $0x29] sm:$0x1]
  %v2588 = vlaneseq
  %v2589 = vshrl.u32 %v2588, 7
  %v2590 = vsub.s32 0, %v2589
  %v2591 = vrot.slane %v2587, %v2590
  %v2596 = vunpack.c.l.b16 %v2583
  %v2597 = vunpack.c.l.b16 %v2584
  %v2598 = vunpack.c.l.b16 %v2585
  %v2599 = vunpack.c.l.b16 %v2586
  %v2600 = vpack.c.b16 %v2597, %v2596
  %v2601 = vpack.c.b16 %v2599, %v2598
  %v2605 = vsel %vm1781, %v2578, 0
  %v2608 = vsel %vm1781, %v2579, 0
  %v2611 = vsel %vm1781, %v2580, 0
  %v2614 = vsel %vm1781, %v2581, 0
  %v2617 = vsel %vm1781, %v2582, 0
  %2619 = vmatprep.subr.bf16.mxu0 0
  %2620 = vmatpush1.bf16.msra.mxu0 0
  %2621 = vmatprep.subr.bf16.mxu0 0
  %2622 = vmatpush1.bf16.msra.mxu0 0
  %2623 = vmatprep.subr.bf16.mxu0 0
  %2624 = vmatpush1.bf16.msra.mxu0 0
  %2625 = vmatprep.subr.bf16.mxu0 0
  %2626 = vmatpush1.bf16.msra.mxu0 0
  %2627 = vmatprep.subr.bf16.mxu0 0
  %2628 = vmatpush1.bf16.msra.mxu0 0
  %2629 = vmatprep.subr.bf16.mxu0 0
  %2630 = vmatpush1.bf16.msra.mxu0 0
  %2631 = vmatprep.subr.bf16.mxu0 0
  %2632 = vmatpush1.bf16.msra.mxu0 %v2601
  %2633 = vmatprep.subr.bf16.mxu0 0
  %2634 = vmatpush1.bf16.msra.mxu0 %v2600
  %2635 = vmatprep.subr.bf16.mxu0 0
  %2636 = vmatpush2.bf16.msra.mxu0 0
  %2637 = vmatprep.subr.bf16.mxu0 0
  %2638 = vmatpush2.bf16.msra.mxu0 0
  %2639 = vmatprep.subr.bf16.mxu0 0
  %2640 = vmatpush2.bf16.msra.mxu0 0
  %2641 = vmatprep.subr.bf16.mxu0 0
  %2642 = vmatpush2.bf16.msra.mxu0 0
  %2643 = vmatprep.subr.bf16.mxu0 0
  %2644 = vmatpush2.bf16.msra.mxu0 0
  %2645 = vmatprep.subr.bf16.mxu0 0
  %2646 = vmatpush2.bf16.msra.mxu0 0
  %2647 = vmatprep.subr.bf16.mxu0 0
  %2648 = vmatpush2.bf16.msra.mxu0 0
  %2649 = vmatprep.subr.bf16.mxu0 0
  %2650 = vmatpush2.bf16.msra.mxu0 0
  %2651 = vmatprep.mubr.bf16.mxu0 0
  %2652 = vmatmul.mubr.bf16.gmra.mxu0 %v2605
  %v2653 = vpop.f32.mrf.mxu0
  %v2654 = vadd.f32 %v2591, %v2653
  %v2655 = vpop.f32.mrf.mxu0
  %v2656 = vpop.f32.mrf.mxu0
  %v2657 = vadd.f32 %v2591, %v2656
  %v2658 = vpop.f32.mrf.mxu0
  %2659 = vmatprep.mubr.bf16.mxu0 0
  %2660 = vmatmul.mubr.bf16.gmra.mxu0 %v2608
  %v2661 = vpop.f32.mrf.mxu0
  %v2662 = vadd.f32 %v2591, %v2661
  %v2663 = vpop.f32.mrf.mxu0
  %v2664 = vpop.f32.mrf.mxu0
  %v2665 = vadd.f32 %v2591, %v2664
  %v2666 = vpop.f32.mrf.mxu0
  %2667 = vmatprep.mubr.bf16.mxu0 0
  %2668 = vmatmul.mubr.bf16.gmra.mxu0 %v2611
  %v2669 = vpop.f32.mrf.mxu0
  %v2670 = vadd.f32 %v2591, %v2669
  %v2671 = vpop.f32.mrf.mxu0
  %v2672 = vpop.f32.mrf.mxu0
  %v2673 = vadd.f32 %v2591, %v2672
  %v2674 = vpop.f32.mrf.mxu0
  %2675 = vmatprep.mubr.bf16.mxu0 0
  %2676 = vmatmul.mubr.bf16.gmra.mxu0 %v2614
  %v2677 = vpop.f32.mrf.mxu0
  %v2678 = vadd.f32 %v2591, %v2677
  %v2679 = vpop.f32.mrf.mxu0
  %v2680 = vpop.f32.mrf.mxu0
  %v2681 = vadd.f32 %v2591, %v2680
  %v2682 = vpop.f32.mrf.mxu0
  %2683 = vmatprep.mubr.bf16.mxu0 0
  %2684 = vmatmul.mubr.bf16.gmra.mxu0 %v2617
  %v2685 = vpop.f32.mrf.mxu0
  %v2686 = vadd.f32 %v2591, %v2685
  %v2687 = vpop.f32.mrf.mxu0
  %v2688 = vpop.f32.mrf.mxu0
  %v2689 = vadd.f32 %v2591, %v2688
  %v2690 = vpop.f32.mrf.mxu0
  %2691 = vdwg.mxu0
  %v2692 = vpack.c.bf16 %v2657, %v2654
  %v2693 = vpack.c.bf16 %v2665, %v2662
  %v2694 = vpack.c.bf16 %v2673, %v2670
  %v2695 = vpack.c.bf16 %v2681, %v2678
  %v2696 = vpack.c.bf16 %v2689, %v2686
  %v2697 = vld [vmem:[%s2 + $0x2a] sm:$0x1]
  %2703 = vrot.lane.b32.xlu0 %v2692, 96
  %v2704 = vpop.permute.xlu0 %2703
  %2705 = vrot.lane.b32.xlu0 %v2693, 96
  %v2706 = vpop.permute.xlu0 %2705
  %2707 = vrot.lane.b32.xlu0 %v2694, 96
  %v2708 = vpop.permute.xlu0 %2707
  %2709 = vrot.lane.b32.xlu0 %v2695, 96
  %v2710 = vpop.permute.xlu0 %2709
  %2711 = vrot.lane.b32.xlu0 %v2696, 96
  %v2712 = vpop.permute.xlu0 %2711
  %vm2713 = vcmask 130048
  %v2715 = vsel %vm2713, %v2692, 0
  %v2718 = vsel %vm2713, %v2693, 0
  %v2721 = vsel %vm2713, %v2694, 0
  %v2724 = vsel %vm2713, %v2695, 0
  %v2727 = vsel %vm2713, %v2696, 0
  %v2730 = vsel %vm2713, %v2704, 0
  %v2733 = vsel %vm2713, %v2706, 0
  %v2736 = vsel %vm2713, %v2708, 0
  %v2739 = vsel %vm2713, %v2710, 0
  %v2742 = vsel %vm2713, %v2712, 0
  %2744 = vmatprep.subr.bf16.mxu0 0
  %2745 = vmatpush1.bf16.xpose.msra.mxu0 0
  %2746 = vmatprep.subr.bf16.mxu0 0
  %2747 = vmatpush1.bf16.xpose.msra.mxu0 0
  %2748 = vmatprep.subr.bf16.mxu0 0
  %2749 = vmatpush1.bf16.xpose.msra.mxu0 0
  %2750 = vmatprep.subr.bf16.mxu0 0
  %2751 = vmatpush1.bf16.xpose.msra.mxu0 %v2742
  %2752 = vmatprep.subr.bf16.mxu0 0
  %2753 = vmatpush1.bf16.xpose.msra.mxu0 %v2739
  %2754 = vmatprep.subr.bf16.mxu0 0
  %2755 = vmatpush1.bf16.xpose.msra.mxu0 %v2736
  %2756 = vmatprep.subr.bf16.mxu0 0
  %2757 = vmatpush1.bf16.xpose.msra.mxu0 %v2733
  %2758 = vmatprep.subr.bf16.mxu0 0
  %2759 = vmatpush1.bf16.xpose.msra.mxu0 %v2730
  %2760 = vmatprep.subr.bf16.mxu0 0
  %2761 = vmatpush2.bf16.xpose.msra.mxu0 0
  %2762 = vmatprep.subr.bf16.mxu0 0
  %2763 = vmatpush2.bf16.xpose.msra.mxu0 0
  %2764 = vmatprep.subr.bf16.mxu0 0
  %2765 = vmatpush2.bf16.xpose.msra.mxu0 0
  %2766 = vmatprep.subr.bf16.mxu0 0
  %2767 = vmatpush2.bf16.xpose.msra.mxu0 0
  %2768 = vmatprep.subr.bf16.mxu0 0
  %2769 = vmatpush2.bf16.xpose.msra.mxu0 0
  %2770 = vmatprep.subr.bf16.mxu0 0
  %2771 = vmatpush2.bf16.xpose.msra.mxu0 0
  %2772 = vmatprep.subr.bf16.mxu0 0
  %2773 = vmatpush2.bf16.xpose.msra.mxu0 0
  %2774 = vmatprep.subr.bf16.mxu0 0
  %2775 = vmatpush2.bf16.xpose.msra.mxu0 0
  %2776 = vmatprep.mubr.bf16.mxu0 0
  %2777 = vmatmul.mubr.bf16.gmra.mxu0 %v2715
  %v2778 = vpop.f32.mrf.mxu0
  %v2779 = vadd.f32 0.0, %v2778
  %v2780 = vpop.f32.mrf.mxu0
  %v2781 = vpop.f32.mrf.mxu0
  %v2782 = vadd.f32 0.0, %v2781
  %v2783 = vpop.f32.mrf.mxu0
  %2784 = vmatprep.mubr.bf16.mxu0 0
  %2785 = vmatmul.mubr.bf16.gmra.mxu0 %v2718
  %v2786 = vpop.f32.mrf.mxu0
  %v2787 = vadd.f32 0.0, %v2786
  %v2788 = vpop.f32.mrf.mxu0
  %v2789 = vpop.f32.mrf.mxu0
  %v2790 = vadd.f32 0.0, %v2789
  %v2791 = vpop.f32.mrf.mxu0
  %2792 = vmatprep.mubr.bf16.mxu0 0
  %2793 = vmatmul.mubr.bf16.gmra.mxu0 %v2721
  %v2794 = vpop.f32.mrf.mxu0
  %v2795 = vadd.f32 0.0, %v2794
  %v2796 = vpop.f32.mrf.mxu0
  %v2797 = vpop.f32.mrf.mxu0
  %v2798 = vadd.f32 0.0, %v2797
  %v2799 = vpop.f32.mrf.mxu0
  %2800 = vmatprep.mubr.bf16.mxu0 0
  %2801 = vmatmul.mubr.bf16.gmra.mxu0 %v2724
  %v2802 = vpop.f32.mrf.mxu0
  %v2803 = vadd.f32 0.0, %v2802
  %v2804 = vpop.f32.mrf.mxu0
  %v2805 = vpop.f32.mrf.mxu0
  %v2806 = vadd.f32 0.0, %v2805
  %v2807 = vpop.f32.mrf.mxu0
  %2808 = vmatprep.mubr.bf16.mxu0 0
  %2809 = vmatmul.mubr.bf16.gmra.mxu0 %v2727
  %v2810 = vpop.f32.mrf.mxu0
  %v2811 = vadd.f32 0.0, %v2810
  %v2812 = vpop.f32.mrf.mxu0
  %v2813 = vpop.f32.mrf.mxu0
  %v2814 = vadd.f32 0.0, %v2813
  %v2815 = vpop.f32.mrf.mxu0
  %2816 = vdwg.mxu0
  %v2817 = vsel %vm347, %v2779, -inf
  %2818 = vmax.xlane.f32.xlu0 %v2817
  %v2819 = vpop.xlane.xlu0 %2818
  %v2820 = vsel %vm347, %v2782, -inf
  %2821 = vmax.xlane.f32.xlu0 %v2820
  %v2822 = vpop.xlane.xlu0 %2821
  %v2823 = vsel %vm347, %v2787, -inf
  %2824 = vmax.xlane.f32.xlu0 %v2823
  %v2825 = vpop.xlane.xlu0 %2824
  %v2826 = vsel %vm347, %v2790, -inf
  %2827 = vmax.xlane.f32.xlu0 %v2826
  %v2828 = vpop.xlane.xlu0 %2827
  %v2829 = vsel %vm347, %v2795, -inf
  %2830 = vmax.xlane.f32.xlu0 %v2829
  %v2831 = vpop.xlane.xlu0 %2830
  %v2832 = vsel %vm347, %v2798, -inf
  %2833 = vmax.xlane.f32.xlu0 %v2832
  %v2834 = vpop.xlane.xlu0 %2833
  %v2835 = vsel %vm347, %v2803, -inf
  %2836 = vmax.xlane.f32.xlu0 %v2835
  %v2837 = vpop.xlane.xlu0 %2836
  %v2838 = vsel %vm347, %v2806, -inf
  %2839 = vmax.xlane.f32.xlu0 %v2838
  %v2840 = vpop.xlane.xlu0 %2839
  %v2841 = vsel %vm347, %v2811, -inf
  %2842 = vmax.xlane.f32.xlu0 %v2841
  %v2843 = vpop.xlane.xlu0 %2842
  %vm2844 = vcmask 617472
  %v2845 = vsel %vm2844, %v2814, -inf
  %2846 = vmax.xlane.f32.xlu0 %v2845
  %v2847 = vpop.xlane.xlu0 %2846
  %v2848 = vsub.f32 %v2779, %v2819
  %v2849 = vsub.f32 %v2782, %v2822
  %v2850 = vsub.f32 %v2787, %v2825
  %v2851 = vsub.f32 %v2790, %v2828
  %v2852 = vsub.f32 %v2795, %v2831
  %v2853 = vsub.f32 %v2798, %v2834
  %v2854 = vsub.f32 %v2803, %v2837
  %v2855 = vsub.f32 %v2806, %v2840
  %v2856 = vsub.f32 %v2811, %v2843
  %v2857 = vsub.f32 %v2814, %v2847
  %v2858 = vmul.f32 %v2848, 1.442695
  %v2859 = vpow.pop %v2858
  %v2860 = vmul.f32 %v2849, 1.442695
  %v2861 = vpow.pop %v2860
  %v2862 = vmul.f32 %v2850, 1.442695
  %v2863 = vpow.pop %v2862
  %v2864 = vmul.f32 %v2851, 1.442695
  %v2865 = vpow.pop %v2864
  %v2866 = vmul.f32 %v2852, 1.442695
  %v2867 = vpow.pop %v2866
  %v2868 = vmul.f32 %v2853, 1.442695
  %v2869 = vpow.pop %v2868
  %v2870 = vmul.f32 %v2854, 1.442695
  %v2871 = vpow.pop %v2870
  %v2872 = vmul.f32 %v2855, 1.442695
  %v2873 = vpow.pop %v2872
  %v2874 = vmul.f32 %v2856, 1.442695
  %v2875 = vpow.pop %v2874
  %v2876 = vmul.f32 %v2857, 1.442695
  %v2877 = vpow.pop %v2876
  %v2878 = vmul.f32 %v2859, %v169
  %v2879 = vmul.f32 %v2861, %v170
  %v2880 = vmul.f32 %v2863, %v171
  %v2881 = vmul.f32 %v2865, %v172
  %v2882 = vmul.f32 %v2867, %v173
  %v2883 = vmul.f32 %v2869, %v174
  %v2884 = vmul.f32 %v2871, %v175
  %v2885 = vmul.f32 %v2873, %v176
  %v2886 = vmul.f32 %v2875, %v177
  %v2887 = vmul.f32 %v2877, %v178
  %v2888 = vsel %vm347, %v2878, 0.0
  %2889 = vadd.xlane.f32.xlu0 %v2888
  %v2890 = vpop.xlane.xlu0 %2889
  %v2891 = vsel %vm347, %v2879, 0.0
  %2892 = vadd.xlane.f32.xlu0 %v2891
  %v2893 = vpop.xlane.xlu0 %2892
  %v2894 = vsel %vm347, %v2880, 0.0
  %2895 = vadd.xlane.f32.xlu0 %v2894
  %v2896 = vpop.xlane.xlu0 %2895
  %v2897 = vsel %vm347, %v2881, 0.0
  %2898 = vadd.xlane.f32.xlu0 %v2897
  %v2899 = vpop.xlane.xlu0 %2898
  %v2900 = vsel %vm347, %v2882, 0.0
  %2901 = vadd.xlane.f32.xlu0 %v2900
  %v2902 = vpop.xlane.xlu0 %2901
  %v2903 = vsel %vm347, %v2883, 0.0
  %2904 = vadd.xlane.f32.xlu0 %v2903
  %v2905 = vpop.xlane.xlu0 %2904
  %v2906 = vsel %vm347, %v2884, 0.0
  %2907 = vadd.xlane.f32.xlu0 %v2906
  %v2908 = vpop.xlane.xlu0 %2907
  %v2909 = vsel %vm347, %v2885, 0.0
  %2910 = vadd.xlane.f32.xlu0 %v2909
  %v2911 = vpop.xlane.xlu0 %2910
  %v2912 = vsel %vm347, %v2886, 0.0
  %2913 = vadd.xlane.f32.xlu0 %v2912
  %v2914 = vpop.xlane.xlu0 %2913
  %v2915 = vsel %vm2844, %v2887, 0.0
  %2916 = vadd.xlane.f32.xlu0 %v2915
  %v2917 = vpop.xlane.xlu0 %2916
  %v2918 = vrcp.pop %v2890
  %v2919 = vrcp.pop %v2893
  %v2920 = vrcp.pop %v2896
  %v2921 = vrcp.pop %v2899
  %v2922 = vrcp.pop %v2902
  %v2923 = vrcp.pop %v2905
  %v2924 = vrcp.pop %v2908
  %v2925 = vrcp.pop %v2911
  %v2926 = vrcp.pop %v2914
  %v2927 = vrcp.pop %v2917
  %v2928 = vmul.f32 %v2878, %v2918
  %v2929 = vmul.f32 %v2879, %v2919
  %v2930 = vmul.f32 %v2880, %v2920
  %v2931 = vmul.f32 %v2881, %v2921
  %v2932 = vmul.f32 %v2882, %v2922
  %v2933 = vmul.f32 %v2883, %v2923
  %v2934 = vmul.f32 %v2884, %v2924
  %v2935 = vmul.f32 %v2885, %v2925
  %v2936 = vmul.f32 %v2886, %v2926
  %v2937 = vmul.f32 %v2887, %v2927
  %v2938 = vpack.c.bf16 %v2929, %v2928
  %v2939 = vpack.c.bf16 %v2931, %v2930
  %v2940 = vpack.c.bf16 %v2933, %v2932
  %v2941 = vpack.c.bf16 %v2935, %v2934
  %v2942 = vpack.c.bf16 %v2937, %v2936
  %2943 = vrot.lane.b32.xlu0 %v2692, 64
  %v2944 = vpop.permute.xlu0 %2943
  %2945 = vrot.lane.b32.xlu0 %v2693, 64
  %v2946 = vpop.permute.xlu0 %2945
  %2947 = vrot.lane.b32.xlu0 %v2694, 64
  %v2948 = vpop.permute.xlu0 %2947
  %2949 = vrot.lane.b32.xlu0 %v2695, 64
  %v2950 = vpop.permute.xlu0 %2949
  %2951 = vrot.lane.b32.xlu0 %v2696, 64
  %v2952 = vpop.permute.xlu0 %2951
  %v2958 = vsel %vm347, %v2938, 0
  %v2961 = vsel %vm347, %v2939, 0
  %v2964 = vsel %vm347, %v2940, 0
  %v2967 = vsel %vm347, %v2941, 0
  %v2970 = vsel %vm347, %v2942, 0
  %vm2972 = vcmask 1045504
  %v2974 = vsel %vm2972, %v2952, 0
  %2976 = vmatprep.subr.bf16.mxu0 0
  %2977 = vmatpush1.bf16.msra.mxu0 0
  %2978 = vmatprep.subr.bf16.mxu0 0
  %2979 = vmatpush1.bf16.msra.mxu0 0
  %2980 = vmatprep.subr.bf16.mxu0 0
  %2981 = vmatpush1.bf16.msra.mxu0 0
  %2982 = vmatprep.subr.bf16.mxu0 0
  %2983 = vmatpush1.bf16.msra.mxu0 %v2974
  %2984 = vmatprep.subr.bf16.mxu0 0
  %2985 = vmatpush1.bf16.msra.mxu0 %v2950
  %2986 = vmatprep.subr.bf16.mxu0 0
  %2987 = vmatpush1.bf16.msra.mxu0 %v2948
  %2988 = vmatprep.subr.bf16.mxu0 0
  %2989 = vmatpush1.bf16.msra.mxu0 %v2946
  %2990 = vmatprep.subr.bf16.mxu0 0
  %2991 = vmatpush1.bf16.msra.mxu0 %v2944
  %2992 = vmatprep.subr.bf16.mxu0 0
  %2993 = vmatpush2.bf16.msra.mxu0 0
  %2994 = vmatprep.subr.bf16.mxu0 0
  %2995 = vmatpush2.bf16.msra.mxu0 0
  %2996 = vmatprep.subr.bf16.mxu0 0
  %2997 = vmatpush2.bf16.msra.mxu0 0
  %2998 = vmatprep.subr.bf16.mxu0 0
  %2999 = vmatpush2.bf16.msra.mxu0 0
  %3000 = vmatprep.subr.bf16.mxu0 0
  %3001 = vmatpush2.bf16.msra.mxu0 0
  %3002 = vmatprep.subr.bf16.mxu0 0
  %3003 = vmatpush2.bf16.msra.mxu0 0
  %3004 = vmatprep.subr.bf16.mxu0 0
  %3005 = vmatpush2.bf16.msra.mxu0 0
  %3006 = vmatprep.subr.bf16.mxu0 0
  %3007 = vmatpush2.bf16.msra.mxu0 0
  %3008 = vmatprep.mubr.bf16.mxu0 0
  %3009 = vmatmul.mubr.bf16.gmra.mxu0 %v2958
  %v3010 = vpop.f32.mrf.mxu0
  %v3011 = vadd.f32 0.0, %v3010
  %v3012 = vpop.f32.mrf.mxu0
  %v3013 = vpop.f32.mrf.mxu0
  %v3014 = vadd.f32 0.0, %v3013
  %v3015 = vpop.f32.mrf.mxu0
  %3016 = vmatprep.mubr.bf16.mxu0 0
  %3017 = vmatmul.mubr.bf16.gmra.mxu0 %v2961
  %v3018 = vpop.f32.mrf.mxu0
  %v3019 = vadd.f32 0.0, %v3018
  %v3020 = vpop.f32.mrf.mxu0
  %v3021 = vpop.f32.mrf.mxu0
  %v3022 = vadd.f32 0.0, %v3021
  %v3023 = vpop.f32.mrf.mxu0
  %3024 = vmatprep.mubr.bf16.mxu0 0
  %3025 = vmatmul.mubr.bf16.gmra.mxu0 %v2964
  %v3026 = vpop.f32.mrf.mxu0
  %v3027 = vadd.f32 0.0, %v3026
  %v3028 = vpop.f32.mrf.mxu0
  %v3029 = vpop.f32.mrf.mxu0
  %v3030 = vadd.f32 0.0, %v3029
  %v3031 = vpop.f32.mrf.mxu0
  %3032 = vmatprep.mubr.bf16.mxu0 0
  %3033 = vmatmul.mubr.bf16.gmra.mxu0 %v2967
  %v3034 = vpop.f32.mrf.mxu0
  %v3035 = vadd.f32 0.0, %v3034
  %v3036 = vpop.f32.mrf.mxu0
  %v3037 = vpop.f32.mrf.mxu0
  %v3038 = vadd.f32 0.0, %v3037
  %v3039 = vpop.f32.mrf.mxu0
  %3040 = vmatprep.mubr.bf16.mxu0 0
  %3041 = vmatmul.mubr.bf16.gmra.mxu0 %v2970
  %v3042 = vpop.f32.mrf.mxu0
  %v3043 = vadd.f32 0.0, %v3042
  %v3044 = vpop.f32.mrf.mxu0
  %v3045 = vpop.f32.mrf.mxu0
  %v3046 = vadd.f32 0.0, %v3045
  %v3047 = vpop.f32.mrf.mxu0
  %3048 = vdwg.mxu0
  %v3049 = vld [vmem:[%s1 + $0x78] sm:$0xf]
  %v3050 = vld [vmem:[%s1 + $0x7c] sm:$0xf]
  %v3051 = vpack.c.bf16 %v3014, %v3011
  %v3052 = vpack.c.bf16 %v3022, %v3019
  %v3053 = vpack.c.bf16 %v3030, %v3027
  %v3054 = vpack.c.bf16 %v3038, %v3035
  %v3055 = vpack.c.bf16 %v3046, %v3043
  %v3058 = vunpack.c.l.b16 %v3049
  %v3059 = vunpack.c.l.b16 %v3050
  %v3060 = vpack.c.b16 %v3059, %v3058
  %v3063 = vsel %vm2713, %v3051, 0
  %v3066 = vsel %vm2713, %v3052, 0
  %v3069 = vsel %vm2713, %v3053, 0
  %v3072 = vsel %vm2713, %v3054, 0
  %v3075 = vsel %vm2713, %v3055, 0
  %3077 = vmatprep.subr.bf16.mxu0 0
  %3078 = vmatpush1.bf16.msra.mxu0 0
  %3079 = vmatprep.subr.bf16.mxu0 0
  %3080 = vmatpush1.bf16.msra.mxu0 0
  %3081 = vmatprep.subr.bf16.mxu0 0
  %3082 = vmatpush1.bf16.msra.mxu0 0
  %3083 = vmatprep.subr.bf16.mxu0 0
  %3084 = vmatpush1.bf16.msra.mxu0 0
  %3085 = vmatprep.subr.bf16.mxu0 0
  %3086 = vmatpush1.bf16.msra.mxu0 0
  %3087 = vmatprep.subr.bf16.mxu0 0
  %3088 = vmatpush1.bf16.msra.mxu0 0
  %3089 = vmatprep.subr.bf16.mxu0 0
  %3090 = vmatpush1.bf16.msra.mxu0 0
  %3091 = vmatprep.subr.bf16.mxu0 0
  %3092 = vmatpush1.bf16.msra.mxu0 %v3060
  %3093 = vmatprep.subr.bf16.mxu0 0
  %3094 = vmatpush2.bf16.msra.mxu0 0
  %3095 = vmatprep.subr.bf16.mxu0 0
  %3096 = vmatpush2.bf16.msra.mxu0 0
  %3097 = vmatprep.subr.bf16.mxu0 0
  %3098 = vmatpush2.bf16.msra.mxu0 0
  %3099 = vmatprep.subr.bf16.mxu0 0
  %3100 = vmatpush2.bf16.msra.mxu0 0
  %3101 = vmatprep.subr.bf16.mxu0 0
  %3102 = vmatpush2.bf16.msra.mxu0 0
  %3103 = vmatprep.subr.bf16.mxu0 0
  %3104 = vmatpush2.bf16.msra.mxu0 0
  %3105 = vmatprep.subr.bf16.mxu0 0
  %3106 = vmatpush2.bf16.msra.mxu0 0
  %3107 = vmatprep.subr.bf16.mxu0 0
  %3108 = vmatpush2.bf16.msra.mxu0 0
  %3109 = vmatprep.mubr.bf16.mxu0 0
  %3110 = vmatmul.mubr.bf16.gmra.mxu0 %v3063
  %v3111 = vpop.f32.mrf.mxu0
  %v3112 = vadd.f32 0.0, %v3111
  %v3113 = vpop.f32.mrf.mxu0
  %v3114 = vpop.f32.mrf.mxu0
  %v3115 = vadd.f32 0.0, %v3114
  %v3116 = vpop.f32.mrf.mxu0
  %3117 = vmatprep.mubr.bf16.mxu0 0
  %3118 = vmatmul.mubr.bf16.gmra.mxu0 %v3066
  %v3119 = vpop.f32.mrf.mxu0
  %v3120 = vadd.f32 0.0, %v3119
  %v3121 = vpop.f32.mrf.mxu0
  %v3122 = vpop.f32.mrf.mxu0
  %v3123 = vadd.f32 0.0, %v3122
  %v3124 = vpop.f32.mrf.mxu0
  %3125 = vmatprep.mubr.bf16.mxu0 0
  %3126 = vmatmul.mubr.bf16.gmra.mxu0 %v3069
  %v3127 = vpop.f32.mrf.mxu0
  %v3128 = vadd.f32 0.0, %v3127
  %v3129 = vpop.f32.mrf.mxu0
  %v3130 = vpop.f32.mrf.mxu0
  %v3131 = vadd.f32 0.0, %v3130
  %v3132 = vpop.f32.mrf.mxu0
  %3133 = vmatprep.mubr.bf16.mxu0 0
  %3134 = vmatmul.mubr.bf16.gmra.mxu0 %v3072
  %v3135 = vpop.f32.mrf.mxu0
  %v3136 = vadd.f32 0.0, %v3135
  %v3137 = vpop.f32.mrf.mxu0
  %v3138 = vpop.f32.mrf.mxu0
  %v3139 = vadd.f32 0.0, %v3138
  %v3140 = vpop.f32.mrf.mxu0
  %3141 = vmatprep.mubr.bf16.mxu0 0
  %3142 = vmatmul.mubr.bf16.gmra.mxu0 %v3075
  %v3143 = vpop.f32.mrf.mxu0
  %v3144 = vadd.f32 0.0, %v3143
  %v3145 = vpop.f32.mrf.mxu0
  %v3146 = vpop.f32.mrf.mxu0
  %v3147 = vadd.f32 0.0, %v3146
  %v3148 = vpop.f32.mrf.mxu0
  %3149 = vdwg.mxu0
  %v3150 = vlaneseq
  %v3151 = vshrl.u32 %v3150, 7
  %v3152 = vsub.s32 0, %v3151
  %v3153 = vrot.slane %v2697, %v3152
  %v3154 = vadd.f32 %v3153, %v3112
  %v3155 = vadd.f32 %v3153, %v3115
  %v3156 = vadd.f32 %v3153, %v3120
  %v3157 = vadd.f32 %v3153, %v3123
  %v3158 = vadd.f32 %v3153, %v3128
  %v3159 = vadd.f32 %v3153, %v3131
  %v3160 = vadd.f32 %v3153, %v3136
  %v3161 = vadd.f32 %v3153, %v3139
  %v3162 = vadd.f32 %v3153, %v3144
  %v3163 = vadd.f32 %v3153, %v3147
  %3164 = vrot.lane.b32.xlu0 %v2692, 112
  %v3165 = vpop.permute.xlu0 %3164
  %3166 = vrot.lane.b32.xlu0 %v2693, 112
  %v3167 = vpop.permute.xlu0 %3166
  %3168 = vrot.lane.b32.xlu0 %v2694, 112
  %v3169 = vpop.permute.xlu0 %3168
  %3170 = vrot.lane.b32.xlu0 %v2695, 112
  %v3171 = vpop.permute.xlu0 %3170
  %3172 = vrot.lane.b32.xlu0 %v2696, 112
  %v3173 = vpop.permute.xlu0 %3172
  %3174 = vrot.lane.b32.xlu0 %v2692, 80
  %v3175 = vpop.permute.xlu0 %3174
  %3176 = vrot.lane.b32.xlu0 %v2693, 80
  %v3177 = vpop.permute.xlu0 %3176
  %3178 = vrot.lane.b32.xlu0 %v2694, 80
  %v3179 = vpop.permute.xlu0 %3178
  %3180 = vrot.lane.b32.xlu0 %v2695, 80
  %v3181 = vpop.permute.xlu0 %3180
  %3182 = vrot.lane.b32.xlu0 %v2696, 80
  %v3183 = vpop.permute.xlu0 %3182
  %v3185 = vsel %vm2713, %v3165, 0
  %v3188 = vsel %vm2713, %v3167, 0
  %v3191 = vsel %vm2713, %v3169, 0
  %v3194 = vsel %vm2713, %v3171, 0
  %v3197 = vsel %vm2713, %v3173, 0
  %v3200 = vsel %vm2713, %v3175, 0
  %v3203 = vsel %vm2713, %v3177, 0
  %v3206 = vsel %vm2713, %v3179, 0
  %v3209 = vsel %vm2713, %v3181, 0
  %v3212 = vsel %vm2713, %v3183, 0
  %3214 = vmatprep.subr.bf16.mxu0 0
  %3215 = vmatpush1.bf16.xpose.msra.mxu0 0
  %3216 = vmatprep.subr.bf16.mxu0 0
  %3217 = vmatpush1.bf16.xpose.msra.mxu0 0
  %3218 = vmatprep.subr.bf16.mxu0 0
  %3219 = vmatpush1.bf16.xpose.msra.mxu0 0
  %3220 = vmatprep.subr.bf16.mxu0 0
  %3221 = vmatpush1.bf16.xpose.msra.mxu0 %v3212
  %3222 = vmatprep.subr.bf16.mxu0 0
  %3223 = vmatpush1.bf16.xpose.msra.mxu0 %v3209
  %3224 = vmatprep.subr.bf16.mxu0 0
  %3225 = vmatpush1.bf16.xpose.msra.mxu0 %v3206
  %3226 = vmatprep.subr.bf16.mxu0 0
  %3227 = vmatpush1.bf16.xpose.msra.mxu0 %v3203
  %3228 = vmatprep.subr.bf16.mxu0 0
  %3229 = vmatpush1.bf16.xpose.msra.mxu0 %v3200
  %3230 = vmatprep.subr.bf16.mxu0 0
  %3231 = vmatpush2.bf16.xpose.msra.mxu0 0
  %3232 = vmatprep.subr.bf16.mxu0 0
  %3233 = vmatpush2.bf16.xpose.msra.mxu0 0
  %3234 = vmatprep.subr.bf16.mxu0 0
  %3235 = vmatpush2.bf16.xpose.msra.mxu0 0
  %3236 = vmatprep.subr.bf16.mxu0 0
  %3237 = vmatpush2.bf16.xpose.msra.mxu0 0
  %3238 = vmatprep.subr.bf16.mxu0 0
  %3239 = vmatpush2.bf16.xpose.msra.mxu0 0
  %3240 = vmatprep.subr.bf16.mxu0 0
  %3241 = vmatpush2.bf16.xpose.msra.mxu0 0
  %3242 = vmatprep.subr.bf16.mxu0 0
  %3243 = vmatpush2.bf16.xpose.msra.mxu0 0
  %3244 = vmatprep.subr.bf16.mxu0 0
  %3245 = vmatpush2.bf16.xpose.msra.mxu0 0
  %3246 = vmatprep.mubr.bf16.mxu0 0
  %3247 = vmatmul.mubr.bf16.gmra.mxu0 %v3185
  %v3248 = vpop.f32.mrf.mxu0
  %v3249 = vadd.f32 0.0, %v3248
  %v3250 = vpop.f32.mrf.mxu0
  %v3251 = vpop.f32.mrf.mxu0
  %v3252 = vadd.f32 0.0, %v3251
  %v3253 = vpop.f32.mrf.mxu0
  %3254 = vmatprep.mubr.bf16.mxu0 0
  %3255 = vmatmul.mubr.bf16.gmra.mxu0 %v3188
  %v3256 = vpop.f32.mrf.mxu0
  %v3257 = vadd.f32 0.0, %v3256
  %v3258 = vpop.f32.mrf.mxu0
  %v3259 = vpop.f32.mrf.mxu0
  %v3260 = vadd.f32 0.0, %v3259
  %v3261 = vpop.f32.mrf.mxu0
  %3262 = vmatprep.mubr.bf16.mxu0 0
  %3263 = vmatmul.mubr.bf16.gmra.mxu0 %v3191
  %v3264 = vpop.f32.mrf.mxu0
  %v3265 = vadd.f32 0.0, %v3264
  %v3266 = vpop.f32.mrf.mxu0
  %v3267 = vpop.f32.mrf.mxu0
  %v3268 = vadd.f32 0.0, %v3267
  %v3269 = vpop.f32.mrf.mxu0
  %3270 = vmatprep.mubr.bf16.mxu0 0
  %3271 = vmatmul.mubr.bf16.gmra.mxu0 %v3194
  %v3272 = vpop.f32.mrf.mxu0
  %v3273 = vadd.f32 0.0, %v3272
  %v3274 = vpop.f32.mrf.mxu0
  %v3275 = vpop.f32.mrf.mxu0
  %v3276 = vadd.f32 0.0, %v3275
  %v3277 = vpop.f32.mrf.mxu0
  %3278 = vmatprep.mubr.bf16.mxu0 0
  %3279 = vmatmul.mubr.bf16.gmra.mxu0 %v3197
  %v3280 = vpop.f32.mrf.mxu0
  %v3281 = vadd.f32 0.0, %v3280
  %v3282 = vpop.f32.mrf.mxu0
  %v3283 = vpop.f32.mrf.mxu0
  %v3284 = vadd.f32 0.0, %v3283
  %v3285 = vpop.f32.mrf.mxu0
  %3286 = vdwg.mxu0
  %v3287 = vsel %vm347, %v3249, -inf
  %3288 = vmax.xlane.f32.xlu0 %v3287
  %v3289 = vpop.xlane.xlu0 %3288
  %v3290 = vsel %vm347, %v3252, -inf
  %3291 = vmax.xlane.f32.xlu0 %v3290
  %v3292 = vpop.xlane.xlu0 %3291
  %v3293 = vsel %vm347, %v3257, -inf
  %3294 = vmax.xlane.f32.xlu0 %v3293
  %v3295 = vpop.xlane.xlu0 %3294
  %v3296 = vsel %vm347, %v3260, -inf
  %3297 = vmax.xlane.f32.xlu0 %v3296
  %v3298 = vpop.xlane.xlu0 %3297
  %v3299 = vsel %vm347, %v3265, -inf
  %3300 = vmax.xlane.f32.xlu0 %v3299
  %v3301 = vpop.xlane.xlu0 %3300
  %v3302 = vsel %vm347, %v3268, -inf
  %3303 = vmax.xlane.f32.xlu0 %v3302
  %v3304 = vpop.xlane.xlu0 %3303
  %v3305 = vsel %vm347, %v3273, -inf
  %3306 = vmax.xlane.f32.xlu0 %v3305
  %v3307 = vpop.xlane.xlu0 %3306
  %v3308 = vsel %vm347, %v3276, -inf
  %3309 = vmax.xlane.f32.xlu0 %v3308
  %v3310 = vpop.xlane.xlu0 %3309
  %v3311 = vsel %vm347, %v3281, -inf
  %3312 = vmax.xlane.f32.xlu0 %v3311
  %v3313 = vpop.xlane.xlu0 %3312
  %v3314 = vsel %vm2844, %v3284, -inf
  %3315 = vmax.xlane.f32.xlu0 %v3314
  %v3316 = vpop.xlane.xlu0 %3315
  %v3317 = vsub.f32 %v3249, %v3289
  %v3318 = vsub.f32 %v3252, %v3292
  %v3319 = vsub.f32 %v3257, %v3295
  %v3320 = vsub.f32 %v3260, %v3298
  %v3321 = vsub.f32 %v3265, %v3301
  %v3322 = vsub.f32 %v3268, %v3304
  %v3323 = vsub.f32 %v3273, %v3307
  %v3324 = vsub.f32 %v3276, %v3310
  %v3325 = vsub.f32 %v3281, %v3313
  %v3326 = vsub.f32 %v3284, %v3316
  %v3327 = vmul.f32 %v3317, 1.442695
  %v3328 = vpow.pop %v3327
  %v3329 = vmul.f32 %v3318, 1.442695
  %v3330 = vpow.pop %v3329
  %v3331 = vmul.f32 %v3319, 1.442695
  %v3332 = vpow.pop %v3331
  %v3333 = vmul.f32 %v3320, 1.442695
  %v3334 = vpow.pop %v3333
  %v3335 = vmul.f32 %v3321, 1.442695
  %v3336 = vpow.pop %v3335
  %v3337 = vmul.f32 %v3322, 1.442695
  %v3338 = vpow.pop %v3337
  %v3339 = vmul.f32 %v3323, 1.442695
  %v3340 = vpow.pop %v3339
  %v3341 = vmul.f32 %v3324, 1.442695
  %v3342 = vpow.pop %v3341
  %v3343 = vmul.f32 %v3325, 1.442695
  %v3344 = vpow.pop %v3343
  %v3345 = vmul.f32 %v3326, 1.442695
  %v3346 = vpow.pop %v3345
  %v3347 = vmul.f32 %v3328, %v169
  %v3348 = vmul.f32 %v3330, %v170
  %v3349 = vmul.f32 %v3332, %v171
  %v3350 = vmul.f32 %v3334, %v172
  %v3351 = vmul.f32 %v3336, %v173
  %v3352 = vmul.f32 %v3338, %v174
  %v3353 = vmul.f32 %v3340, %v175
  %v3354 = vmul.f32 %v3342, %v176
  %v3355 = vmul.f32 %v3344, %v177
  %v3356 = vmul.f32 %v3346, %v178
  %v3357 = vsel %vm347, %v3347, 0.0
  %3358 = vadd.xlane.f32.xlu0 %v3357
  %v3359 = vpop.xlane.xlu0 %3358
  %v3360 = vsel %vm347, %v3348, 0.0
  %3361 = vadd.xlane.f32.xlu0 %v3360
  %v3362 = vpop.xlane.xlu0 %3361
  %v3363 = vsel %vm347, %v3349, 0.0
  %3364 = vadd.xlane.f32.xlu0 %v3363
  %v3365 = vpop.xlane.xlu0 %3364
  %v3366 = vsel %vm347, %v3350, 0.0
  %3367 = vadd.xlane.f32.xlu0 %v3366
  %v3368 = vpop.xlane.xlu0 %3367
  %v3369 = vsel %vm347, %v3351, 0.0
  %3370 = vadd.xlane.f32.xlu0 %v3369
  %v3371 = vpop.xlane.xlu0 %3370
  %v3372 = vsel %vm347, %v3352, 0.0
  %3373 = vadd.xlane.f32.xlu0 %v3372
  %v3374 = vpop.xlane.xlu0 %3373
  %v3375 = vsel %vm347, %v3353, 0.0
  %3376 = vadd.xlane.f32.xlu0 %v3375
  %v3377 = vpop.xlane.xlu0 %3376
  %v3378 = vsel %vm347, %v3354, 0.0
  %3379 = vadd.xlane.f32.xlu0 %v3378
  %v3380 = vpop.xlane.xlu0 %3379
  %v3381 = vsel %vm347, %v3355, 0.0
  %3382 = vadd.xlane.f32.xlu0 %v3381
  %v3383 = vpop.xlane.xlu0 %3382
  %v3384 = vsel %vm2844, %v3356, 0.0
  %3385 = vadd.xlane.f32.xlu0 %v3384
  %v3386 = vpop.xlane.xlu0 %3385
  %v3387 = vrcp.pop %v3359
  %v3388 = vrcp.pop %v3362
  %v3389 = vrcp.pop %v3365
  %v3390 = vrcp.pop %v3368
  %v3391 = vrcp.pop %v3371
  %v3392 = vrcp.pop %v3374
  %v3393 = vrcp.pop %v3377
  %v3394 = vrcp.pop %v3380
  %v3395 = vrcp.pop %v3383
  %v3396 = vrcp.pop %v3386
  %v3397 = vmul.f32 %v3347, %v3387
  %v3398 = vmul.f32 %v3348, %v3388
  %v3399 = vmul.f32 %v3349, %v3389
  %v3400 = vmul.f32 %v3350, %v3390
  %v3401 = vmul.f32 %v3351, %v3391
  %v3402 = vmul.f32 %v3352, %v3392
  %v3403 = vmul.f32 %v3353, %v3393
  %v3404 = vmul.f32 %v3354, %v3394
  %v3405 = vmul.f32 %v3355, %v3395
  %v3406 = vmul.f32 %v3356, %v3396
  %v3407 = vadd.f32 %v2928, %v3397
  %v3408 = vadd.f32 %v2929, %v3398
  %v3409 = vadd.f32 %v2930, %v3399
  %v3410 = vadd.f32 %v2931, %v3400
  %v3411 = vadd.f32 %v2932, %v3401
  %v3412 = vadd.f32 %v2933, %v3402
  %v3413 = vadd.f32 %v2934, %v3403
  %v3414 = vadd.f32 %v2935, %v3404
  %v3415 = vadd.f32 %v2936, %v3405
  %v3416 = vadd.f32 %v2937, %v3406
  %v3417 = vpack.c.bf16 %v3398, %v3397
  %v3418 = vpack.c.bf16 %v3400, %v3399
  %v3419 = vpack.c.bf16 %v3402, %v3401
  %v3420 = vpack.c.bf16 %v3404, %v3403
  %v3421 = vpack.c.bf16 %v3406, %v3405
  %3422 = vrot.lane.b32.xlu0 %v2692, 48
  %v3423 = vpop.permute.xlu0 %3422
  %3424 = vrot.lane.b32.xlu0 %v2693, 48
  %v3425 = vpop.permute.xlu0 %3424
  %3426 = vrot.lane.b32.xlu0 %v2694, 48
  %v3427 = vpop.permute.xlu0 %3426
  %3428 = vrot.lane.b32.xlu0 %v2695, 48
  %v3429 = vpop.permute.xlu0 %3428
  %3430 = vrot.lane.b32.xlu0 %v2696, 48
  %v3431 = vpop.permute.xlu0 %3430
  %v3437 = vsel %vm347, %v3417, 0
  %v3440 = vsel %vm347, %v3418, 0
  %v3443 = vsel %vm347, %v3419, 0
  %v3446 = vsel %vm347, %v3420, 0
  %v3449 = vsel %vm347, %v3421, 0
  %v3452 = vsel %vm2972, %v3431, 0
  %3454 = vmatprep.subr.bf16.mxu0 0
  %3455 = vmatpush1.bf16.msra.mxu0 0
  %3456 = vmatprep.subr.bf16.mxu0 0
  %3457 = vmatpush1.bf16.msra.mxu0 0
  %3458 = vmatprep.subr.bf16.mxu0 0
  %3459 = vmatpush1.bf16.msra.mxu0 0
  %3460 = vmatprep.subr.bf16.mxu0 0
  %3461 = vmatpush1.bf16.msra.mxu0 %v3452
  %3462 = vmatprep.subr.bf16.mxu0 0
  %3463 = vmatpush1.bf16.msra.mxu0 %v3429
  %3464 = vmatprep.subr.bf16.mxu0 0
  %3465 = vmatpush1.bf16.msra.mxu0 %v3427
  %3466 = vmatprep.subr.bf16.mxu0 0
  %3467 = vmatpush1.bf16.msra.mxu0 %v3425
  %3468 = vmatprep.subr.bf16.mxu0 0
  %3469 = vmatpush1.bf16.msra.mxu0 %v3423
  %3470 = vmatprep.subr.bf16.mxu0 0
  %3471 = vmatpush2.bf16.msra.mxu0 0
  %3472 = vmatprep.subr.bf16.mxu0 0
  %3473 = vmatpush2.bf16.msra.mxu0 0
  %3474 = vmatprep.subr.bf16.mxu0 0
  %3475 = vmatpush2.bf16.msra.mxu0 0
  %3476 = vmatprep.subr.bf16.mxu0 0
  %3477 = vmatpush2.bf16.msra.mxu0 0
  %3478 = vmatprep.subr.bf16.mxu0 0
  %3479 = vmatpush2.bf16.msra.mxu0 0
  %3480 = vmatprep.subr.bf16.mxu0 0
  %3481 = vmatpush2.bf16.msra.mxu0 0
  %3482 = vmatprep.subr.bf16.mxu0 0
  %3483 = vmatpush2.bf16.msra.mxu0 0
  %3484 = vmatprep.subr.bf16.mxu0 0
  %3485 = vmatpush2.bf16.msra.mxu0 0
  %3486 = vmatprep.mubr.bf16.mxu0 0
  %3487 = vmatmul.mubr.bf16.gmra.mxu0 %v3437
  %v3488 = vpop.f32.mrf.mxu0
  %v3489 = vadd.f32 0.0, %v3488
  %v3490 = vpop.f32.mrf.mxu0
  %v3491 = vpop.f32.mrf.mxu0
  %v3492 = vadd.f32 0.0, %v3491
  %v3493 = vpop.f32.mrf.mxu0
  %3494 = vmatprep.mubr.bf16.mxu0 0
  %3495 = vmatmul.mubr.bf16.gmra.mxu0 %v3440
  %v3496 = vpop.f32.mrf.mxu0
  %v3497 = vadd.f32 0.0, %v3496
  %v3498 = vpop.f32.mrf.mxu0
  %v3499 = vpop.f32.mrf.mxu0
  %v3500 = vadd.f32 0.0, %v3499
  %v3501 = vpop.f32.mrf.mxu0
  %3502 = vmatprep.mubr.bf16.mxu0 0
  %3503 = vmatmul.mubr.bf16.gmra.mxu0 %v3443
  %v3504 = vpop.f32.mrf.mxu0
  %v3505 = vadd.f32 0.0, %v3504
  %v3506 = vpop.f32.mrf.mxu0
  %v3507 = vpop.f32.mrf.mxu0
  %v3508 = vadd.f32 0.0, %v3507
  %v3509 = vpop.f32.mrf.mxu0
  %3510 = vmatprep.mubr.bf16.mxu0 0
  %3511 = vmatmul.mubr.bf16.gmra.mxu0 %v3446
  %v3512 = vpop.f32.mrf.mxu0
  %v3513 = vadd.f32 0.0, %v3512
  %v3514 = vpop.f32.mrf.mxu0
  %v3515 = vpop.f32.mrf.mxu0
  %v3516 = vadd.f32 0.0, %v3515
  %v3517 = vpop.f32.mrf.mxu0
  %3518 = vmatprep.mubr.bf16.mxu0 0
  %3519 = vmatmul.mubr.bf16.gmra.mxu0 %v3449
  %v3520 = vpop.f32.mrf.mxu0
  %v3521 = vadd.f32 0.0, %v3520
  %v3522 = vpop.f32.mrf.mxu0
  %v3523 = vpop.f32.mrf.mxu0
  %v3524 = vadd.f32 0.0, %v3523
  %v3525 = vpop.f32.mrf.mxu0
  %3526 = vdwg.mxu0
  %v3527 = vld [vmem:[%s1 + $0x80] sm:$0xf]
  %v3528 = vld [vmem:[%s1 + $0x84] sm:$0xf]
  %v3529 = vpack.c.bf16 %v3492, %v3489
  %v3530 = vpack.c.bf16 %v3500, %v3497
  %v3531 = vpack.c.bf16 %v3508, %v3505
  %v3532 = vpack.c.bf16 %v3516, %v3513
  %v3533 = vpack.c.bf16 %v3524, %v3521
  %v3536 = vunpack.c.l.b16 %v3527
  %v3537 = vunpack.c.l.b16 %v3528
  %v3538 = vpack.c.b16 %v3537, %v3536
  %v3541 = vsel %vm2713, %v3529, 0
  %v3544 = vsel %vm2713, %v3530, 0
  %v3547 = vsel %vm2713, %v3531, 0
  %v3550 = vsel %vm2713, %v3532, 0
  %v3553 = vsel %vm2713, %v3533, 0
  %3555 = vmatprep.subr.bf16.mxu0 0
  %3556 = vmatpush1.bf16.msra.mxu0 0
  %3557 = vmatprep.subr.bf16.mxu0 0
  %3558 = vmatpush1.bf16.msra.mxu0 0
  %3559 = vmatprep.subr.bf16.mxu0 0
  %3560 = vmatpush1.bf16.msra.mxu0 0
  %3561 = vmatprep.subr.bf16.mxu0 0
  %3562 = vmatpush1.bf16.msra.mxu0 0
  %3563 = vmatprep.subr.bf16.mxu0 0
  %3564 = vmatpush1.bf16.msra.mxu0 0
  %3565 = vmatprep.subr.bf16.mxu0 0
  %3566 = vmatpush1.bf16.msra.mxu0 0
  %3567 = vmatprep.subr.bf16.mxu0 0
  %3568 = vmatpush1.bf16.msra.mxu0 0
  %3569 = vmatprep.subr.bf16.mxu0 0
  %3570 = vmatpush1.bf16.msra.mxu0 %v3538
  %3571 = vmatprep.subr.bf16.mxu0 0
  %3572 = vmatpush2.bf16.msra.mxu0 0
  %3573 = vmatprep.subr.bf16.mxu0 0
  %3574 = vmatpush2.bf16.msra.mxu0 0
  %3575 = vmatprep.subr.bf16.mxu0 0
  %3576 = vmatpush2.bf16.msra.mxu0 0
  %3577 = vmatprep.subr.bf16.mxu0 0
  %3578 = vmatpush2.bf16.msra.mxu0 0
  %3579 = vmatprep.subr.bf16.mxu0 0
  %3580 = vmatpush2.bf16.msra.mxu0 0
  %3581 = vmatprep.subr.bf16.mxu0 0
  %3582 = vmatpush2.bf16.msra.mxu0 0
  %3583 = vmatprep.subr.bf16.mxu0 0
  %3584 = vmatpush2.bf16.msra.mxu0 0
  %3585 = vmatprep.subr.bf16.mxu0 0
  %3586 = vmatpush2.bf16.msra.mxu0 0
  %3587 = vmatprep.mubr.bf16.mxu0 0
  %3588 = vmatmul.mubr.bf16.gmra.mxu0 %v3541
  %v3589 = vpop.f32.mrf.mxu0
  %v3590 = vadd.f32 0.0, %v3589
  %v3591 = vpop.f32.mrf.mxu0
  %v3592 = vpop.f32.mrf.mxu0
  %v3593 = vadd.f32 0.0, %v3592
  %v3594 = vpop.f32.mrf.mxu0
  %3595 = vmatprep.mubr.bf16.mxu0 0
  %3596 = vmatmul.mubr.bf16.gmra.mxu0 %v3544
  %v3597 = vpop.f32.mrf.mxu0
  %v3598 = vadd.f32 0.0, %v3597
  %v3599 = vpop.f32.mrf.mxu0
  %v3600 = vpop.f32.mrf.mxu0
  %v3601 = vadd.f32 0.0, %v3600
  %v3602 = vpop.f32.mrf.mxu0
  %3603 = vmatprep.mubr.bf16.mxu0 0
  %3604 = vmatmul.mubr.bf16.gmra.mxu0 %v3547
  %v3605 = vpop.f32.mrf.mxu0
  %v3606 = vadd.f32 0.0, %v3605
  %v3607 = vpop.f32.mrf.mxu0
  %v3608 = vpop.f32.mrf.mxu0
  %v3609 = vadd.f32 0.0, %v3608
  %v3610 = vpop.f32.mrf.mxu0
  %3611 = vmatprep.mubr.bf16.mxu0 0
  %3612 = vmatmul.mubr.bf16.gmra.mxu0 %v3550
  %v3613 = vpop.f32.mrf.mxu0
  %v3614 = vadd.f32 0.0, %v3613
  %v3615 = vpop.f32.mrf.mxu0
  %v3616 = vpop.f32.mrf.mxu0
  %v3617 = vadd.f32 0.0, %v3616
  %v3618 = vpop.f32.mrf.mxu0
  %3619 = vmatprep.mubr.bf16.mxu0 0
  %3620 = vmatmul.mubr.bf16.gmra.mxu0 %v3553
  %v3621 = vpop.f32.mrf.mxu0
  %v3622 = vadd.f32 0.0, %v3621
  %v3623 = vpop.f32.mrf.mxu0
  %v3624 = vpop.f32.mrf.mxu0
  %v3625 = vadd.f32 0.0, %v3624
  %v3626 = vpop.f32.mrf.mxu0
  %3627 = vdwg.mxu0
  %v3628 = vadd.f32 %v3154, %v3590
  %v3629 = vadd.f32 %v3155, %v3593
  %v3630 = vadd.f32 %v3156, %v3598
  %v3631 = vadd.f32 %v3157, %v3601
  %v3632 = vadd.f32 %v3158, %v3606
  %v3633 = vadd.f32 %v3159, %v3609
  %v3634 = vadd.f32 %v3160, %v3614
  %v3635 = vadd.f32 %v3161, %v3617
  %v3636 = vadd.f32 %v3162, %v3622
  %v3637 = vadd.f32 %v3163, %v3625
  %v3638 = vmul.f32 %v3407, 0.5
  %v3639 = vmul.f32 %v3408, 0.5
  %v3640 = vmul.f32 %v3409, 0.5
  %v3641 = vmul.f32 %v3410, 0.5
  %v3642 = vmul.f32 %v3411, 0.5
  %v3643 = vmul.f32 %v3412, 0.5
  %v3644 = vmul.f32 %v3413, 0.5
  %v3645 = vmul.f32 %v3414, 0.5
  %v3646 = vmul.f32 %v3415, 0.5
  %v3647 = vmul.f32 %v3416, 0.5
  %vm3648 = vcmask 310272
  %3649 = vst.msk [vmem:[%s5] sm:$0xff] %vm3648, %v3638
  %3650 = vst.msk [vmem:[%s5 + $0x8] sm:$0xff] %vm3648, %v3639
  %3651 = vst.msk [vmem:[%s5 + $0x10] sm:$0xff] %vm3648, %v3640
  %3652 = vst.msk [vmem:[%s5 + $0x18] sm:$0xff] %vm3648, %v3641
  %vm3653 = vcmask 308224
  %3654 = vst.msk [vmem:[%s5 + $0x20] sm:$0x3f] %vm3653, %v3642
  %3661 = vrot.lane.b32.xlu0 %v3642, 90
  %v3662 = vpop.permute.xlu0 %3661
  %3663 = vrot.lane.b32.xlu0 %v3643, 90
  %v3664 = vpop.permute.xlu0 %3663
  %3665 = vrot.lane.b32.xlu0 %v3644, 90
  %v3666 = vpop.permute.xlu0 %3665
  %3667 = vrot.lane.b32.xlu0 %v3645, 90
  %v3668 = vpop.permute.xlu0 %3667
  %3669 = vrot.lane.b32.xlu0 %v3646, 90
  %v3670 = vpop.permute.xlu0 %3669
  %3671 = vrot.lane.b32.xlu0 %v3647, 90
  %v3672 = vpop.permute.xlu0 %3671
  %s3679 = scalar_lea.vmem %s5, 80
  %vm3680 = vcmask 310278
  %3681 = vst.msk [vmem:[%s3679 - $0x6] sm:$0xc0] %vm3680, %v3662
  %3682 = vst.msk [vmem:[%s3679 + $0x2] sm:$0xff] %vm3648, %v3664
  %3683 = vst.msk [vmem:[%s3679 + $0xa] sm:$0xff] %vm3648, %v3666
  %3684 = vst.msk [vmem:[%s3679 + $0x12] sm:$0xff] %vm3648, %v3668
  %3685 = vst.msk [vmem:[%s3679 + $0x1a] sm:$0xff] %vm3648, %v3670
  %vm3686 = vcmask 306176
  %3687 = vst.msk [vmem:[%s3679 + $0x22] sm:$0xf] %vm3686, %v3672
  %v3688 = vadd.f32 %v2568, %v3628
  %v3689 = vadd.f32 %v2569, %v3629
  %v3690 = vadd.f32 %v2570, %v3630
  %v3691 = vadd.f32 %v2571, %v3631
  %v3692 = vadd.f32 %v2572, %v3632
  %v3693 = vadd.f32 %v2573, %v3633
  %v3694 = vadd.f32 %v2574, %v3634
  %v3695 = vadd.f32 %v2575, %v3635
  %v3696 = vadd.f32 %v2576, %v3636
  %v3697 = vadd.f32 %v2577, %v3637
  %v3698 = vld [vmem:[%s2 + $0x2b] sm:$0x1]
  %v3699 = vld [vmem:[%s2 + $0x2c] sm:$0x1]
  %v3700 = vsel %vm1781, %v3688, 0.0
  %3701 = vadd.xlane.f32.xlu0 %v3700
  %v3702 = vpop.xlane.xlu0 %3701
  %v3703 = vsel %vm1781, %v3689, 0.0
  %3704 = vadd.xlane.f32.xlu0 %v3703
  %v3705 = vpop.xlane.xlu0 %3704
  %v3706 = vsel %vm1781, %v3690, 0.0
  %3707 = vadd.xlane.f32.xlu0 %v3706
  %v3708 = vpop.xlane.xlu0 %3707
  %v3709 = vsel %vm1781, %v3691, 0.0
  %3710 = vadd.xlane.f32.xlu0 %v3709
  %v3711 = vpop.xlane.xlu0 %3710
  %v3712 = vsel %vm1781, %v3692, 0.0
  %3713 = vadd.xlane.f32.xlu0 %v3712
  %v3714 = vpop.xlane.xlu0 %3713
  %v3715 = vsel %vm1781, %v3693, 0.0
  %3716 = vadd.xlane.f32.xlu0 %v3715
  %v3717 = vpop.xlane.xlu0 %3716
  %v3718 = vsel %vm1781, %v3694, 0.0
  %3719 = vadd.xlane.f32.xlu0 %v3718
  %v3720 = vpop.xlane.xlu0 %3719
  %v3721 = vsel %vm1781, %v3695, 0.0
  %3722 = vadd.xlane.f32.xlu0 %v3721
  %v3723 = vpop.xlane.xlu0 %3722
  %v3724 = vsel %vm1781, %v3696, 0.0
  %3725 = vadd.xlane.f32.xlu0 %v3724
  %v3726 = vpop.xlane.xlu0 %3725
  %v3727 = vsel %vm1809, %v3697, 0.0
  %3728 = vadd.xlane.f32.xlu0 %v3727
  %v3729 = vpop.xlane.xlu0 %3728
  %v3730 = vmul.f32 %v3688, %v3688
  %v3731 = vmul.f32 %v3689, %v3689
  %v3732 = vmul.f32 %v3690, %v3690
  %v3733 = vmul.f32 %v3691, %v3691
  %v3734 = vmul.f32 %v3692, %v3692
  %v3735 = vmul.f32 %v3693, %v3693
  %v3736 = vmul.f32 %v3694, %v3694
  %v3737 = vmul.f32 %v3695, %v3695
  %v3738 = vmul.f32 %v3696, %v3696
  %v3739 = vmul.f32 %v3697, %v3697
  %v3740 = vsel %vm1781, %v3730, 0.0
  %3741 = vadd.xlane.f32.xlu0 %v3740
  %v3742 = vpop.xlane.xlu0 %3741
  %v3743 = vsel %vm1781, %v3731, 0.0
  %3744 = vadd.xlane.f32.xlu0 %v3743
  %v3745 = vpop.xlane.xlu0 %3744
  %v3746 = vsel %vm1781, %v3732, 0.0
  %3747 = vadd.xlane.f32.xlu0 %v3746
  %v3748 = vpop.xlane.xlu0 %3747
  %v3749 = vsel %vm1781, %v3733, 0.0
  %3750 = vadd.xlane.f32.xlu0 %v3749
  %v3751 = vpop.xlane.xlu0 %3750
  %v3752 = vsel %vm1781, %v3734, 0.0
  %3753 = vadd.xlane.f32.xlu0 %v3752
  %v3754 = vpop.xlane.xlu0 %3753
  %v3755 = vsel %vm1781, %v3735, 0.0
  %3756 = vadd.xlane.f32.xlu0 %v3755
  %v3757 = vpop.xlane.xlu0 %3756
  %v3758 = vsel %vm1781, %v3736, 0.0
  %3759 = vadd.xlane.f32.xlu0 %v3758
  %v3760 = vpop.xlane.xlu0 %3759
  %v3761 = vsel %vm1781, %v3737, 0.0
  %3762 = vadd.xlane.f32.xlu0 %v3761
  %v3763 = vpop.xlane.xlu0 %3762
  %v3764 = vsel %vm1781, %v3738, 0.0
  %3765 = vadd.xlane.f32.xlu0 %v3764
  %v3766 = vpop.xlane.xlu0 %3765
  %v3767 = vsel %vm1809, %v3739, 0.0
  %3768 = vadd.xlane.f32.xlu0 %v3767
  %v3769 = vpop.xlane.xlu0 %3768
  %v3770 = vrcp.pop 32.0
  %v3771 = vmul.f32 %v3702, %v3770
  %v3772 = vmul.f32 %v3705, %v3770
  %v3773 = vmul.f32 %v3708, %v3770
  %v3774 = vmul.f32 %v3711, %v3770
  %v3775 = vmul.f32 %v3714, %v3770
  %v3776 = vmul.f32 %v3717, %v3770
  %v3777 = vmul.f32 %v3720, %v3770
  %v3778 = vmul.f32 %v3723, %v3770
  %v3779 = vmul.f32 %v3726, %v3770
  %v3780 = vmul.f32 %v3729, %v3770
  %v3781 = vmul.f32 %v3742, %v3770
  %v3782 = vmul.f32 %v3745, %v3770
  %v3783 = vmul.f32 %v3748, %v3770
  %v3784 = vmul.f32 %v3751, %v3770
  %v3785 = vmul.f32 %v3754, %v3770
  %v3786 = vmul.f32 %v3757, %v3770
  %v3787 = vmul.f32 %v3760, %v3770
  %v3788 = vmul.f32 %v3763, %v3770
  %v3789 = vmul.f32 %v3766, %v3770
  %v3790 = vmul.f32 %v3769, %v3770
  %v3791 = vmul.f32 %v3771, %v3771
  %v3792 = vmul.f32 %v3772, %v3772
  %v3793 = vmul.f32 %v3773, %v3773
  %v3794 = vmul.f32 %v3774, %v3774
  %v3795 = vmul.f32 %v3775, %v3775
  %v3796 = vmul.f32 %v3776, %v3776
  %v3797 = vmul.f32 %v3777, %v3777
  %v3798 = vmul.f32 %v3778, %v3778
  %v3799 = vmul.f32 %v3779, %v3779
  %v3800 = vmul.f32 %v3780, %v3780
  %v3801 = vsub.f32 %v3781, %v3791
  %v3802 = vsub.f32 %v3782, %v3792
  %v3803 = vsub.f32 %v3783, %v3793
  %v3804 = vsub.f32 %v3784, %v3794
  %v3805 = vsub.f32 %v3785, %v3795
  %v3806 = vsub.f32 %v3786, %v3796
  %v3807 = vsub.f32 %v3787, %v3797
  %v3808 = vsub.f32 %v3788, %v3798
  %v3809 = vsub.f32 %v3789, %v3799
  %v3810 = vsub.f32 %v3790, %v3800
  %v3811 = vmax.f32 %v3801, 0.0
  %v3812 = vmax.f32 %v3802, 0.0
  %v3813 = vmax.f32 %v3803, 0.0
  %v3814 = vmax.f32 %v3804, 0.0
  %v3815 = vmax.f32 %v3805, 0.0
  %v3816 = vmax.f32 %v3806, 0.0
  %v3817 = vmax.f32 %v3807, 0.0
  %v3818 = vmax.f32 %v3808, 0.0
  %v3819 = vmax.f32 %v3809, 0.0
  %v3820 = vmax.f32 %v3810, 0.0
  %v3821 = vsub.f32 %v3688, %v3771
  %v3822 = vsub.f32 %v3689, %v3772
  %v3823 = vsub.f32 %v3690, %v3773
  %v3824 = vsub.f32 %v3691, %v3774
  %v3825 = vsub.f32 %v3692, %v3775
  %v3826 = vsub.f32 %v3693, %v3776
  %v3827 = vsub.f32 %v3694, %v3777
  %v3828 = vsub.f32 %v3695, %v3778
  %v3829 = vsub.f32 %v3696, %v3779
  %v3830 = vsub.f32 %v3697, %v3780
  %v3831 = vadd.f32 %v3811, 1e-05
  %v3832 = vadd.f32 %v3812, 1e-05
  %v3833 = vadd.f32 %v3813, 1e-05
  %v3834 = vadd.f32 %v3814, 1e-05
  %v3835 = vadd.f32 %v3815, 1e-05
  %v3836 = vadd.f32 %v3816, 1e-05
  %v3837 = vadd.f32 %v3817, 1e-05
  %v3838 = vadd.f32 %v3818, 1e-05
  %v3839 = vadd.f32 %v3819, 1e-05
  %v3840 = vadd.f32 %v3820, 1e-05
  %v3841 = vrsqrt.pop %v3831
  %v3842 = vrsqrt.pop %v3832
  %v3843 = vrsqrt.pop %v3833
  %v3844 = vrsqrt.pop %v3834
  %v3845 = vrsqrt.pop %v3835
  %v3846 = vrsqrt.pop %v3836
  %v3847 = vrsqrt.pop %v3837
  %v3848 = vrsqrt.pop %v3838
  %v3849 = vrsqrt.pop %v3839
  %v3850 = vrsqrt.pop %v3840
  %v3851 = vmul.f32 %v3821, %v3841
  %v3852 = vmul.f32 %v3822, %v3842
  %v3853 = vmul.f32 %v3823, %v3843
  %v3854 = vmul.f32 %v3824, %v3844
  %v3855 = vmul.f32 %v3825, %v3845
  %v3856 = vmul.f32 %v3826, %v3846
  %v3857 = vmul.f32 %v3827, %v3847
  %v3858 = vmul.f32 %v3828, %v3848
  %v3859 = vmul.f32 %v3829, %v3849
  %v3860 = vmul.f32 %v3830, %v3850
  %v3861 = vlaneseq
  %v3862 = vshrl.u32 %v3861, 7
  %v3863 = vsub.s32 0, %v3862
  %v3864 = vrot.slane %v3698, %v3863
  %v3865 = vmul.f32 %v3851, %v3864
  %v3866 = vmul.f32 %v3852, %v3864
  %v3867 = vmul.f32 %v3853, %v3864
  %v3868 = vmul.f32 %v3854, %v3864
  %v3869 = vmul.f32 %v3855, %v3864
  %v3870 = vmul.f32 %v3856, %v3864
  %v3871 = vmul.f32 %v3857, %v3864
  %v3872 = vmul.f32 %v3858, %v3864
  %v3873 = vmul.f32 %v3859, %v3864
  %v3874 = vmul.f32 %v3860, %v3864
  %v3875 = vlaneseq
  %v3876 = vshrl.u32 %v3875, 7
  %v3877 = vsub.s32 0, %v3876
  %v3878 = vrot.slane %v3699, %v3877
  %v3879 = vadd.f32 %v3865, %v3878
  %v3880 = vadd.f32 %v3866, %v3878
  %v3881 = vadd.f32 %v3867, %v3878
  %v3882 = vadd.f32 %v3868, %v3878
  %v3883 = vadd.f32 %v3869, %v3878
  %v3884 = vadd.f32 %v3870, %v3878
  %v3885 = vadd.f32 %v3871, %v3878
  %v3886 = vadd.f32 %v3872, %v3878
  %v3887 = vadd.f32 %v3873, %v3878
  %v3888 = vadd.f32 %v3874, %v3878
  %v3889 = vpack.c.bf16 %v3880, %v3879
  %v3890 = vpack.c.bf16 %v3882, %v3881
  %v3891 = vpack.c.bf16 %v3884, %v3883
  %v3892 = vpack.c.bf16 %v3886, %v3885
  %v3893 = vpack.c.bf16 %v3888, %v3887
  %v3894 = vld [vmem:[%s1 + $0x88] sm:$0xf]
  %v3895 = vld [vmem:[%s1 + $0x8c] sm:$0xf]
  %v3896 = vld [vmem:[%s1 + $0x90] sm:$0xf]
  %v3897 = vld [vmem:[%s1 + $0x94] sm:$0xf]
  %v3898 = vld [vmem:[%s2 + $0x2d] sm:$0x1]
  %v3899 = vlaneseq
  %v3900 = vshrl.u32 %v3899, 7
  %v3901 = vsub.s32 0, %v3900
  %v3902 = vrot.slane %v3898, %v3901
  %v3907 = vunpack.c.l.b16 %v3894
  %v3908 = vunpack.c.l.b16 %v3895
  %v3909 = vunpack.c.l.b16 %v3896
  %v3910 = vunpack.c.l.b16 %v3897
  %v3911 = vpack.c.b16 %v3908, %v3907
  %v3912 = vpack.c.b16 %v3910, %v3909
  %v3916 = vsel %vm1781, %v3889, 0
  %v3919 = vsel %vm1781, %v3890, 0
  %v3922 = vsel %vm1781, %v3891, 0
  %v3925 = vsel %vm1781, %v3892, 0
  %v3928 = vsel %vm1781, %v3893, 0
  %3930 = vmatprep.subr.bf16.mxu0 0
  %3931 = vmatpush1.bf16.msra.mxu0 0
  %3932 = vmatprep.subr.bf16.mxu0 0
  %3933 = vmatpush1.bf16.msra.mxu0 0
  %3934 = vmatprep.subr.bf16.mxu0 0
  %3935 = vmatpush1.bf16.msra.mxu0 0
  %3936 = vmatprep.subr.bf16.mxu0 0
  %3937 = vmatpush1.bf16.msra.mxu0 0
  %3938 = vmatprep.subr.bf16.mxu0 0
  %3939 = vmatpush1.bf16.msra.mxu0 0
  %3940 = vmatprep.subr.bf16.mxu0 0
  %3941 = vmatpush1.bf16.msra.mxu0 0
  %3942 = vmatprep.subr.bf16.mxu0 0
  %3943 = vmatpush1.bf16.msra.mxu0 %v3912
  %3944 = vmatprep.subr.bf16.mxu0 0
  %3945 = vmatpush1.bf16.msra.mxu0 %v3911
  %3946 = vmatprep.subr.bf16.mxu0 0
  %3947 = vmatpush2.bf16.msra.mxu0 0
  %3948 = vmatprep.subr.bf16.mxu0 0
  %3949 = vmatpush2.bf16.msra.mxu0 0
  %3950 = vmatprep.subr.bf16.mxu0 0
  %3951 = vmatpush2.bf16.msra.mxu0 0
  %3952 = vmatprep.subr.bf16.mxu0 0
  %3953 = vmatpush2.bf16.msra.mxu0 0
  %3954 = vmatprep.subr.bf16.mxu0 0
  %3955 = vmatpush2.bf16.msra.mxu0 0
  %3956 = vmatprep.subr.bf16.mxu0 0
  %3957 = vmatpush2.bf16.msra.mxu0 0
  %3958 = vmatprep.subr.bf16.mxu0 0
  %3959 = vmatpush2.bf16.msra.mxu0 0
  %3960 = vmatprep.subr.bf16.mxu0 0
  %3961 = vmatpush2.bf16.msra.mxu0 0
  %3962 = vmatprep.mubr.bf16.mxu0 0
  %3963 = vmatmul.mubr.bf16.gmra.mxu0 %v3916
  %v3964 = vpop.f32.mrf.mxu0
  %v3965 = vadd.f32 %v3902, %v3964
  %v3966 = vpop.f32.mrf.mxu0
  %v3967 = vpop.f32.mrf.mxu0
  %v3968 = vadd.f32 %v3902, %v3967
  %v3969 = vpop.f32.mrf.mxu0
  %3970 = vmatprep.mubr.bf16.mxu0 0
  %3971 = vmatmul.mubr.bf16.gmra.mxu0 %v3919
  %v3972 = vpop.f32.mrf.mxu0
  %v3973 = vadd.f32 %v3902, %v3972
  %v3974 = vpop.f32.mrf.mxu0
  %v3975 = vpop.f32.mrf.mxu0
  %v3976 = vadd.f32 %v3902, %v3975
  %v3977 = vpop.f32.mrf.mxu0
  %3978 = vmatprep.mubr.bf16.mxu0 0
  %3979 = vmatmul.mubr.bf16.gmra.mxu0 %v3922
  %v3980 = vpop.f32.mrf.mxu0
  %v3981 = vadd.f32 %v3902, %v3980
  %v3982 = vpop.f32.mrf.mxu0
  %v3983 = vpop.f32.mrf.mxu0
  %v3984 = vadd.f32 %v3902, %v3983
  %v3985 = vpop.f32.mrf.mxu0
  %3986 = vmatprep.mubr.bf16.mxu0 0
  %3987 = vmatmul.mubr.bf16.gmra.mxu0 %v3925
  %v3988 = vpop.f32.mrf.mxu0
  %v3989 = vadd.f32 %v3902, %v3988
  %v3990 = vpop.f32.mrf.mxu0
  %v3991 = vpop.f32.mrf.mxu0
  %v3992 = vadd.f32 %v3902, %v3991
  %v3993 = vpop.f32.mrf.mxu0
  %3994 = vmatprep.mubr.bf16.mxu0 0
  %3995 = vmatmul.mubr.bf16.gmra.mxu0 %v3928
  %v3996 = vpop.f32.mrf.mxu0
  %v3997 = vadd.f32 %v3902, %v3996
  %v3998 = vpop.f32.mrf.mxu0
  %v3999 = vpop.f32.mrf.mxu0
  %v4000 = vadd.f32 %v3902, %v3999
  %v4001 = vpop.f32.mrf.mxu0
  %4002 = vdwg.mxu0
  %v4003 = vxor.u32 %v3965, 2147483648
  %v4004 = vxor.u32 %v3968, 2147483648
  %v4005 = vxor.u32 %v3973, 2147483648
  %v4006 = vxor.u32 %v3976, 2147483648
  %v4007 = vxor.u32 %v3981, 2147483648
  %v4008 = vxor.u32 %v3984, 2147483648
  %v4009 = vxor.u32 %v3989, 2147483648
  %v4010 = vxor.u32 %v3992, 2147483648
  %v4011 = vxor.u32 %v3997, 2147483648
  %v4012 = vxor.u32 %v4000, 2147483648
  %v4013 = vmul.f32 %v4003, 1.442695
  %v4014 = vpow.pop %v4013
  %v4015 = vmul.f32 %v4004, 1.442695
  %v4016 = vpow.pop %v4015
  %v4017 = vmul.f32 %v4005, 1.442695
  %v4018 = vpow.pop %v4017
  %v4019 = vmul.f32 %v4006, 1.442695
  %v4020 = vpow.pop %v4019
  %v4021 = vmul.f32 %v4007, 1.442695
  %v4022 = vpow.pop %v4021
  %v4023 = vmul.f32 %v4008, 1.442695
  %v4024 = vpow.pop %v4023
  %v4025 = vmul.f32 %v4009, 1.442695
  %v4026 = vpow.pop %v4025
  %v4027 = vmul.f32 %v4010, 1.442695
  %v4028 = vpow.pop %v4027
  %v4029 = vmul.f32 %v4011, 1.442695
  %v4030 = vpow.pop %v4029
  %v4031 = vmul.f32 %v4012, 1.442695
  %v4032 = vpow.pop %v4031
  %v4033 = vadd.f32 %v4014, 1.0
  %v4034 = vadd.f32 %v4016, 1.0
  %v4035 = vadd.f32 %v4018, 1.0
  %v4036 = vadd.f32 %v4020, 1.0
  %v4037 = vadd.f32 %v4022, 1.0
  %v4038 = vadd.f32 %v4024, 1.0
  %v4039 = vadd.f32 %v4026, 1.0
  %v4040 = vadd.f32 %v4028, 1.0
  %v4041 = vadd.f32 %v4030, 1.0
  %v4042 = vadd.f32 %v4032, 1.0
  %v4043 = vrcp.pop %v4033
  %v4044 = vmul.f32 1.0, %v4043
  %v4045 = vrcp.pop %v4034
  %v4046 = vmul.f32 1.0, %v4045
  %v4047 = vrcp.pop %v4035
  %v4048 = vmul.f32 1.0, %v4047
  %v4049 = vrcp.pop %v4036
  %v4050 = vmul.f32 1.0, %v4049
  %v4051 = vrcp.pop %v4037
  %v4052 = vmul.f32 1.0, %v4051
  %v4053 = vrcp.pop %v4038
  %v4054 = vmul.f32 1.0, %v4053
  %v4055 = vrcp.pop %v4039
  %v4056 = vmul.f32 1.0, %v4055
  %v4057 = vrcp.pop %v4040
  %v4058 = vmul.f32 1.0, %v4057
  %v4059 = vrcp.pop %v4041
  %v4060 = vmul.f32 1.0, %v4059
  %v4061 = vrcp.pop %v4042
  %v4062 = vmul.f32 1.0, %v4061
  %v4063 = vmul.f32 %v3965, %v4044
  %v4064 = vmul.f32 %v3968, %v4046
  %v4065 = vmul.f32 %v3973, %v4048
  %v4066 = vmul.f32 %v3976, %v4050
  %v4067 = vmul.f32 %v3981, %v4052
  %v4068 = vmul.f32 %v3984, %v4054
  %v4069 = vmul.f32 %v3989, %v4056
  %v4070 = vmul.f32 %v3992, %v4058
  %v4071 = vmul.f32 %v3997, %v4060
  %v4072 = vmul.f32 %v4000, %v4062
  %v4073 = vpack.c.bf16 %v4064, %v4063
  %v4074 = vpack.c.bf16 %v4066, %v4065
  %v4075 = vpack.c.bf16 %v4068, %v4067
  %v4076 = vpack.c.bf16 %v4070, %v4069
  %v4077 = vpack.c.bf16 %v4072, %v4071
  %v4078 = vld [vmem:[%s1 + $0x98] sm:$0xf]
  %v4079 = vld [vmem:[%s1 + $0x9c] sm:$0xf]
  %v4080 = vld [vmem:[%s1 + $0xa0] sm:$0xf]
  %v4081 = vld [vmem:[%s1 + $0xa4] sm:$0xf]
  %v4082 = vld [vmem:[%s1 + $0xa8] sm:$0xf]
  %v4083 = vld [vmem:[%s1 + $0xac] sm:$0xf]
  %v4084 = vld [vmem:[%s1 + $0xb0] sm:$0xf]
  %v4085 = vld [vmem:[%s1 + $0xb4] sm:$0xf]
  %v4086 = vld [vmem:[%s1 + $0xb8] sm:$0xf]
  %v4087 = vld [vmem:[%s1 + $0xbc] sm:$0xf]
  %v4088 = vld [vmem:[%s1 + $0xc0] sm:$0xf]
  %v4089 = vld [vmem:[%s1 + $0xc4] sm:$0xf]
  %v4090 = vld [vmem:[%s1 + $0xc8] sm:$0xf]
  %v4091 = vld [vmem:[%s1 + $0xcc] sm:$0xf]
  %v4092 = vld [vmem:[%s1 + $0xd0] sm:$0xf]
  %v4093 = vld [vmem:[%s1 + $0xd4] sm:$0xf]
  %v4094 = vld [vmem:[%s2 + $0x2e] sm:$0x1]
  %v4095 = vlaneseq
  %v4096 = vshrl.u32 %v4095, 7
  %v4097 = vsub.s32 0, %v4096
  %v4098 = vrot.slane %v4094, %v4097
  %v4115 = vunpack.c.l.b16 %v4078
  %v4116 = vunpack.c.l.b16 %v4079
  %v4117 = vunpack.c.l.b16 %v4080
  %v4118 = vunpack.c.l.b16 %v4081
  %v4119 = vunpack.c.l.b16 %v4082
  %v4120 = vunpack.c.l.b16 %v4083
  %v4121 = vunpack.c.l.b16 %v4084
  %v4122 = vunpack.c.l.b16 %v4085
  %v4123 = vunpack.c.l.b16 %v4086
  %v4124 = vunpack.c.l.b16 %v4087
  %v4125 = vunpack.c.l.b16 %v4088
  %v4126 = vunpack.c.l.b16 %v4089
  %v4127 = vunpack.c.l.b16 %v4090
  %v4128 = vunpack.c.l.b16 %v4091
  %v4129 = vunpack.c.l.b16 %v4092
  %v4130 = vunpack.c.l.b16 %v4093
  %v4131 = vpack.c.b16 %v4116, %v4115
  %v4132 = vpack.c.b16 %v4118, %v4117
  %v4133 = vpack.c.b16 %v4120, %v4119
  %v4134 = vpack.c.b16 %v4122, %v4121
  %v4135 = vpack.c.b16 %v4124, %v4123
  %v4136 = vpack.c.b16 %v4126, %v4125
  %v4137 = vpack.c.b16 %v4128, %v4127
  %v4138 = vpack.c.b16 %v4130, %v4129
  %4147 = vmatprep.subr.bf16.mxu0 0
  %4148 = vmatpush1.bf16.msra.mxu0 %v4138
  %4149 = vmatprep.subr.bf16.mxu0 0
  %4150 = vmatpush1.bf16.msra.mxu0 %v4137
  %4151 = vmatprep.subr.bf16.mxu0 0
  %4152 = vmatpush1.bf16.msra.mxu0 %v4136
  %4153 = vmatprep.subr.bf16.mxu0 0
  %4154 = vmatpush1.bf16.msra.mxu0 %v4135
  %4155 = vmatprep.subr.bf16.mxu0 0
  %4156 = vmatpush1.bf16.msra.mxu0 %v4134
  %4157 = vmatprep.subr.bf16.mxu0 0
  %4158 = vmatpush1.bf16.msra.mxu0 %v4133
  %4159 = vmatprep.subr.bf16.mxu0 0
  %4160 = vmatpush1.bf16.msra.mxu0 %v4132
  %4161 = vmatprep.subr.bf16.mxu0 0
  %4162 = vmatpush1.bf16.msra.mxu0 %v4131
  %4163 = vmatprep.subr.bf16.mxu0 0
  %4164 = vmatpush2.bf16.msra.mxu0 0
  %4165 = vmatprep.subr.bf16.mxu0 0
  %4166 = vmatpush2.bf16.msra.mxu0 0
  %4167 = vmatprep.subr.bf16.mxu0 0
  %4168 = vmatpush2.bf16.msra.mxu0 0
  %4169 = vmatprep.subr.bf16.mxu0 0
  %4170 = vmatpush2.bf16.msra.mxu0 0
  %4171 = vmatprep.subr.bf16.mxu0 0
  %4172 = vmatpush2.bf16.msra.mxu0 0
  %4173 = vmatprep.subr.bf16.mxu0 0
  %4174 = vmatpush2.bf16.msra.mxu0 0
  %4175 = vmatprep.subr.bf16.mxu0 0
  %4176 = vmatpush2.bf16.msra.mxu0 0
  %4177 = vmatprep.subr.bf16.mxu0 0
  %4178 = vmatpush2.bf16.msra.mxu0 0
  %4179 = vmatprep.mubr.bf16.mxu0 0
  %4180 = vmatmul.mubr.bf16.gmra.mxu0 %v4073
  %v4181 = vpop.f32.mrf.mxu0
  %v4182 = vadd.f32 %v4098, %v4181
  %v4183 = vpop.f32.mrf.mxu0
  %v4184 = vpop.f32.mrf.mxu0
  %v4185 = vadd.f32 %v4098, %v4184
  %v4186 = vpop.f32.mrf.mxu0
  %4187 = vmatprep.mubr.bf16.mxu0 0
  %4188 = vmatmul.mubr.bf16.gmra.mxu0 %v4074
  %v4189 = vpop.f32.mrf.mxu0
  %v4190 = vadd.f32 %v4098, %v4189
  %v4191 = vpop.f32.mrf.mxu0
  %v4192 = vpop.f32.mrf.mxu0
  %v4193 = vadd.f32 %v4098, %v4192
  %v4194 = vpop.f32.mrf.mxu0
  %4195 = vmatprep.mubr.bf16.mxu0 0
  %4196 = vmatmul.mubr.bf16.gmra.mxu0 %v4075
  %v4197 = vpop.f32.mrf.mxu0
  %v4198 = vadd.f32 %v4098, %v4197
  %v4199 = vpop.f32.mrf.mxu0
  %v4200 = vpop.f32.mrf.mxu0
  %v4201 = vadd.f32 %v4098, %v4200
  %v4202 = vpop.f32.mrf.mxu0
  %4203 = vmatprep.mubr.bf16.mxu0 0
  %4204 = vmatmul.mubr.bf16.gmra.mxu0 %v4076
  %v4205 = vpop.f32.mrf.mxu0
  %v4206 = vadd.f32 %v4098, %v4205
  %v4207 = vpop.f32.mrf.mxu0
  %v4208 = vpop.f32.mrf.mxu0
  %v4209 = vadd.f32 %v4098, %v4208
  %v4210 = vpop.f32.mrf.mxu0
  %4211 = vmatprep.mubr.bf16.mxu0 0
  %4212 = vmatmul.mubr.bf16.gmra.mxu0 %v4077
  %v4213 = vpop.f32.mrf.mxu0
  %v4214 = vadd.f32 %v4098, %v4213
  %v4215 = vpop.f32.mrf.mxu0
  %v4216 = vpop.f32.mrf.mxu0
  %v4217 = vadd.f32 %v4098, %v4216
  %v4218 = vpop.f32.mrf.mxu0
  %4219 = vdwg.mxu0
  %v4220 = vadd.f32 %v3879, %v4182
  %v4221 = vadd.f32 %v3880, %v4185
  %v4222 = vadd.f32 %v3881, %v4190
  %v4223 = vadd.f32 %v3882, %v4193
  %v4224 = vadd.f32 %v3883, %v4198
  %v4225 = vadd.f32 %v3884, %v4201
  %v4226 = vadd.f32 %v3885, %v4206
  %v4227 = vadd.f32 %v3886, %v4209
  %v4228 = vadd.f32 %v3887, %v4214
  %v4229 = vadd.f32 %v3888, %v4217
  %v4230 = vld [vmem:[%s2 + $0x2f] sm:$0x1]
  %v4231 = vld [vmem:[%s2 + $0x30] sm:$0x1]
  %v4232 = vsel %vm1781, %v4220, 0.0
  %4233 = vadd.xlane.f32.xlu0 %v4232
  %v4234 = vpop.xlane.xlu0 %4233
  %v4235 = vsel %vm1781, %v4221, 0.0
  %4236 = vadd.xlane.f32.xlu0 %v4235
  %v4237 = vpop.xlane.xlu0 %4236
  %v4238 = vsel %vm1781, %v4222, 0.0
  %4239 = vadd.xlane.f32.xlu0 %v4238
  %v4240 = vpop.xlane.xlu0 %4239
  %v4241 = vsel %vm1781, %v4223, 0.0
  %4242 = vadd.xlane.f32.xlu0 %v4241
  %v4243 = vpop.xlane.xlu0 %4242
  %v4244 = vsel %vm1781, %v4224, 0.0
  %4245 = vadd.xlane.f32.xlu0 %v4244
  %v4246 = vpop.xlane.xlu0 %4245
  %v4247 = vsel %vm1781, %v4225, 0.0
  %4248 = vadd.xlane.f32.xlu0 %v4247
  %v4249 = vpop.xlane.xlu0 %4248
  %v4250 = vsel %vm1781, %v4226, 0.0
  %4251 = vadd.xlane.f32.xlu0 %v4250
  %v4252 = vpop.xlane.xlu0 %4251
  %v4253 = vsel %vm1781, %v4227, 0.0
  %4254 = vadd.xlane.f32.xlu0 %v4253
  %v4255 = vpop.xlane.xlu0 %4254
  %v4256 = vsel %vm1781, %v4228, 0.0
  %4257 = vadd.xlane.f32.xlu0 %v4256
  %v4258 = vpop.xlane.xlu0 %4257
  %v4259 = vsel %vm1809, %v4229, 0.0
  %4260 = vadd.xlane.f32.xlu0 %v4259
  %v4261 = vpop.xlane.xlu0 %4260
  %v4262 = vmul.f32 %v4220, %v4220
  %v4263 = vmul.f32 %v4221, %v4221
  %v4264 = vmul.f32 %v4222, %v4222
  %v4265 = vmul.f32 %v4223, %v4223
  %v4266 = vmul.f32 %v4224, %v4224
  %v4267 = vmul.f32 %v4225, %v4225
  %v4268 = vmul.f32 %v4226, %v4226
  %v4269 = vmul.f32 %v4227, %v4227
  %v4270 = vmul.f32 %v4228, %v4228
  %v4271 = vmul.f32 %v4229, %v4229
  %v4272 = vsel %vm1781, %v4262, 0.0
  %4273 = vadd.xlane.f32.xlu0 %v4272
  %v4274 = vpop.xlane.xlu0 %4273
  %v4275 = vsel %vm1781, %v4263, 0.0
  %4276 = vadd.xlane.f32.xlu0 %v4275
  %v4277 = vpop.xlane.xlu0 %4276
  %v4278 = vsel %vm1781, %v4264, 0.0
  %4279 = vadd.xlane.f32.xlu0 %v4278
  %v4280 = vpop.xlane.xlu0 %4279
  %v4281 = vsel %vm1781, %v4265, 0.0
  %4282 = vadd.xlane.f32.xlu0 %v4281
  %v4283 = vpop.xlane.xlu0 %4282
  %v4284 = vsel %vm1781, %v4266, 0.0
  %4285 = vadd.xlane.f32.xlu0 %v4284
  %v4286 = vpop.xlane.xlu0 %4285
  %v4287 = vsel %vm1781, %v4267, 0.0
  %4288 = vadd.xlane.f32.xlu0 %v4287
  %v4289 = vpop.xlane.xlu0 %4288
  %v4290 = vsel %vm1781, %v4268, 0.0
  %4291 = vadd.xlane.f32.xlu0 %v4290
  %v4292 = vpop.xlane.xlu0 %4291
  %v4293 = vsel %vm1781, %v4269, 0.0
  %4294 = vadd.xlane.f32.xlu0 %v4293
  %v4295 = vpop.xlane.xlu0 %4294
  %v4296 = vsel %vm1781, %v4270, 0.0
  %4297 = vadd.xlane.f32.xlu0 %v4296
  %v4298 = vpop.xlane.xlu0 %4297
  %v4299 = vsel %vm1809, %v4271, 0.0
  %4300 = vadd.xlane.f32.xlu0 %v4299
  %v4301 = vpop.xlane.xlu0 %4300
  %v4302 = vmul.f32 %v4234, %v3770
  %v4303 = vmul.f32 %v4237, %v3770
  %v4304 = vmul.f32 %v4240, %v3770
  %v4305 = vmul.f32 %v4243, %v3770
  %v4306 = vmul.f32 %v4246, %v3770
  %v4307 = vmul.f32 %v4249, %v3770
  %v4308 = vmul.f32 %v4252, %v3770
  %v4309 = vmul.f32 %v4255, %v3770
  %v4310 = vmul.f32 %v4258, %v3770
  %v4311 = vmul.f32 %v4261, %v3770
  %v4312 = vmul.f32 %v4274, %v3770
  %v4313 = vmul.f32 %v4277, %v3770
  %v4314 = vmul.f32 %v4280, %v3770
  %v4315 = vmul.f32 %v4283, %v3770
  %v4316 = vmul.f32 %v4286, %v3770
  %v4317 = vmul.f32 %v4289, %v3770
  %v4318 = vmul.f32 %v4292, %v3770
  %v4319 = vmul.f32 %v4295, %v3770
  %v4320 = vmul.f32 %v4298, %v3770
  %v4321 = vmul.f32 %v4301, %v3770
  %v4322 = vmul.f32 %v4302, %v4302
  %v4323 = vmul.f32 %v4303, %v4303
  %v4324 = vmul.f32 %v4304, %v4304
  %v4325 = vmul.f32 %v4305, %v4305
  %v4326 = vmul.f32 %v4306, %v4306
  %v4327 = vmul.f32 %v4307, %v4307
  %v4328 = vmul.f32 %v4308, %v4308
  %v4329 = vmul.f32 %v4309, %v4309
  %v4330 = vmul.f32 %v4310, %v4310
  %v4331 = vmul.f32 %v4311, %v4311
  %v4332 = vsub.f32 %v4312, %v4322
  %v4333 = vsub.f32 %v4313, %v4323
  %v4334 = vsub.f32 %v4314, %v4324
  %v4335 = vsub.f32 %v4315, %v4325
  %v4336 = vsub.f32 %v4316, %v4326
  %v4337 = vsub.f32 %v4317, %v4327
  %v4338 = vsub.f32 %v4318, %v4328
  %v4339 = vsub.f32 %v4319, %v4329
  %v4340 = vsub.f32 %v4320, %v4330
  %v4341 = vsub.f32 %v4321, %v4331
  %v4342 = vmax.f32 %v4332, 0.0
  %v4343 = vmax.f32 %v4333, 0.0
  %v4344 = vmax.f32 %v4334, 0.0
  %v4345 = vmax.f32 %v4335, 0.0
  %v4346 = vmax.f32 %v4336, 0.0
  %v4347 = vmax.f32 %v4337, 0.0
  %v4348 = vmax.f32 %v4338, 0.0
  %v4349 = vmax.f32 %v4339, 0.0
  %v4350 = vmax.f32 %v4340, 0.0
  %v4351 = vmax.f32 %v4341, 0.0
  %v4352 = vsub.f32 %v4220, %v4302
  %v4353 = vsub.f32 %v4221, %v4303
  %v4354 = vsub.f32 %v4222, %v4304
  %v4355 = vsub.f32 %v4223, %v4305
  %v4356 = vsub.f32 %v4224, %v4306
  %v4357 = vsub.f32 %v4225, %v4307
  %v4358 = vsub.f32 %v4226, %v4308
  %v4359 = vsub.f32 %v4227, %v4309
  %v4360 = vsub.f32 %v4228, %v4310
  %v4361 = vsub.f32 %v4229, %v4311
  %v4362 = vadd.f32 %v4342, 1e-05
  %v4363 = vadd.f32 %v4343, 1e-05
  %v4364 = vadd.f32 %v4344, 1e-05
  %v4365 = vadd.f32 %v4345, 1e-05
  %v4366 = vadd.f32 %v4346, 1e-05
  %v4367 = vadd.f32 %v4347, 1e-05
  %v4368 = vadd.f32 %v4348, 1e-05
  %v4369 = vadd.f32 %v4349, 1e-05
  %v4370 = vadd.f32 %v4350, 1e-05
  %v4371 = vadd.f32 %v4351, 1e-05
  %v4372 = vrsqrt.pop %v4362
  %v4373 = vrsqrt.pop %v4363
  %v4374 = vrsqrt.pop %v4364
  %v4375 = vrsqrt.pop %v4365
  %v4376 = vrsqrt.pop %v4366
  %v4377 = vrsqrt.pop %v4367
  %v4378 = vrsqrt.pop %v4368
  %v4379 = vrsqrt.pop %v4369
  %v4380 = vrsqrt.pop %v4370
  %v4381 = vrsqrt.pop %v4371
  %v4382 = vmul.f32 %v4352, %v4372
  %v4383 = vmul.f32 %v4353, %v4373
  %v4384 = vmul.f32 %v4354, %v4374
  %v4385 = vmul.f32 %v4355, %v4375
  %v4386 = vmul.f32 %v4356, %v4376
  %v4387 = vmul.f32 %v4357, %v4377
  %v4388 = vmul.f32 %v4358, %v4378
  %v4389 = vmul.f32 %v4359, %v4379
  %v4390 = vmul.f32 %v4360, %v4380
  %v4391 = vmul.f32 %v4361, %v4381
  %v4392 = vlaneseq
  %v4393 = vshrl.u32 %v4392, 7
  %v4394 = vsub.s32 0, %v4393
  %v4395 = vrot.slane %v4230, %v4394
  %v4396 = vmul.f32 %v4382, %v4395
  %v4397 = vmul.f32 %v4383, %v4395
  %v4398 = vmul.f32 %v4384, %v4395
  %v4399 = vmul.f32 %v4385, %v4395
  %v4400 = vmul.f32 %v4386, %v4395
  %v4401 = vmul.f32 %v4387, %v4395
  %v4402 = vmul.f32 %v4388, %v4395
  %v4403 = vmul.f32 %v4389, %v4395
  %v4404 = vmul.f32 %v4390, %v4395
  %v4405 = vmul.f32 %v4391, %v4395
  %v4406 = vlaneseq
  %v4407 = vshrl.u32 %v4406, 7
  %v4408 = vsub.s32 0, %v4407
  %v4409 = vrot.slane %v4231, %v4408
  %v4410 = vadd.f32 %v4396, %v4409
  %v4411 = vadd.f32 %v4397, %v4409
  %v4412 = vadd.f32 %v4398, %v4409
  %v4413 = vadd.f32 %v4399, %v4409
  %v4414 = vadd.f32 %v4400, %v4409
  %v4415 = vadd.f32 %v4401, %v4409
  %v4416 = vadd.f32 %v4402, %v4409
  %v4417 = vadd.f32 %v4403, %v4409
  %v4418 = vadd.f32 %v4404, %v4409
  %v4419 = vadd.f32 %v4405, %v4409
  %v4420 = vpack.c.bf16 %v4411, %v4410
  %v4421 = vpack.c.bf16 %v4413, %v4412
  %v4422 = vpack.c.bf16 %v4415, %v4414
  %v4423 = vpack.c.bf16 %v4417, %v4416
  %v4424 = vpack.c.bf16 %v4419, %v4418
  %v4425 = vld [vmem:[%s1 + $0xd8] sm:$0xf]
  %v4426 = vld [vmem:[%s1 + $0xdc] sm:$0xf]
  %v4427 = vld [vmem:[%s1 + $0xe0] sm:$0xf]
  %v4428 = vld [vmem:[%s1 + $0xe4] sm:$0xf]
  %v4429 = vld [vmem:[%s2 + $0x31] sm:$0x1]
  %v4430 = vlaneseq
  %v4431 = vshrl.u32 %v4430, 7
  %v4432 = vsub.s32 0, %v4431
  %v4433 = vrot.slane %v4429, %v4432
  %v4438 = vunpack.c.l.b16 %v4425
  %v4439 = vunpack.c.l.b16 %v4426
  %v4440 = vunpack.c.l.b16 %v4427
  %v4441 = vunpack.c.l.b16 %v4428
  %v4442 = vpack.c.b16 %v4439, %v4438
  %v4443 = vpack.c.b16 %v4441, %v4440
  %v4447 = vsel %vm1781, %v4420, 0
  %v4450 = vsel %vm1781, %v4421, 0
  %v4453 = vsel %vm1781, %v4422, 0
  %v4456 = vsel %vm1781, %v4423, 0
  %v4459 = vsel %vm1781, %v4424, 0
  %4461 = vmatprep.subr.bf16.mxu0 0
  %4462 = vmatpush1.bf16.msra.mxu0 0
  %4463 = vmatprep.subr.bf16.mxu0 0
  %4464 = vmatpush1.bf16.msra.mxu0 0
  %4465 = vmatprep.subr.bf16.mxu0 0
  %4466 = vmatpush1.bf16.msra.mxu0 0
  %4467 = vmatprep.subr.bf16.mxu0 0
  %4468 = vmatpush1.bf16.msra.mxu0 0
  %4469 = vmatprep.subr.bf16.mxu0 0
  %4470 = vmatpush1.bf16.msra.mxu0 0
  %4471 = vmatprep.subr.bf16.mxu0 0
  %4472 = vmatpush1.bf16.msra.mxu0 0
  %4473 = vmatprep.subr.bf16.mxu0 0
  %4474 = vmatpush1.bf16.msra.mxu0 %v4443
  %4475 = vmatprep.subr.bf16.mxu0 0
  %4476 = vmatpush1.bf16.msra.mxu0 %v4442
  %4477 = vmatprep.subr.bf16.mxu0 0
  %4478 = vmatpush2.bf16.msra.mxu0 0
  %4479 = vmatprep.subr.bf16.mxu0 0
  %4480 = vmatpush2.bf16.msra.mxu0 0
  %4481 = vmatprep.subr.bf16.mxu0 0
  %4482 = vmatpush2.bf16.msra.mxu0 0
  %4483 = vmatprep.subr.bf16.mxu0 0
  %4484 = vmatpush2.bf16.msra.mxu0 0
  %4485 = vmatprep.subr.bf16.mxu0 0
  %4486 = vmatpush2.bf16.msra.mxu0 0
  %4487 = vmatprep.subr.bf16.mxu0 0
  %4488 = vmatpush2.bf16.msra.mxu0 0
  %4489 = vmatprep.subr.bf16.mxu0 0
  %4490 = vmatpush2.bf16.msra.mxu0 0
  %4491 = vmatprep.subr.bf16.mxu0 0
  %4492 = vmatpush2.bf16.msra.mxu0 0
  %4493 = vmatprep.mubr.bf16.mxu0 0
  %4494 = vmatmul.mubr.bf16.gmra.mxu0 %v4447
  %v4495 = vpop.f32.mrf.mxu0
  %v4496 = vadd.f32 %v4433, %v4495
  %v4497 = vpop.f32.mrf.mxu0
  %v4498 = vpop.f32.mrf.mxu0
  %v4499 = vadd.f32 %v4433, %v4498
  %v4500 = vpop.f32.mrf.mxu0
  %4501 = vmatprep.mubr.bf16.mxu0 0
  %4502 = vmatmul.mubr.bf16.gmra.mxu0 %v4450
  %v4503 = vpop.f32.mrf.mxu0
  %v4504 = vadd.f32 %v4433, %v4503
  %v4505 = vpop.f32.mrf.mxu0
  %v4506 = vpop.f32.mrf.mxu0
  %v4507 = vadd.f32 %v4433, %v4506
  %v4508 = vpop.f32.mrf.mxu0
  %4509 = vmatprep.mubr.bf16.mxu0 0
  %4510 = vmatmul.mubr.bf16.gmra.mxu0 %v4453
  %v4511 = vpop.f32.mrf.mxu0
  %v4512 = vadd.f32 %v4433, %v4511
  %v4513 = vpop.f32.mrf.mxu0
  %v4514 = vpop.f32.mrf.mxu0
  %v4515 = vadd.f32 %v4433, %v4514
  %v4516 = vpop.f32.mrf.mxu0
  %4517 = vmatprep.mubr.bf16.mxu0 0
  %4518 = vmatmul.mubr.bf16.gmra.mxu0 %v4456
  %v4519 = vpop.f32.mrf.mxu0
  %v4520 = vadd.f32 %v4433, %v4519
  %v4521 = vpop.f32.mrf.mxu0
  %v4522 = vpop.f32.mrf.mxu0
  %v4523 = vadd.f32 %v4433, %v4522
  %v4524 = vpop.f32.mrf.mxu0
  %4525 = vmatprep.mubr.bf16.mxu0 0
  %4526 = vmatmul.mubr.bf16.gmra.mxu0 %v4459
  %v4527 = vpop.f32.mrf.mxu0
  %v4528 = vadd.f32 %v4433, %v4527
  %v4529 = vpop.f32.mrf.mxu0
  %v4530 = vpop.f32.mrf.mxu0
  %v4531 = vadd.f32 %v4433, %v4530
  %v4532 = vpop.f32.mrf.mxu0
  %4533 = vdwg.mxu0
  %v4534 = vpack.c.bf16 %v4499, %v4496
  %v4535 = vpack.c.bf16 %v4507, %v4504
  %v4536 = vpack.c.bf16 %v4515, %v4512
  %v4537 = vpack.c.bf16 %v4523, %v4520
  %v4538 = vpack.c.bf16 %v4531, %v4528
  %v4539 = vld [vmem:[%s2 + $0x32] sm:$0x1]
  %4545 = vrot.lane.b32.xlu0 %v4534, 96
  %v4546 = vpop.permute.xlu0 %4545
  %4547 = vrot.lane.b32.xlu0 %v4535, 96
  %v4548 = vpop.permute.xlu0 %4547
  %4549 = vrot.lane.b32.xlu0 %v4536, 96
  %v4550 = vpop.permute.xlu0 %4549
  %4551 = vrot.lane.b32.xlu0 %v4537, 96
  %v4552 = vpop.permute.xlu0 %4551
  %4553 = vrot.lane.b32.xlu0 %v4538, 96
  %v4554 = vpop.permute.xlu0 %4553
  %v4556 = vsel %vm2713, %v4534, 0
  %v4559 = vsel %vm2713, %v4535, 0
  %v4562 = vsel %vm2713, %v4536, 0
  %v4565 = vsel %vm2713, %v4537, 0
  %v4568 = vsel %vm2713, %v4538, 0
  %v4571 = vsel %vm2713, %v4546, 0
  %v4574 = vsel %vm2713, %v4548, 0
  %v4577 = vsel %vm2713, %v4550, 0
  %v4580 = vsel %vm2713, %v4552, 0
  %v4583 = vsel %vm2713, %v4554, 0
  %4585 = vmatprep.subr.bf16.mxu0 0
  %4586 = vmatpush1.bf16.xpose.msra.mxu0 0
  %4587 = vmatprep.subr.bf16.mxu0 0
  %4588 = vmatpush1.bf16.xpose.msra.mxu0 0
  %4589 = vmatprep.subr.bf16.mxu0 0
  %4590 = vmatpush1.bf16.xpose.msra.mxu0 0
  %4591 = vmatprep.subr.bf16.mxu0 0
  %4592 = vmatpush1.bf16.xpose.msra.mxu0 %v4583
  %4593 = vmatprep.subr.bf16.mxu0 0
  %4594 = vmatpush1.bf16.xpose.msra.mxu0 %v4580
  %4595 = vmatprep.subr.bf16.mxu0 0
  %4596 = vmatpush1.bf16.xpose.msra.mxu0 %v4577
  %4597 = vmatprep.subr.bf16.mxu0 0
  %4598 = vmatpush1.bf16.xpose.msra.mxu0 %v4574
  %4599 = vmatprep.subr.bf16.mxu0 0
  %4600 = vmatpush1.bf16.xpose.msra.mxu0 %v4571
  %4601 = vmatprep.subr.bf16.mxu0 0
  %4602 = vmatpush2.bf16.xpose.msra.mxu0 0
  %4603 = vmatprep.subr.bf16.mxu0 0
  %4604 = vmatpush2.bf16.xpose.msra.mxu0 0
  %4605 = vmatprep.subr.bf16.mxu0 0
  %4606 = vmatpush2.bf16.xpose.msra.mxu0 0
  %4607 = vmatprep.subr.bf16.mxu0 0
  %4608 = vmatpush2.bf16.xpose.msra.mxu0 0
  %4609 = vmatprep.subr.bf16.mxu0 0
  %4610 = vmatpush2.bf16.xpose.msra.mxu0 0
  %4611 = vmatprep.subr.bf16.mxu0 0
  %4612 = vmatpush2.bf16.xpose.msra.mxu0 0
  %4613 = vmatprep.subr.bf16.mxu0 0
  %4614 = vmatpush2.bf16.xpose.msra.mxu0 0
  %4615 = vmatprep.subr.bf16.mxu0 0
  %4616 = vmatpush2.bf16.xpose.msra.mxu0 0
  %4617 = vmatprep.mubr.bf16.mxu0 0
  %4618 = vmatmul.mubr.bf16.gmra.mxu0 %v4556
  %v4619 = vpop.f32.mrf.mxu0
  %v4620 = vadd.f32 0.0, %v4619
  %v4621 = vpop.f32.mrf.mxu0
  %v4622 = vpop.f32.mrf.mxu0
  %v4623 = vadd.f32 0.0, %v4622
  %v4624 = vpop.f32.mrf.mxu0
  %4625 = vmatprep.mubr.bf16.mxu0 0
  %4626 = vmatmul.mubr.bf16.gmra.mxu0 %v4559
  %v4627 = vpop.f32.mrf.mxu0
  %v4628 = vadd.f32 0.0, %v4627
  %v4629 = vpop.f32.mrf.mxu0
  %v4630 = vpop.f32.mrf.mxu0
  %v4631 = vadd.f32 0.0, %v4630
  %v4632 = vpop.f32.mrf.mxu0
  %4633 = vmatprep.mubr.bf16.mxu0 0
  %4634 = vmatmul.mubr.bf16.gmra.mxu0 %v4562
  %v4635 = vpop.f32.mrf.mxu0
  %v4636 = vadd.f32 0.0, %v4635
  %v4637 = vpop.f32.mrf.mxu0
  %v4638 = vpop.f32.mrf.mxu0
  %v4639 = vadd.f32 0.0, %v4638
  %v4640 = vpop.f32.mrf.mxu0
  %4641 = vmatprep.mubr.bf16.mxu0 0
  %4642 = vmatmul.mubr.bf16.gmra.mxu0 %v4565
  %v4643 = vpop.f32.mrf.mxu0
  %v4644 = vadd.f32 0.0, %v4643
  %v4645 = vpop.f32.mrf.mxu0
  %v4646 = vpop.f32.mrf.mxu0
  %v4647 = vadd.f32 0.0, %v4646
  %v4648 = vpop.f32.mrf.mxu0
  %4649 = vmatprep.mubr.bf16.mxu0 0
  %4650 = vmatmul.mubr.bf16.gmra.mxu0 %v4568
  %v4651 = vpop.f32.mrf.mxu0
  %v4652 = vadd.f32 0.0, %v4651
  %v4653 = vpop.f32.mrf.mxu0
  %v4654 = vpop.f32.mrf.mxu0
  %v4655 = vadd.f32 0.0, %v4654
  %v4656 = vpop.f32.mrf.mxu0
  %4657 = vdwg.mxu0
  %v4658 = vsel %vm347, %v4620, -inf
  %4659 = vmax.xlane.f32.xlu0 %v4658
  %v4660 = vpop.xlane.xlu0 %4659
  %v4661 = vsel %vm347, %v4623, -inf
  %4662 = vmax.xlane.f32.xlu0 %v4661
  %v4663 = vpop.xlane.xlu0 %4662
  %v4664 = vsel %vm347, %v4628, -inf
  %4665 = vmax.xlane.f32.xlu0 %v4664
  %v4666 = vpop.xlane.xlu0 %4665
  %v4667 = vsel %vm347, %v4631, -inf
  %4668 = vmax.xlane.f32.xlu0 %v4667
  %v4669 = vpop.xlane.xlu0 %4668
  %v4670 = vsel %vm347, %v4636, -inf
  %4671 = vmax.xlane.f32.xlu0 %v4670
  %v4672 = vpop.xlane.xlu0 %4671
  %v4673 = vsel %vm347, %v4639, -inf
  %4674 = vmax.xlane.f32.xlu0 %v4673
  %v4675 = vpop.xlane.xlu0 %4674
  %v4676 = vsel %vm347, %v4644, -inf
  %4677 = vmax.xlane.f32.xlu0 %v4676
  %v4678 = vpop.xlane.xlu0 %4677
  %v4679 = vsel %vm347, %v4647, -inf
  %4680 = vmax.xlane.f32.xlu0 %v4679
  %v4681 = vpop.xlane.xlu0 %4680
  %v4682 = vsel %vm347, %v4652, -inf
  %4683 = vmax.xlane.f32.xlu0 %v4682
  %v4684 = vpop.xlane.xlu0 %4683
  %v4685 = vsel %vm2844, %v4655, -inf
  %4686 = vmax.xlane.f32.xlu0 %v4685
  %v4687 = vpop.xlane.xlu0 %4686
  %v4688 = vsub.f32 %v4620, %v4660
  %v4689 = vsub.f32 %v4623, %v4663
  %v4690 = vsub.f32 %v4628, %v4666
  %v4691 = vsub.f32 %v4631, %v4669
  %v4692 = vsub.f32 %v4636, %v4672
  %v4693 = vsub.f32 %v4639, %v4675
  %v4694 = vsub.f32 %v4644, %v4678
  %v4695 = vsub.f32 %v4647, %v4681
  %v4696 = vsub.f32 %v4652, %v4684
  %v4697 = vsub.f32 %v4655, %v4687
  %v4698 = vmul.f32 %v4688, 1.442695
  %v4699 = vpow.pop %v4698
  %v4700 = vmul.f32 %v4689, 1.442695
  %v4701 = vpow.pop %v4700
  %v4702 = vmul.f32 %v4690, 1.442695
  %v4703 = vpow.pop %v4702
  %v4704 = vmul.f32 %v4691, 1.442695
  %v4705 = vpow.pop %v4704
  %v4706 = vmul.f32 %v4692, 1.442695
  %v4707 = vpow.pop %v4706
  %v4708 = vmul.f32 %v4693, 1.442695
  %v4709 = vpow.pop %v4708
  %v4710 = vmul.f32 %v4694, 1.442695
  %v4711 = vpow.pop %v4710
  %v4712 = vmul.f32 %v4695, 1.442695
  %v4713 = vpow.pop %v4712
  %v4714 = vmul.f32 %v4696, 1.442695
  %v4715 = vpow.pop %v4714
  %v4716 = vmul.f32 %v4697, 1.442695
  %v4717 = vpow.pop %v4716
  %v4718 = vmul.f32 %v4699, %v169
  %v4719 = vmul.f32 %v4701, %v170
  %v4720 = vmul.f32 %v4703, %v171
  %v4721 = vmul.f32 %v4705, %v172
  %v4722 = vmul.f32 %v4707, %v173
  %v4723 = vmul.f32 %v4709, %v174
  %v4724 = vmul.f32 %v4711, %v175
  %v4725 = vmul.f32 %v4713, %v176
  %v4726 = vmul.f32 %v4715, %v177
  %v4727 = vmul.f32 %v4717, %v178
  %v4728 = vsel %vm347, %v4718, 0.0
  %4729 = vadd.xlane.f32.xlu0 %v4728
  %v4730 = vpop.xlane.xlu0 %4729
  %v4731 = vsel %vm347, %v4719, 0.0
  %4732 = vadd.xlane.f32.xlu0 %v4731
  %v4733 = vpop.xlane.xlu0 %4732
  %v4734 = vsel %vm347, %v4720, 0.0
  %4735 = vadd.xlane.f32.xlu0 %v4734
  %v4736 = vpop.xlane.xlu0 %4735
  %v4737 = vsel %vm347, %v4721, 0.0
  %4738 = vadd.xlane.f32.xlu0 %v4737
  %v4739 = vpop.xlane.xlu0 %4738
  %v4740 = vsel %vm347, %v4722, 0.0
  %4741 = vadd.xlane.f32.xlu0 %v4740
  %v4742 = vpop.xlane.xlu0 %4741
  %v4743 = vsel %vm347, %v4723, 0.0
  %4744 = vadd.xlane.f32.xlu0 %v4743
  %v4745 = vpop.xlane.xlu0 %4744
  %v4746 = vsel %vm347, %v4724, 0.0
  %4747 = vadd.xlane.f32.xlu0 %v4746
  %v4748 = vpop.xlane.xlu0 %4747
  %v4749 = vsel %vm347, %v4725, 0.0
  %4750 = vadd.xlane.f32.xlu0 %v4749
  %v4751 = vpop.xlane.xlu0 %4750
  %v4752 = vsel %vm347, %v4726, 0.0
  %4753 = vadd.xlane.f32.xlu0 %v4752
  %v4754 = vpop.xlane.xlu0 %4753
  %v4755 = vsel %vm2844, %v4727, 0.0
  %4756 = vadd.xlane.f32.xlu0 %v4755
  %v4757 = vpop.xlane.xlu0 %4756
  %v4758 = vrcp.pop %v4730
  %v4759 = vrcp.pop %v4733
  %v4760 = vrcp.pop %v4736
  %v4761 = vrcp.pop %v4739
  %v4762 = vrcp.pop %v4742
  %v4763 = vrcp.pop %v4745
  %v4764 = vrcp.pop %v4748
  %v4765 = vrcp.pop %v4751
  %v4766 = vrcp.pop %v4754
  %v4767 = vrcp.pop %v4757
  %v4768 = vmul.f32 %v4718, %v4758
  %v4769 = vmul.f32 %v4719, %v4759
  %v4770 = vmul.f32 %v4720, %v4760
  %v4771 = vmul.f32 %v4721, %v4761
  %v4772 = vmul.f32 %v4722, %v4762
  %v4773 = vmul.f32 %v4723, %v4763
  %v4774 = vmul.f32 %v4724, %v4764
  %v4775 = vmul.f32 %v4725, %v4765
  %v4776 = vmul.f32 %v4726, %v4766
  %v4777 = vmul.f32 %v4727, %v4767
  %v4778 = vpack.c.bf16 %v4769, %v4768
  %v4779 = vpack.c.bf16 %v4771, %v4770
  %v4780 = vpack.c.bf16 %v4773, %v4772
  %v4781 = vpack.c.bf16 %v4775, %v4774
  %v4782 = vpack.c.bf16 %v4777, %v4776
  %4783 = vrot.lane.b32.xlu0 %v4534, 64
  %v4784 = vpop.permute.xlu0 %4783
  %4785 = vrot.lane.b32.xlu0 %v4535, 64
  %v4786 = vpop.permute.xlu0 %4785
  %4787 = vrot.lane.b32.xlu0 %v4536, 64
  %v4788 = vpop.permute.xlu0 %4787
  %4789 = vrot.lane.b32.xlu0 %v4537, 64
  %v4790 = vpop.permute.xlu0 %4789
  %4791 = vrot.lane.b32.xlu0 %v4538, 64
  %v4792 = vpop.permute.xlu0 %4791
  %v4798 = vsel %vm347, %v4778, 0
  %v4801 = vsel %vm347, %v4779, 0
  %v4804 = vsel %vm347, %v4780, 0
  %v4807 = vsel %vm347, %v4781, 0
  %v4810 = vsel %vm347, %v4782, 0
  %v4813 = vsel %vm2972, %v4792, 0
  %4815 = vmatprep.subr.bf16.mxu0 0
  %4816 = vmatpush1.bf16.msra.mxu0 0
  %4817 = vmatprep.subr.bf16.mxu0 0
  %4818 = vmatpush1.bf16.msra.mxu0 0
  %4819 = vmatprep.subr.bf16.mxu0 0
  %4820 = vmatpush1.bf16.msra.mxu0 0
  %4821 = vmatprep.subr.bf16.mxu0 0
  %4822 = vmatpush1.bf16.msra.mxu0 %v4813
  %4823 = vmatprep.subr.bf16.mxu0 0
  %4824 = vmatpush1.bf16.msra.mxu0 %v4790
  %4825 = vmatprep.subr.bf16.mxu0 0
  %4826 = vmatpush1.bf16.msra.mxu0 %v4788
  %4827 = vmatprep.subr.bf16.mxu0 0
  %4828 = vmatpush1.bf16.msra.mxu0 %v4786
  %4829 = vmatprep.subr.bf16.mxu0 0
  %4830 = vmatpush1.bf16.msra.mxu0 %v4784
  %4831 = vmatprep.subr.bf16.mxu0 0
  %4832 = vmatpush2.bf16.msra.mxu0 0
  %4833 = vmatprep.subr.bf16.mxu0 0
  %4834 = vmatpush2.bf16.msra.mxu0 0
  %4835 = vmatprep.subr.bf16.mxu0 0
  %4836 = vmatpush2.bf16.msra.mxu0 0
  %4837 = vmatprep.subr.bf16.mxu0 0
  %4838 = vmatpush2.bf16.msra.mxu0 0
  %4839 = vmatprep.subr.bf16.mxu0 0
  %4840 = vmatpush2.bf16.msra.mxu0 0
  %4841 = vmatprep.subr.bf16.mxu0 0
  %4842 = vmatpush2.bf16.msra.mxu0 0
  %4843 = vmatprep.subr.bf16.mxu0 0
  %4844 = vmatpush2.bf16.msra.mxu0 0
  %4845 = vmatprep.subr.bf16.mxu0 0
  %4846 = vmatpush2.bf16.msra.mxu0 0
  %4847 = vmatprep.mubr.bf16.mxu0 0
  %4848 = vmatmul.mubr.bf16.gmra.mxu0 %v4798
  %v4849 = vpop.f32.mrf.mxu0
  %v4850 = vadd.f32 0.0, %v4849
  %v4851 = vpop.f32.mrf.mxu0
  %v4852 = vpop.f32.mrf.mxu0
  %v4853 = vadd.f32 0.0, %v4852
  %v4854 = vpop.f32.mrf.mxu0
  %4855 = vmatprep.mubr.bf16.mxu0 0
  %4856 = vmatmul.mubr.bf16.gmra.mxu0 %v4801
  %v4857 = vpop.f32.mrf.mxu0
  %v4858 = vadd.f32 0.0, %v4857
  %v4859 = vpop.f32.mrf.mxu0
  %v4860 = vpop.f32.mrf.mxu0
  %v4861 = vadd.f32 0.0, %v4860
  %v4862 = vpop.f32.mrf.mxu0
  %4863 = vmatprep.mubr.bf16.mxu0 0
  %4864 = vmatmul.mubr.bf16.gmra.mxu0 %v4804
  %v4865 = vpop.f32.mrf.mxu0
  %v4866 = vadd.f32 0.0, %v4865
  %v4867 = vpop.f32.mrf.mxu0
  %v4868 = vpop.f32.mrf.mxu0
  %v4869 = vadd.f32 0.0, %v4868
  %v4870 = vpop.f32.mrf.mxu0
  %4871 = vmatprep.mubr.bf16.mxu0 0
  %4872 = vmatmul.mubr.bf16.gmra.mxu0 %v4807
  %v4873 = vpop.f32.mrf.mxu0
  %v4874 = vadd.f32 0.0, %v4873
  %v4875 = vpop.f32.mrf.mxu0
  %v4876 = vpop.f32.mrf.mxu0
  %v4877 = vadd.f32 0.0, %v4876
  %v4878 = vpop.f32.mrf.mxu0
  %4879 = vmatprep.mubr.bf16.mxu0 0
  %4880 = vmatmul.mubr.bf16.gmra.mxu0 %v4810
  %v4881 = vpop.f32.mrf.mxu0
  %v4882 = vadd.f32 0.0, %v4881
  %v4883 = vpop.f32.mrf.mxu0
  %v4884 = vpop.f32.mrf.mxu0
  %v4885 = vadd.f32 0.0, %v4884
  %v4886 = vpop.f32.mrf.mxu0
  %4887 = vdwg.mxu0
  %v4888 = vld [vmem:[%s1 + $0xe8] sm:$0xf]
  %v4889 = vld [vmem:[%s1 + $0xec] sm:$0xf]
  %v4890 = vpack.c.bf16 %v4853, %v4850
  %v4891 = vpack.c.bf16 %v4861, %v4858
  %v4892 = vpack.c.bf16 %v4869, %v4866
  %v4893 = vpack.c.bf16 %v4877, %v4874
  %v4894 = vpack.c.bf16 %v4885, %v4882
  %v4897 = vunpack.c.l.b16 %v4888
  %v4898 = vunpack.c.l.b16 %v4889
  %v4899 = vpack.c.b16 %v4898, %v4897
  %v4902 = vsel %vm2713, %v4890, 0
  %v4905 = vsel %vm2713, %v4891, 0
  %v4908 = vsel %vm2713, %v4892, 0
  %v4911 = vsel %vm2713, %v4893, 0
  %v4914 = vsel %vm2713, %v4894, 0
  %4916 = vmatprep.subr.bf16.mxu0 0
  %4917 = vmatpush1.bf16.msra.mxu0 0
  %4918 = vmatprep.subr.bf16.mxu0 0
  %4919 = vmatpush1.bf16.msra.mxu0 0
  %4920 = vmatprep.subr.bf16.mxu0 0
  %4921 = vmatpush1.bf16.msra.mxu0 0
  %4922 = vmatprep.subr.bf16.mxu0 0
  %4923 = vmatpush1.bf16.msra.mxu0 0
  %4924 = vmatprep.subr.bf16.mxu0 0
  %4925 = vmatpush1.bf16.msra.mxu0 0
  %4926 = vmatprep.subr.bf16.mxu0 0
  %4927 = vmatpush1.bf16.msra.mxu0 0
  %4928 = vmatprep.subr.bf16.mxu0 0
  %4929 = vmatpush1.bf16.msra.mxu0 0
  %4930 = vmatprep.subr.bf16.mxu0 0
  %4931 = vmatpush1.bf16.msra.mxu0 %v4899
  %4932 = vmatprep.subr.bf16.mxu0 0
  %4933 = vmatpush2.bf16.msra.mxu0 0
  %4934 = vmatprep.subr.bf16.mxu0 0
  %4935 = vmatpush2.bf16.msra.mxu0 0
  %4936 = vmatprep.subr.bf16.mxu0 0
  %4937 = vmatpush2.bf16.msra.mxu0 0
  %4938 = vmatprep.subr.bf16.mxu0 0
  %4939 = vmatpush2.bf16.msra.mxu0 0
  %4940 = vmatprep.subr.bf16.mxu0 0
  %4941 = vmatpush2.bf16.msra.mxu0 0
  %4942 = vmatprep.subr.bf16.mxu0 0
  %4943 = vmatpush2.bf16.msra.mxu0 0
  %4944 = vmatprep.subr.bf16.mxu0 0
  %4945 = vmatpush2.bf16.msra.mxu0 0
  %4946 = vmatprep.subr.bf16.mxu0 0
  %4947 = vmatpush2.bf16.msra.mxu0 0
  %4948 = vmatprep.mubr.bf16.mxu0 0
  %4949 = vmatmul.mubr.bf16.gmra.mxu0 %v4902
  %v4950 = vpop.f32.mrf.mxu0
  %v4951 = vadd.f32 0.0, %v4950
  %v4952 = vpop.f32.mrf.mxu0
  %v4953 = vpop.f32.mrf.mxu0
  %v4954 = vadd.f32 0.0, %v4953
  %v4955 = vpop.f32.mrf.mxu0
  %4956 = vmatprep.mubr.bf16.mxu0 0
  %4957 = vmatmul.mubr.bf16.gmra.mxu0 %v4905
  %v4958 = vpop.f32.mrf.mxu0
  %v4959 = vadd.f32 0.0, %v4958
  %v4960 = vpop.f32.mrf.mxu0
  %v4961 = vpop.f32.mrf.mxu0
  %v4962 = vadd.f32 0.0, %v4961
  %v4963 = vpop.f32.mrf.mxu0
  %4964 = vmatprep.mubr.bf16.mxu0 0
  %4965 = vmatmul.mubr.bf16.gmra.mxu0 %v4908
  %v4966 = vpop.f32.mrf.mxu0
  %v4967 = vadd.f32 0.0, %v4966
  %v4968 = vpop.f32.mrf.mxu0
  %v4969 = vpop.f32.mrf.mxu0
  %v4970 = vadd.f32 0.0, %v4969
  %v4971 = vpop.f32.mrf.mxu0
  %4972 = vmatprep.mubr.bf16.mxu0 0
  %4973 = vmatmul.mubr.bf16.gmra.mxu0 %v4911
  %v4974 = vpop.f32.mrf.mxu0
  %v4975 = vadd.f32 0.0, %v4974
  %v4976 = vpop.f32.mrf.mxu0
  %v4977 = vpop.f32.mrf.mxu0
  %v4978 = vadd.f32 0.0, %v4977
  %v4979 = vpop.f32.mrf.mxu0
  %4980 = vmatprep.mubr.bf16.mxu0 0
  %4981 = vmatmul.mubr.bf16.gmra.mxu0 %v4914
  %v4982 = vpop.f32.mrf.mxu0
  %v4983 = vadd.f32 0.0, %v4982
  %v4984 = vpop.f32.mrf.mxu0
  %v4985 = vpop.f32.mrf.mxu0
  %v4986 = vadd.f32 0.0, %v4985
  %v4987 = vpop.f32.mrf.mxu0
  %4988 = vdwg.mxu0
  %v4989 = vlaneseq
  %v4990 = vshrl.u32 %v4989, 7
  %v4991 = vsub.s32 0, %v4990
  %v4992 = vrot.slane %v4539, %v4991
  %v4993 = vadd.f32 %v4992, %v4951
  %v4994 = vadd.f32 %v4992, %v4954
  %v4995 = vadd.f32 %v4992, %v4959
  %v4996 = vadd.f32 %v4992, %v4962
  %v4997 = vadd.f32 %v4992, %v4967
  %v4998 = vadd.f32 %v4992, %v4970
  %v4999 = vadd.f32 %v4992, %v4975
  %v5000 = vadd.f32 %v4992, %v4978
  %v5001 = vadd.f32 %v4992, %v4983
  %v5002 = vadd.f32 %v4992, %v4986
  %5003 = vrot.lane.b32.xlu0 %v4534, 112
  %v5004 = vpop.permute.xlu0 %5003
  %5005 = vrot.lane.b32.xlu0 %v4535, 112
  %v5006 = vpop.permute.xlu0 %5005
  %5007 = vrot.lane.b32.xlu0 %v4536, 112
  %v5008 = vpop.permute.xlu0 %5007
  %5009 = vrot.lane.b32.xlu0 %v4537, 112
  %v5010 = vpop.permute.xlu0 %5009
  %5011 = vrot.lane.b32.xlu0 %v4538, 112
  %v5012 = vpop.permute.xlu0 %5011
  %5013 = vrot.lane.b32.xlu0 %v4534, 80
  %v5014 = vpop.permute.xlu0 %5013
  %5015 = vrot.lane.b32.xlu0 %v4535, 80
  %v5016 = vpop.permute.xlu0 %5015
  %5017 = vrot.lane.b32.xlu0 %v4536, 80
  %v5018 = vpop.permute.xlu0 %5017
  %5019 = vrot.lane.b32.xlu0 %v4537, 80
  %v5020 = vpop.permute.xlu0 %5019
  %5021 = vrot.lane.b32.xlu0 %v4538, 80
  %v5022 = vpop.permute.xlu0 %5021
  %v5024 = vsel %vm2713, %v5004, 0
  %v5027 = vsel %vm2713, %v5006, 0
  %v5030 = vsel %vm2713, %v5008, 0
  %v5033 = vsel %vm2713, %v5010, 0
  %v5036 = vsel %vm2713, %v5012, 0
  %v5039 = vsel %vm2713, %v5014, 0
  %v5042 = vsel %vm2713, %v5016, 0
  %v5045 = vsel %vm2713, %v5018, 0
  %v5048 = vsel %vm2713, %v5020, 0
  %v5051 = vsel %vm2713, %v5022, 0
  %5053 = vmatprep.subr.bf16.mxu0 0
  %5054 = vmatpush1.bf16.xpose.msra.mxu0 0
  %5055 = vmatprep.subr.bf16.mxu0 0
  %5056 = vmatpush1.bf16.xpose.msra.mxu0 0
  %5057 = vmatprep.subr.bf16.mxu0 0
  %5058 = vmatpush1.bf16.xpose.msra.mxu0 0
  %5059 = vmatprep.subr.bf16.mxu0 0
  %5060 = vmatpush1.bf16.xpose.msra.mxu0 %v5051
  %5061 = vmatprep.subr.bf16.mxu0 0
  %5062 = vmatpush1.bf16.xpose.msra.mxu0 %v5048
  %5063 = vmatprep.subr.bf16.mxu0 0
  %5064 = vmatpush1.bf16.xpose.msra.mxu0 %v5045
  %5065 = vmatprep.subr.bf16.mxu0 0
  %5066 = vmatpush1.bf16.xpose.msra.mxu0 %v5042
  %5067 = vmatprep.subr.bf16.mxu0 0
  %5068 = vmatpush1.bf16.xpose.msra.mxu0 %v5039
  %5069 = vmatprep.subr.bf16.mxu0 0
  %5070 = vmatpush2.bf16.xpose.msra.mxu0 0
  %5071 = vmatprep.subr.bf16.mxu0 0
  %5072 = vmatpush2.bf16.xpose.msra.mxu0 0
  %5073 = vmatprep.subr.bf16.mxu0 0
  %5074 = vmatpush2.bf16.xpose.msra.mxu0 0
  %5075 = vmatprep.subr.bf16.mxu0 0
  %5076 = vmatpush2.bf16.xpose.msra.mxu0 0
  %5077 = vmatprep.subr.bf16.mxu0 0
  %5078 = vmatpush2.bf16.xpose.msra.mxu0 0
  %5079 = vmatprep.subr.bf16.mxu0 0
  %5080 = vmatpush2.bf16.xpose.msra.mxu0 0
  %5081 = vmatprep.subr.bf16.mxu0 0
  %5082 = vmatpush2.bf16.xpose.msra.mxu0 0
  %5083 = vmatprep.subr.bf16.mxu0 0
  %5084 = vmatpush2.bf16.xpose.msra.mxu0 0
  %5085 = vmatprep.mubr.bf16.mxu0 0
  %5086 = vmatmul.mubr.bf16.gmra.mxu0 %v5024
  %v5087 = vpop.f32.mrf.mxu0
  %v5088 = vadd.f32 0.0, %v5087
  %v5089 = vpop.f32.mrf.mxu0
  %v5090 = vpop.f32.mrf.mxu0
  %v5091 = vadd.f32 0.0, %v5090
  %v5092 = vpop.f32.mrf.mxu0
  %5093 = vmatprep.mubr.bf16.mxu0 0
  %5094 = vmatmul.mubr.bf16.gmra.mxu0 %v5027
  %v5095 = vpop.f32.mrf.mxu0
  %v5096 = vadd.f32 0.0, %v5095
  %v5097 = vpop.f32.mrf.mxu0
  %v5098 = vpop.f32.mrf.mxu0
  %v5099 = vadd.f32 0.0, %v5098
  %v5100 = vpop.f32.mrf.mxu0
  %5101 = vmatprep.mubr.bf16.mxu0 0
  %5102 = vmatmul.mubr.bf16.gmra.mxu0 %v5030
  %v5103 = vpop.f32.mrf.mxu0
  %v5104 = vadd.f32 0.0, %v5103
  %v5105 = vpop.f32.mrf.mxu0
  %v5106 = vpop.f32.mrf.mxu0
  %v5107 = vadd.f32 0.0, %v5106
  %v5108 = vpop.f32.mrf.mxu0
  %5109 = vmatprep.mubr.bf16.mxu0 0
  %5110 = vmatmul.mubr.bf16.gmra.mxu0 %v5033
  %v5111 = vpop.f32.mrf.mxu0
  %v5112 = vadd.f32 0.0, %v5111
  %v5113 = vpop.f32.mrf.mxu0
  %v5114 = vpop.f32.mrf.mxu0
  %v5115 = vadd.f32 0.0, %v5114
  %v5116 = vpop.f32.mrf.mxu0
  %5117 = vmatprep.mubr.bf16.mxu0 0
  %5118 = vmatmul.mubr.bf16.gmra.mxu0 %v5036
  %v5119 = vpop.f32.mrf.mxu0
  %v5120 = vadd.f32 0.0, %v5119
  %v5121 = vpop.f32.mrf.mxu0
  %v5122 = vpop.f32.mrf.mxu0
  %v5123 = vadd.f32 0.0, %v5122
  %v5124 = vpop.f32.mrf.mxu0
  %5125 = vdwg.mxu0
  %v5126 = vsel %vm347, %v5088, -inf
  %5127 = vmax.xlane.f32.xlu0 %v5126
  %v5128 = vpop.xlane.xlu0 %5127
  %v5129 = vsel %vm347, %v5091, -inf
  %5130 = vmax.xlane.f32.xlu0 %v5129
  %v5131 = vpop.xlane.xlu0 %5130
  %v5132 = vsel %vm347, %v5096, -inf
  %5133 = vmax.xlane.f32.xlu0 %v5132
  %v5134 = vpop.xlane.xlu0 %5133
  %v5135 = vsel %vm347, %v5099, -inf
  %5136 = vmax.xlane.f32.xlu0 %v5135
  %v5137 = vpop.xlane.xlu0 %5136
  %v5138 = vsel %vm347, %v5104, -inf
  %5139 = vmax.xlane.f32.xlu0 %v5138
  %v5140 = vpop.xlane.xlu0 %5139
  %v5141 = vsel %vm347, %v5107, -inf
  %5142 = vmax.xlane.f32.xlu0 %v5141
  %v5143 = vpop.xlane.xlu0 %5142
  %v5144 = vsel %vm347, %v5112, -inf
  %5145 = vmax.xlane.f32.xlu0 %v5144
  %v5146 = vpop.xlane.xlu0 %5145
  %v5147 = vsel %vm347, %v5115, -inf
  %5148 = vmax.xlane.f32.xlu0 %v5147
  %v5149 = vpop.xlane.xlu0 %5148
  %v5150 = vsel %vm347, %v5120, -inf
  %5151 = vmax.xlane.f32.xlu0 %v5150
  %v5152 = vpop.xlane.xlu0 %5151
  %v5153 = vsel %vm2844, %v5123, -inf
  %5154 = vmax.xlane.f32.xlu0 %v5153
  %v5155 = vpop.xlane.xlu0 %5154
  %v5156 = vsub.f32 %v5088, %v5128
  %v5157 = vsub.f32 %v5091, %v5131
  %v5158 = vsub.f32 %v5096, %v5134
  %v5159 = vsub.f32 %v5099, %v5137
  %v5160 = vsub.f32 %v5104, %v5140
  %v5161 = vsub.f32 %v5107, %v5143
  %v5162 = vsub.f32 %v5112, %v5146
  %v5163 = vsub.f32 %v5115, %v5149
  %v5164 = vsub.f32 %v5120, %v5152
  %v5165 = vsub.f32 %v5123, %v5155
  %v5166 = vmul.f32 %v5156, 1.442695
  %v5167 = vpow.pop %v5166
  %v5168 = vmul.f32 %v5157, 1.442695
  %v5169 = vpow.pop %v5168
  %v5170 = vmul.f32 %v5158, 1.442695
  %v5171 = vpow.pop %v5170
  %v5172 = vmul.f32 %v5159, 1.442695
  %v5173 = vpow.pop %v5172
  %v5174 = vmul.f32 %v5160, 1.442695
  %v5175 = vpow.pop %v5174
  %v5176 = vmul.f32 %v5161, 1.442695
  %v5177 = vpow.pop %v5176
  %v5178 = vmul.f32 %v5162, 1.442695
  %v5179 = vpow.pop %v5178
  %v5180 = vmul.f32 %v5163, 1.442695
  %v5181 = vpow.pop %v5180
  %v5182 = vmul.f32 %v5164, 1.442695
  %v5183 = vpow.pop %v5182
  %v5184 = vmul.f32 %v5165, 1.442695
  %v5185 = vpow.pop %v5184
  %v5186 = vmul.f32 %v5167, %v169
  %v5187 = vmul.f32 %v5169, %v170
  %v5188 = vmul.f32 %v5171, %v171
  %v5189 = vmul.f32 %v5173, %v172
  %v5190 = vmul.f32 %v5175, %v173
  %v5191 = vmul.f32 %v5177, %v174
  %v5192 = vmul.f32 %v5179, %v175
  %v5193 = vmul.f32 %v5181, %v176
  %v5194 = vmul.f32 %v5183, %v177
  %v5195 = vmul.f32 %v5185, %v178
  %v5196 = vsel %vm347, %v5186, 0.0
  %5197 = vadd.xlane.f32.xlu0 %v5196
  %v5198 = vpop.xlane.xlu0 %5197
  %v5199 = vsel %vm347, %v5187, 0.0
  %5200 = vadd.xlane.f32.xlu0 %v5199
  %v5201 = vpop.xlane.xlu0 %5200
  %v5202 = vsel %vm347, %v5188, 0.0
  %5203 = vadd.xlane.f32.xlu0 %v5202
  %v5204 = vpop.xlane.xlu0 %5203
  %v5205 = vsel %vm347, %v5189, 0.0
  %5206 = vadd.xlane.f32.xlu0 %v5205
  %v5207 = vpop.xlane.xlu0 %5206
  %v5208 = vsel %vm347, %v5190, 0.0
  %5209 = vadd.xlane.f32.xlu0 %v5208
  %v5210 = vpop.xlane.xlu0 %5209
  %v5211 = vsel %vm347, %v5191, 0.0
  %5212 = vadd.xlane.f32.xlu0 %v5211
  %v5213 = vpop.xlane.xlu0 %5212
  %v5214 = vsel %vm347, %v5192, 0.0
  %5215 = vadd.xlane.f32.xlu0 %v5214
  %v5216 = vpop.xlane.xlu0 %5215
  %v5217 = vsel %vm347, %v5193, 0.0
  %5218 = vadd.xlane.f32.xlu0 %v5217
  %v5219 = vpop.xlane.xlu0 %5218
  %v5220 = vsel %vm347, %v5194, 0.0
  %5221 = vadd.xlane.f32.xlu0 %v5220
  %v5222 = vpop.xlane.xlu0 %5221
  %v5223 = vsel %vm2844, %v5195, 0.0
  %5224 = vadd.xlane.f32.xlu0 %v5223
  %v5225 = vpop.xlane.xlu0 %5224
  %v5226 = vrcp.pop %v5198
  %v5227 = vrcp.pop %v5201
  %v5228 = vrcp.pop %v5204
  %v5229 = vrcp.pop %v5207
  %v5230 = vrcp.pop %v5210
  %v5231 = vrcp.pop %v5213
  %v5232 = vrcp.pop %v5216
  %v5233 = vrcp.pop %v5219
  %v5234 = vrcp.pop %v5222
  %v5235 = vrcp.pop %v5225
  %v5236 = vmul.f32 %v5186, %v5226
  %v5237 = vmul.f32 %v5187, %v5227
  %v5238 = vmul.f32 %v5188, %v5228
  %v5239 = vmul.f32 %v5189, %v5229
  %v5240 = vmul.f32 %v5190, %v5230
  %v5241 = vmul.f32 %v5191, %v5231
  %v5242 = vmul.f32 %v5192, %v5232
  %v5243 = vmul.f32 %v5193, %v5233
  %v5244 = vmul.f32 %v5194, %v5234
  %v5245 = vmul.f32 %v5195, %v5235
  %v5246 = vadd.f32 %v4768, %v5236
  %v5247 = vadd.f32 %v4769, %v5237
  %v5248 = vadd.f32 %v4770, %v5238
  %v5249 = vadd.f32 %v4771, %v5239
  %v5250 = vadd.f32 %v4772, %v5240
  %v5251 = vadd.f32 %v4773, %v5241
  %v5252 = vadd.f32 %v4774, %v5242
  %v5253 = vadd.f32 %v4775, %v5243
  %v5254 = vadd.f32 %v4776, %v5244
  %v5255 = vadd.f32 %v4777, %v5245
  %v5256 = vpack.c.bf16 %v5237, %v5236
  %v5257 = vpack.c.bf16 %v5239, %v5238
  %v5258 = vpack.c.bf16 %v5241, %v5240
  %v5259 = vpack.c.bf16 %v5243, %v5242
  %v5260 = vpack.c.bf16 %v5245, %v5244
  %5261 = vrot.lane.b32.xlu0 %v4534, 48
  %v5262 = vpop.permute.xlu0 %5261
  %5263 = vrot.lane.b32.xlu0 %v4535, 48
  %v5264 = vpop.permute.xlu0 %5263
  %5265 = vrot.lane.b32.xlu0 %v4536, 48
  %v5266 = vpop.permute.xlu0 %5265
  %5267 = vrot.lane.b32.xlu0 %v4537, 48
  %v5268 = vpop.permute.xlu0 %5267
  %5269 = vrot.lane.b32.xlu0 %v4538, 48
  %v5270 = vpop.permute.xlu0 %5269
  %v5276 = vsel %vm347, %v5256, 0
  %v5279 = vsel %vm347, %v5257, 0
  %v5282 = vsel %vm347, %v5258, 0
  %v5285 = vsel %vm347, %v5259, 0
  %v5288 = vsel %vm347, %v5260, 0
  %v5291 = vsel %vm2972, %v5270, 0
  %5293 = vmatprep.subr.bf16.mxu0 0
  %5294 = vmatpush1.bf16.msra.mxu0 0
  %5295 = vmatprep.subr.bf16.mxu0 0
  %5296 = vmatpush1.bf16.msra.mxu0 0
  %5297 = vmatprep.subr.bf16.mxu0 0
  %5298 = vmatpush1.bf16.msra.mxu0 0
  %5299 = vmatprep.subr.bf16.mxu0 0
  %5300 = vmatpush1.bf16.msra.mxu0 %v5291
  %5301 = vmatprep.subr.bf16.mxu0 0
  %5302 = vmatpush1.bf16.msra.mxu0 %v5268
  %5303 = vmatprep.subr.bf16.mxu0 0
  %5304 = vmatpush1.bf16.msra.mxu0 %v5266
  %5305 = vmatprep.subr.bf16.mxu0 0
  %5306 = vmatpush1.bf16.msra.mxu0 %v5264
  %5307 = vmatprep.subr.bf16.mxu0 0
  %5308 = vmatpush1.bf16.msra.mxu0 %v5262
  %5309 = vmatprep.subr.bf16.mxu0 0
  %5310 = vmatpush2.bf16.msra.mxu0 0
  %5311 = vmatprep.subr.bf16.mxu0 0
  %5312 = vmatpush2.bf16.msra.mxu0 0
  %5313 = vmatprep.subr.bf16.mxu0 0
  %5314 = vmatpush2.bf16.msra.mxu0 0
  %5315 = vmatprep.subr.bf16.mxu0 0
  %5316 = vmatpush2.bf16.msra.mxu0 0
  %5317 = vmatprep.subr.bf16.mxu0 0
  %5318 = vmatpush2.bf16.msra.mxu0 0
  %5319 = vmatprep.subr.bf16.mxu0 0
  %5320 = vmatpush2.bf16.msra.mxu0 0
  %5321 = vmatprep.subr.bf16.mxu0 0
  %5322 = vmatpush2.bf16.msra.mxu0 0
  %5323 = vmatprep.subr.bf16.mxu0 0
  %5324 = vmatpush2.bf16.msra.mxu0 0
  %5325 = vmatprep.mubr.bf16.mxu0 0
  %5326 = vmatmul.mubr.bf16.gmra.mxu0 %v5276
  %v5327 = vpop.f32.mrf.mxu0
  %v5328 = vadd.f32 0.0, %v5327
  %v5329 = vpop.f32.mrf.mxu0
  %v5330 = vpop.f32.mrf.mxu0
  %v5331 = vadd.f32 0.0, %v5330
  %v5332 = vpop.f32.mrf.mxu0
  %5333 = vmatprep.mubr.bf16.mxu0 0
  %5334 = vmatmul.mubr.bf16.gmra.mxu0 %v5279
  %v5335 = vpop.f32.mrf.mxu0
  %v5336 = vadd.f32 0.0, %v5335
  %v5337 = vpop.f32.mrf.mxu0
  %v5338 = vpop.f32.mrf.mxu0
  %v5339 = vadd.f32 0.0, %v5338
  %v5340 = vpop.f32.mrf.mxu0
  %5341 = vmatprep.mubr.bf16.mxu0 0
  %5342 = vmatmul.mubr.bf16.gmra.mxu0 %v5282
  %v5343 = vpop.f32.mrf.mxu0
  %v5344 = vadd.f32 0.0, %v5343
  %v5345 = vpop.f32.mrf.mxu0
  %v5346 = vpop.f32.mrf.mxu0
  %v5347 = vadd.f32 0.0, %v5346
  %v5348 = vpop.f32.mrf.mxu0
  %5349 = vmatprep.mubr.bf16.mxu0 0
  %5350 = vmatmul.mubr.bf16.gmra.mxu0 %v5285
  %v5351 = vpop.f32.mrf.mxu0
  %v5352 = vadd.f32 0.0, %v5351
  %v5353 = vpop.f32.mrf.mxu0
  %v5354 = vpop.f32.mrf.mxu0
  %v5355 = vadd.f32 0.0, %v5354
  %v5356 = vpop.f32.mrf.mxu0
  %5357 = vmatprep.mubr.bf16.mxu0 0
  %5358 = vmatmul.mubr.bf16.gmra.mxu0 %v5288
  %v5359 = vpop.f32.mrf.mxu0
  %v5360 = vadd.f32 0.0, %v5359
  %v5361 = vpop.f32.mrf.mxu0
  %v5362 = vpop.f32.mrf.mxu0
  %v5363 = vadd.f32 0.0, %v5362
  %v5364 = vpop.f32.mrf.mxu0
  %5365 = vdwg.mxu0
  %v5366 = vld [vmem:[%s1 + $0xf0] sm:$0xf]
  %v5367 = vld [vmem:[%s1 + $0xf4] sm:$0xf]
  %v5368 = vpack.c.bf16 %v5331, %v5328
  %v5369 = vpack.c.bf16 %v5339, %v5336
  %v5370 = vpack.c.bf16 %v5347, %v5344
  %v5371 = vpack.c.bf16 %v5355, %v5352
  %v5372 = vpack.c.bf16 %v5363, %v5360
  %v5375 = vunpack.c.l.b16 %v5366
  %v5376 = vunpack.c.l.b16 %v5367
  %v5377 = vpack.c.b16 %v5376, %v5375
  %v5380 = vsel %vm2713, %v5368, 0
  %v5383 = vsel %vm2713, %v5369, 0
  %v5386 = vsel %vm2713, %v5370, 0
  %v5389 = vsel %vm2713, %v5371, 0
  %v5392 = vsel %vm2713, %v5372, 0
  %5394 = vmatprep.subr.bf16.mxu0 0
  %5395 = vmatpush1.bf16.msra.mxu0 0
  %5396 = vmatprep.subr.bf16.mxu0 0
  %5397 = vmatpush1.bf16.msra.mxu0 0
  %5398 = vmatprep.subr.bf16.mxu0 0
  %5399 = vmatpush1.bf16.msra.mxu0 0
  %5400 = vmatprep.subr.bf16.mxu0 0
  %5401 = vmatpush1.bf16.msra.mxu0 0
  %5402 = vmatprep.subr.bf16.mxu0 0
  %5403 = vmatpush1.bf16.msra.mxu0 0
  %5404 = vmatprep.subr.bf16.mxu0 0
  %5405 = vmatpush1.bf16.msra.mxu0 0
  %5406 = vmatprep.subr.bf16.mxu0 0
  %5407 = vmatpush1.bf16.msra.mxu0 0
  %5408 = vmatprep.subr.bf16.mxu0 0
  %5409 = vmatpush1.bf16.msra.mxu0 %v5377
  %5410 = vmatprep.subr.bf16.mxu0 0
  %5411 = vmatpush2.bf16.msra.mxu0 0
  %5412 = vmatprep.subr.bf16.mxu0 0
  %5413 = vmatpush2.bf16.msra.mxu0 0
  %5414 = vmatprep.subr.bf16.mxu0 0
  %5415 = vmatpush2.bf16.msra.mxu0 0
  %5416 = vmatprep.subr.bf16.mxu0 0
  %5417 = vmatpush2.bf16.msra.mxu0 0
  %5418 = vmatprep.subr.bf16.mxu0 0
  %5419 = vmatpush2.bf16.msra.mxu0 0
  %5420 = vmatprep.subr.bf16.mxu0 0
  %5421 = vmatpush2.bf16.msra.mxu0 0
  %5422 = vmatprep.subr.bf16.mxu0 0
  %5423 = vmatpush2.bf16.msra.mxu0 0
  %5424 = vmatprep.subr.bf16.mxu0 0
  %5425 = vmatpush2.bf16.msra.mxu0 0
  %5426 = vmatprep.mubr.bf16.mxu0 0
  %5427 = vmatmul.mubr.bf16.gmra.mxu0 %v5380
  %v5428 = vpop.f32.mrf.mxu0
  %v5429 = vadd.f32 0.0, %v5428
  %v5430 = vpop.f32.mrf.mxu0
  %v5431 = vpop.f32.mrf.mxu0
  %v5432 = vadd.f32 0.0, %v5431
  %v5433 = vpop.f32.mrf.mxu0
  %5434 = vmatprep.mubr.bf16.mxu0 0
  %5435 = vmatmul.mubr.bf16.gmra.mxu0 %v5383
  %v5436 = vpop.f32.mrf.mxu0
  %v5437 = vadd.f32 0.0, %v5436
  %v5438 = vpop.f32.mrf.mxu0
  %v5439 = vpop.f32.mrf.mxu0
  %v5440 = vadd.f32 0.0, %v5439
  %v5441 = vpop.f32.mrf.mxu0
  %5442 = vmatprep.mubr.bf16.mxu0 0
  %5443 = vmatmul.mubr.bf16.gmra.mxu0 %v5386
  %v5444 = vpop.f32.mrf.mxu0
  %v5445 = vadd.f32 0.0, %v5444
  %v5446 = vpop.f32.mrf.mxu0
  %v5447 = vpop.f32.mrf.mxu0
  %v5448 = vadd.f32 0.0, %v5447
  %v5449 = vpop.f32.mrf.mxu0
  %5450 = vmatprep.mubr.bf16.mxu0 0
  %5451 = vmatmul.mubr.bf16.gmra.mxu0 %v5389
  %v5452 = vpop.f32.mrf.mxu0
  %v5453 = vadd.f32 0.0, %v5452
  %v5454 = vpop.f32.mrf.mxu0
  %v5455 = vpop.f32.mrf.mxu0
  %v5456 = vadd.f32 0.0, %v5455
  %v5457 = vpop.f32.mrf.mxu0
  %5458 = vmatprep.mubr.bf16.mxu0 0
  %5459 = vmatmul.mubr.bf16.gmra.mxu0 %v5392
  %v5460 = vpop.f32.mrf.mxu0
  %v5461 = vadd.f32 0.0, %v5460
  %v5462 = vpop.f32.mrf.mxu0
  %v5463 = vpop.f32.mrf.mxu0
  %v5464 = vadd.f32 0.0, %v5463
  %v5465 = vpop.f32.mrf.mxu0
  %5466 = vdwg.mxu0
  %v5467 = vadd.f32 %v4993, %v5429
  %v5468 = vadd.f32 %v4994, %v5432
  %v5469 = vadd.f32 %v4995, %v5437
  %v5470 = vadd.f32 %v4996, %v5440
  %v5471 = vadd.f32 %v4997, %v5445
  %v5472 = vadd.f32 %v4998, %v5448
  %v5473 = vadd.f32 %v4999, %v5453
  %v5474 = vadd.f32 %v5000, %v5456
  %v5475 = vadd.f32 %v5001, %v5461
  %v5476 = vadd.f32 %v5002, %v5464
  %v5477 = vmul.f32 %v5246, 0.5
  %v5478 = vmul.f32 %v5247, 0.5
  %v5479 = vmul.f32 %v5248, 0.5
  %v5480 = vmul.f32 %v5249, 0.5
  %v5481 = vmul.f32 %v5250, 0.5
  %v5482 = vmul.f32 %v5251, 0.5
  %v5483 = vmul.f32 %v5252, 0.5
  %v5484 = vmul.f32 %v5253, 0.5
  %v5485 = vmul.f32 %v5254, 0.5
  %v5486 = vmul.f32 %v5255, 0.5
  %s5487 = scalar_lea.vmem %s5, 40
  %5488 = vst.msk [vmem:[%s5487] sm:$0xff] %vm3648, %v5477
  %5489 = vst.msk [vmem:[%s5487 + $0x8] sm:$0xff] %vm3648, %v5478
  %5490 = vst.msk [vmem:[%s5487 + $0x10] sm:$0xff] %vm3648, %v5479
  %5491 = vst.msk [vmem:[%s5487 + $0x18] sm:$0xff] %vm3648, %v5480
  %5492 = vst.msk [vmem:[%s5487 + $0x20] sm:$0x3f] %vm3653, %v5481
  %5499 = vrot.lane.b32.xlu0 %v5481, 90
  %v5500 = vpop.permute.xlu0 %5499
  %5501 = vrot.lane.b32.xlu0 %v5482, 90
  %v5502 = vpop.permute.xlu0 %5501
  %5503 = vrot.lane.b32.xlu0 %v5483, 90
  %v5504 = vpop.permute.xlu0 %5503
  %5505 = vrot.lane.b32.xlu0 %v5484, 90
  %v5506 = vpop.permute.xlu0 %5505
  %5507 = vrot.lane.b32.xlu0 %v5485, 90
  %v5508 = vpop.permute.xlu0 %5507
  %5509 = vrot.lane.b32.xlu0 %v5486, 90
  %v5510 = vpop.permute.xlu0 %5509
  %s5517 = scalar_lea.vmem %s5, 120
  %5518 = vst.msk [vmem:[%s5517 - $0x6] sm:$0xc0] %vm3680, %v5500
  %5519 = vst.msk [vmem:[%s5517 + $0x2] sm:$0xff] %vm3648, %v5502
  %5520 = vst.msk [vmem:[%s5517 + $0xa] sm:$0xff] %vm3648, %v5504
  %5521 = vst.msk [vmem:[%s5517 + $0x12] sm:$0xff] %vm3648, %v5506
  %5522 = vst.msk [vmem:[%s5517 + $0x1a] sm:$0xff] %vm3648, %v5508
  %5523 = vst.msk [vmem:[%s5517 + $0x22] sm:$0xf] %vm3686, %v5510
  %v5524 = vadd.f32 %v4410, %v5467
  %v5525 = vadd.f32 %v4411, %v5468
  %v5526 = vadd.f32 %v4412, %v5469
  %v5527 = vadd.f32 %v4413, %v5470
  %v5528 = vadd.f32 %v4414, %v5471
  %v5529 = vadd.f32 %v4415, %v5472
  %v5530 = vadd.f32 %v4416, %v5473
  %v5531 = vadd.f32 %v4417, %v5474
  %v5532 = vadd.f32 %v4418, %v5475
  %v5533 = vadd.f32 %v4419, %v5476
  %v5534 = vld [vmem:[%s2 + $0x33] sm:$0x1]
  %v5535 = vld [vmem:[%s2 + $0x34] sm:$0x1]
  %v5536 = vsel %vm1781, %v5524, 0.0
  %5537 = vadd.xlane.f32.xlu0 %v5536
  %v5538 = vpop.xlane.xlu0 %5537
  %v5539 = vsel %vm1781, %v5525, 0.0
  %5540 = vadd.xlane.f32.xlu0 %v5539
  %v5541 = vpop.xlane.xlu0 %5540
  %v5542 = vsel %vm1781, %v5526, 0.0
  %5543 = vadd.xlane.f32.xlu0 %v5542
  %v5544 = vpop.xlane.xlu0 %5543
  %v5545 = vsel %vm1781, %v5527, 0.0
  %5546 = vadd.xlane.f32.xlu0 %v5545
  %v5547 = vpop.xlane.xlu0 %5546
  %v5548 = vsel %vm1781, %v5528, 0.0
  %5549 = vadd.xlane.f32.xlu0 %v5548
  %v5550 = vpop.xlane.xlu0 %5549
  %v5551 = vsel %vm1781, %v5529, 0.0
  %5552 = vadd.xlane.f32.xlu0 %v5551
  %v5553 = vpop.xlane.xlu0 %5552
  %v5554 = vsel %vm1781, %v5530, 0.0
  %5555 = vadd.xlane.f32.xlu0 %v5554
  %v5556 = vpop.xlane.xlu0 %5555
  %v5557 = vsel %vm1781, %v5531, 0.0
  %5558 = vadd.xlane.f32.xlu0 %v5557
  %v5559 = vpop.xlane.xlu0 %5558
  %v5560 = vsel %vm1781, %v5532, 0.0
  %5561 = vadd.xlane.f32.xlu0 %v5560
  %v5562 = vpop.xlane.xlu0 %5561
  %v5563 = vsel %vm1809, %v5533, 0.0
  %5564 = vadd.xlane.f32.xlu0 %v5563
  %v5565 = vpop.xlane.xlu0 %5564
  %v5566 = vmul.f32 %v5524, %v5524
  %v5567 = vmul.f32 %v5525, %v5525
  %v5568 = vmul.f32 %v5526, %v5526
  %v5569 = vmul.f32 %v5527, %v5527
  %v5570 = vmul.f32 %v5528, %v5528
  %v5571 = vmul.f32 %v5529, %v5529
  %v5572 = vmul.f32 %v5530, %v5530
  %v5573 = vmul.f32 %v5531, %v5531
  %v5574 = vmul.f32 %v5532, %v5532
  %v5575 = vmul.f32 %v5533, %v5533
  %v5576 = vsel %vm1781, %v5566, 0.0
  %5577 = vadd.xlane.f32.xlu0 %v5576
  %v5578 = vpop.xlane.xlu0 %5577
  %v5579 = vsel %vm1781, %v5567, 0.0
  %5580 = vadd.xlane.f32.xlu0 %v5579
  %v5581 = vpop.xlane.xlu0 %5580
  %v5582 = vsel %vm1781, %v5568, 0.0
  %5583 = vadd.xlane.f32.xlu0 %v5582
  %v5584 = vpop.xlane.xlu0 %5583
  %v5585 = vsel %vm1781, %v5569, 0.0
  %5586 = vadd.xlane.f32.xlu0 %v5585
  %v5587 = vpop.xlane.xlu0 %5586
  %v5588 = vsel %vm1781, %v5570, 0.0
  %5589 = vadd.xlane.f32.xlu0 %v5588
  %v5590 = vpop.xlane.xlu0 %5589
  %v5591 = vsel %vm1781, %v5571, 0.0
  %5592 = vadd.xlane.f32.xlu0 %v5591
  %v5593 = vpop.xlane.xlu0 %5592
  %v5594 = vsel %vm1781, %v5572, 0.0
  %5595 = vadd.xlane.f32.xlu0 %v5594
  %v5596 = vpop.xlane.xlu0 %5595
  %v5597 = vsel %vm1781, %v5573, 0.0
  %5598 = vadd.xlane.f32.xlu0 %v5597
  %v5599 = vpop.xlane.xlu0 %5598
  %v5600 = vsel %vm1781, %v5574, 0.0
  %5601 = vadd.xlane.f32.xlu0 %v5600
  %v5602 = vpop.xlane.xlu0 %5601
  %v5603 = vsel %vm1809, %v5575, 0.0
  %5604 = vadd.xlane.f32.xlu0 %v5603
  %v5605 = vpop.xlane.xlu0 %5604
  %v5606 = vmul.f32 %v5538, %v3770
  %v5607 = vmul.f32 %v5541, %v3770
  %v5608 = vmul.f32 %v5544, %v3770
  %v5609 = vmul.f32 %v5547, %v3770
  %v5610 = vmul.f32 %v5550, %v3770
  %v5611 = vmul.f32 %v5553, %v3770
  %v5612 = vmul.f32 %v5556, %v3770
  %v5613 = vmul.f32 %v5559, %v3770
  %v5614 = vmul.f32 %v5562, %v3770
  %v5615 = vmul.f32 %v5565, %v3770
  %v5616 = vmul.f32 %v5578, %v3770
  %v5617 = vmul.f32 %v5581, %v3770
  %v5618 = vmul.f32 %v5584, %v3770
  %v5619 = vmul.f32 %v5587, %v3770
  %v5620 = vmul.f32 %v5590, %v3770
  %v5621 = vmul.f32 %v5593, %v3770
  %v5622 = vmul.f32 %v5596, %v3770
  %v5623 = vmul.f32 %v5599, %v3770
  %v5624 = vmul.f32 %v5602, %v3770
  %v5625 = vmul.f32 %v5605, %v3770
  %v5626 = vmul.f32 %v5606, %v5606
  %v5627 = vmul.f32 %v5607, %v5607
  %v5628 = vmul.f32 %v5608, %v5608
  %v5629 = vmul.f32 %v5609, %v5609
  %v5630 = vmul.f32 %v5610, %v5610
  %v5631 = vmul.f32 %v5611, %v5611
  %v5632 = vmul.f32 %v5612, %v5612
  %v5633 = vmul.f32 %v5613, %v5613
  %v5634 = vmul.f32 %v5614, %v5614
  %v5635 = vmul.f32 %v5615, %v5615
  %v5636 = vsub.f32 %v5616, %v5626
  %v5637 = vsub.f32 %v5617, %v5627
  %v5638 = vsub.f32 %v5618, %v5628
  %v5639 = vsub.f32 %v5619, %v5629
  %v5640 = vsub.f32 %v5620, %v5630
  %v5641 = vsub.f32 %v5621, %v5631
  %v5642 = vsub.f32 %v5622, %v5632
  %v5643 = vsub.f32 %v5623, %v5633
  %v5644 = vsub.f32 %v5624, %v5634
  %v5645 = vsub.f32 %v5625, %v5635
  %v5646 = vmax.f32 %v5636, 0.0
  %v5647 = vmax.f32 %v5637, 0.0
  %v5648 = vmax.f32 %v5638, 0.0
  %v5649 = vmax.f32 %v5639, 0.0
  %v5650 = vmax.f32 %v5640, 0.0
  %v5651 = vmax.f32 %v5641, 0.0
  %v5652 = vmax.f32 %v5642, 0.0
  %v5653 = vmax.f32 %v5643, 0.0
  %v5654 = vmax.f32 %v5644, 0.0
  %v5655 = vmax.f32 %v5645, 0.0
  %v5656 = vsub.f32 %v5524, %v5606
  %v5657 = vsub.f32 %v5525, %v5607
  %v5658 = vsub.f32 %v5526, %v5608
  %v5659 = vsub.f32 %v5527, %v5609
  %v5660 = vsub.f32 %v5528, %v5610
  %v5661 = vsub.f32 %v5529, %v5611
  %v5662 = vsub.f32 %v5530, %v5612
  %v5663 = vsub.f32 %v5531, %v5613
  %v5664 = vsub.f32 %v5532, %v5614
  %v5665 = vsub.f32 %v5533, %v5615
  %v5666 = vadd.f32 %v5646, 1e-05
  %v5667 = vadd.f32 %v5647, 1e-05
  %v5668 = vadd.f32 %v5648, 1e-05
  %v5669 = vadd.f32 %v5649, 1e-05
  %v5670 = vadd.f32 %v5650, 1e-05
  %v5671 = vadd.f32 %v5651, 1e-05
  %v5672 = vadd.f32 %v5652, 1e-05
  %v5673 = vadd.f32 %v5653, 1e-05
  %v5674 = vadd.f32 %v5654, 1e-05
  %v5675 = vadd.f32 %v5655, 1e-05
  %v5676 = vrsqrt.pop %v5666
  %v5677 = vrsqrt.pop %v5667
  %v5678 = vrsqrt.pop %v5668
  %v5679 = vrsqrt.pop %v5669
  %v5680 = vrsqrt.pop %v5670
  %v5681 = vrsqrt.pop %v5671
  %v5682 = vrsqrt.pop %v5672
  %v5683 = vrsqrt.pop %v5673
  %v5684 = vrsqrt.pop %v5674
  %v5685 = vrsqrt.pop %v5675
  %v5686 = vmul.f32 %v5656, %v5676
  %v5687 = vmul.f32 %v5657, %v5677
  %v5688 = vmul.f32 %v5658, %v5678
  %v5689 = vmul.f32 %v5659, %v5679
  %v5690 = vmul.f32 %v5660, %v5680
  %v5691 = vmul.f32 %v5661, %v5681
  %v5692 = vmul.f32 %v5662, %v5682
  %v5693 = vmul.f32 %v5663, %v5683
  %v5694 = vmul.f32 %v5664, %v5684
  %v5695 = vmul.f32 %v5665, %v5685
  %v5696 = vlaneseq
  %v5697 = vshrl.u32 %v5696, 7
  %v5698 = vsub.s32 0, %v5697
  %v5699 = vrot.slane %v5534, %v5698
  %v5700 = vmul.f32 %v5686, %v5699
  %v5701 = vmul.f32 %v5687, %v5699
  %v5702 = vmul.f32 %v5688, %v5699
  %v5703 = vmul.f32 %v5689, %v5699
  %v5704 = vmul.f32 %v5690, %v5699
  %v5705 = vmul.f32 %v5691, %v5699
  %v5706 = vmul.f32 %v5692, %v5699
  %v5707 = vmul.f32 %v5693, %v5699
  %v5708 = vmul.f32 %v5694, %v5699
  %v5709 = vmul.f32 %v5695, %v5699
  %v5710 = vlaneseq
  %v5711 = vshrl.u32 %v5710, 7
  %v5712 = vsub.s32 0, %v5711
  %v5713 = vrot.slane %v5535, %v5712
  %v5714 = vadd.f32 %v5700, %v5713
  %v5715 = vadd.f32 %v5701, %v5713
  %v5716 = vadd.f32 %v5702, %v5713
  %v5717 = vadd.f32 %v5703, %v5713
  %v5718 = vadd.f32 %v5704, %v5713
  %v5719 = vadd.f32 %v5705, %v5713
  %v5720 = vadd.f32 %v5706, %v5713
  %v5721 = vadd.f32 %v5707, %v5713
  %v5722 = vadd.f32 %v5708, %v5713
  %v5723 = vadd.f32 %v5709, %v5713
  %v5724 = vpack.c.bf16 %v5715, %v5714
  %v5725 = vpack.c.bf16 %v5717, %v5716
  %v5726 = vpack.c.bf16 %v5719, %v5718
  %v5727 = vpack.c.bf16 %v5721, %v5720
  %v5728 = vpack.c.bf16 %v5723, %v5722
  %v5729 = vld [vmem:[%s1 + $0xf8] sm:$0xf]
  %v5730 = vld [vmem:[%s1 + $0xfc] sm:$0xf]
  %v5731 = vld [vmem:[%s1 + $0x100] sm:$0xf]
  %v5732 = vld [vmem:[%s1 + $0x104] sm:$0xf]
  %v5733 = vld [vmem:[%s2 + $0x35] sm:$0x1]
  %v5734 = vlaneseq
  %v5735 = vshrl.u32 %v5734, 7
  %v5736 = vsub.s32 0, %v5735
  %v5737 = vrot.slane %v5733, %v5736
  %v5742 = vunpack.c.l.b16 %v5729
  %v5743 = vunpack.c.l.b16 %v5730
  %v5744 = vunpack.c.l.b16 %v5731
  %v5745 = vunpack.c.l.b16 %v5732
  %v5746 = vpack.c.b16 %v5743, %v5742
  %v5747 = vpack.c.b16 %v5745, %v5744
  %v5751 = vsel %vm1781, %v5724, 0
  %v5754 = vsel %vm1781, %v5725, 0
  %v5757 = vsel %vm1781, %v5726, 0
  %v5760 = vsel %vm1781, %v5727, 0
  %v5763 = vsel %vm1781, %v5728, 0
  %5765 = vmatprep.subr.bf16.mxu0 0
  %5766 = vmatpush1.bf16.msra.mxu0 0
  %5767 = vmatprep.subr.bf16.mxu0 0
  %5768 = vmatpush1.bf16.msra.mxu0 0
  %5769 = vmatprep.subr.bf16.mxu0 0
  %5770 = vmatpush1.bf16.msra.mxu0 0
  %5771 = vmatprep.subr.bf16.mxu0 0
  %5772 = vmatpush1.bf16.msra.mxu0 0
  %5773 = vmatprep.subr.bf16.mxu0 0
  %5774 = vmatpush1.bf16.msra.mxu0 0
  %5775 = vmatprep.subr.bf16.mxu0 0
  %5776 = vmatpush1.bf16.msra.mxu0 0
  %5777 = vmatprep.subr.bf16.mxu0 0
  %5778 = vmatpush1.bf16.msra.mxu0 %v5747
  %5779 = vmatprep.subr.bf16.mxu0 0
  %5780 = vmatpush1.bf16.msra.mxu0 %v5746
  %5781 = vmatprep.subr.bf16.mxu0 0
  %5782 = vmatpush2.bf16.msra.mxu0 0
  %5783 = vmatprep.subr.bf16.mxu0 0
  %5784 = vmatpush2.bf16.msra.mxu0 0
  %5785 = vmatprep.subr.bf16.mxu0 0
  %5786 = vmatpush2.bf16.msra.mxu0 0
  %5787 = vmatprep.subr.bf16.mxu0 0
  %5788 = vmatpush2.bf16.msra.mxu0 0
  %5789 = vmatprep.subr.bf16.mxu0 0
  %5790 = vmatpush2.bf16.msra.mxu0 0
  %5791 = vmatprep.subr.bf16.mxu0 0
  %5792 = vmatpush2.bf16.msra.mxu0 0
  %5793 = vmatprep.subr.bf16.mxu0 0
  %5794 = vmatpush2.bf16.msra.mxu0 0
  %5795 = vmatprep.subr.bf16.mxu0 0
  %5796 = vmatpush2.bf16.msra.mxu0 0
  %5797 = vmatprep.mubr.bf16.mxu0 0
  %5798 = vmatmul.mubr.bf16.gmra.mxu0 %v5751
  %v5799 = vpop.f32.mrf.mxu0
  %v5800 = vadd.f32 %v5737, %v5799
  %v5801 = vpop.f32.mrf.mxu0
  %v5802 = vpop.f32.mrf.mxu0
  %v5803 = vadd.f32 %v5737, %v5802
  %v5804 = vpop.f32.mrf.mxu0
  %5805 = vmatprep.mubr.bf16.mxu0 0
  %5806 = vmatmul.mubr.bf16.gmra.mxu0 %v5754
  %v5807 = vpop.f32.mrf.mxu0
  %v5808 = vadd.f32 %v5737, %v5807
  %v5809 = vpop.f32.mrf.mxu0
  %v5810 = vpop.f32.mrf.mxu0
  %v5811 = vadd.f32 %v5737, %v5810
  %v5812 = vpop.f32.mrf.mxu0
  %5813 = vmatprep.mubr.bf16.mxu0 0
  %5814 = vmatmul.mubr.bf16.gmra.mxu0 %v5757
  %v5815 = vpop.f32.mrf.mxu0
  %v5816 = vadd.f32 %v5737, %v5815
  %v5817 = vpop.f32.mrf.mxu0
  %v5818 = vpop.f32.mrf.mxu0
  %v5819 = vadd.f32 %v5737, %v5818
  %v5820 = vpop.f32.mrf.mxu0
  %5821 = vmatprep.mubr.bf16.mxu0 0
  %5822 = vmatmul.mubr.bf16.gmra.mxu0 %v5760
  %v5823 = vpop.f32.mrf.mxu0
  %v5824 = vadd.f32 %v5737, %v5823
  %v5825 = vpop.f32.mrf.mxu0
  %v5826 = vpop.f32.mrf.mxu0
  %v5827 = vadd.f32 %v5737, %v5826
  %v5828 = vpop.f32.mrf.mxu0
  %5829 = vmatprep.mubr.bf16.mxu0 0
  %5830 = vmatmul.mubr.bf16.gmra.mxu0 %v5763
  %v5831 = vpop.f32.mrf.mxu0
  %v5832 = vadd.f32 %v5737, %v5831
  %v5833 = vpop.f32.mrf.mxu0
  %v5834 = vpop.f32.mrf.mxu0
  %v5835 = vadd.f32 %v5737, %v5834
  %v5836 = vpop.f32.mrf.mxu0
  %5837 = vdwg.mxu0
  %v5838 = vxor.u32 %v5800, 2147483648
  %v5839 = vxor.u32 %v5803, 2147483648
  %v5840 = vxor.u32 %v5808, 2147483648
  %v5841 = vxor.u32 %v5811, 2147483648
  %v5842 = vxor.u32 %v5816, 2147483648
  %v5843 = vxor.u32 %v5819, 2147483648
  %v5844 = vxor.u32 %v5824, 2147483648
  %v5845 = vxor.u32 %v5827, 2147483648
  %v5846 = vxor.u32 %v5832, 2147483648
  %v5847 = vxor.u32 %v5835, 2147483648
  %v5848 = vmul.f32 %v5838, 1.442695
  %v5849 = vpow.pop %v5848
  %v5850 = vmul.f32 %v5839, 1.442695
  %v5851 = vpow.pop %v5850
  %v5852 = vmul.f32 %v5840, 1.442695
  %v5853 = vpow.pop %v5852
  %v5854 = vmul.f32 %v5841, 1.442695
  %v5855 = vpow.pop %v5854
  %v5856 = vmul.f32 %v5842, 1.442695
  %v5857 = vpow.pop %v5856
  %v5858 = vmul.f32 %v5843, 1.442695
  %v5859 = vpow.pop %v5858
  %v5860 = vmul.f32 %v5844, 1.442695
  %v5861 = vpow.pop %v5860
  %v5862 = vmul.f32 %v5845, 1.442695
  %v5863 = vpow.pop %v5862
  %v5864 = vmul.f32 %v5846, 1.442695
  %v5865 = vpow.pop %v5864
  %v5866 = vmul.f32 %v5847, 1.442695
  %v5867 = vpow.pop %v5866
  %v5868 = vadd.f32 %v5849, 1.0
  %v5869 = vadd.f32 %v5851, 1.0
  %v5870 = vadd.f32 %v5853, 1.0
  %v5871 = vadd.f32 %v5855, 1.0
  %v5872 = vadd.f32 %v5857, 1.0
  %v5873 = vadd.f32 %v5859, 1.0
  %v5874 = vadd.f32 %v5861, 1.0
  %v5875 = vadd.f32 %v5863, 1.0
  %v5876 = vadd.f32 %v5865, 1.0
  %v5877 = vadd.f32 %v5867, 1.0
  %v5878 = vrcp.pop %v5868
  %v5879 = vmul.f32 1.0, %v5878
  %v5880 = vrcp.pop %v5869
  %v5881 = vmul.f32 1.0, %v5880
  %v5882 = vrcp.pop %v5870
  %v5883 = vmul.f32 1.0, %v5882
  %v5884 = vrcp.pop %v5871
  %v5885 = vmul.f32 1.0, %v5884
  %v5886 = vrcp.pop %v5872
  %v5887 = vmul.f32 1.0, %v5886
  %v5888 = vrcp.pop %v5873
  %v5889 = vmul.f32 1.0, %v5888
  %v5890 = vrcp.pop %v5874
  %v5891 = vmul.f32 1.0, %v5890
  %v5892 = vrcp.pop %v5875
  %v5893 = vmul.f32 1.0, %v5892
  %v5894 = vrcp.pop %v5876
  %v5895 = vmul.f32 1.0, %v5894
  %v5896 = vrcp.pop %v5877
  %v5897 = vmul.f32 1.0, %v5896
  %v5898 = vmul.f32 %v5800, %v5879
  %v5899 = vmul.f32 %v5803, %v5881
  %v5900 = vmul.f32 %v5808, %v5883
  %v5901 = vmul.f32 %v5811, %v5885
  %v5902 = vmul.f32 %v5816, %v5887
  %v5903 = vmul.f32 %v5819, %v5889
  %v5904 = vmul.f32 %v5824, %v5891
  %v5905 = vmul.f32 %v5827, %v5893
  %v5906 = vmul.f32 %v5832, %v5895
  %v5907 = vmul.f32 %v5835, %v5897
  %v5908 = vpack.c.bf16 %v5899, %v5898
  %v5909 = vpack.c.bf16 %v5901, %v5900
  %v5910 = vpack.c.bf16 %v5903, %v5902
  %v5911 = vpack.c.bf16 %v5905, %v5904
  %v5912 = vpack.c.bf16 %v5907, %v5906
  %v5913 = vld [vmem:[%s1 + $0x108] sm:$0xf]
  %v5914 = vld [vmem:[%s1 + $0x10c] sm:$0xf]
  %v5915 = vld [vmem:[%s1 + $0x110] sm:$0xf]
  %v5916 = vld [vmem:[%s1 + $0x114] sm:$0xf]
  %v5917 = vld [vmem:[%s1 + $0x118] sm:$0xf]
  %v5918 = vld [vmem:[%s1 + $0x11c] sm:$0xf]
  %v5919 = vld [vmem:[%s1 + $0x120] sm:$0xf]
  %v5920 = vld [vmem:[%s1 + $0x124] sm:$0xf]
  %v5921 = vld [vmem:[%s1 + $0x128] sm:$0xf]
  %v5922 = vld [vmem:[%s1 + $0x12c] sm:$0xf]
  %v5923 = vld [vmem:[%s1 + $0x130] sm:$0xf]
  %v5924 = vld [vmem:[%s1 + $0x134] sm:$0xf]
  %v5925 = vld [vmem:[%s1 + $0x138] sm:$0xf]
  %v5926 = vld [vmem:[%s1 + $0x13c] sm:$0xf]
  %v5927 = vld [vmem:[%s1 + $0x140] sm:$0xf]
  %v5928 = vld [vmem:[%s1 + $0x144] sm:$0xf]
  %v5929 = vld [vmem:[%s2 + $0x36] sm:$0x1]
  %v5930 = vlaneseq
  %v5931 = vshrl.u32 %v5930, 7
  %v5932 = vsub.s32 0, %v5931
  %v5933 = vrot.slane %v5929, %v5932
  %v5950 = vunpack.c.l.b16 %v5913
  %v5951 = vunpack.c.l.b16 %v5914
  %v5952 = vunpack.c.l.b16 %v5915
  %v5953 = vunpack.c.l.b16 %v5916
  %v5954 = vunpack.c.l.b16 %v5917
  %v5955 = vunpack.c.l.b16 %v5918
  %v5956 = vunpack.c.l.b16 %v5919
  %v5957 = vunpack.c.l.b16 %v5920
  %v5958 = vunpack.c.l.b16 %v5921
  %v5959 = vunpack.c.l.b16 %v5922
  %v5960 = vunpack.c.l.b16 %v5923
  %v5961 = vunpack.c.l.b16 %v5924
  %v5962 = vunpack.c.l.b16 %v5925
  %v5963 = vunpack.c.l.b16 %v5926
  %v5964 = vunpack.c.l.b16 %v5927
  %v5965 = vunpack.c.l.b16 %v5928
  %v5966 = vpack.c.b16 %v5951, %v5950
  %v5967 = vpack.c.b16 %v5953, %v5952
  %v5968 = vpack.c.b16 %v5955, %v5954
  %v5969 = vpack.c.b16 %v5957, %v5956
  %v5970 = vpack.c.b16 %v5959, %v5958
  %v5971 = vpack.c.b16 %v5961, %v5960
  %v5972 = vpack.c.b16 %v5963, %v5962
  %v5973 = vpack.c.b16 %v5965, %v5964
  %5982 = vmatprep.subr.bf16.mxu0 0
  %5983 = vmatpush1.bf16.msra.mxu0 %v5973
  %5984 = vmatprep.subr.bf16.mxu0 0
  %5985 = vmatpush1.bf16.msra.mxu0 %v5972
  %5986 = vmatprep.subr.bf16.mxu0 0
  %5987 = vmatpush1.bf16.msra.mxu0 %v5971
  %5988 = vmatprep.subr.bf16.mxu0 0
  %5989 = vmatpush1.bf16.msra.mxu0 %v5970
  %5990 = vmatprep.subr.bf16.mxu0 0
  %5991 = vmatpush1.bf16.msra.mxu0 %v5969
  %5992 = vmatprep.subr.bf16.mxu0 0
  %5993 = vmatpush1.bf16.msra.mxu0 %v5968
  %5994 = vmatprep.subr.bf16.mxu0 0
  %5995 = vmatpush1.bf16.msra.mxu0 %v5967
  %5996 = vmatprep.subr.bf16.mxu0 0
  %5997 = vmatpush1.bf16.msra.mxu0 %v5966
  %5998 = vmatprep.subr.bf16.mxu0 0
  %5999 = vmatpush2.bf16.msra.mxu0 0
  %6000 = vmatprep.subr.bf16.mxu0 0
  %6001 = vmatpush2.bf16.msra.mxu0 0
  %6002 = vmatprep.subr.bf16.mxu0 0
  %6003 = vmatpush2.bf16.msra.mxu0 0
  %6004 = vmatprep.subr.bf16.mxu0 0
  %6005 = vmatpush2.bf16.msra.mxu0 0
  %6006 = vmatprep.subr.bf16.mxu0 0
  %6007 = vmatpush2.bf16.msra.mxu0 0
  %6008 = vmatprep.subr.bf16.mxu0 0
  %6009 = vmatpush2.bf16.msra.mxu0 0
  %6010 = vmatprep.subr.bf16.mxu0 0
  %6011 = vmatpush2.bf16.msra.mxu0 0
  %6012 = vmatprep.subr.bf16.mxu0 0
  %6013 = vmatpush2.bf16.msra.mxu0 0
  %6014 = vmatprep.mubr.bf16.mxu0 0
  %6015 = vmatmul.mubr.bf16.gmra.mxu0 %v5908
  %v6016 = vpop.f32.mrf.mxu0
  %v6017 = vadd.f32 %v5933, %v6016
  %v6018 = vpop.f32.mrf.mxu0
  %v6019 = vpop.f32.mrf.mxu0
  %v6020 = vadd.f32 %v5933, %v6019
  %v6021 = vpop.f32.mrf.mxu0
  %6022 = vmatprep.mubr.bf16.mxu0 0
  %6023 = vmatmul.mubr.bf16.gmra.mxu0 %v5909
  %v6024 = vpop.f32.mrf.mxu0
  %v6025 = vadd.f32 %v5933, %v6024
  %v6026 = vpop.f32.mrf.mxu0
  %v6027 = vpop.f32.mrf.mxu0
  %v6028 = vadd.f32 %v5933, %v6027
  %v6029 = vpop.f32.mrf.mxu0
  %6030 = vmatprep.mubr.bf16.mxu0 0
  %6031 = vmatmul.mubr.bf16.gmra.mxu0 %v5910
  %v6032 = vpop.f32.mrf.mxu0
  %v6033 = vadd.f32 %v5933, %v6032
  %v6034 = vpop.f32.mrf.mxu0
  %v6035 = vpop.f32.mrf.mxu0
  %v6036 = vadd.f32 %v5933, %v6035
  %v6037 = vpop.f32.mrf.mxu0
  %6038 = vmatprep.mubr.bf16.mxu0 0
  %6039 = vmatmul.mubr.bf16.gmra.mxu0 %v5911
  %v6040 = vpop.f32.mrf.mxu0
  %v6041 = vadd.f32 %v5933, %v6040
  %v6042 = vpop.f32.mrf.mxu0
  %v6043 = vpop.f32.mrf.mxu0
  %v6044 = vadd.f32 %v5933, %v6043
  %v6045 = vpop.f32.mrf.mxu0
  %6046 = vmatprep.mubr.bf16.mxu0 0
  %6047 = vmatmul.mubr.bf16.gmra.mxu0 %v5912
  %v6048 = vpop.f32.mrf.mxu0
  %v6049 = vadd.f32 %v5933, %v6048
  %v6050 = vpop.f32.mrf.mxu0
  %v6051 = vpop.f32.mrf.mxu0
  %v6052 = vadd.f32 %v5933, %v6051
  %v6053 = vpop.f32.mrf.mxu0
  %6054 = vdwg.mxu0
  %v6055 = vadd.f32 %v5714, %v6017
  %v6056 = vadd.f32 %v5715, %v6020
  %v6057 = vadd.f32 %v5716, %v6025
  %v6058 = vadd.f32 %v5717, %v6028
  %v6059 = vadd.f32 %v5718, %v6033
  %v6060 = vadd.f32 %v5719, %v6036
  %v6061 = vadd.f32 %v5720, %v6041
  %v6062 = vadd.f32 %v5721, %v6044
  %v6063 = vadd.f32 %v5722, %v6049
  %v6064 = vadd.f32 %v5723, %v6052
  %v6065 = vld [vmem:[%s2 + $0x37] sm:$0x1]
  %v6066 = vld [vmem:[%s2 + $0x38] sm:$0x1]
  %v6067 = vsel %vm1781, %v6055, 0.0
  %6068 = vadd.xlane.f32.xlu0 %v6067
  %v6069 = vpop.xlane.xlu0 %6068
  %v6070 = vsel %vm1781, %v6056, 0.0
  %6071 = vadd.xlane.f32.xlu0 %v6070
  %v6072 = vpop.xlane.xlu0 %6071
  %v6073 = vsel %vm1781, %v6057, 0.0
  %6074 = vadd.xlane.f32.xlu0 %v6073
  %v6075 = vpop.xlane.xlu0 %6074
  %v6076 = vsel %vm1781, %v6058, 0.0
  %6077 = vadd.xlane.f32.xlu0 %v6076
  %v6078 = vpop.xlane.xlu0 %6077
  %v6079 = vsel %vm1781, %v6059, 0.0
  %6080 = vadd.xlane.f32.xlu0 %v6079
  %v6081 = vpop.xlane.xlu0 %6080
  %v6082 = vsel %vm1781, %v6060, 0.0
  %6083 = vadd.xlane.f32.xlu0 %v6082
  %v6084 = vpop.xlane.xlu0 %6083
  %v6085 = vsel %vm1781, %v6061, 0.0
  %6086 = vadd.xlane.f32.xlu0 %v6085
  %v6087 = vpop.xlane.xlu0 %6086
  %v6088 = vsel %vm1781, %v6062, 0.0
  %6089 = vadd.xlane.f32.xlu0 %v6088
  %v6090 = vpop.xlane.xlu0 %6089
  %v6091 = vsel %vm1781, %v6063, 0.0
  %6092 = vadd.xlane.f32.xlu0 %v6091
  %v6093 = vpop.xlane.xlu0 %6092
  %v6094 = vsel %vm1809, %v6064, 0.0
  %6095 = vadd.xlane.f32.xlu0 %v6094
  %v6096 = vpop.xlane.xlu0 %6095
  %v6097 = vmul.f32 %v6055, %v6055
  %v6098 = vmul.f32 %v6056, %v6056
  %v6099 = vmul.f32 %v6057, %v6057
  %v6100 = vmul.f32 %v6058, %v6058
  %v6101 = vmul.f32 %v6059, %v6059
  %v6102 = vmul.f32 %v6060, %v6060
  %v6103 = vmul.f32 %v6061, %v6061
  %v6104 = vmul.f32 %v6062, %v6062
  %v6105 = vmul.f32 %v6063, %v6063
  %v6106 = vmul.f32 %v6064, %v6064
  %v6107 = vsel %vm1781, %v6097, 0.0
  %6108 = vadd.xlane.f32.xlu0 %v6107
  %v6109 = vpop.xlane.xlu0 %6108
  %v6110 = vsel %vm1781, %v6098, 0.0
  %6111 = vadd.xlane.f32.xlu0 %v6110
  %v6112 = vpop.xlane.xlu0 %6111
  %v6113 = vsel %vm1781, %v6099, 0.0
  %6114 = vadd.xlane.f32.xlu0 %v6113
  %v6115 = vpop.xlane.xlu0 %6114
  %v6116 = vsel %vm1781, %v6100, 0.0
  %6117 = vadd.xlane.f32.xlu0 %v6116
  %v6118 = vpop.xlane.xlu0 %6117
  %v6119 = vsel %vm1781, %v6101, 0.0
  %6120 = vadd.xlane.f32.xlu0 %v6119
  %v6121 = vpop.xlane.xlu0 %6120
  %v6122 = vsel %vm1781, %v6102, 0.0
  %6123 = vadd.xlane.f32.xlu0 %v6122
  %v6124 = vpop.xlane.xlu0 %6123
  %v6125 = vsel %vm1781, %v6103, 0.0
  %6126 = vadd.xlane.f32.xlu0 %v6125
  %v6127 = vpop.xlane.xlu0 %6126
  %v6128 = vsel %vm1781, %v6104, 0.0
  %6129 = vadd.xlane.f32.xlu0 %v6128
  %v6130 = vpop.xlane.xlu0 %6129
  %v6131 = vsel %vm1781, %v6105, 0.0
  %6132 = vadd.xlane.f32.xlu0 %v6131
  %v6133 = vpop.xlane.xlu0 %6132
  %v6134 = vsel %vm1809, %v6106, 0.0
  %6135 = vadd.xlane.f32.xlu0 %v6134
  %v6136 = vpop.xlane.xlu0 %6135
  %v6137 = vmul.f32 %v6069, %v3770
  %v6138 = vmul.f32 %v6072, %v3770
  %v6139 = vmul.f32 %v6075, %v3770
  %v6140 = vmul.f32 %v6078, %v3770
  %v6141 = vmul.f32 %v6081, %v3770
  %v6142 = vmul.f32 %v6084, %v3770
  %v6143 = vmul.f32 %v6087, %v3770
  %v6144 = vmul.f32 %v6090, %v3770
  %v6145 = vmul.f32 %v6093, %v3770
  %v6146 = vmul.f32 %v6096, %v3770
  %v6147 = vmul.f32 %v6109, %v3770
  %v6148 = vmul.f32 %v6112, %v3770
  %v6149 = vmul.f32 %v6115, %v3770
  %v6150 = vmul.f32 %v6118, %v3770
  %v6151 = vmul.f32 %v6121, %v3770
  %v6152 = vmul.f32 %v6124, %v3770
  %v6153 = vmul.f32 %v6127, %v3770
  %v6154 = vmul.f32 %v6130, %v3770
  %v6155 = vmul.f32 %v6133, %v3770
  %v6156 = vmul.f32 %v6136, %v3770
  %v6157 = vmul.f32 %v6137, %v6137
  %v6158 = vmul.f32 %v6138, %v6138
  %v6159 = vmul.f32 %v6139, %v6139
  %v6160 = vmul.f32 %v6140, %v6140
  %v6161 = vmul.f32 %v6141, %v6141
  %v6162 = vmul.f32 %v6142, %v6142
  %v6163 = vmul.f32 %v6143, %v6143
  %v6164 = vmul.f32 %v6144, %v6144
  %v6165 = vmul.f32 %v6145, %v6145
  %v6166 = vmul.f32 %v6146, %v6146
  %v6167 = vsub.f32 %v6147, %v6157
  %v6168 = vsub.f32 %v6148, %v6158
  %v6169 = vsub.f32 %v6149, %v6159
  %v6170 = vsub.f32 %v6150, %v6160
  %v6171 = vsub.f32 %v6151, %v6161
  %v6172 = vsub.f32 %v6152, %v6162
  %v6173 = vsub.f32 %v6153, %v6163
  %v6174 = vsub.f32 %v6154, %v6164
  %v6175 = vsub.f32 %v6155, %v6165
  %v6176 = vsub.f32 %v6156, %v6166
  %v6177 = vmax.f32 %v6167, 0.0
  %v6178 = vmax.f32 %v6168, 0.0
  %v6179 = vmax.f32 %v6169, 0.0
  %v6180 = vmax.f32 %v6170, 0.0
  %v6181 = vmax.f32 %v6171, 0.0
  %v6182 = vmax.f32 %v6172, 0.0
  %v6183 = vmax.f32 %v6173, 0.0
  %v6184 = vmax.f32 %v6174, 0.0
  %v6185 = vmax.f32 %v6175, 0.0
  %v6186 = vmax.f32 %v6176, 0.0
  %v6187 = vsub.f32 %v6055, %v6137
  %v6188 = vsub.f32 %v6056, %v6138
  %v6189 = vsub.f32 %v6057, %v6139
  %v6190 = vsub.f32 %v6058, %v6140
  %v6191 = vsub.f32 %v6059, %v6141
  %v6192 = vsub.f32 %v6060, %v6142
  %v6193 = vsub.f32 %v6061, %v6143
  %v6194 = vsub.f32 %v6062, %v6144
  %v6195 = vsub.f32 %v6063, %v6145
  %v6196 = vsub.f32 %v6064, %v6146
  %v6197 = vadd.f32 %v6177, 1e-05
  %v6198 = vadd.f32 %v6178, 1e-05
  %v6199 = vadd.f32 %v6179, 1e-05
  %v6200 = vadd.f32 %v6180, 1e-05
  %v6201 = vadd.f32 %v6181, 1e-05
  %v6202 = vadd.f32 %v6182, 1e-05
  %v6203 = vadd.f32 %v6183, 1e-05
  %v6204 = vadd.f32 %v6184, 1e-05
  %v6205 = vadd.f32 %v6185, 1e-05
  %v6206 = vadd.f32 %v6186, 1e-05
  %v6207 = vrsqrt.pop %v6197
  %v6208 = vrsqrt.pop %v6198
  %v6209 = vrsqrt.pop %v6199
  %v6210 = vrsqrt.pop %v6200
  %v6211 = vrsqrt.pop %v6201
  %v6212 = vrsqrt.pop %v6202
  %v6213 = vrsqrt.pop %v6203
  %v6214 = vrsqrt.pop %v6204
  %v6215 = vrsqrt.pop %v6205
  %v6216 = vrsqrt.pop %v6206
  %v6217 = vmul.f32 %v6187, %v6207
  %v6218 = vmul.f32 %v6188, %v6208
  %v6219 = vmul.f32 %v6189, %v6209
  %v6220 = vmul.f32 %v6190, %v6210
  %v6221 = vmul.f32 %v6191, %v6211
  %v6222 = vmul.f32 %v6192, %v6212
  %v6223 = vmul.f32 %v6193, %v6213
  %v6224 = vmul.f32 %v6194, %v6214
  %v6225 = vmul.f32 %v6195, %v6215
  %v6226 = vmul.f32 %v6196, %v6216
  %v6227 = vlaneseq
  %v6228 = vshrl.u32 %v6227, 7
  %v6229 = vsub.s32 0, %v6228
  %v6230 = vrot.slane %v6065, %v6229
  %v6231 = vmul.f32 %v6217, %v6230
  %v6232 = vmul.f32 %v6218, %v6230
  %v6233 = vmul.f32 %v6219, %v6230
  %v6234 = vmul.f32 %v6220, %v6230
  %v6235 = vmul.f32 %v6221, %v6230
  %v6236 = vmul.f32 %v6222, %v6230
  %v6237 = vmul.f32 %v6223, %v6230
  %v6238 = vmul.f32 %v6224, %v6230
  %v6239 = vmul.f32 %v6225, %v6230
  %v6240 = vmul.f32 %v6226, %v6230
  %v6241 = vlaneseq
  %v6242 = vshrl.u32 %v6241, 7
  %v6243 = vsub.s32 0, %v6242
  %v6244 = vrot.slane %v6066, %v6243
  %v6245 = vadd.f32 %v6231, %v6244
  %v6246 = vadd.f32 %v6232, %v6244
  %v6247 = vadd.f32 %v6233, %v6244
  %v6248 = vadd.f32 %v6234, %v6244
  %v6249 = vadd.f32 %v6235, %v6244
  %v6250 = vadd.f32 %v6236, %v6244
  %v6251 = vadd.f32 %v6237, %v6244
  %v6252 = vadd.f32 %v6238, %v6244
  %v6253 = vadd.f32 %v6239, %v6244
  %v6254 = vadd.f32 %v6240, %v6244
  %6255 = vst.msk [vmem:[%s4] sm:$0xff] %vm1781, %v6245
  %6256 = vst.msk [vmem:[%s4 + $0x8] sm:$0xff] %vm1781, %v6246
  %6257 = vst.msk [vmem:[%s4 + $0x10] sm:$0xff] %vm1781, %v6247
  %6258 = vst.msk [vmem:[%s4 + $0x18] sm:$0xff] %vm1781, %v6248
  %6259 = vst.msk [vmem:[%s4 + $0x20] sm:$0xff] %vm1781, %v6249
  %6260 = vst.msk [vmem:[%s4 + $0x28] sm:$0xff] %vm1781, %v6250
  %6261 = vst.msk [vmem:[%s4 + $0x30] sm:$0xff] %vm1781, %v6251
  %6262 = vst.msk [vmem:[%s4 + $0x38] sm:$0xff] %vm1781, %v6252
  %6263 = vst.msk [vmem:[%s4 + $0x40] sm:$0xff] %vm1781, %v6253
  %6264 = vst.msk [vmem:[%s4 + $0x48] sm:$0xf] %vm1809, %v6254
  // Predicated region
  $region18: #{encoder_forward.1} parent=0 // pred_check
    _
  $region19: #{encoder_forward.1} parent=0 // pred_check_branch
    %6266 = sbr.rel (0) target = $region21
  $region20: #{encoder_forward.1} parent=0 // pred_region
    _
  $region21: #{encoder_forward.1} parent=0 // pred_fallthru
    _
  // Predicated region
  $region22: #{encoder_forward.1} parent=0 // pred_check
    _
  $region23: #{encoder_forward.1} parent=0 // pred_check_branch
    %6268 = sbr.rel (0) target = $region25
  $region24: #{encoder_forward.1} parent=0 // pred_region
    _
  $region25: #{encoder_forward.1} parent=0 // pred_fallthru
    _
  // Predicated region
  $region26: #{encoder_forward.1} parent=0 // pred_check
    _
  $region27: #{encoder_forward.1} parent=0 // pred_check_branch
    %6270 = sbr.rel (0) target = $region29
  $region28: #{encoder_forward.1} parent=0 // pred_region
    _
  $region29: #{encoder_forward.1} parent=0 // pred_fallthru
    _
  // Predicated region
  $region30: #{encoder_forward.1} parent=0 // pred_check
    _
  $region31: #{encoder_forward.1} parent=0 // pred_check_branch
    %6272 = sbr.rel (0) target = $region33
  $region32: #{encoder_forward.1} parent=0 // pred_region
    _
  $region33: #{encoder_forward.1} parent=0 // pred_fallthru
    _

</llo_original>
